<compile_context>
chip_gen: v5e
topology: v5e:2x2
jax: 0.10.0
libtpu: 0.0.40
codegen_flags: <defaults>
</compile_context>

<pallas_src>
import functools

import jax
import jax.numpy as jnp
from jax import lax
from jax.experimental import pallas as pl
from jax.experimental.pallas import tpu as pltpu

EMB = 16            # args.embedding_size
HALF = 32           # fc1_input_size // 2
HID = 64            # fc1/fc2 width
CAT = 5 * EMB       # 80 = 3E (item) + 2E (user)
CATP = 128          # lane-padded feature width; lane CAT carries the support label

# row layout of the packed (P64_ROWS, 64) parameter slab (8-aligned rows)
R_W1 = 0            # fc1.weight        (64, 64)
R_W2 = 64           # fc2.weight        (64, 64)
R_BCAT = 128        # [item_fc.b | user_fc.b]   (1, 64)
R_B1 = 136          # fc1.bias          (1, 64)
R_B2 = 144          # fc2.bias          (1, 64)
R_WO = 152          # linear_output.weight (1, 64)
R_MISC = 160        # [local_lr, linear_output.bias, 0, ...]
P64_ROWS = 168

# wide slab (2*HID, CATP): rows 0:64 block-diag [item|user] weight (zero-padded
# to 128 lanes), rows 64:128 f32 block-diagonal gradient mask (host-built).


def _matT(x, w):
    # x: (M, in) @ w(out, in).T -> (M, out)      (PyTorch Linear convention)
    return lax.dot_general(x, w, (((1,), (1,)), ((), ())),
                           preferred_element_type=jnp.float32)


def _matN(d, w):
    # d: (M, out) @ w(out, in) -> (M, in)        (backprop to inputs)
    return lax.dot_general(d, w, (((1,), (0,)), ((), ())),
                           preferred_element_type=jnp.float32)


def meta_kernel(wslab_ref, p64_ref, xs_ref, xq_ref, out_ref, *, tb, ns, nq):
    # ---- resident parameter slabs (static ref slices, zero cost) ------------
    wcat = wslab_ref[0:HID, :]                 # (64, 128) block-diag, cols>=80 zero
    bd_mask = wslab_ref[HID:2 * HID, :]        # (64, 128) f32 grad mask (host-built)
    w1 = p64_ref[R_W1:R_W1 + HID, :]           # (64, 64)
    w2 = p64_ref[R_W2:R_W2 + HID, :]           # (64, 64)
    bcat = p64_ref[R_BCAT:R_BCAT + 1, :]       # (1, 64)
    b1 = p64_ref[R_B1:R_B1 + 1, :]
    b2 = p64_ref[R_B2:R_B2 + 1, :]
    wo = p64_ref[R_WO:R_WO + 1, :]             # (1, 64)
    misc = p64_ref[R_MISC:R_MISC + 1, :]       # (1, 64)
    lr = misc[:, 0:1]                          # (1, 1)
    bo = misc[:, 1:2]                          # (1, 1)
    neg_lr = -lr                               # hoisted once

    xs = xs_ref[...]                           # (tb*ns, 128) features | label@80
    sy = xs[:, CAT:CAT + 1]                    # (tb*ns, 1) support labels

    # ---------- support forward: shared weights, M = tb*ns -------------------
    # wcat columns 80:128 are zero, so the label lane never leaks into x1.
    x1 = jnp.maximum(_matT(xs, wcat) + bcat, 0.0)    # (M, 64)
    h1 = jnp.maximum(_matT(x1, w1) + b1, 0.0)        # (M, 64)
    h2 = jnp.maximum(_matT(h1, w2) + b2, 0.0)        # (M, 64)
    y = jnp.sum(h2 * wo, axis=-1, keepdims=True) + bo  # (M, 1)

    # ---------- backward of per-task mean((y - sy)^2) -------------------------
    # Each task contributes exactly ns support rows, so the per-row factor of
    # the per-task MSE mean is 2/ns for every row in the block.
    # TODO(synk): variable-length support sets would need per-task valid counts
    # (scalar prefetch) and masking of dy.
    dy = (2.0 / ns) * (y - sy)                 # (M, 1)
    dh2 = dy * wo                              # (M, 64) broadcast, no K=1 matmul
    da2 = jnp.where(h2 > 0, dh2, 0.0)          # ReLU mask via post-activation
    dh1 = _matN(da2, w2)
    da1 = jnp.where(h1 > 0, dh1, 0.0)
    dx1 = _matN(da1, w1)
    dacat = jnp.where(x1 > 0, dx1, 0.0)

    # ---------- per-task weight/bias gradients (batched over tb tasks) -------
    xs_t = xs.reshape(tb, ns, CATP)
    x1_t = x1.reshape(tb, ns, HID)
    h1_t = h1.reshape(tb, ns, HID)
    da2_t = da2.reshape(tb, ns, HID)
    da1_t = da1.reshape(tb, ns, HID)
    dacat_t = dacat.reshape(tb, ns, HID)

    dw2 = jnp.einsum('tno,tnp->top', da2_t, h1_t,
                     preferred_element_type=jnp.float32)     # (tb, 64, 64)
    dw1 = jnp.einsum('tno,tnp->top', da1_t, x1_t,
                     preferred_element_type=jnp.float32)     # (tb, 64, 64)
    dwcat = jnp.einsum('tno,tnc->toc', dacat_t, xs_t,
                       preferred_element_type=jnp.float32)   # (tb, 64, 128)
    # block-diagonal mask (also zeroes the label/pad lanes 80:128) — mandatory
    # so cross-coupling weights that don't exist in the reference stay zero.
    dwcat = dwcat * bd_mask

    db2 = jnp.sum(da2_t, axis=1, keepdims=True)    # (tb, 1, 64)
    db1 = jnp.sum(da1_t, axis=1, keepdims=True)
    dbcat = jnp.sum(dacat_t, axis=1, keepdims=True)

    # ---------- per-task fast parameters --------------------------------------
    wcat_f = wcat + neg_lr * dwcat             # (tb, 64, 128)
    w1_f = w1 + neg_lr * dw1                   # (tb, 64, 64)
    w2_f = w2 + neg_lr * dw2
    bcat_f = bcat + neg_lr * dbcat             # (tb, 1, 64)
    b1_f = b1 + neg_lr * db1
    b2_f = b2 + neg_lr * db2
    # linear_output & embeddings intentionally NOT updated ('linear_out.weigh'
    # in local_updated_parameters does not match 'linear_output.weight').

    # ---------- query forward with per-task fast parameters -------------------
    xq = xq_ref[...].reshape(tb, nq, CATP)     # (tb, nq, 128), lanes 80:128 zero
    qx1 = jnp.maximum(jnp.einsum('tnc,toc->tno', xq, wcat_f,
                                 preferred_element_type=jnp.float32) + bcat_f, 0.0)
    qh1 = jnp.maximum(jnp.einsum('tno,tpo->tnp', qx1, w1_f,
                                 preferred_element_type=jnp.float32) + b1_f, 0.0)
    qh2 = jnp.maximum(jnp.einsum('tnp,tqp->tnq', qh1, w2_f,
                                 preferred_element_type=jnp.float32) + b2_f, 0.0)

    # lane-dense (1, tb*nq) output: single small matmul wo @ qh2_flat.T, no
    # masked (N,1) partial stores.  Column j = task (j//nq), query row (j%nq).
    qh2_flat = qh2.reshape(tb * nq, HID)
    out_ref[...] = lax.dot_general(wo, qh2_flat, (((1,), (1,)), ((), ())),
                                   preferred_element_type=jnp.float32) + bo


# ------------------------- host-side packing / glue --------------------------
def make_params(key):
    """Deterministic synthetic parameters (shapes from the PyTorch module)."""
    ks = jax.random.split(key, 15)
    s = 0.1
    p = {}
    p["author_emb"] = jax.random.normal(ks[0], (28678, EMB), jnp.float32) * s
    p["publisher_emb"] = jax.random.normal(ks[1], (5897, EMB), jnp.float32) * s
    p["year_emb"] = jax.random.normal(ks[2], (1170, EMB), jnp.float32) * s
    p["location_emb"] = jax.random.normal(ks[3], (58, EMB), jnp.float32) * s
    p["age_emb"] = jax.random.normal(ks[4], (2, EMB), jnp.float32) * s
    p["item_fc_w"] = jax.random.normal(ks[5], (HALF, 3 * EMB), jnp.float32) * s
    p["item_fc_b"] = jax.random.normal(ks[6], (1, HALF), jnp.float32) * s
    p["user_fc_w"] = jax.random.normal(ks[7], (HALF, 2 * EMB), jnp.float32) * s
    p["user_fc_b"] = jax.random.normal(ks[8], (1, HALF), jnp.float32) * s
    p["fc1_w"] = jax.random.normal(ks[9], (HID, HID), jnp.float32) * s
    p["fc1_b"] = jax.random.normal(ks[10], (1, HID), jnp.float32) * s
    p["fc2_w"] = jax.random.normal(ks[11], (HID, HID), jnp.float32) * s
    p["fc2_b"] = jax.random.normal(ks[12], (1, HID), jnp.float32) * s
    p["out_w"] = jax.random.normal(ks[13], (1, HID), jnp.float32) * s
    p["out_b"] = jax.random.normal(ks[14], (1, 1), jnp.float32) * s
    return p


def embed(params, x):
    """x: (N, 5) int32 -> (item_emb (N,3E), user_emb (N,2E)).  Glue in JAX."""
    author = jnp.take(params["author_emb"], x[:, 0], axis=0)
    publisher = jnp.take(params["publisher_emb"], x[:, 1], axis=0)
    year = jnp.take(params["year_emb"], x[:, 2], axis=0)
    location = jnp.take(params["location_emb"], x[:, 3], axis=0)
    age = jnp.take(params["age_emb"], x[:, 4], axis=0)
    item_emb = jnp.concatenate([author, publisher, year], axis=1)
    user_emb = jnp.concatenate([location, age], axis=1)
    return item_emb, user_emb


def pack_params(params, local_lr):
    """Pack the 10 tiny MLP tensors + lr + grad-mask into 2 VMEM-resident slabs."""
    f32 = jnp.float32

    wslab = jnp.zeros((2 * HID, CATP), f32)
    wslab = wslab.at[:HALF, : 3 * EMB].set(params["item_fc_w"])
    wslab = wslab.at[HALF:HID, 3 * EMB:CAT].set(params["user_fc_w"])
    # block-diagonal gradient mask precomputed on the host (rows 64:128);
    # zero on the label/pad lanes 80:128 as well.
    mask = jnp.zeros((HID, CATP), f32)
    mask = mask.at[:HALF, : 3 * EMB].set(1.0)
    mask = mask.at[HALF:, 3 * EMB:CAT].set(1.0)
    wslab = wslab.at[HID:, :].set(mask)

    bcat = jnp.concatenate([params["item_fc_b"], params["user_fc_b"]], axis=1)
    p64 = jnp.zeros((P64_ROWS, HID), f32)
    p64 = p64.at[R_W1:R_W1 + HID, :].set(params["fc1_w"])
    p64 = p64.at[R_W2:R_W2 + HID, :].set(params["fc2_w"])
    p64 = p64.at[R_BCAT, :].set(bcat[0])
    p64 = p64.at[R_B1, :].set(params["fc1_b"][0])
    p64 = p64.at[R_B2, :].set(params["fc2_b"][0])
    p64 = p64.at[R_WO, :].set(params["out_w"][0])
    p64 = p64.at[R_MISC, 0].set(jnp.asarray(local_lr, f32))
    p64 = p64.at[R_MISC, 1].set(params["out_b"][0, 0].astype(f32))
    return wslab, p64


@functools.partial(jax.jit, static_argnames=("tb",))
def meta_forward_batch(params, local_lr, supp_xs, supp_ys, qry_xs, *, tb=16):
    """T independent MAML tasks, Tb tasks per grid step, one pallas_call."""
    T, Ns, _ = supp_xs.shape
    Nq = qry_xs.shape[1]

    si, su = embed(params, supp_xs.reshape(T * Ns, 5))
    supp_cat = jnp.concatenate([si, su], axis=1).reshape(T, Ns, CAT)
    qi, qu = embed(params, qry_xs.reshape(T * Nq, 5))
    qry_cat = jnp.concatenate([qi, qu], axis=1).reshape(T, Nq, CAT)

    # lane-dense 128-wide slabs; support label folded into lane CAT (=80).
    supp_slab = jnp.zeros((T, Ns, CATP), jnp.float32)
    supp_slab = supp_slab.at[:, :, :CAT].set(supp_cat)
    supp_slab = supp_slab.at[:, :, CAT:CAT + 1].set(supp_ys.astype(jnp.float32))
    qry_slab = jnp.zeros((T, Nq, CATP), jnp.float32)
    qry_slab = qry_slab.at[:, :, :CAT].set(qry_cat)

    # pad the task axis to a multiple of the per-block task count
    tbe = max(1, min(tb, T))
    Tg = -(-T // tbe)
    Tp = Tg * tbe
    if Tp != T:
        pad = Tp - T
        supp_slab = jnp.concatenate(
            [supp_slab, jnp.zeros((pad, Ns, CATP), jnp.float32)], axis=0)
        qry_slab = jnp.concatenate(
            [qry_slab, jnp.zeros((pad, Nq, CATP), jnp.float32)], axis=0)
    supp_slab = supp_slab.reshape(Tg, tbe * Ns, CATP)
    qry_slab = qry_slab.reshape(Tg, tbe * Nq, CATP)

    wslab, p64 = pack_params(params, local_lr)

    flops_task = (2 * Ns * (CATP * HID + 2 * HID * HID + HID)     # support fwd
                  + 2 * Ns * (2 * HID * HID)                       # act backprop
                  + 2 * Ns * (2 * HID * HID + CATP * HID)          # weight grads
                  + 2 * Nq * (CATP * HID + 2 * HID * HID + HID))   # query fwd
    bytes_acc = 4 * (supp_slab.size + qry_slab.size + wslab.size + p64.size
                     + Tp * Nq)
    cost = pl.CostEstimate(flops=int(Tp * flops_task), transcendentals=0,
                           bytes_accessed=int(bytes_acc))

    out = pl.pallas_call(
        functools.partial(meta_kernel, tb=tbe, ns=Ns, nq=Nq),
        out_shape=jax.ShapeDtypeStruct((Tg, 1, tbe * Nq), jnp.float32),
        grid=(Tg,),
        in_specs=[
            # weight slabs: constant block index -> resident in VMEM across steps
            pl.BlockSpec((2 * HID, CATP), lambda g: (0, 0)),
            pl.BlockSpec((P64_ROWS, HID), lambda g: (0, 0)),
            # per-block (Tb tasks) data slabs, leading block dim squeezed out
            pl.BlockSpec((None, tbe * Ns, CATP), lambda g: (g, 0, 0)),
            pl.BlockSpec((None, tbe * Nq, CATP), lambda g: (g, 0, 0)),
        ],
        out_specs=pl.BlockSpec((None, 1, tbe * Nq), lambda g: (g, 0, 0)),
        compiler_params=pltpu.CompilerParams(
            dimension_semantics=("parallel",)),   # >=2 blocks -> both v7x TCs fed
        cost_estimate=cost,
    )(wslab, p64, supp_slab, qry_slab)

    # lane index within a block is t*Nq + n (row-major), so a plain row-major
    # reshape restores exact (task, query) ordering.
    return out.reshape(Tp, Nq, 1)[:T]


def meta_forward(params, local_lr, supp_x, supp_y, qry_x):
    """MetaLearner.forward: one MAML inner step on supp, predict on qry."""
    out = meta_forward_batch(params, local_lr,
                             supp_x[None], supp_y[None], qry_x[None])
    return out[0]


# ------------------------- pure-JAX reference --------------------------------
def _ref_mlp(p, item_emb, user_emb):
    def lin(x, w, b):
        return x @ w.T + b
    hi = jax.nn.relu(lin(item_emb, p["item_fc_w"], p["item_fc_b"]))
    hu = jax.nn.relu(lin(user_emb, p["user_fc_w"], p["user_fc_b"]))
    x = jnp.concatenate([hi, hu], axis=1)
    x = jax.nn.relu(lin(x, p["fc1_w"], p["fc1_b"]))
    x = jax.nn.relu(lin(x, p["fc2_w"], p["fc2_b"]))
    return lin(x, p["out_w"], p["out_b"])


def meta_forward_ref(params, local_lr, supp_x, supp_y, qry_x):
    supp_item, supp_user = embed(params, supp_x)
    qry_item, qry_user = embed(params, qry_x)

    updated = ["item_fc_w", "item_fc_b", "user_fc_w", "user_fc_b",
               "fc1_w", "fc1_b", "fc2_w", "fc2_b"]
    inner = {k: params[k] for k in updated + ["out_w", "out_b"]}

    def loss_fn(pp):
        y = _ref_mlp(pp, supp_item, supp_user)
        return jnp.mean((y - supp_y) ** 2)

    grads = jax.grad(loss_fn)(inner)
    fast = dict(inner)
    for k in updated:
        fast[k] = inner[k] - local_lr * grads[k]
    return _ref_mlp(fast, qry_item, qry_user)


# ------------------------------------------------------------------------------
if __name__ == "__main__":
    key = jax.random.PRNGKey(0)
    kp, kd = jax.random.split(key)
    params = make_params(kp)

    # 32 tasks, 16 per grid step -> 2 grid blocks (loads both v7x TCs),
    # M = 16*24 = 384 support rows per step, 16*8 = 128-lane output row.
    T, Ns, Nq = 32, 24, 8
    keys = jax.random.split(kd, 2 * T + 1)

    def make_x(k, n):
        k1, k2, k3, k4, k5 = jax.random.split(k, 5)
        return jnp.stack([
            jax.random.randint(k1, (n,), 0, 28678),
            jax.random.randint(k2, (n,), 0, 5897),
            jax.random.randint(k3, (n,), 0, 1170),
            jax.random.randint(k4, (n,), 0, 58),
            jax.random.randint(k5, (n,), 0, 2),
        ], axis=1).astype(jnp.int32)

    supp_xs = jnp.stack([make_x(keys[i], Ns) for i in range(T)])
    qry_xs = jnp.stack([make_x(keys[T + i], Nq) for i in range(T)])
    supp_ys = jax.random.normal(keys[2 * T], (T, Ns, 1), jnp.float32)
    local_lr = jnp.float32(0.05)

    # batched (16 tasks per grid step, parallel grid axis)
    out_batch = jax.block_until_ready(
        meta_forward_batch(params, local_lr, supp_xs, supp_ys, qry_xs))
    assert out_batch.shape == (T, Nq, 1)

    ref_fn = jax.jit(meta_forward_ref)
    ref_batch = jnp.stack([
        ref_fn(params, local_lr, supp_xs[t], supp_ys[t], qry_xs[t])
        for t in range(T)])
    assert jnp.allclose(out_batch, ref_batch, atol=2e-4, rtol=2e-4), \
        (out_batch, ref_batch)

    # single-task path (matches MetaLearner.forward signature)
    out1 = jax.block_until_ready(
        meta_forward(params, local_lr, supp_xs[0], supp_ys[0], qry_xs[0]))
    assert out1.shape == (Nq, 1)
    assert jnp.allclose(out1, ref_batch[0], atol=2e-4, rtol=2e-4), \
        (out1, ref_batch[0])

    # TODO(synk): Adam meta-optimizer steps (global_update / optim_innerLR) are
    # training-loop logic outside the module's forward and are not ported.
    print("KERNEL_OK")
</pallas_src>

<mosaic_0001>
module attributes {stable_mosaic.version = 11 : i64} {
  func.func @meta_kernel(%arg0: i32, %arg1: memref<128x128xf32, #tpu.memory_space<vmem>>, %arg2: memref<168x64xf32, #tpu.memory_space<vmem>>, %arg3: memref<1x384x128xf32, #tpu.memory_space<vmem>>, %arg4: memref<1x128x128xf32, #tpu.memory_space<vmem>>, %arg5: memref<1x1x128xf32, #tpu.memory_space<vmem>>) attributes {dimension_semantics = [#tpu.dimension_semantics<parallel>], iteration_bounds = array<i64: 2>, scalar_prefetch = 0 : i64, scratch_operands = 0 : i64, tpu.core_type = #tpu.core_type<tc>, window_params = [{pipeline_mode = #tpu.pipeline_mode<synchronous>, transform_indices = @transform_0, window_bounds = array<i64: 128, 128>}, {pipeline_mode = #tpu.pipeline_mode<synchronous>, transform_indices = @transform_1, window_bounds = array<i64: 168, 64>}, {transform_indices = @transform_2, window_bounds = array<i64: 1, 384, 128>}, {transform_indices = @transform_3, window_bounds = array<i64: 1, 128, 128>}, {transform_indices = @transform_4, window_bounds = array<i64: 1, 1, 128>}]} {
    %c0 = arith.constant 0 : index
    %c0_0 = arith.constant 0 : index
    %0 = vector.load %arg1[%c0, %c0_0] : memref<128x128xf32, #tpu.memory_space<vmem>>, vector<64x128xf32>
    %c64 = arith.constant 64 : index
    %c0_1 = arith.constant 0 : index
    %1 = vector.load %arg1[%c64, %c0_1] : memref<128x128xf32, #tpu.memory_space<vmem>>, vector<64x128xf32>
    %c0_2 = arith.constant 0 : index
    %c0_3 = arith.constant 0 : index
    %2 = vector.load %arg2[%c0_2, %c0_3] : memref<168x64xf32, #tpu.memory_space<vmem>>, vector<64x64xf32>
    %c64_4 = arith.constant 64 : index
    %c0_5 = arith.constant 0 : index
    %3 = vector.load %arg2[%c64_4, %c0_5] : memref<168x64xf32, #tpu.memory_space<vmem>>, vector<64x64xf32>
    %c128 = arith.constant 128 : index
    %c0_6 = arith.constant 0 : index
    %4 = vector.load %arg2[%c128, %c0_6] : memref<168x64xf32, #tpu.memory_space<vmem>>, vector<1x64xf32>
    %c136 = arith.constant 136 : index
    %c0_7 = arith.constant 0 : index
    %5 = vector.load %arg2[%c136, %c0_7] : memref<168x64xf32, #tpu.memory_space<vmem>>, vector<1x64xf32>
    %c144 = arith.constant 144 : index
    %c0_8 = arith.constant 0 : index
    %6 = vector.load %arg2[%c144, %c0_8] : memref<168x64xf32, #tpu.memory_space<vmem>>, vector<1x64xf32>
    %c152 = arith.constant 152 : index
    %c0_9 = arith.constant 0 : index
    %7 = vector.load %arg2[%c152, %c0_9] : memref<168x64xf32, #tpu.memory_space<vmem>>, vector<1x64xf32>
    %c160 = arith.constant 160 : index
    %c0_10 = arith.constant 0 : index
    %8 = vector.load %arg2[%c160, %c0_10] : memref<168x64xf32, #tpu.memory_space<vmem>>, vector<1x64xf32>
    %9 = vector.extract_strided_slice %8 {offsets = [0, 0], sizes = [1, 1], strides = [1, 1]} : vector<1x64xf32> to vector<1x1xf32>
    %10 = vector.extract_strided_slice %8 {offsets = [0, 1], sizes = [1, 1], strides = [1, 1]} : vector<1x64xf32> to vector<1x1xf32>
    %cst = arith.constant 0.000000e+00 : f32
    %11 = vector.broadcast %cst : f32 to vector<1x1xf32>
    %12 = arith.subf %11, %9 : vector<1x1xf32>
    %c0_11 = arith.constant 0 : index
    %c0_12 = arith.constant 0 : index
    %c0_13 = arith.constant 0 : index
    %13 = vector.load %arg3[%c0_11, %c0_12, %c0_13] : memref<1x384x128xf32, #tpu.memory_space<vmem>>, vector<1x384x128xf32>
    %14 = vector.shape_cast %13 : vector<1x384x128xf32> to vector<384x128xf32>
    %15 = vector.extract_strided_slice %14 {offsets = [0, 80], sizes = [384, 1], strides = [1, 1]} : vector<384x128xf32> to vector<384x1xf32>
    %cst_14 = arith.constant dense<0.000000e+00> : vector<384x64xf32>
    %16 = tpu.matmul %14, %0, %cst_14 {dimension_numbers = #tpu.dot_dimension_numbers<[1], [1], [0], [0], [0, 0, 1, 0], [], []>} : vector<384x128xf32>, vector<64x128xf32>, vector<384x64xf32> -> vector<384x64xf32>
    %17 = vector.broadcast %4 : vector<1x64xf32> to vector<384x64xf32>
    %18 = arith.addf %16, %17 : vector<384x64xf32>
    %cst_15 = arith.constant 0.000000e+00 : f32
    %19 = vector.broadcast %cst_15 : f32 to vector<384x64xf32>
    %20 = arith.maximumf %18, %19 : vector<384x64xf32>
    %cst_16 = arith.constant dense<0.000000e+00> : vector<384x64xf32>
    %21 = tpu.matmul %20, %2, %cst_16 {dimension_numbers = #tpu.dot_dimension_numbers<[1], [1], [0], [0], [0, 0, 1, 0], [], []>} : vector<384x64xf32>, vector<64x64xf32>, vector<384x64xf32> -> vector<384x64xf32>
    %22 = vector.broadcast %5 : vector<1x64xf32> to vector<384x64xf32>
    %23 = arith.addf %21, %22 : vector<384x64xf32>
    %cst_17 = arith.constant 0.000000e+00 : f32
    %24 = vector.broadcast %cst_17 : f32 to vector<384x64xf32>
    %25 = arith.maximumf %23, %24 : vector<384x64xf32>
    %cst_18 = arith.constant dense<0.000000e+00> : vector<384x64xf32>
    %26 = tpu.matmul %25, %3, %cst_18 {dimension_numbers = #tpu.dot_dimension_numbers<[1], [1], [0], [0], [0, 0, 1, 0], [], []>} : vector<384x64xf32>, vector<64x64xf32>, vector<384x64xf32> -> vector<384x64xf32>
    %27 = vector.broadcast %6 : vector<1x64xf32> to vector<384x64xf32>
    %28 = arith.addf %26, %27 : vector<384x64xf32>
    %cst_19 = arith.constant 0.000000e+00 : f32
    %29 = vector.broadcast %cst_19 : f32 to vector<384x64xf32>
    %30 = arith.maximumf %28, %29 : vector<384x64xf32>
    %31 = vector.broadcast %7 : vector<1x64xf32> to vector<384x64xf32>
    %32 = arith.mulf %30, %31 : vector<384x64xf32>
    %cst_20 = arith.constant dense<0.000000e+00> : vector<384xf32>
    %33 = vector.multi_reduction <add>, %32, %cst_20 [1] : vector<384x64xf32> to vector<384xf32>
    %34 = vector.shape_cast %33 : vector<384xf32> to vector<384x1xf32>
    %35 = vector.broadcast %10 : vector<1x1xf32> to vector<384x1xf32>
    %36 = arith.addf %34, %35 : vector<384x1xf32>
    %37 = arith.subf %36, %15 : vector<384x1xf32>
    %cst_21 = arith.constant 0.0833333358 : f32
    %38 = vector.broadcast %cst_21 : f32 to vector<384x1xf32>
    %39 = arith.mulf %38, %37 : vector<384x1xf32>
    %40 = vector.broadcast %39 : vector<384x1xf32> to vector<384x64xf32>
    %41 = vector.broadcast %7 : vector<1x64xf32> to vector<384x64xf32>
    %42 = arith.mulf %40, %41 : vector<384x64xf32>
    %cst_22 = arith.constant 0.000000e+00 : f32
    %43 = vector.broadcast %cst_22 : f32 to vector<384x64xf32>
    %44 = arith.cmpf ogt, %30, %43 : vector<384x64xf32>
    %cst_23 = arith.constant 0.000000e+00 : f32
    %45 = vector.broadcast %cst_23 : f32 to vector<384x64xf32>
    %46 = arith.select %44, %42, %45 : vector<384x64xi1>, vector<384x64xf32>
    %cst_24 = arith.constant dense<0.000000e+00> : vector<384x64xf32>
    %47 = tpu.matmul %46, %3, %cst_24 {dimension_numbers = #tpu.dot_dimension_numbers<[1], [0], [0], [1], [0, 0, 1, 1], [], []>} : vector<384x64xf32>, vector<64x64xf32>, vector<384x64xf32> -> vector<384x64xf32>
    %cst_25 = arith.constant 0.000000e+00 : f32
    %48 = vector.broadcast %cst_25 : f32 to vector<384x64xf32>
    %49 = arith.cmpf ogt, %25, %48 : vector<384x64xf32>
    %cst_26 = arith.constant 0.000000e+00 : f32
    %50 = vector.broadcast %cst_26 : f32 to vector<384x64xf32>
    %51 = arith.select %49, %47, %50 : vector<384x64xi1>, vector<384x64xf32>
    %cst_27 = arith.constant dense<0.000000e+00> : vector<384x64xf32>
    %52 = tpu.matmul %51, %2, %cst_27 {dimension_numbers = #tpu.dot_dimension_numbers<[1], [0], [0], [1], [0, 0, 1, 1], [], []>} : vector<384x64xf32>, vector<64x64xf32>, vector<384x64xf32> -> vector<384x64xf32>
    %cst_28 = arith.constant 0.000000e+00 : f32
    %53 = vector.broadcast %cst_28 : f32 to vector<384x64xf32>
    %54 = arith.cmpf ogt, %20, %53 : vector<384x64xf32>
    %cst_29 = arith.constant 0.000000e+00 : f32
    %55 = vector.broadcast %cst_29 : f32 to vector<384x64xf32>
    %56 = arith.select %54, %52, %55 : vector<384x64xi1>, vector<384x64xf32>
    %57 = vector.shape_cast %14 : vector<384x128xf32> to vector<16x24x128xf32>
    %58 = vector.shape_cast %20 : vector<384x64xf32> to vector<16x24x64xf32>
    %59 = vector.shape_cast %25 : vector<384x64xf32> to vector<16x24x64xf32>
    %60 = vector.shape_cast %46 : vector<384x64xf32> to vector<16x24x64xf32>
    %61 = vector.shape_cast %51 : vector<384x64xf32> to vector<16x24x64xf32>
    %62 = vector.shape_cast %56 : vector<384x64xf32> to vector<16x24x64xf32>
    "tpu.trace_start"() <{level = 10 : i32, message = "tno,tnp->top"}> : () -> ()
    %cst_30 = arith.constant dense<0.000000e+00> : vector<16x64x64xf32>
    %63 = tpu.matmul %60, %59, %cst_30 {dimension_numbers = #tpu.dot_dimension_numbers<[1], [1], [2], [2], [0, 0, 0, 2, 1, 2], [0], [0]>} : vector<16x24x64xf32>, vector<16x24x64xf32>, vector<16x64x64xf32> -> vector<16x64x64xf32>
    %cst_31 = arith.constant dense<0.000000e+00> : vector<16x64x64xf32>
    %64 = tpu.matmul %61, %58, %cst_31 {dimension_numbers = #tpu.dot_dimension_numbers<[1], [1], [2], [2], [0, 0, 0, 2, 1, 2], [0], [0]>} : vector<16x24x64xf32>, vector<16x24x64xf32>, vector<16x64x64xf32> -> vector<16x64x64xf32>
    "tpu.trace_stop"() : () -> ()
    "tpu.trace_start"() <{level = 10 : i32, message = "tno,tnc->toc"}> : () -> ()
    %cst_32 = arith.constant dense<0.000000e+00> : vector<16x64x128xf32>
    %65 = tpu.matmul %62, %57, %cst_32 {dimension_numbers = #tpu.dot_dimension_numbers<[1], [1], [2], [2], [0, 0, 0, 2, 1, 2], [0], [0]>} : vector<16x24x64xf32>, vector<16x24x128xf32>, vector<16x64x128xf32> -> vector<16x64x128xf32>
    "tpu.trace_stop"() : () -> ()
    %66 = vector.shape_cast %1 : vector<64x128xf32> to vector<1x64x128xf32>
    %67 = vector.broadcast %66 : vector<1x64x128xf32> to vector<16x64x128xf32>
    %68 = arith.mulf %65, %67 : vector<16x64x128xf32>
    %cst_33 = arith.constant dense<0.000000e+00> : vector<16x64xf32>
    %69 = vector.multi_reduction <add>, %60, %cst_33 [1] : vector<16x24x64xf32> to vector<16x64xf32>
    %70 = vector.shape_cast %69 : vector<16x64xf32> to vector<16x1x64xf32>
    %cst_34 = arith.constant dense<0.000000e+00> : vector<16x64xf32>
    %71 = vector.multi_reduction <add>, %61, %cst_34 [1] : vector<16x24x64xf32> to vector<16x64xf32>
    %72 = vector.shape_cast %71 : vector<16x64xf32> to vector<16x1x64xf32>
    %cst_35 = arith.constant dense<0.000000e+00> : vector<16x64xf32>
    %73 = vector.multi_reduction <add>, %62, %cst_35 [1] : vector<16x24x64xf32> to vector<16x64xf32>
    %74 = vector.shape_cast %73 : vector<16x64xf32> to vector<16x1x64xf32>
    %75 = vector.shape_cast %12 : vector<1x1xf32> to vector<1x1x1xf32>
    %76 = vector.broadcast %75 : vector<1x1x1xf32> to vector<16x64x128xf32>
    %77 = arith.mulf %76, %68 : vector<16x64x128xf32>
    %78 = vector.shape_cast %0 : vector<64x128xf32> to vector<1x64x128xf32>
    %79 = vector.broadcast %78 : vector<1x64x128xf32> to vector<16x64x128xf32>
    %80 = arith.addf %79, %77 : vector<16x64x128xf32>
    %81 = vector.shape_cast %12 : vector<1x1xf32> to vector<1x1x1xf32>
    %82 = vector.broadcast %81 : vector<1x1x1xf32> to vector<16x64x64xf32>
    %83 = arith.mulf %82, %64 : vector<16x64x64xf32>
    %84 = vector.shape_cast %2 : vector<64x64xf32> to vector<1x64x64xf32>
    %85 = vector.broadcast %84 : vector<1x64x64xf32> to vector<16x64x64xf32>
    %86 = arith.addf %85, %83 : vector<16x64x64xf32>
    %87 = vector.shape_cast %12 : vector<1x1xf32> to vector<1x1x1xf32>
    %88 = vector.broadcast %87 : vector<1x1x1xf32> to vector<16x64x64xf32>
    %89 = arith.mulf %88, %63 : vector<16x64x64xf32>
    %90 = vector.shape_cast %3 : vector<64x64xf32> to vector<1x64x64xf32>
    %91 = vector.broadcast %90 : vector<1x64x64xf32> to vector<16x64x64xf32>
    %92 = arith.addf %91, %89 : vector<16x64x64xf32>
    %93 = vector.shape_cast %12 : vector<1x1xf32> to vector<1x1x1xf32>
    %94 = vector.broadcast %93 : vector<1x1x1xf32> to vector<16x1x64xf32>
    %95 = arith.mulf %94, %74 : vector<16x1x64xf32>
    %96 = vector.shape_cast %4 : vector<1x64xf32> to vector<1x1x64xf32>
    %97 = vector.broadcast %96 : vector<1x1x64xf32> to vector<16x1x64xf32>
    %98 = arith.addf %97, %95 : vector<16x1x64xf32>
    %99 = vector.shape_cast %12 : vector<1x1xf32> to vector<1x1x1xf32>
    %100 = vector.broadcast %99 : vector<1x1x1xf32> to vector<16x1x64xf32>
    %101 = arith.mulf %100, %72 : vector<16x1x64xf32>
    %102 = vector.shape_cast %5 : vector<1x64xf32> to vector<1x1x64xf32>
    %103 = vector.broadcast %102 : vector<1x1x64xf32> to vector<16x1x64xf32>
    %104 = arith.addf %103, %101 : vector<16x1x64xf32>
    %105 = vector.shape_cast %12 : vector<1x1xf32> to vector<1x1x1xf32>
    %106 = vector.broadcast %105 : vector<1x1x1xf32> to vector<16x1x64xf32>
    %107 = arith.mulf %106, %70 : vector<16x1x64xf32>
    %108 = vector.shape_cast %6 : vector<1x64xf32> to vector<1x1x64xf32>
    %109 = vector.broadcast %108 : vector<1x1x64xf32> to vector<16x1x64xf32>
    %110 = arith.addf %109, %107 : vector<16x1x64xf32>
    %c0_36 = arith.constant 0 : index
    %c0_37 = arith.constant 0 : index
    %c0_38 = arith.constant 0 : index
    %111 = vector.load %arg4[%c0_36, %c0_37, %c0_38] : memref<1x128x128xf32, #tpu.memory_space<vmem>>, vector<1x128x128xf32>
    %112 = vector.shape_cast %111 : vector<1x128x128xf32> to vector<128x128xf32>
    %113 = vector.shape_cast %112 : vector<128x128xf32> to vector<16x8x128xf32>
    "tpu.trace_start"() <{level = 10 : i32, message = "tnc,toc->tno"}> : () -> ()
    %cst_39 = arith.constant dense<0.000000e+00> : vector<16x8x64xf32>
    %114 = tpu.matmul %113, %80, %cst_39 {dimension_numbers = #tpu.dot_dimension_numbers<[2], [2], [1], [1], [0, 0, 0, 1, 1, 1], [0], [0]>} : vector<16x8x128xf32>, vector<16x64x128xf32>, vector<16x8x64xf32> -> vector<16x8x64xf32>
    "tpu.trace_stop"() : () -> ()
    %115 = vector.broadcast %98 : vector<16x1x64xf32> to vector<16x8x64xf32>
    %116 = arith.addf %114, %115 : vector<16x8x64xf32>
    %cst_40 = arith.constant 0.000000e+00 : f32
    %117 = vector.broadcast %cst_40 : f32 to vector<16x8x64xf32>
    %118 = arith.maximumf %116, %117 : vector<16x8x64xf32>
    "tpu.trace_start"() <{level = 10 : i32, message = "tno,tpo->tnp"}> : () -> ()
    %cst_41 = arith.constant dense<0.000000e+00> : vector<16x8x64xf32>
    %119 = tpu.matmul %118, %86, %cst_41 {dimension_numbers = #tpu.dot_dimension_numbers<[2], [2], [1], [1], [0, 0, 0, 1, 1, 1], [0], [0]>} : vector<16x8x64xf32>, vector<16x64x64xf32>, vector<16x8x64xf32> -> vector<16x8x64xf32>
    "tpu.trace_stop"() : () -> ()
    %120 = vector.broadcast %104 : vector<16x1x64xf32> to vector<16x8x64xf32>
    %121 = arith.addf %119, %120 : vector<16x8x64xf32>
    %cst_42 = arith.constant 0.000000e+00 : f32
    %122 = vector.broadcast %cst_42 : f32 to vector<16x8x64xf32>
    %123 = arith.maximumf %121, %122 : vector<16x8x64xf32>
    "tpu.trace_start"() <{level = 10 : i32, message = "tnp,tqp->tnq"}> : () -> ()
    %cst_43 = arith.constant dense<0.000000e+00> : vector<16x8x64xf32>
    %124 = tpu.matmul %123, %92, %cst_43 {dimension_numbers = #tpu.dot_dimension_numbers<[2], [2], [1], [1], [0, 0, 0, 1, 1, 1], [0], [0]>} : vector<16x8x64xf32>, vector<16x64x64xf32>, vector<16x8x64xf32> -> vector<16x8x64xf32>
    "tpu.trace_stop"() : () -> ()
    %125 = vector.broadcast %110 : vector<16x1x64xf32> to vector<16x8x64xf32>
    %126 = arith.addf %124, %125 : vector<16x8x64xf32>
    %cst_44 = arith.constant 0.000000e+00 : f32
    %127 = vector.broadcast %cst_44 : f32 to vector<16x8x64xf32>
    %128 = arith.maximumf %126, %127 : vector<16x8x64xf32>
    %129 = vector.shape_cast %128 : vector<16x8x64xf32> to vector<128x64xf32>
    %cst_45 = arith.constant dense<0.000000e+00> : vector<1x128xf32>
    %130 = tpu.matmul %7, %129, %cst_45 {dimension_numbers = #tpu.dot_dimension_numbers<[1], [1], [0], [0], [0, 0, 1, 0], [], []>} : vector<1x64xf32>, vector<128x64xf32>, vector<1x128xf32> -> vector<1x128xf32>
    %131 = vector.broadcast %10 : vector<1x1xf32> to vector<1x128xf32>
    %132 = arith.addf %130, %131 : vector<1x128xf32>
    %c0_46 = arith.constant 0 : index
    %c0_47 = arith.constant 0 : index
    %c0_48 = arith.constant 0 : index
    %133 = vector.load %arg5[%c0_46, %c0_47, %c0_48] : memref<1x1x128xf32, #tpu.memory_space<vmem>>, vector<1x1x128xf32>
    %134 = vector.shape_cast %133 : vector<1x1x128xf32> to vector<1x128xf32>
    %135 = vector.shape_cast %132 : vector<1x128xf32> to vector<1x1x128xf32>
    tpu.vector_store %arg5[%c0_46, %c0_47, %c0_48], %135 {strides = array<i32>} : memref<1x1x128xf32, #tpu.memory_space<vmem>>, vector<1x1x128xf32>,
    return
  }
  func.func @transform_0(%arg0: i32) -> (i32, i32) {
    %c0_i32 = arith.constant 0 : i32
    %c0_i32_0 = arith.constant 0 : i32
    %c0_i32_1 = arith.constant 0 : i32
    return %c0_i32, %c0_i32_0 : i32, i32
  }
  func.func @transform_1(%arg0: i32) -> (i32, i32) {
    %c0_i32 = arith.constant 0 : i32
    %c0_i32_0 = arith.constant 0 : i32
    %c0_i32_1 = arith.constant 0 : i32
    return %c0_i32, %c0_i32_0 : i32, i32
  }
  func.func @transform_2(%arg0: i32) -> (i32, i32, i32) {
    %c0_i32 = arith.constant 0 : i32
    %c0_i32_0 = arith.constant 0 : i32
    %c0_i32_1 = arith.constant 0 : i32
    return %arg0, %c0_i32, %c0_i32_0 : i32, i32, i32
  }
  func.func @transform_3(%arg0: i32) -> (i32, i32, i32) {
    %c0_i32 = arith.constant 0 : i32
    %c0_i32_0 = arith.constant 0 : i32
    %c0_i32_1 = arith.constant 0 : i32
    return %arg0, %c0_i32, %c0_i32_0 : i32, i32, i32
  }
  func.func @transform_4(%arg0: i32) -> (i32, i32, i32) {
    %c0_i32 = arith.constant 0 : i32
    %c0_i32_0 = arith.constant 0 : i32
    %c0_i32_1 = arith.constant 0 : i32
    return %arg0, %c0_i32, %c0_i32_0 : i32, i32, i32
  }
}

</mosaic_0001>

<llo_original>
// kernel: meta_forward_batch.1
$region0: #{meta_forward_batch.1}
  #allocation0 [shape = 'u32[]', space=smem, size = 0x4, offset = 0x4, fixed_abs, tag = 'smem constant byte address 0x4 - core index']
  #allocation1 [shape = 'u32[72,128]{1,0:T(1,128)}', space=vmem, size = 0x9000, scoped, tag = 'internal scratch']
  %s0 = inlined_call_operand.vmem [shape: f32[128,128], index: 0, kind: input, shape index: {}]
  %s1 = inlined_call_operand.vmem [shape: f32[168,64], index: 1, kind: input, shape index: {}]
  %s2 = inlined_call_operand.vmem [shape: f32[2,384,128], index: 2, kind: input, shape index: {}]
  %s3 = inlined_call_operand.vmem [shape: f32[2,128,128], index: 3, kind: input, shape index: {}]
  %s4 = inlined_call_operand.vmem [shape: f32[2,1,128], index: 4, kind: output, shape index: {}]
  %s5 = sld [smem:[#allocation0]]
  $region49: #{meta_forward_batch.1} parent=0
    _
  %s7 = ssub.s32 1, %s5
  %s8 = scalar_select 0, %s7, %s5
  loop: start=0, step=1, limit=4
  $region2: #{meta_forward_batch.1} parent=0 // loop_pre_header
    _
  $region3: #{meta_forward_batch.1} parent=0 // loop_header
    %s10 = sphi 0, %s14
    %p11 = scmp.ge.s32.totalorder %s10, 4
    %s18 = sphi 0, %s18
    %s20 = sphi 0, %s18
    %s21 = sphi 0, %s20
    %s35 = sphi 0, %s21
    %s39 = sphi 0, %s39
    %s41 = sphi 0, %s39
    %s42 = sphi 0, %s41
    %s56 = sphi 0, %s42
    %s62 = sphi 0, %s64
    %s65 = sphi 0, %s62
    %s66 = sphi 0, %s65
    %s82 = sphi 0, %s66
    %s88 = sphi 0, %s90
    %s91 = sphi 0, %s88
    %s92 = sphi 0, %s91
    %s108 = sphi 0, %s92
    %s114 = sphi 0, %s116
    %s117 = sphi 0, %s114
    %s118 = sphi 0, %s117
    %s134 = sphi 0, %s118
  $region4: #{meta_forward_batch.1} parent=0 // loop_header_branch
    %13 = sbr.rel (%p11) target = $region8
  $region5: #{meta_forward_batch.1} parent=0 // loop_body
    %s15 = ssub.s32 %s10, 1
    %s16 = ssub.s32 %s10, 2
    %s17 = sadd.s32 %s10, 1
    %s19 = sadd.s32 %s18, 1
    %p22 = scmp.eq.s32.totalorder %s10, 1
    %p23 = scmp.ne.s32.totalorder %s18, %s20
    %p24 = scmp.eq.s32.totalorder %s10, 0
    %p25 = por %p23, %p24
    %p26 = scmp.ne.s32.totalorder %s18, %s20
    %p27 = scmp.eq.s32.totalorder %s15, 1
    %p28 = por %p26, %p27
    %p29 = scmp.ne.s32.totalorder %s20, %s21
    %p30 = scmp.eq.s32.totalorder %s15, 0
    %p31 = por %p29, %p30
    %p32 = scmp.ne.s32.totalorder %s20, %s21
    %p33 = scmp.eq.s32.totalorder %s16, 1
    %p34 = por %p32, %p33
    %p36 = scmp.ne.s32.totalorder %s21, %s35
    %p37 = scmp.eq.s32.totalorder %s16, 0
    %p38 = por %p36, %p37
    %s40 = sadd.s32 %s39, 1
    %p43 = scmp.eq.s32.totalorder %s10, 1
    %p44 = scmp.ne.s32.totalorder %s39, %s41
    %p45 = scmp.eq.s32.totalorder %s10, 0
    %p46 = por %p44, %p45
    %p47 = scmp.ne.s32.totalorder %s39, %s41
    %p48 = scmp.eq.s32.totalorder %s15, 1
    %p49 = por %p47, %p48
    %p50 = scmp.ne.s32.totalorder %s41, %s42
    %p51 = scmp.eq.s32.totalorder %s15, 0
    %p52 = por %p50, %p51
    %p53 = scmp.ne.s32.totalorder %s41, %s42
    %p54 = scmp.eq.s32.totalorder %s16, 1
    %p55 = por %p53, %p54
    %p57 = scmp.ne.s32.totalorder %s42, %s56
    %p58 = scmp.eq.s32.totalorder %s16, 0
    %p59 = por %p57, %p58
    %s60 = ssub.s32 %s10, %s17
    %p61 = scmp.eq.s32.totalorder %s60, 0
    %s63 = sadd.s32 %s62, 1
    %s64 = scalar_select %p61, %s62, %s63
    %p67 = pneg %p61
    %p68 = scmp.eq.s32.totalorder %s10, 1
    %p69 = por %p67, %p68
    %p70 = scmp.ne.s32.totalorder %s62, %s65
    %p71 = scmp.eq.s32.totalorder %s10, 0
    %p72 = por %p70, %p71
    %p73 = scmp.ne.s32.totalorder %s62, %s65
    %p74 = scmp.eq.s32.totalorder %s15, 1
    %p75 = por %p73, %p74
    %p76 = scmp.ne.s32.totalorder %s65, %s66
    %p77 = scmp.eq.s32.totalorder %s15, 0
    %p78 = por %p76, %p77
    %p79 = scmp.ne.s32.totalorder %s65, %s66
    %p80 = scmp.eq.s32.totalorder %s16, 1
    %p81 = por %p79, %p80
    %p83 = scmp.ne.s32.totalorder %s66, %s82
    %p84 = scmp.eq.s32.totalorder %s16, 0
    %p85 = por %p83, %p84
    %s86 = ssub.s32 %s10, %s17
    %p87 = scmp.eq.s32.totalorder %s86, 0
    %s89 = sadd.s32 %s88, 1
    %s90 = scalar_select %p87, %s88, %s89
    %p93 = pneg %p87
    %p94 = scmp.eq.s32.totalorder %s10, 1
    %p95 = por %p93, %p94
    %p96 = scmp.ne.s32.totalorder %s88, %s91
    %p97 = scmp.eq.s32.totalorder %s10, 0
    %p98 = por %p96, %p97
    %p99 = scmp.ne.s32.totalorder %s88, %s91
    %p100 = scmp.eq.s32.totalorder %s15, 1
    %p101 = por %p99, %p100
    %p102 = scmp.ne.s32.totalorder %s91, %s92
    %p103 = scmp.eq.s32.totalorder %s15, 0
    %p104 = por %p102, %p103
    %p105 = scmp.ne.s32.totalorder %s91, %s92
    %p106 = scmp.eq.s32.totalorder %s16, 1
    %p107 = por %p105, %p106
    %p109 = scmp.ne.s32.totalorder %s92, %s108
    %p110 = scmp.eq.s32.totalorder %s16, 0
    %p111 = por %p109, %p110
    %s112 = ssub.s32 %s10, %s17
    %p113 = scmp.eq.s32.totalorder %s112, 0
    %s115 = sadd.s32 %s114, 1
    %s116 = scalar_select %p113, %s114, %s115
    %p119 = pneg %p113
    %p120 = scmp.eq.s32.totalorder %s10, 1
    %p121 = por %p119, %p120
    %p122 = scmp.ne.s32.totalorder %s114, %s117
    %p123 = scmp.eq.s32.totalorder %s10, 0
    %p124 = por %p122, %p123
    %p125 = scmp.ne.s32.totalorder %s114, %s117
    %p126 = scmp.eq.s32.totalorder %s15, 1
    %p127 = por %p125, %p126
    %p128 = scmp.ne.s32.totalorder %s117, %s118
    %p129 = scmp.eq.s32.totalorder %s15, 0
    %p130 = por %p128, %p129
    %p131 = scmp.ne.s32.totalorder %s117, %s118
    %p132 = scmp.eq.s32.totalorder %s16, 1
    %p133 = por %p131, %p132
    %p135 = scmp.ne.s32.totalorder %s118, %s134
    %p136 = scmp.eq.s32.totalorder %s16, 0
    %p137 = por %p135, %p136
    %p138 = scmp.le.s32.totalorder 1, %s10
    %p139 = scmp.lt.s32.totalorder %s10, 3
    %p140 = pnand %p138, %p139
    %p141 = pneg %p140
    // Predicated region
    $region9: #{meta_forward_batch.1} parent=5 // pred_check
      _
    $region10: #{meta_forward_batch.1} parent=5 // pred_check_branch
      %143 = sbr.rel (%p140) target = $region12
    $region11: #{meta_forward_batch.1} parent=5 // pred_region
      %s144 = ssub.s32 %s10, 1
      // Predicated region
      $region13: #{meta_forward_batch.1} parent=11 // pred_check
        %p145 = pneg %p31
      $region14: #{meta_forward_batch.1} parent=11 // pred_check_branch
        %147 = sbr.rel (%p145) target = $region16
      $region15: #{meta_forward_batch.1} parent=11 // pred_region
        _
      $region16: #{meta_forward_batch.1} parent=11 // pred_fallthru
        _
      // Predicated region
      $region17: #{meta_forward_batch.1} parent=11 // pred_check
        %p148 = pneg %p52
      $region18: #{meta_forward_batch.1} parent=11 // pred_check_branch
        %150 = sbr.rel (%p148) target = $region20
      $region19: #{meta_forward_batch.1} parent=11 // pred_region
        _
      $region20: #{meta_forward_batch.1} parent=11 // pred_fallthru
        _
    $region12: #{meta_forward_batch.1} parent=5 // pred_fallthru
      _
    %p151 = scmp.lt.s32.totalorder %s10, 2
    // Predicated region
    $region21: #{meta_forward_batch.1} parent=5 // pred_check
      %p152 = pneg %p151
    $region22: #{meta_forward_batch.1} parent=5 // pred_check_branch
      %154 = sbr.rel (%p152) target = $region24
    $region23: #{meta_forward_batch.1} parent=5 // pred_region
      // Predicated region
      $region25: #{meta_forward_batch.1} parent=23 // pred_check
        %p155 = pneg %p72
      $region26: #{meta_forward_batch.1} parent=23 // pred_check_branch
        %157 = sbr.rel (%p155) target = $region28
      $region27: #{meta_forward_batch.1} parent=23 // pred_region
        %p158 = scmp.lt.s32.totalorder %s10, 1
        %s159 = scalar_select %p158, %s10, 1
        %s160 = smul.addr %s159, 48
        %s161 = smul.addr %s160, 8
        %s162 = scalar_lea.vmem %s2, %s161
      $region28: #{meta_forward_batch.1} parent=23 // pred_fallthru
        _
      // Predicated region
      $region29: #{meta_forward_batch.1} parent=23 // pred_check
        %p163 = pneg %p98
      $region30: #{meta_forward_batch.1} parent=23 // pred_check_branch
        %165 = sbr.rel (%p163) target = $region32
      $region31: #{meta_forward_batch.1} parent=23 // pred_region
        %p166 = scmp.lt.s32.totalorder %s10, 1
        %s167 = scalar_select %p166, %s10, 1
        %s168 = smul.addr %s167, 16
        %s169 = smul.addr %s168, 8
        %s170 = scalar_lea.vmem %s3, %s169
      $region32: #{meta_forward_batch.1} parent=23 // pred_fallthru
        _
    $region24: #{meta_forward_batch.1} parent=5 // pred_fallthru
      _
    %p171 = scmp.le.s32.totalorder 1, %s10
    %p172 = scmp.lt.s32.totalorder %s10, 3
    %p173 = pnand %p171, %p172
    %p174 = pneg %p173
    // Predicated region
    $region33: #{meta_forward_batch.1} parent=5 // pred_check
      _
    $region34: #{meta_forward_batch.1} parent=5 // pred_check_branch
      %176 = sbr.rel (%p173) target = $region36
    $region35: #{meta_forward_batch.1} parent=5 // pred_region
      %s177 = ssub.s32 %s10, 1
      %p178 = pneg %p31
      %p179 = pneg %p28
      %p180 = pneg %p52
      %p181 = pneg %p49
      %p182 = scmp.lt.s32.totalorder %s15, 1
      %s183 = scalar_select %p182, %s15, 1
      %s184 = smul.addr %s183, 48
      %s185 = smul.addr %s184, 8
      %s186 = scalar_lea.vmem %s2, %s185
      %p187 = pneg %p78
      %p188 = pneg %p75
      %p189 = scmp.lt.s32.totalorder %s15, 1
      %s190 = scalar_select %p189, %s15, 1
      %s191 = smul.addr %s190, 16
      %s192 = smul.addr %s191, 8
      %s193 = scalar_lea.vmem %s3, %s192
      %p194 = pneg %p104
      %p195 = pneg %p101
      %p196 = pneg %p130
      %p197 = pneg %p127
      %p198 = scmp.lt.s32.totalorder %s15, 1
      %s199 = scalar_select %p198, %s15, 1
      %s200 = scalar_lea.vmem %s4, %s199
      %p201 = scmp.lt.s32.totalorder %s15, 1
      %s202 = scalar_select %p201, %s15, 1
      %s203 = smul.addr %s202, 48
      %s204 = smul.addr %s203, 8
      %s205 = scalar_lea.vmem %s2, %s204
      %p206 = scmp.lt.s32.totalorder %s15, 1
      %s207 = scalar_select %p206, %s15, 1
      %s208 = smul.addr %s207, 16
      %s209 = smul.addr %s208, 8
      %s210 = scalar_lea.vmem %s3, %s209
      %p211 = scmp.lt.s32.totalorder %s15, 1
      %s212 = scalar_select %p211, %s15, 1
      %s213 = scalar_lea.vmem %s4, %s212
      %v214 = vld [vmem:[%s0] sm:$0xff]
      %v215 = vld [vmem:[%s0 + $0x8] sm:$0xff]
      %v216 = vld [vmem:[%s0 + $0x10] sm:$0xff]
      %v217 = vld [vmem:[%s0 + $0x18] sm:$0xff]
      %v218 = vld [vmem:[%s0 + $0x20] sm:$0xff]
      %v219 = vld [vmem:[%s0 + $0x28] sm:$0xff]
      %v220 = vld [vmem:[%s0 + $0x30] sm:$0xff]
      %v221 = vld [vmem:[%s0 + $0x38] sm:$0xff]
      %v222 = vld [vmem:[%s0 + $0x40] sm:$0xff]
      %v223 = vld [vmem:[%s0 + $0x48] sm:$0xff]
      %v224 = vld [vmem:[%s0 + $0x50] sm:$0xff]
      %v225 = vld [vmem:[%s0 + $0x58] sm:$0xff]
      %v226 = vld [vmem:[%s0 + $0x60] sm:$0xff]
      %v227 = vld [vmem:[%s0 + $0x68] sm:$0xff]
      %v228 = vld [vmem:[%s0 + $0x70] sm:$0xff]
      %v229 = vld [vmem:[%s0 + $0x78] sm:$0xff]
      %v230 = vld [vmem:[%s1] sm:$0xff]
      %v231 = vld [vmem:[%s1 + $0x8] sm:$0xff]
      %v232 = vld [vmem:[%s1 + $0x10] sm:$0xff]
      %v233 = vld [vmem:[%s1 + $0x18] sm:$0xff]
      %v234 = vld [vmem:[%s1 + $0x20] sm:$0xff]
      %v235 = vld [vmem:[%s1 + $0x28] sm:$0xff]
      %v236 = vld [vmem:[%s1 + $0x30] sm:$0xff]
      %v237 = vld [vmem:[%s1 + $0x38] sm:$0xff]
      %v238 = vld [vmem:[%s1 + $0x40] sm:$0xff]
      %v239 = vld [vmem:[%s1 + $0x48] sm:$0xff]
      %v240 = vld [vmem:[%s1 + $0x50] sm:$0xff]
      %v241 = vld [vmem:[%s1 + $0x58] sm:$0xff]
      %v242 = vld [vmem:[%s1 + $0x60] sm:$0xff]
      %v243 = vld [vmem:[%s1 + $0x68] sm:$0xff]
      %v244 = vld [vmem:[%s1 + $0x70] sm:$0xff]
      %v245 = vld [vmem:[%s1 + $0x78] sm:$0xff]
      %v246 = vld [vmem:[%s1 + $0x80] sm:$0x1]
      %v247 = vld [vmem:[%s1 + $0x88] sm:$0x1]
      %v248 = vld [vmem:[%s1 + $0x90] sm:$0x1]
      %v249 = vld [vmem:[%s1 + $0x98] sm:$0x1]
      %v250 = vld [vmem:[%s1 + $0xa0] sm:$0x1]
      %v251 = vsub.f32 0.0, %v250
      %v252 = vld [vmem:[%s205] sm:$0xff]
      %v253 = vld [vmem:[%s205 + $0x8] sm:$0xff]
      %v254 = vld [vmem:[%s205 + $0x10] sm:$0xff]
      %v255 = vld [vmem:[%s205 + $0x18] sm:$0xff]
      %v256 = vld [vmem:[%s205 + $0x20] sm:$0xff]
      %v257 = vld [vmem:[%s205 + $0x28] sm:$0xff]
      %v258 = vld [vmem:[%s205 + $0x30] sm:$0xff]
      %v259 = vld [vmem:[%s205 + $0x38] sm:$0xff]
      %v260 = vld [vmem:[%s205 + $0x40] sm:$0xff]
      %v261 = vld [vmem:[%s205 + $0x48] sm:$0xff]
      %v262 = vld [vmem:[%s205 + $0x50] sm:$0xff]
      %v263 = vld [vmem:[%s205 + $0x58] sm:$0xff]
      %v264 = vld [vmem:[%s205 + $0x60] sm:$0xff]
      %v265 = vld [vmem:[%s205 + $0x68] sm:$0xff]
      %v266 = vld [vmem:[%s205 + $0x70] sm:$0xff]
      %v267 = vld [vmem:[%s205 + $0x78] sm:$0xff]
      %v268 = vld [vmem:[%s205 + $0x80] sm:$0xff]
      %v269 = vld [vmem:[%s205 + $0x88] sm:$0xff]
      %v270 = vld [vmem:[%s205 + $0x90] sm:$0xff]
      %v271 = vld [vmem:[%s205 + $0x98] sm:$0xff]
      %v272 = vld [vmem:[%s205 + $0xa0] sm:$0xff]
      %v273 = vld [vmem:[%s205 + $0xa8] sm:$0xff]
      %v274 = vld [vmem:[%s205 + $0xb0] sm:$0xff]
      %v275 = vld [vmem:[%s205 + $0xb8] sm:$0xff]
      %v276 = vld [vmem:[%s205 + $0xc0] sm:$0xff]
      %v277 = vld [vmem:[%s205 + $0xc8] sm:$0xff]
      %v278 = vld [vmem:[%s205 + $0xd0] sm:$0xff]
      %v279 = vld [vmem:[%s205 + $0xd8] sm:$0xff]
      %v280 = vld [vmem:[%s205 + $0xe0] sm:$0xff]
      %v281 = vld [vmem:[%s205 + $0xe8] sm:$0xff]
      %v282 = vld [vmem:[%s205 + $0xf0] sm:$0xff]
      %v283 = vld [vmem:[%s205 + $0xf8] sm:$0xff]
      %v284 = vld [vmem:[%s205 + $0x100] sm:$0xff]
      %v285 = vld [vmem:[%s205 + $0x108] sm:$0xff]
      %v286 = vld [vmem:[%s205 + $0x110] sm:$0xff]
      %v287 = vld [vmem:[%s205 + $0x118] sm:$0xff]
      %v288 = vld [vmem:[%s205 + $0x120] sm:$0xff]
      %v289 = vld [vmem:[%s205 + $0x128] sm:$0xff]
      %v290 = vld [vmem:[%s205 + $0x130] sm:$0xff]
      %v291 = vld [vmem:[%s205 + $0x138] sm:$0xff]
      %v292 = vld [vmem:[%s205 + $0x140] sm:$0xff]
      %v293 = vld [vmem:[%s205 + $0x148] sm:$0xff]
      %v294 = vld [vmem:[%s205 + $0x150] sm:$0xff]
      %v295 = vld [vmem:[%s205 + $0x158] sm:$0xff]
      %v296 = vld [vmem:[%s205 + $0x160] sm:$0xff]
      %v297 = vld [vmem:[%s205 + $0x168] sm:$0xff]
      %v298 = vld [vmem:[%s205 + $0x170] sm:$0xff]
      %v299 = vld [vmem:[%s205 + $0x178] sm:$0xff]
      %v300 = vperm.slane %v246, 0
      %301 = vmatpush.xpose.msra.mxu0 0.0
      %302 = vmatpush.xpose.msra.mxu0 0.0
      %303 = vmatpush.xpose.msra.mxu0 0.0
      %304 = vmatpush.xpose.msra.mxu0 0.0
      %305 = vmatpush.xpose.msra.mxu0 0.0
      %306 = vmatpush.xpose.msra.mxu0 0.0
      %307 = vmatpush.xpose.msra.mxu0 0.0
      %308 = vmatpush.xpose.msra.mxu0 0.0
      %309 = vmatpush.xpose.msra.mxu0 %v221
      %310 = vmatpush.xpose.msra.mxu0 %v220
      %311 = vmatpush.xpose.msra.mxu0 %v219
      %312 = vmatpush.xpose.msra.mxu0 %v218
      %313 = vmatpush.xpose.msra.mxu0 %v217
      %314 = vmatpush.xpose.msra.mxu0 %v216
      %315 = vmatpush.xpose.msra.mxu0 %v215
      %316 = vmatpush.xpose.msra.mxu0 %v214
      %317 = vmatmul.f32.gmra.mxu0 %v252
      %v318 = vpop.f32.mrf.mxu0
      %v319 = vadd.f32 %v300, %v318
      %320 = vmatmul.f32.gmra.mxu0 %v253
      %v321 = vpop.f32.mrf.mxu0
      %v322 = vadd.f32 %v300, %v321
      %323 = vmatmul.f32.gmra.mxu0 %v254
      %v324 = vpop.f32.mrf.mxu0
      %v325 = vadd.f32 %v300, %v324
      %326 = vmatmul.f32.gmra.mxu0 %v255
      %v327 = vpop.f32.mrf.mxu0
      %v328 = vadd.f32 %v300, %v327
      %329 = vmatmul.f32.gmra.mxu0 %v256
      %v330 = vpop.f32.mrf.mxu0
      %v331 = vadd.f32 %v300, %v330
      %332 = vmatmul.f32.gmra.mxu0 %v257
      %v333 = vpop.f32.mrf.mxu0
      %v334 = vadd.f32 %v300, %v333
      %335 = vmatmul.f32.gmra.mxu0 %v258
      %v336 = vpop.f32.mrf.mxu0
      %v337 = vadd.f32 %v300, %v336
      %338 = vmatmul.f32.gmra.mxu0 %v259
      %v339 = vpop.f32.mrf.mxu0
      %v340 = vadd.f32 %v300, %v339
      %341 = vmatmul.f32.gmra.mxu0 %v260
      %v342 = vpop.f32.mrf.mxu0
      %v343 = vadd.f32 %v300, %v342
      %344 = vmatmul.f32.gmra.mxu0 %v261
      %v345 = vpop.f32.mrf.mxu0
      %v346 = vadd.f32 %v300, %v345
      %347 = vmatmul.f32.gmra.mxu0 %v262
      %v348 = vpop.f32.mrf.mxu0
      %v349 = vadd.f32 %v300, %v348
      %350 = vmatmul.f32.gmra.mxu0 %v263
      %v351 = vpop.f32.mrf.mxu0
      %v352 = vadd.f32 %v300, %v351
      %353 = vmatmul.f32.gmra.mxu0 %v264
      %v354 = vpop.f32.mrf.mxu0
      %v355 = vadd.f32 %v300, %v354
      %356 = vmatmul.f32.gmra.mxu0 %v265
      %v357 = vpop.f32.mrf.mxu0
      %v358 = vadd.f32 %v300, %v357
      %359 = vmatmul.f32.gmra.mxu0 %v266
      %v360 = vpop.f32.mrf.mxu0
      %v361 = vadd.f32 %v300, %v360
      %362 = vmatmul.f32.gmra.mxu0 %v267
      %v363 = vpop.f32.mrf.mxu0
      %v364 = vadd.f32 %v300, %v363
      %365 = vmatmul.f32.gmra.mxu0 %v268
      %v366 = vpop.f32.mrf.mxu0
      %v367 = vadd.f32 %v300, %v366
      %368 = vmatmul.f32.gmra.mxu0 %v269
      %v369 = vpop.f32.mrf.mxu0
      %v370 = vadd.f32 %v300, %v369
      %371 = vmatmul.f32.gmra.mxu0 %v270
      %v372 = vpop.f32.mrf.mxu0
      %v373 = vadd.f32 %v300, %v372
      %374 = vmatmul.f32.gmra.mxu0 %v271
      %v375 = vpop.f32.mrf.mxu0
      %v376 = vadd.f32 %v300, %v375
      %377 = vmatmul.f32.gmra.mxu0 %v272
      %v378 = vpop.f32.mrf.mxu0
      %v379 = vadd.f32 %v300, %v378
      %380 = vmatmul.f32.gmra.mxu0 %v273
      %v381 = vpop.f32.mrf.mxu0
      %v382 = vadd.f32 %v300, %v381
      %383 = vmatmul.f32.gmra.mxu0 %v274
      %v384 = vpop.f32.mrf.mxu0
      %v385 = vadd.f32 %v300, %v384
      %386 = vmatmul.f32.gmra.mxu0 %v275
      %v387 = vpop.f32.mrf.mxu0
      %v388 = vadd.f32 %v300, %v387
      %389 = vmatmul.f32.gmra.mxu0 %v276
      %v390 = vpop.f32.mrf.mxu0
      %v391 = vadd.f32 %v300, %v390
      %392 = vmatmul.f32.gmra.mxu0 %v277
      %v393 = vpop.f32.mrf.mxu0
      %v394 = vadd.f32 %v300, %v393
      %395 = vmatmul.f32.gmra.mxu0 %v278
      %v396 = vpop.f32.mrf.mxu0
      %v397 = vadd.f32 %v300, %v396
      %398 = vmatmul.f32.gmra.mxu0 %v279
      %v399 = vpop.f32.mrf.mxu0
      %v400 = vadd.f32 %v300, %v399
      %401 = vmatmul.f32.gmra.mxu0 %v280
      %v402 = vpop.f32.mrf.mxu0
      %v403 = vadd.f32 %v300, %v402
      %404 = vmatmul.f32.gmra.mxu0 %v281
      %v405 = vpop.f32.mrf.mxu0
      %v406 = vadd.f32 %v300, %v405
      %407 = vmatmul.f32.gmra.mxu0 %v282
      %v408 = vpop.f32.mrf.mxu0
      %v409 = vadd.f32 %v300, %v408
      %410 = vmatmul.f32.gmra.mxu0 %v283
      %v411 = vpop.f32.mrf.mxu0
      %v412 = vadd.f32 %v300, %v411
      %413 = vmatmul.f32.gmra.mxu0 %v284
      %v414 = vpop.f32.mrf.mxu0
      %v415 = vadd.f32 %v300, %v414
      %416 = vmatmul.f32.gmra.mxu0 %v285
      %v417 = vpop.f32.mrf.mxu0
      %v418 = vadd.f32 %v300, %v417
      %419 = vmatmul.f32.gmra.mxu0 %v286
      %v420 = vpop.f32.mrf.mxu0
      %v421 = vadd.f32 %v300, %v420
      %422 = vmatmul.f32.gmra.mxu0 %v287
      %v423 = vpop.f32.mrf.mxu0
      %v424 = vadd.f32 %v300, %v423
      %425 = vmatmul.f32.gmra.mxu0 %v288
      %v426 = vpop.f32.mrf.mxu0
      %v427 = vadd.f32 %v300, %v426
      %428 = vmatmul.f32.gmra.mxu0 %v289
      %v429 = vpop.f32.mrf.mxu0
      %v430 = vadd.f32 %v300, %v429
      %431 = vmatmul.f32.gmra.mxu0 %v290
      %v432 = vpop.f32.mrf.mxu0
      %v433 = vadd.f32 %v300, %v432
      %434 = vmatmul.f32.gmra.mxu0 %v291
      %v435 = vpop.f32.mrf.mxu0
      %v436 = vadd.f32 %v300, %v435
      %437 = vmatmul.f32.gmra.mxu0 %v292
      %v438 = vpop.f32.mrf.mxu0
      %v439 = vadd.f32 %v300, %v438
      %440 = vmatmul.f32.gmra.mxu0 %v293
      %v441 = vpop.f32.mrf.mxu0
      %v442 = vadd.f32 %v300, %v441
      %443 = vmatmul.f32.gmra.mxu0 %v294
      %v444 = vpop.f32.mrf.mxu0
      %v445 = vadd.f32 %v300, %v444
      %446 = vmatmul.f32.gmra.mxu0 %v295
      %v447 = vpop.f32.mrf.mxu0
      %v448 = vadd.f32 %v300, %v447
      %449 = vmatmul.f32.gmra.mxu0 %v296
      %v450 = vpop.f32.mrf.mxu0
      %v451 = vadd.f32 %v300, %v450
      %452 = vmatmul.f32.gmra.mxu0 %v297
      %v453 = vpop.f32.mrf.mxu0
      %v454 = vadd.f32 %v300, %v453
      %455 = vmatmul.f32.gmra.mxu0 %v298
      %v456 = vpop.f32.mrf.mxu0
      %v457 = vadd.f32 %v300, %v456
      %458 = vmatmul.f32.gmra.mxu0 %v299
      %v459 = vpop.f32.mrf.mxu0
      %v460 = vadd.f32 %v300, %v459
      %461 = vdwg.mxu0
      %v462 = vmax.f32 %v319, 0.0
      %v463 = vmax.f32 %v322, 0.0
      %v464 = vmax.f32 %v325, 0.0
      %v465 = vmax.f32 %v328, 0.0
      %v466 = vmax.f32 %v331, 0.0
      %v467 = vmax.f32 %v334, 0.0
      %v468 = vmax.f32 %v337, 0.0
      %v469 = vmax.f32 %v340, 0.0
      %v470 = vmax.f32 %v343, 0.0
      %v471 = vmax.f32 %v346, 0.0
      %v472 = vmax.f32 %v349, 0.0
      %v473 = vmax.f32 %v352, 0.0
      %v474 = vmax.f32 %v355, 0.0
      %v475 = vmax.f32 %v358, 0.0
      %v476 = vmax.f32 %v361, 0.0
      %v477 = vmax.f32 %v364, 0.0
      %v478 = vmax.f32 %v367, 0.0
      %v479 = vmax.f32 %v370, 0.0
      %v480 = vmax.f32 %v373, 0.0
      %v481 = vmax.f32 %v376, 0.0
      %v482 = vmax.f32 %v379, 0.0
      %v483 = vmax.f32 %v382, 0.0
      %v484 = vmax.f32 %v385, 0.0
      %v485 = vmax.f32 %v388, 0.0
      %v486 = vmax.f32 %v391, 0.0
      %v487 = vmax.f32 %v394, 0.0
      %v488 = vmax.f32 %v397, 0.0
      %v489 = vmax.f32 %v400, 0.0
      %v490 = vmax.f32 %v403, 0.0
      %v491 = vmax.f32 %v406, 0.0
      %v492 = vmax.f32 %v409, 0.0
      %v493 = vmax.f32 %v412, 0.0
      %v494 = vmax.f32 %v415, 0.0
      %v495 = vmax.f32 %v418, 0.0
      %v496 = vmax.f32 %v421, 0.0
      %v497 = vmax.f32 %v424, 0.0
      %v498 = vmax.f32 %v427, 0.0
      %v499 = vmax.f32 %v430, 0.0
      %v500 = vmax.f32 %v433, 0.0
      %v501 = vmax.f32 %v436, 0.0
      %v502 = vmax.f32 %v439, 0.0
      %v503 = vmax.f32 %v442, 0.0
      %v504 = vmax.f32 %v445, 0.0
      %v505 = vmax.f32 %v448, 0.0
      %v506 = vmax.f32 %v451, 0.0
      %v507 = vmax.f32 %v454, 0.0
      %v508 = vmax.f32 %v457, 0.0
      %v509 = vmax.f32 %v460, 0.0
      %v510 = vperm.slane %v247, 0
      %vm511 = vcmask 523264
      %v513 = vsel %vm511, %v462, 0
      %v516 = vsel %vm511, %v463, 0
      %v519 = vsel %vm511, %v464, 0
      %v522 = vsel %vm511, %v465, 0
      %v525 = vsel %vm511, %v466, 0
      %v528 = vsel %vm511, %v467, 0
      %v531 = vsel %vm511, %v468, 0
      %v534 = vsel %vm511, %v469, 0
      %v537 = vsel %vm511, %v470, 0
      %v540 = vsel %vm511, %v471, 0
      %v543 = vsel %vm511, %v472, 0
      %v546 = vsel %vm511, %v473, 0
      %v549 = vsel %vm511, %v474, 0
      %v552 = vsel %vm511, %v475, 0
      %v555 = vsel %vm511, %v476, 0
      %v558 = vsel %vm511, %v477, 0
      %v561 = vsel %vm511, %v478, 0
      %v564 = vsel %vm511, %v479, 0
      %v567 = vsel %vm511, %v480, 0
      %v570 = vsel %vm511, %v481, 0
      %v573 = vsel %vm511, %v482, 0
      %v576 = vsel %vm511, %v483, 0
      %v579 = vsel %vm511, %v484, 0
      %v582 = vsel %vm511, %v485, 0
      %v585 = vsel %vm511, %v486, 0
      %v588 = vsel %vm511, %v487, 0
      %v591 = vsel %vm511, %v488, 0
      %v594 = vsel %vm511, %v489, 0
      %v597 = vsel %vm511, %v490, 0
      %v600 = vsel %vm511, %v491, 0
      %v603 = vsel %vm511, %v492, 0
      %v606 = vsel %vm511, %v493, 0
      %v609 = vsel %vm511, %v494, 0
      %v612 = vsel %vm511, %v495, 0
      %v615 = vsel %vm511, %v496, 0
      %v618 = vsel %vm511, %v497, 0
      %v621 = vsel %vm511, %v498, 0
      %v624 = vsel %vm511, %v499, 0
      %v627 = vsel %vm511, %v500, 0
      %v630 = vsel %vm511, %v501, 0
      %v633 = vsel %vm511, %v502, 0
      %v636 = vsel %vm511, %v503, 0
      %v639 = vsel %vm511, %v504, 0
      %v642 = vsel %vm511, %v505, 0
      %v645 = vsel %vm511, %v506, 0
      %v648 = vsel %vm511, %v507, 0
      %v651 = vsel %vm511, %v508, 0
      %v654 = vsel %vm511, %v509, 0
      %v657 = vsel %vm511, %v230, 0
      %v660 = vsel %vm511, %v231, 0
      %v663 = vsel %vm511, %v232, 0
      %v666 = vsel %vm511, %v233, 0
      %v669 = vsel %vm511, %v234, 0
      %v672 = vsel %vm511, %v235, 0
      %v675 = vsel %vm511, %v236, 0
      %v678 = vsel %vm511, %v237, 0
      %680 = vmatpush.xpose.msra.mxu0 0.0
      %681 = vmatpush.xpose.msra.mxu0 0.0
      %682 = vmatpush.xpose.msra.mxu0 0.0
      %683 = vmatpush.xpose.msra.mxu0 0.0
      %684 = vmatpush.xpose.msra.mxu0 0.0
      %685 = vmatpush.xpose.msra.mxu0 0.0
      %686 = vmatpush.xpose.msra.mxu0 0.0
      %687 = vmatpush.xpose.msra.mxu0 0.0
      %688 = vmatpush.xpose.msra.mxu0 %v678
      %689 = vmatpush.xpose.msra.mxu0 %v675
      %690 = vmatpush.xpose.msra.mxu0 %v672
      %691 = vmatpush.xpose.msra.mxu0 %v669
      %692 = vmatpush.xpose.msra.mxu0 %v666
      %693 = vmatpush.xpose.msra.mxu0 %v663
      %694 = vmatpush.xpose.msra.mxu0 %v660
      %695 = vmatpush.xpose.msra.mxu0 %v657
      %696 = vmatmul.f32.gmra.mxu0 %v513
      %v697 = vpop.f32.mrf.mxu0
      %v698 = vadd.f32 %v510, %v697
      %699 = vmatmul.f32.gmra.mxu0 %v516
      %v700 = vpop.f32.mrf.mxu0
      %v701 = vadd.f32 %v510, %v700
      %702 = vmatmul.f32.gmra.mxu0 %v519
      %v703 = vpop.f32.mrf.mxu0
      %v704 = vadd.f32 %v510, %v703
      %705 = vmatmul.f32.gmra.mxu0 %v522
      %v706 = vpop.f32.mrf.mxu0
      %v707 = vadd.f32 %v510, %v706
      %708 = vmatmul.f32.gmra.mxu0 %v525
      %v709 = vpop.f32.mrf.mxu0
      %v710 = vadd.f32 %v510, %v709
      %711 = vmatmul.f32.gmra.mxu0 %v528
      %v712 = vpop.f32.mrf.mxu0
      %v713 = vadd.f32 %v510, %v712
      %714 = vmatmul.f32.gmra.mxu0 %v531
      %v715 = vpop.f32.mrf.mxu0
      %v716 = vadd.f32 %v510, %v715
      %717 = vmatmul.f32.gmra.mxu0 %v534
      %v718 = vpop.f32.mrf.mxu0
      %v719 = vadd.f32 %v510, %v718
      %720 = vmatmul.f32.gmra.mxu0 %v537
      %v721 = vpop.f32.mrf.mxu0
      %v722 = vadd.f32 %v510, %v721
      %723 = vmatmul.f32.gmra.mxu0 %v540
      %v724 = vpop.f32.mrf.mxu0
      %v725 = vadd.f32 %v510, %v724
      %726 = vmatmul.f32.gmra.mxu0 %v543
      %v727 = vpop.f32.mrf.mxu0
      %v728 = vadd.f32 %v510, %v727
      %729 = vmatmul.f32.gmra.mxu0 %v546
      %v730 = vpop.f32.mrf.mxu0
      %v731 = vadd.f32 %v510, %v730
      %732 = vmatmul.f32.gmra.mxu0 %v549
      %v733 = vpop.f32.mrf.mxu0
      %v734 = vadd.f32 %v510, %v733
      %735 = vmatmul.f32.gmra.mxu0 %v552
      %v736 = vpop.f32.mrf.mxu0
      %v737 = vadd.f32 %v510, %v736
      %738 = vmatmul.f32.gmra.mxu0 %v555
      %v739 = vpop.f32.mrf.mxu0
      %v740 = vadd.f32 %v510, %v739
      %741 = vmatmul.f32.gmra.mxu0 %v558
      %v742 = vpop.f32.mrf.mxu0
      %v743 = vadd.f32 %v510, %v742
      %744 = vmatmul.f32.gmra.mxu0 %v561
      %v745 = vpop.f32.mrf.mxu0
      %v746 = vadd.f32 %v510, %v745
      %747 = vmatmul.f32.gmra.mxu0 %v564
      %v748 = vpop.f32.mrf.mxu0
      %v749 = vadd.f32 %v510, %v748
      %750 = vmatmul.f32.gmra.mxu0 %v567
      %v751 = vpop.f32.mrf.mxu0
      %v752 = vadd.f32 %v510, %v751
      %753 = vmatmul.f32.gmra.mxu0 %v570
      %v754 = vpop.f32.mrf.mxu0
      %v755 = vadd.f32 %v510, %v754
      %756 = vmatmul.f32.gmra.mxu0 %v573
      %v757 = vpop.f32.mrf.mxu0
      %v758 = vadd.f32 %v510, %v757
      %759 = vmatmul.f32.gmra.mxu0 %v576
      %v760 = vpop.f32.mrf.mxu0
      %v761 = vadd.f32 %v510, %v760
      %762 = vmatmul.f32.gmra.mxu0 %v579
      %v763 = vpop.f32.mrf.mxu0
      %v764 = vadd.f32 %v510, %v763
      %765 = vmatmul.f32.gmra.mxu0 %v582
      %v766 = vpop.f32.mrf.mxu0
      %v767 = vadd.f32 %v510, %v766
      %768 = vmatmul.f32.gmra.mxu0 %v585
      %v769 = vpop.f32.mrf.mxu0
      %v770 = vadd.f32 %v510, %v769
      %771 = vmatmul.f32.gmra.mxu0 %v588
      %v772 = vpop.f32.mrf.mxu0
      %v773 = vadd.f32 %v510, %v772
      %774 = vmatmul.f32.gmra.mxu0 %v591
      %v775 = vpop.f32.mrf.mxu0
      %v776 = vadd.f32 %v510, %v775
      %777 = vmatmul.f32.gmra.mxu0 %v594
      %v778 = vpop.f32.mrf.mxu0
      %v779 = vadd.f32 %v510, %v778
      %780 = vmatmul.f32.gmra.mxu0 %v597
      %v781 = vpop.f32.mrf.mxu0
      %v782 = vadd.f32 %v510, %v781
      %783 = vmatmul.f32.gmra.mxu0 %v600
      %v784 = vpop.f32.mrf.mxu0
      %v785 = vadd.f32 %v510, %v784
      %786 = vmatmul.f32.gmra.mxu0 %v603
      %v787 = vpop.f32.mrf.mxu0
      %v788 = vadd.f32 %v510, %v787
      %789 = vmatmul.f32.gmra.mxu0 %v606
      %v790 = vpop.f32.mrf.mxu0
      %v791 = vadd.f32 %v510, %v790
      %792 = vmatmul.f32.gmra.mxu0 %v609
      %v793 = vpop.f32.mrf.mxu0
      %v794 = vadd.f32 %v510, %v793
      %795 = vmatmul.f32.gmra.mxu0 %v612
      %v796 = vpop.f32.mrf.mxu0
      %v797 = vadd.f32 %v510, %v796
      %798 = vmatmul.f32.gmra.mxu0 %v615
      %v799 = vpop.f32.mrf.mxu0
      %v800 = vadd.f32 %v510, %v799
      %801 = vmatmul.f32.gmra.mxu0 %v618
      %v802 = vpop.f32.mrf.mxu0
      %v803 = vadd.f32 %v510, %v802
      %804 = vmatmul.f32.gmra.mxu0 %v621
      %v805 = vpop.f32.mrf.mxu0
      %v806 = vadd.f32 %v510, %v805
      %807 = vmatmul.f32.gmra.mxu0 %v624
      %v808 = vpop.f32.mrf.mxu0
      %v809 = vadd.f32 %v510, %v808
      %810 = vmatmul.f32.gmra.mxu0 %v627
      %v811 = vpop.f32.mrf.mxu0
      %v812 = vadd.f32 %v510, %v811
      %813 = vmatmul.f32.gmra.mxu0 %v630
      %v814 = vpop.f32.mrf.mxu0
      %v815 = vadd.f32 %v510, %v814
      %816 = vmatmul.f32.gmra.mxu0 %v633
      %v817 = vpop.f32.mrf.mxu0
      %v818 = vadd.f32 %v510, %v817
      %819 = vmatmul.f32.gmra.mxu0 %v636
      %v820 = vpop.f32.mrf.mxu0
      %v821 = vadd.f32 %v510, %v820
      %822 = vmatmul.f32.gmra.mxu0 %v639
      %v823 = vpop.f32.mrf.mxu0
      %v824 = vadd.f32 %v510, %v823
      %825 = vmatmul.f32.gmra.mxu0 %v642
      %v826 = vpop.f32.mrf.mxu0
      %v827 = vadd.f32 %v510, %v826
      %828 = vmatmul.f32.gmra.mxu0 %v645
      %v829 = vpop.f32.mrf.mxu0
      %v830 = vadd.f32 %v510, %v829
      %831 = vmatmul.f32.gmra.mxu0 %v648
      %v832 = vpop.f32.mrf.mxu0
      %v833 = vadd.f32 %v510, %v832
      %834 = vmatmul.f32.gmra.mxu0 %v651
      %v835 = vpop.f32.mrf.mxu0
      %v836 = vadd.f32 %v510, %v835
      %837 = vmatmul.f32.gmra.mxu0 %v654
      %v838 = vpop.f32.mrf.mxu0
      %v839 = vadd.f32 %v510, %v838
      %840 = vdwg.mxu0
      %v841 = vmax.f32 %v698, 0.0
      %v842 = vmax.f32 %v701, 0.0
      %v843 = vmax.f32 %v704, 0.0
      %v844 = vmax.f32 %v707, 0.0
      %v845 = vmax.f32 %v710, 0.0
      %v846 = vmax.f32 %v713, 0.0
      %v847 = vmax.f32 %v716, 0.0
      %v848 = vmax.f32 %v719, 0.0
      %v849 = vmax.f32 %v722, 0.0
      %v850 = vmax.f32 %v725, 0.0
      %v851 = vmax.f32 %v728, 0.0
      %v852 = vmax.f32 %v731, 0.0
      %v853 = vmax.f32 %v734, 0.0
      %v854 = vmax.f32 %v737, 0.0
      %v855 = vmax.f32 %v740, 0.0
      %v856 = vmax.f32 %v743, 0.0
      %v857 = vmax.f32 %v746, 0.0
      %v858 = vmax.f32 %v749, 0.0
      %v859 = vmax.f32 %v752, 0.0
      %v860 = vmax.f32 %v755, 0.0
      %v861 = vmax.f32 %v758, 0.0
      %v862 = vmax.f32 %v761, 0.0
      %v863 = vmax.f32 %v764, 0.0
      %v864 = vmax.f32 %v767, 0.0
      %v865 = vmax.f32 %v770, 0.0
      %v866 = vmax.f32 %v773, 0.0
      %v867 = vmax.f32 %v776, 0.0
      %v868 = vmax.f32 %v779, 0.0
      %v869 = vmax.f32 %v782, 0.0
      %v870 = vmax.f32 %v785, 0.0
      %v871 = vmax.f32 %v788, 0.0
      %v872 = vmax.f32 %v791, 0.0
      %v873 = vmax.f32 %v794, 0.0
      %v874 = vmax.f32 %v797, 0.0
      %v875 = vmax.f32 %v800, 0.0
      %v876 = vmax.f32 %v803, 0.0
      %v877 = vmax.f32 %v806, 0.0
      %v878 = vmax.f32 %v809, 0.0
      %v879 = vmax.f32 %v812, 0.0
      %v880 = vmax.f32 %v815, 0.0
      %v881 = vmax.f32 %v818, 0.0
      %v882 = vmax.f32 %v821, 0.0
      %v883 = vmax.f32 %v824, 0.0
      %v884 = vmax.f32 %v827, 0.0
      %v885 = vmax.f32 %v830, 0.0
      %v886 = vmax.f32 %v833, 0.0
      %v887 = vmax.f32 %v836, 0.0
      %v888 = vmax.f32 %v839, 0.0
      %v889 = vperm.slane %v248, 0
      %v891 = vsel %vm511, %v841, 0
      %v894 = vsel %vm511, %v842, 0
      %v897 = vsel %vm511, %v843, 0
      %v900 = vsel %vm511, %v844, 0
      %v903 = vsel %vm511, %v845, 0
      %v906 = vsel %vm511, %v846, 0
      %v909 = vsel %vm511, %v847, 0
      %v912 = vsel %vm511, %v848, 0
      %v915 = vsel %vm511, %v849, 0
      %v918 = vsel %vm511, %v850, 0
      %v921 = vsel %vm511, %v851, 0
      %v924 = vsel %vm511, %v852, 0
      %v927 = vsel %vm511, %v853, 0
      %v930 = vsel %vm511, %v854, 0
      %v933 = vsel %vm511, %v855, 0
      %v936 = vsel %vm511, %v856, 0
      %v939 = vsel %vm511, %v857, 0
      %v942 = vsel %vm511, %v858, 0
      %v945 = vsel %vm511, %v859, 0
      %v948 = vsel %vm511, %v860, 0
      %v951 = vsel %vm511, %v861, 0
      %v954 = vsel %vm511, %v862, 0
      %v957 = vsel %vm511, %v863, 0
      %v960 = vsel %vm511, %v864, 0
      %v963 = vsel %vm511, %v865, 0
      %v966 = vsel %vm511, %v866, 0
      %v969 = vsel %vm511, %v867, 0
      %v972 = vsel %vm511, %v868, 0
      %v975 = vsel %vm511, %v869, 0
      %v978 = vsel %vm511, %v870, 0
      %v981 = vsel %vm511, %v871, 0
      %v984 = vsel %vm511, %v872, 0
      %v987 = vsel %vm511, %v873, 0
      %v990 = vsel %vm511, %v874, 0
      %v993 = vsel %vm511, %v875, 0
      %v996 = vsel %vm511, %v876, 0
      %v999 = vsel %vm511, %v877, 0
      %v1002 = vsel %vm511, %v878, 0
      %v1005 = vsel %vm511, %v879, 0
      %v1008 = vsel %vm511, %v880, 0
      %v1011 = vsel %vm511, %v881, 0
      %v1014 = vsel %vm511, %v882, 0
      %v1017 = vsel %vm511, %v883, 0
      %v1020 = vsel %vm511, %v884, 0
      %v1023 = vsel %vm511, %v885, 0
      %v1026 = vsel %vm511, %v886, 0
      %v1029 = vsel %vm511, %v887, 0
      %v1032 = vsel %vm511, %v888, 0
      %v1035 = vsel %vm511, %v238, 0
      %v1038 = vsel %vm511, %v239, 0
      %v1041 = vsel %vm511, %v240, 0
      %v1044 = vsel %vm511, %v241, 0
      %v1047 = vsel %vm511, %v242, 0
      %v1050 = vsel %vm511, %v243, 0
      %v1053 = vsel %vm511, %v244, 0
      %v1056 = vsel %vm511, %v245, 0
      %1058 = vmatpush.xpose.msra.mxu0 0.0
      %1059 = vmatpush.xpose.msra.mxu0 0.0
      %1060 = vmatpush.xpose.msra.mxu0 0.0
      %1061 = vmatpush.xpose.msra.mxu0 0.0
      %1062 = vmatpush.xpose.msra.mxu0 0.0
      %1063 = vmatpush.xpose.msra.mxu0 0.0
      %1064 = vmatpush.xpose.msra.mxu0 0.0
      %1065 = vmatpush.xpose.msra.mxu0 0.0
      %1066 = vmatpush.xpose.msra.mxu0 %v1056
      %1067 = vmatpush.xpose.msra.mxu0 %v1053
      %1068 = vmatpush.xpose.msra.mxu0 %v1050
      %1069 = vmatpush.xpose.msra.mxu0 %v1047
      %1070 = vmatpush.xpose.msra.mxu0 %v1044
      %1071 = vmatpush.xpose.msra.mxu0 %v1041
      %1072 = vmatpush.xpose.msra.mxu0 %v1038
      %1073 = vmatpush.xpose.msra.mxu0 %v1035
      %1074 = vmatmul.f32.gmra.mxu0 %v891
      %v1075 = vpop.f32.mrf.mxu0
      %v1076 = vadd.f32 %v889, %v1075
      %1077 = vmatmul.f32.gmra.mxu0 %v894
      %v1078 = vpop.f32.mrf.mxu0
      %v1079 = vadd.f32 %v889, %v1078
      %1080 = vmatmul.f32.gmra.mxu0 %v897
      %v1081 = vpop.f32.mrf.mxu0
      %v1082 = vadd.f32 %v889, %v1081
      %1083 = vmatmul.f32.gmra.mxu0 %v900
      %v1084 = vpop.f32.mrf.mxu0
      %v1085 = vadd.f32 %v889, %v1084
      %1086 = vmatmul.f32.gmra.mxu0 %v903
      %v1087 = vpop.f32.mrf.mxu0
      %v1088 = vadd.f32 %v889, %v1087
      %1089 = vmatmul.f32.gmra.mxu0 %v906
      %v1090 = vpop.f32.mrf.mxu0
      %v1091 = vadd.f32 %v889, %v1090
      %1092 = vmatmul.f32.gmra.mxu0 %v909
      %v1093 = vpop.f32.mrf.mxu0
      %v1094 = vadd.f32 %v889, %v1093
      %1095 = vmatmul.f32.gmra.mxu0 %v912
      %v1096 = vpop.f32.mrf.mxu0
      %v1097 = vadd.f32 %v889, %v1096
      %1098 = vmatmul.f32.gmra.mxu0 %v915
      %v1099 = vpop.f32.mrf.mxu0
      %v1100 = vadd.f32 %v889, %v1099
      %1101 = vmatmul.f32.gmra.mxu0 %v918
      %v1102 = vpop.f32.mrf.mxu0
      %v1103 = vadd.f32 %v889, %v1102
      %1104 = vmatmul.f32.gmra.mxu0 %v921
      %v1105 = vpop.f32.mrf.mxu0
      %v1106 = vadd.f32 %v889, %v1105
      %1107 = vmatmul.f32.gmra.mxu0 %v924
      %v1108 = vpop.f32.mrf.mxu0
      %v1109 = vadd.f32 %v889, %v1108
      %1110 = vmatmul.f32.gmra.mxu0 %v927
      %v1111 = vpop.f32.mrf.mxu0
      %v1112 = vadd.f32 %v889, %v1111
      %1113 = vmatmul.f32.gmra.mxu0 %v930
      %v1114 = vpop.f32.mrf.mxu0
      %v1115 = vadd.f32 %v889, %v1114
      %1116 = vmatmul.f32.gmra.mxu0 %v933
      %v1117 = vpop.f32.mrf.mxu0
      %v1118 = vadd.f32 %v889, %v1117
      %1119 = vmatmul.f32.gmra.mxu0 %v936
      %v1120 = vpop.f32.mrf.mxu0
      %v1121 = vadd.f32 %v889, %v1120
      %1122 = vmatmul.f32.gmra.mxu0 %v939
      %v1123 = vpop.f32.mrf.mxu0
      %v1124 = vadd.f32 %v889, %v1123
      %1125 = vmatmul.f32.gmra.mxu0 %v942
      %v1126 = vpop.f32.mrf.mxu0
      %v1127 = vadd.f32 %v889, %v1126
      %1128 = vmatmul.f32.gmra.mxu0 %v945
      %v1129 = vpop.f32.mrf.mxu0
      %v1130 = vadd.f32 %v889, %v1129
      %1131 = vmatmul.f32.gmra.mxu0 %v948
      %v1132 = vpop.f32.mrf.mxu0
      %v1133 = vadd.f32 %v889, %v1132
      %1134 = vmatmul.f32.gmra.mxu0 %v951
      %v1135 = vpop.f32.mrf.mxu0
      %v1136 = vadd.f32 %v889, %v1135
      %1137 = vmatmul.f32.gmra.mxu0 %v954
      %v1138 = vpop.f32.mrf.mxu0
      %v1139 = vadd.f32 %v889, %v1138
      %1140 = vmatmul.f32.gmra.mxu0 %v957
      %v1141 = vpop.f32.mrf.mxu0
      %v1142 = vadd.f32 %v889, %v1141
      %1143 = vmatmul.f32.gmra.mxu0 %v960
      %v1144 = vpop.f32.mrf.mxu0
      %v1145 = vadd.f32 %v889, %v1144
      %1146 = vmatmul.f32.gmra.mxu0 %v963
      %v1147 = vpop.f32.mrf.mxu0
      %v1148 = vadd.f32 %v889, %v1147
      %1149 = vmatmul.f32.gmra.mxu0 %v966
      %v1150 = vpop.f32.mrf.mxu0
      %v1151 = vadd.f32 %v889, %v1150
      %1152 = vmatmul.f32.gmra.mxu0 %v969
      %v1153 = vpop.f32.mrf.mxu0
      %v1154 = vadd.f32 %v889, %v1153
      %1155 = vmatmul.f32.gmra.mxu0 %v972
      %v1156 = vpop.f32.mrf.mxu0
      %v1157 = vadd.f32 %v889, %v1156
      %1158 = vmatmul.f32.gmra.mxu0 %v975
      %v1159 = vpop.f32.mrf.mxu0
      %v1160 = vadd.f32 %v889, %v1159
      %1161 = vmatmul.f32.gmra.mxu0 %v978
      %v1162 = vpop.f32.mrf.mxu0
      %v1163 = vadd.f32 %v889, %v1162
      %1164 = vmatmul.f32.gmra.mxu0 %v981
      %v1165 = vpop.f32.mrf.mxu0
      %v1166 = vadd.f32 %v889, %v1165
      %1167 = vmatmul.f32.gmra.mxu0 %v984
      %v1168 = vpop.f32.mrf.mxu0
      %v1169 = vadd.f32 %v889, %v1168
      %1170 = vmatmul.f32.gmra.mxu0 %v987
      %v1171 = vpop.f32.mrf.mxu0
      %v1172 = vadd.f32 %v889, %v1171
      %1173 = vmatmul.f32.gmra.mxu0 %v990
      %v1174 = vpop.f32.mrf.mxu0
      %v1175 = vadd.f32 %v889, %v1174
      %1176 = vmatmul.f32.gmra.mxu0 %v993
      %v1177 = vpop.f32.mrf.mxu0
      %v1178 = vadd.f32 %v889, %v1177
      %1179 = vmatmul.f32.gmra.mxu0 %v996
      %v1180 = vpop.f32.mrf.mxu0
      %v1181 = vadd.f32 %v889, %v1180
      %1182 = vmatmul.f32.gmra.mxu0 %v999
      %v1183 = vpop.f32.mrf.mxu0
      %v1184 = vadd.f32 %v889, %v1183
      %1185 = vmatmul.f32.gmra.mxu0 %v1002
      %v1186 = vpop.f32.mrf.mxu0
      %v1187 = vadd.f32 %v889, %v1186
      %1188 = vmatmul.f32.gmra.mxu0 %v1005
      %v1189 = vpop.f32.mrf.mxu0
      %v1190 = vadd.f32 %v889, %v1189
      %1191 = vmatmul.f32.gmra.mxu0 %v1008
      %v1192 = vpop.f32.mrf.mxu0
      %v1193 = vadd.f32 %v889, %v1192
      %1194 = vmatmul.f32.gmra.mxu0 %v1011
      %v1195 = vpop.f32.mrf.mxu0
      %v1196 = vadd.f32 %v889, %v1195
      %1197 = vmatmul.f32.gmra.mxu0 %v1014
      %v1198 = vpop.f32.mrf.mxu0
      %v1199 = vadd.f32 %v889, %v1198
      %1200 = vmatmul.f32.gmra.mxu0 %v1017
      %v1201 = vpop.f32.mrf.mxu0
      %v1202 = vadd.f32 %v889, %v1201
      %1203 = vmatmul.f32.gmra.mxu0 %v1020
      %v1204 = vpop.f32.mrf.mxu0
      %v1205 = vadd.f32 %v889, %v1204
      %1206 = vmatmul.f32.gmra.mxu0 %v1023
      %v1207 = vpop.f32.mrf.mxu0
      %v1208 = vadd.f32 %v889, %v1207
      %1209 = vmatmul.f32.gmra.mxu0 %v1026
      %v1210 = vpop.f32.mrf.mxu0
      %v1211 = vadd.f32 %v889, %v1210
      %1212 = vmatmul.f32.gmra.mxu0 %v1029
      %v1213 = vpop.f32.mrf.mxu0
      %v1214 = vadd.f32 %v889, %v1213
      %1215 = vmatmul.f32.gmra.mxu0 %v1032
      %v1216 = vpop.f32.mrf.mxu0
      %v1217 = vadd.f32 %v889, %v1216
      %1218 = vdwg.mxu0
      %v1219 = vmax.f32 %v1076, 0.0
      %v1220 = vmax.f32 %v1079, 0.0
      %v1221 = vmax.f32 %v1082, 0.0
      %v1222 = vmax.f32 %v1085, 0.0
      %v1223 = vmax.f32 %v1088, 0.0
      %v1224 = vmax.f32 %v1091, 0.0
      %v1225 = vmax.f32 %v1094, 0.0
      %v1226 = vmax.f32 %v1097, 0.0
      %v1227 = vmax.f32 %v1100, 0.0
      %v1228 = vmax.f32 %v1103, 0.0
      %v1229 = vmax.f32 %v1106, 0.0
      %v1230 = vmax.f32 %v1109, 0.0
      %v1231 = vmax.f32 %v1112, 0.0
      %v1232 = vmax.f32 %v1115, 0.0
      %v1233 = vmax.f32 %v1118, 0.0
      %v1234 = vmax.f32 %v1121, 0.0
      %v1235 = vmax.f32 %v1124, 0.0
      %v1236 = vmax.f32 %v1127, 0.0
      %v1237 = vmax.f32 %v1130, 0.0
      %v1238 = vmax.f32 %v1133, 0.0
      %v1239 = vmax.f32 %v1136, 0.0
      %v1240 = vmax.f32 %v1139, 0.0
      %v1241 = vmax.f32 %v1142, 0.0
      %v1242 = vmax.f32 %v1145, 0.0
      %v1243 = vmax.f32 %v1148, 0.0
      %v1244 = vmax.f32 %v1151, 0.0
      %v1245 = vmax.f32 %v1154, 0.0
      %v1246 = vmax.f32 %v1157, 0.0
      %v1247 = vmax.f32 %v1160, 0.0
      %v1248 = vmax.f32 %v1163, 0.0
      %v1249 = vmax.f32 %v1166, 0.0
      %v1250 = vmax.f32 %v1169, 0.0
      %v1251 = vmax.f32 %v1172, 0.0
      %v1252 = vmax.f32 %v1175, 0.0
      %v1253 = vmax.f32 %v1178, 0.0
      %v1254 = vmax.f32 %v1181, 0.0
      %v1255 = vmax.f32 %v1184, 0.0
      %v1256 = vmax.f32 %v1187, 0.0
      %v1257 = vmax.f32 %v1190, 0.0
      %v1258 = vmax.f32 %v1193, 0.0
      %v1259 = vmax.f32 %v1196, 0.0
      %v1260 = vmax.f32 %v1199, 0.0
      %v1261 = vmax.f32 %v1202, 0.0
      %v1262 = vmax.f32 %v1205, 0.0
      %v1263 = vmax.f32 %v1208, 0.0
      %v1264 = vmax.f32 %v1211, 0.0
      %v1265 = vmax.f32 %v1214, 0.0
      %v1266 = vmax.f32 %v1217, 0.0
      %v1267 = vperm.slane %v249, 0
      %v1268 = vmul.f32 %v1219, %v1267
      %v1269 = vmul.f32 %v1220, %v1267
      %v1270 = vmul.f32 %v1221, %v1267
      %v1271 = vmul.f32 %v1222, %v1267
      %v1272 = vmul.f32 %v1223, %v1267
      %v1273 = vmul.f32 %v1224, %v1267
      %v1274 = vmul.f32 %v1225, %v1267
      %v1275 = vmul.f32 %v1226, %v1267
      %v1276 = vmul.f32 %v1227, %v1267
      %v1277 = vmul.f32 %v1228, %v1267
      %v1278 = vmul.f32 %v1229, %v1267
      %v1279 = vmul.f32 %v1230, %v1267
      %v1280 = vmul.f32 %v1231, %v1267
      %v1281 = vmul.f32 %v1232, %v1267
      %v1282 = vmul.f32 %v1233, %v1267
      %v1283 = vmul.f32 %v1234, %v1267
      %v1284 = vmul.f32 %v1235, %v1267
      %v1285 = vmul.f32 %v1236, %v1267
      %v1286 = vmul.f32 %v1237, %v1267
      %v1287 = vmul.f32 %v1238, %v1267
      %v1288 = vmul.f32 %v1239, %v1267
      %v1289 = vmul.f32 %v1240, %v1267
      %v1290 = vmul.f32 %v1241, %v1267
      %v1291 = vmul.f32 %v1242, %v1267
      %v1292 = vmul.f32 %v1243, %v1267
      %v1293 = vmul.f32 %v1244, %v1267
      %v1294 = vmul.f32 %v1245, %v1267
      %v1295 = vmul.f32 %v1246, %v1267
      %v1296 = vmul.f32 %v1247, %v1267
      %v1297 = vmul.f32 %v1248, %v1267
      %v1298 = vmul.f32 %v1249, %v1267
      %v1299 = vmul.f32 %v1250, %v1267
      %v1300 = vmul.f32 %v1251, %v1267
      %v1301 = vmul.f32 %v1252, %v1267
      %v1302 = vmul.f32 %v1253, %v1267
      %v1303 = vmul.f32 %v1254, %v1267
      %v1304 = vmul.f32 %v1255, %v1267
      %v1305 = vmul.f32 %v1256, %v1267
      %v1306 = vmul.f32 %v1257, %v1267
      %v1307 = vmul.f32 %v1258, %v1267
      %v1308 = vmul.f32 %v1259, %v1267
      %v1309 = vmul.f32 %v1260, %v1267
      %v1310 = vmul.f32 %v1261, %v1267
      %v1311 = vmul.f32 %v1262, %v1267
      %v1312 = vmul.f32 %v1263, %v1267
      %v1313 = vmul.f32 %v1264, %v1267
      %v1314 = vmul.f32 %v1265, %v1267
      %v1315 = vmul.f32 %v1266, %v1267
      %v1316 = vsel %vm511, %v1268, 0.0
      %1317 = vadd.xlane.f32.xlu0 %v1316
      %v1318 = vpop.xlane.xlu0 %1317
      %v1319 = vsel %vm511, %v1269, 0.0
      %1320 = vadd.xlane.f32.xlu0 %v1319
      %v1321 = vpop.xlane.xlu0 %1320
      %v1322 = vsel %vm511, %v1270, 0.0
      %1323 = vadd.xlane.f32.xlu0 %v1322
      %v1324 = vpop.xlane.xlu0 %1323
      %v1325 = vsel %vm511, %v1271, 0.0
      %1326 = vadd.xlane.f32.xlu0 %v1325
      %v1327 = vpop.xlane.xlu0 %1326
      %v1328 = vsel %vm511, %v1272, 0.0
      %1329 = vadd.xlane.f32.xlu0 %v1328
      %v1330 = vpop.xlane.xlu0 %1329
      %v1331 = vsel %vm511, %v1273, 0.0
      %1332 = vadd.xlane.f32.xlu0 %v1331
      %v1333 = vpop.xlane.xlu0 %1332
      %v1334 = vsel %vm511, %v1274, 0.0
      %1335 = vadd.xlane.f32.xlu0 %v1334
      %v1336 = vpop.xlane.xlu0 %1335
      %v1337 = vsel %vm511, %v1275, 0.0
      %1338 = vadd.xlane.f32.xlu0 %v1337
      %v1339 = vpop.xlane.xlu0 %1338
      %v1340 = vsel %vm511, %v1276, 0.0
      %1341 = vadd.xlane.f32.xlu0 %v1340
      %v1342 = vpop.xlane.xlu0 %1341
      %v1343 = vsel %vm511, %v1277, 0.0
      %1344 = vadd.xlane.f32.xlu0 %v1343
      %v1345 = vpop.xlane.xlu0 %1344
      %v1346 = vsel %vm511, %v1278, 0.0
      %1347 = vadd.xlane.f32.xlu0 %v1346
      %v1348 = vpop.xlane.xlu0 %1347
      %v1349 = vsel %vm511, %v1279, 0.0
      %1350 = vadd.xlane.f32.xlu0 %v1349
      %v1351 = vpop.xlane.xlu0 %1350
      %v1352 = vsel %vm511, %v1280, 0.0
      %1353 = vadd.xlane.f32.xlu0 %v1352
      %v1354 = vpop.xlane.xlu0 %1353
      %v1355 = vsel %vm511, %v1281, 0.0
      %1356 = vadd.xlane.f32.xlu0 %v1355
      %v1357 = vpop.xlane.xlu0 %1356
      %v1358 = vsel %vm511, %v1282, 0.0
      %1359 = vadd.xlane.f32.xlu0 %v1358
      %v1360 = vpop.xlane.xlu0 %1359
      %v1361 = vsel %vm511, %v1283, 0.0
      %1362 = vadd.xlane.f32.xlu0 %v1361
      %v1363 = vpop.xlane.xlu0 %1362
      %v1364 = vsel %vm511, %v1284, 0.0
      %1365 = vadd.xlane.f32.xlu0 %v1364
      %v1366 = vpop.xlane.xlu0 %1365
      %v1367 = vsel %vm511, %v1285, 0.0
      %1368 = vadd.xlane.f32.xlu0 %v1367
      %v1369 = vpop.xlane.xlu0 %1368
      %v1370 = vsel %vm511, %v1286, 0.0
      %1371 = vadd.xlane.f32.xlu0 %v1370
      %v1372 = vpop.xlane.xlu0 %1371
      %v1373 = vsel %vm511, %v1287, 0.0
      %1374 = vadd.xlane.f32.xlu0 %v1373
      %v1375 = vpop.xlane.xlu0 %1374
      %v1376 = vsel %vm511, %v1288, 0.0
      %1377 = vadd.xlane.f32.xlu0 %v1376
      %v1378 = vpop.xlane.xlu0 %1377
      %v1379 = vsel %vm511, %v1289, 0.0
      %1380 = vadd.xlane.f32.xlu0 %v1379
      %v1381 = vpop.xlane.xlu0 %1380
      %v1382 = vsel %vm511, %v1290, 0.0
      %1383 = vadd.xlane.f32.xlu0 %v1382
      %v1384 = vpop.xlane.xlu0 %1383
      %v1385 = vsel %vm511, %v1291, 0.0
      %1386 = vadd.xlane.f32.xlu0 %v1385
      %v1387 = vpop.xlane.xlu0 %1386
      %v1388 = vsel %vm511, %v1292, 0.0
      %1389 = vadd.xlane.f32.xlu0 %v1388
      %v1390 = vpop.xlane.xlu0 %1389
      %v1391 = vsel %vm511, %v1293, 0.0
      %1392 = vadd.xlane.f32.xlu0 %v1391
      %v1393 = vpop.xlane.xlu0 %1392
      %v1394 = vsel %vm511, %v1294, 0.0
      %1395 = vadd.xlane.f32.xlu0 %v1394
      %v1396 = vpop.xlane.xlu0 %1395
      %v1397 = vsel %vm511, %v1295, 0.0
      %1398 = vadd.xlane.f32.xlu0 %v1397
      %v1399 = vpop.xlane.xlu0 %1398
      %v1400 = vsel %vm511, %v1296, 0.0
      %1401 = vadd.xlane.f32.xlu0 %v1400
      %v1402 = vpop.xlane.xlu0 %1401
      %v1403 = vsel %vm511, %v1297, 0.0
      %1404 = vadd.xlane.f32.xlu0 %v1403
      %v1405 = vpop.xlane.xlu0 %1404
      %v1406 = vsel %vm511, %v1298, 0.0
      %1407 = vadd.xlane.f32.xlu0 %v1406
      %v1408 = vpop.xlane.xlu0 %1407
      %v1409 = vsel %vm511, %v1299, 0.0
      %1410 = vadd.xlane.f32.xlu0 %v1409
      %v1411 = vpop.xlane.xlu0 %1410
      %v1412 = vsel %vm511, %v1300, 0.0
      %1413 = vadd.xlane.f32.xlu0 %v1412
      %v1414 = vpop.xlane.xlu0 %1413
      %v1415 = vsel %vm511, %v1301, 0.0
      %1416 = vadd.xlane.f32.xlu0 %v1415
      %v1417 = vpop.xlane.xlu0 %1416
      %v1418 = vsel %vm511, %v1302, 0.0
      %1419 = vadd.xlane.f32.xlu0 %v1418
      %v1420 = vpop.xlane.xlu0 %1419
      %v1421 = vsel %vm511, %v1303, 0.0
      %1422 = vadd.xlane.f32.xlu0 %v1421
      %v1423 = vpop.xlane.xlu0 %1422
      %v1424 = vsel %vm511, %v1304, 0.0
      %1425 = vadd.xlane.f32.xlu0 %v1424
      %v1426 = vpop.xlane.xlu0 %1425
      %v1427 = vsel %vm511, %v1305, 0.0
      %1428 = vadd.xlane.f32.xlu0 %v1427
      %v1429 = vpop.xlane.xlu0 %1428
      %v1430 = vsel %vm511, %v1306, 0.0
      %1431 = vadd.xlane.f32.xlu0 %v1430
      %v1432 = vpop.xlane.xlu0 %1431
      %v1433 = vsel %vm511, %v1307, 0.0
      %1434 = vadd.xlane.f32.xlu0 %v1433
      %v1435 = vpop.xlane.xlu0 %1434
      %v1436 = vsel %vm511, %v1308, 0.0
      %1437 = vadd.xlane.f32.xlu0 %v1436
      %v1438 = vpop.xlane.xlu0 %1437
      %v1439 = vsel %vm511, %v1309, 0.0
      %1440 = vadd.xlane.f32.xlu0 %v1439
      %v1441 = vpop.xlane.xlu0 %1440
      %v1442 = vsel %vm511, %v1310, 0.0
      %1443 = vadd.xlane.f32.xlu0 %v1442
      %v1444 = vpop.xlane.xlu0 %1443
      %v1445 = vsel %vm511, %v1311, 0.0
      %1446 = vadd.xlane.f32.xlu0 %v1445
      %v1447 = vpop.xlane.xlu0 %1446
      %v1448 = vsel %vm511, %v1312, 0.0
      %1449 = vadd.xlane.f32.xlu0 %v1448
      %v1450 = vpop.xlane.xlu0 %1449
      %v1451 = vsel %vm511, %v1313, 0.0
      %1452 = vadd.xlane.f32.xlu0 %v1451
      %v1453 = vpop.xlane.xlu0 %1452
      %v1454 = vsel %vm511, %v1314, 0.0
      %1455 = vadd.xlane.f32.xlu0 %v1454
      %v1456 = vpop.xlane.xlu0 %1455
      %v1457 = vsel %vm511, %v1315, 0.0
      %1458 = vadd.xlane.f32.xlu0 %v1457
      %v1459 = vpop.xlane.xlu0 %1458
      %v1460 = vperm.slane %v250, 0
      %v1461 = vadd.f32 %v1318, %v1460
      %v1462 = vadd.f32 %v1321, %v1460
      %v1463 = vadd.f32 %v1324, %v1460
      %v1464 = vadd.f32 %v1327, %v1460
      %v1465 = vadd.f32 %v1330, %v1460
      %v1466 = vadd.f32 %v1333, %v1460
      %v1467 = vadd.f32 %v1336, %v1460
      %v1468 = vadd.f32 %v1339, %v1460
      %v1469 = vadd.f32 %v1342, %v1460
      %v1470 = vadd.f32 %v1345, %v1460
      %v1471 = vadd.f32 %v1348, %v1460
      %v1472 = vadd.f32 %v1351, %v1460
      %v1473 = vadd.f32 %v1354, %v1460
      %v1474 = vadd.f32 %v1357, %v1460
      %v1475 = vadd.f32 %v1360, %v1460
      %v1476 = vadd.f32 %v1363, %v1460
      %v1477 = vadd.f32 %v1366, %v1460
      %v1478 = vadd.f32 %v1369, %v1460
      %v1479 = vadd.f32 %v1372, %v1460
      %v1480 = vadd.f32 %v1375, %v1460
      %v1481 = vadd.f32 %v1378, %v1460
      %v1482 = vadd.f32 %v1381, %v1460
      %v1483 = vadd.f32 %v1384, %v1460
      %v1484 = vadd.f32 %v1387, %v1460
      %v1485 = vadd.f32 %v1390, %v1460
      %v1486 = vadd.f32 %v1393, %v1460
      %v1487 = vadd.f32 %v1396, %v1460
      %v1488 = vadd.f32 %v1399, %v1460
      %v1489 = vadd.f32 %v1402, %v1460
      %v1490 = vadd.f32 %v1405, %v1460
      %v1491 = vadd.f32 %v1408, %v1460
      %v1492 = vadd.f32 %v1411, %v1460
      %v1493 = vadd.f32 %v1414, %v1460
      %v1494 = vadd.f32 %v1417, %v1460
      %v1495 = vadd.f32 %v1420, %v1460
      %v1496 = vadd.f32 %v1423, %v1460
      %v1497 = vadd.f32 %v1426, %v1460
      %v1498 = vadd.f32 %v1429, %v1460
      %v1499 = vadd.f32 %v1432, %v1460
      %v1500 = vadd.f32 %v1435, %v1460
      %v1501 = vadd.f32 %v1438, %v1460
      %v1502 = vadd.f32 %v1441, %v1460
      %v1503 = vadd.f32 %v1444, %v1460
      %v1504 = vadd.f32 %v1447, %v1460
      %v1505 = vadd.f32 %v1450, %v1460
      %v1506 = vadd.f32 %v1453, %v1460
      %v1507 = vadd.f32 %v1456, %v1460
      %v1508 = vadd.f32 %v1459, %v1460
      %1557 = vrot.lane.b32.xlu0 %v252, 49
      %v1558 = vpop.permute.xlu0 %1557
      %1559 = vrot.lane.b32.xlu0 %v253, 49
      %v1560 = vpop.permute.xlu0 %1559
      %1561 = vrot.lane.b32.xlu0 %v254, 49
      %v1562 = vpop.permute.xlu0 %1561
      %1563 = vrot.lane.b32.xlu0 %v255, 49
      %v1564 = vpop.permute.xlu0 %1563
      %1565 = vrot.lane.b32.xlu0 %v256, 49
      %v1566 = vpop.permute.xlu0 %1565
      %1567 = vrot.lane.b32.xlu0 %v257, 49
      %v1568 = vpop.permute.xlu0 %1567
      %1569 = vrot.lane.b32.xlu0 %v258, 49
      %v1570 = vpop.permute.xlu0 %1569
      %1571 = vrot.lane.b32.xlu0 %v259, 49
      %v1572 = vpop.permute.xlu0 %1571
      %1573 = vrot.lane.b32.xlu0 %v260, 49
      %v1574 = vpop.permute.xlu0 %1573
      %1575 = vrot.lane.b32.xlu0 %v261, 49
      %v1576 = vpop.permute.xlu0 %1575
      %1577 = vrot.lane.b32.xlu0 %v262, 49
      %v1578 = vpop.permute.xlu0 %1577
      %1579 = vrot.lane.b32.xlu0 %v263, 49
      %v1580 = vpop.permute.xlu0 %1579
      %1581 = vrot.lane.b32.xlu0 %v264, 49
      %v1582 = vpop.permute.xlu0 %1581
      %1583 = vrot.lane.b32.xlu0 %v265, 49
      %v1584 = vpop.permute.xlu0 %1583
      %1585 = vrot.lane.b32.xlu0 %v266, 49
      %v1586 = vpop.permute.xlu0 %1585
      %1587 = vrot.lane.b32.xlu0 %v267, 49
      %v1588 = vpop.permute.xlu0 %1587
      %1589 = vrot.lane.b32.xlu0 %v268, 49
      %v1590 = vpop.permute.xlu0 %1589
      %1591 = vrot.lane.b32.xlu0 %v269, 49
      %v1592 = vpop.permute.xlu0 %1591
      %1593 = vrot.lane.b32.xlu0 %v270, 49
      %v1594 = vpop.permute.xlu0 %1593
      %1595 = vrot.lane.b32.xlu0 %v271, 49
      %v1596 = vpop.permute.xlu0 %1595
      %1597 = vrot.lane.b32.xlu0 %v272, 49
      %v1598 = vpop.permute.xlu0 %1597
      %1599 = vrot.lane.b32.xlu0 %v273, 49
      %v1600 = vpop.permute.xlu0 %1599
      %1601 = vrot.lane.b32.xlu0 %v274, 49
      %v1602 = vpop.permute.xlu0 %1601
      %1603 = vrot.lane.b32.xlu0 %v275, 49
      %v1604 = vpop.permute.xlu0 %1603
      %1605 = vrot.lane.b32.xlu0 %v276, 49
      %v1606 = vpop.permute.xlu0 %1605
      %1607 = vrot.lane.b32.xlu0 %v277, 49
      %v1608 = vpop.permute.xlu0 %1607
      %1609 = vrot.lane.b32.xlu0 %v278, 49
      %v1610 = vpop.permute.xlu0 %1609
      %1611 = vrot.lane.b32.xlu0 %v279, 49
      %v1612 = vpop.permute.xlu0 %1611
      %1613 = vrot.lane.b32.xlu0 %v280, 49
      %v1614 = vpop.permute.xlu0 %1613
      %1615 = vrot.lane.b32.xlu0 %v281, 49
      %v1616 = vpop.permute.xlu0 %1615
      %1617 = vrot.lane.b32.xlu0 %v282, 49
      %v1618 = vpop.permute.xlu0 %1617
      %1619 = vrot.lane.b32.xlu0 %v283, 49
      %v1620 = vpop.permute.xlu0 %1619
      %1621 = vrot.lane.b32.xlu0 %v284, 49
      %v1622 = vpop.permute.xlu0 %1621
      %1623 = vrot.lane.b32.xlu0 %v285, 49
      %v1624 = vpop.permute.xlu0 %1623
      %1625 = vrot.lane.b32.xlu0 %v286, 49
      %v1626 = vpop.permute.xlu0 %1625
      %1627 = vrot.lane.b32.xlu0 %v287, 49
      %v1628 = vpop.permute.xlu0 %1627
      %1629 = vrot.lane.b32.xlu0 %v288, 49
      %v1630 = vpop.permute.xlu0 %1629
      %1631 = vrot.lane.b32.xlu0 %v289, 49
      %v1632 = vpop.permute.xlu0 %1631
      %1633 = vrot.lane.b32.xlu0 %v290, 49
      %v1634 = vpop.permute.xlu0 %1633
      %1635 = vrot.lane.b32.xlu0 %v291, 49
      %v1636 = vpop.permute.xlu0 %1635
      %1637 = vrot.lane.b32.xlu0 %v292, 49
      %v1638 = vpop.permute.xlu0 %1637
      %1639 = vrot.lane.b32.xlu0 %v293, 49
      %v1640 = vpop.permute.xlu0 %1639
      %1641 = vrot.lane.b32.xlu0 %v294, 49
      %v1642 = vpop.permute.xlu0 %1641
      %1643 = vrot.lane.b32.xlu0 %v295, 49
      %v1644 = vpop.permute.xlu0 %1643
      %1645 = vrot.lane.b32.xlu0 %v296, 49
      %v1646 = vpop.permute.xlu0 %1645
      %1647 = vrot.lane.b32.xlu0 %v297, 49
      %v1648 = vpop.permute.xlu0 %1647
      %1649 = vrot.lane.b32.xlu0 %v298, 49
      %v1650 = vpop.permute.xlu0 %1649
      %1651 = vrot.lane.b32.xlu0 %v299, 49
      %v1652 = vpop.permute.xlu0 %1651
      %v1701 = vsub.f32 %v1461, %v1558
      %v1702 = vsub.f32 %v1462, %v1560
      %v1703 = vsub.f32 %v1463, %v1562
      %v1704 = vsub.f32 %v1464, %v1564
      %v1705 = vsub.f32 %v1465, %v1566
      %v1706 = vsub.f32 %v1466, %v1568
      %v1707 = vsub.f32 %v1467, %v1570
      %v1708 = vsub.f32 %v1468, %v1572
      %v1709 = vsub.f32 %v1469, %v1574
      %v1710 = vsub.f32 %v1470, %v1576
      %v1711 = vsub.f32 %v1471, %v1578
      %v1712 = vsub.f32 %v1472, %v1580
      %v1713 = vsub.f32 %v1473, %v1582
      %v1714 = vsub.f32 %v1474, %v1584
      %v1715 = vsub.f32 %v1475, %v1586
      %v1716 = vsub.f32 %v1476, %v1588
      %v1717 = vsub.f32 %v1477, %v1590
      %v1718 = vsub.f32 %v1478, %v1592
      %v1719 = vsub.f32 %v1479, %v1594
      %v1720 = vsub.f32 %v1480, %v1596
      %v1721 = vsub.f32 %v1481, %v1598
      %v1722 = vsub.f32 %v1482, %v1600
      %v1723 = vsub.f32 %v1483, %v1602
      %v1724 = vsub.f32 %v1484, %v1604
      %v1725 = vsub.f32 %v1485, %v1606
      %v1726 = vsub.f32 %v1486, %v1608
      %v1727 = vsub.f32 %v1487, %v1610
      %v1728 = vsub.f32 %v1488, %v1612
      %v1729 = vsub.f32 %v1489, %v1614
      %v1730 = vsub.f32 %v1490, %v1616
      %v1731 = vsub.f32 %v1491, %v1618
      %v1732 = vsub.f32 %v1492, %v1620
      %v1733 = vsub.f32 %v1493, %v1622
      %v1734 = vsub.f32 %v1494, %v1624
      %v1735 = vsub.f32 %v1495, %v1626
      %v1736 = vsub.f32 %v1496, %v1628
      %v1737 = vsub.f32 %v1497, %v1630
      %v1738 = vsub.f32 %v1498, %v1632
      %v1739 = vsub.f32 %v1499, %v1634
      %v1740 = vsub.f32 %v1500, %v1636
      %v1741 = vsub.f32 %v1501, %v1638
      %v1742 = vsub.f32 %v1502, %v1640
      %v1743 = vsub.f32 %v1503, %v1642
      %v1744 = vsub.f32 %v1504, %v1644
      %v1745 = vsub.f32 %v1505, %v1646
      %v1746 = vsub.f32 %v1506, %v1648
      %v1747 = vsub.f32 %v1507, %v1650
      %v1748 = vsub.f32 %v1508, %v1652
      %v1749 = vmul.f32 %v1701, 0.083333336
      %v1750 = vmul.f32 %v1702, 0.083333336
      %v1751 = vmul.f32 %v1703, 0.083333336
      %v1752 = vmul.f32 %v1704, 0.083333336
      %v1753 = vmul.f32 %v1705, 0.083333336
      %v1754 = vmul.f32 %v1706, 0.083333336
      %v1755 = vmul.f32 %v1707, 0.083333336
      %v1756 = vmul.f32 %v1708, 0.083333336
      %v1757 = vmul.f32 %v1709, 0.083333336
      %v1758 = vmul.f32 %v1710, 0.083333336
      %v1759 = vmul.f32 %v1711, 0.083333336
      %v1760 = vmul.f32 %v1712, 0.083333336
      %v1761 = vmul.f32 %v1713, 0.083333336
      %v1762 = vmul.f32 %v1714, 0.083333336
      %v1763 = vmul.f32 %v1715, 0.083333336
      %v1764 = vmul.f32 %v1716, 0.083333336
      %v1765 = vmul.f32 %v1717, 0.083333336
      %v1766 = vmul.f32 %v1718, 0.083333336
      %v1767 = vmul.f32 %v1719, 0.083333336
      %v1768 = vmul.f32 %v1720, 0.083333336
      %v1769 = vmul.f32 %v1721, 0.083333336
      %v1770 = vmul.f32 %v1722, 0.083333336
      %v1771 = vmul.f32 %v1723, 0.083333336
      %v1772 = vmul.f32 %v1724, 0.083333336
      %v1773 = vmul.f32 %v1725, 0.083333336
      %v1774 = vmul.f32 %v1726, 0.083333336
      %v1775 = vmul.f32 %v1727, 0.083333336
      %v1776 = vmul.f32 %v1728, 0.083333336
      %v1777 = vmul.f32 %v1729, 0.083333336
      %v1778 = vmul.f32 %v1730, 0.083333336
      %v1779 = vmul.f32 %v1731, 0.083333336
      %v1780 = vmul.f32 %v1732, 0.083333336
      %v1781 = vmul.f32 %v1733, 0.083333336
      %v1782 = vmul.f32 %v1734, 0.083333336
      %v1783 = vmul.f32 %v1735, 0.083333336
      %v1784 = vmul.f32 %v1736, 0.083333336
      %v1785 = vmul.f32 %v1737, 0.083333336
      %v1786 = vmul.f32 %v1738, 0.083333336
      %v1787 = vmul.f32 %v1739, 0.083333336
      %v1788 = vmul.f32 %v1740, 0.083333336
      %v1789 = vmul.f32 %v1741, 0.083333336
      %v1790 = vmul.f32 %v1742, 0.083333336
      %v1791 = vmul.f32 %v1743, 0.083333336
      %v1792 = vmul.f32 %v1744, 0.083333336
      %v1793 = vmul.f32 %v1745, 0.083333336
      %v1794 = vmul.f32 %v1746, 0.083333336
      %v1795 = vmul.f32 %v1747, 0.083333336
      %v1796 = vmul.f32 %v1748, 0.083333336
      %1798 = vset.pattern.permute.xlu0 1
      %1799 = vperm.xlu0 %1798, %v1749
      %v1800 = vpop.permute.xlu0 %1799
      %1803 = vset.pattern.permute.xlu0 1
      %1804 = vperm.xlu0 %1803, %v1750
      %v1805 = vpop.permute.xlu0 %1804
      %1808 = vset.pattern.permute.xlu0 1
      %1809 = vperm.xlu0 %1808, %v1751
      %v1810 = vpop.permute.xlu0 %1809
      %1813 = vset.pattern.permute.xlu0 1
      %1814 = vperm.xlu0 %1813, %v1752
      %v1815 = vpop.permute.xlu0 %1814
      %1818 = vset.pattern.permute.xlu0 1
      %1819 = vperm.xlu0 %1818, %v1753
      %v1820 = vpop.permute.xlu0 %1819
      %1823 = vset.pattern.permute.xlu0 1
      %1824 = vperm.xlu0 %1823, %v1754
      %v1825 = vpop.permute.xlu0 %1824
      %1828 = vset.pattern.permute.xlu0 1
      %1829 = vperm.xlu0 %1828, %v1755
      %v1830 = vpop.permute.xlu0 %1829
      %1833 = vset.pattern.permute.xlu0 1
      %1834 = vperm.xlu0 %1833, %v1756
      %v1835 = vpop.permute.xlu0 %1834
      %1838 = vset.pattern.permute.xlu0 1
      %1839 = vperm.xlu0 %1838, %v1757
      %v1840 = vpop.permute.xlu0 %1839
      %1843 = vset.pattern.permute.xlu0 1
      %1844 = vperm.xlu0 %1843, %v1758
      %v1845 = vpop.permute.xlu0 %1844
      %1848 = vset.pattern.permute.xlu0 1
      %1849 = vperm.xlu0 %1848, %v1759
      %v1850 = vpop.permute.xlu0 %1849
      %1853 = vset.pattern.permute.xlu0 1
      %1854 = vperm.xlu0 %1853, %v1760
      %v1855 = vpop.permute.xlu0 %1854
      %1858 = vset.pattern.permute.xlu0 1
      %1859 = vperm.xlu0 %1858, %v1761
      %v1860 = vpop.permute.xlu0 %1859
      %1863 = vset.pattern.permute.xlu0 1
      %1864 = vperm.xlu0 %1863, %v1762
      %v1865 = vpop.permute.xlu0 %1864
      %1868 = vset.pattern.permute.xlu0 1
      %1869 = vperm.xlu0 %1868, %v1763
      %v1870 = vpop.permute.xlu0 %1869
      %1873 = vset.pattern.permute.xlu0 1
      %1874 = vperm.xlu0 %1873, %v1764
      %v1875 = vpop.permute.xlu0 %1874
      %1878 = vset.pattern.permute.xlu0 1
      %1879 = vperm.xlu0 %1878, %v1765
      %v1880 = vpop.permute.xlu0 %1879
      %1883 = vset.pattern.permute.xlu0 1
      %1884 = vperm.xlu0 %1883, %v1766
      %v1885 = vpop.permute.xlu0 %1884
      %1888 = vset.pattern.permute.xlu0 1
      %1889 = vperm.xlu0 %1888, %v1767
      %v1890 = vpop.permute.xlu0 %1889
      %1893 = vset.pattern.permute.xlu0 1
      %1894 = vperm.xlu0 %1893, %v1768
      %v1895 = vpop.permute.xlu0 %1894
      %1898 = vset.pattern.permute.xlu0 1
      %1899 = vperm.xlu0 %1898, %v1769
      %v1900 = vpop.permute.xlu0 %1899
      %1903 = vset.pattern.permute.xlu0 1
      %1904 = vperm.xlu0 %1903, %v1770
      %v1905 = vpop.permute.xlu0 %1904
      %1908 = vset.pattern.permute.xlu0 1
      %1909 = vperm.xlu0 %1908, %v1771
      %v1910 = vpop.permute.xlu0 %1909
      %1913 = vset.pattern.permute.xlu0 1
      %1914 = vperm.xlu0 %1913, %v1772
      %v1915 = vpop.permute.xlu0 %1914
      %1918 = vset.pattern.permute.xlu0 1
      %1919 = vperm.xlu0 %1918, %v1773
      %v1920 = vpop.permute.xlu0 %1919
      %1923 = vset.pattern.permute.xlu0 1
      %1924 = vperm.xlu0 %1923, %v1774
      %v1925 = vpop.permute.xlu0 %1924
      %1928 = vset.pattern.permute.xlu0 1
      %1929 = vperm.xlu0 %1928, %v1775
      %v1930 = vpop.permute.xlu0 %1929
      %1933 = vset.pattern.permute.xlu0 1
      %1934 = vperm.xlu0 %1933, %v1776
      %v1935 = vpop.permute.xlu0 %1934
      %1938 = vset.pattern.permute.xlu0 1
      %1939 = vperm.xlu0 %1938, %v1777
      %v1940 = vpop.permute.xlu0 %1939
      %1943 = vset.pattern.permute.xlu0 1
      %1944 = vperm.xlu0 %1943, %v1778
      %v1945 = vpop.permute.xlu0 %1944
      %1948 = vset.pattern.permute.xlu0 1
      %1949 = vperm.xlu0 %1948, %v1779
      %v1950 = vpop.permute.xlu0 %1949
      %1953 = vset.pattern.permute.xlu0 1
      %1954 = vperm.xlu0 %1953, %v1780
      %v1955 = vpop.permute.xlu0 %1954
      %1958 = vset.pattern.permute.xlu0 1
      %1959 = vperm.xlu0 %1958, %v1781
      %v1960 = vpop.permute.xlu0 %1959
      %1963 = vset.pattern.permute.xlu0 1
      %1964 = vperm.xlu0 %1963, %v1782
      %v1965 = vpop.permute.xlu0 %1964
      %1968 = vset.pattern.permute.xlu0 1
      %1969 = vperm.xlu0 %1968, %v1783
      %v1970 = vpop.permute.xlu0 %1969
      %1973 = vset.pattern.permute.xlu0 1
      %1974 = vperm.xlu0 %1973, %v1784
      %v1975 = vpop.permute.xlu0 %1974
      %1978 = vset.pattern.permute.xlu0 1
      %1979 = vperm.xlu0 %1978, %v1785
      %v1980 = vpop.permute.xlu0 %1979
      %1983 = vset.pattern.permute.xlu0 1
      %1984 = vperm.xlu0 %1983, %v1786
      %v1985 = vpop.permute.xlu0 %1984
      %1988 = vset.pattern.permute.xlu0 1
      %1989 = vperm.xlu0 %1988, %v1787
      %v1990 = vpop.permute.xlu0 %1989
      %1993 = vset.pattern.permute.xlu0 1
      %1994 = vperm.xlu0 %1993, %v1788
      %v1995 = vpop.permute.xlu0 %1994
      %1998 = vset.pattern.permute.xlu0 1
      %1999 = vperm.xlu0 %1998, %v1789
      %v2000 = vpop.permute.xlu0 %1999
      %2003 = vset.pattern.permute.xlu0 1
      %2004 = vperm.xlu0 %2003, %v1790
      %v2005 = vpop.permute.xlu0 %2004
      %2008 = vset.pattern.permute.xlu0 1
      %2009 = vperm.xlu0 %2008, %v1791
      %v2010 = vpop.permute.xlu0 %2009
      %2013 = vset.pattern.permute.xlu0 1
      %2014 = vperm.xlu0 %2013, %v1792
      %v2015 = vpop.permute.xlu0 %2014
      %2018 = vset.pattern.permute.xlu0 1
      %2019 = vperm.xlu0 %2018, %v1793
      %v2020 = vpop.permute.xlu0 %2019
      %2023 = vset.pattern.permute.xlu0 1
      %2024 = vperm.xlu0 %2023, %v1794
      %v2025 = vpop.permute.xlu0 %2024
      %2028 = vset.pattern.permute.xlu0 1
      %2029 = vperm.xlu0 %2028, %v1795
      %v2030 = vpop.permute.xlu0 %2029
      %2033 = vset.pattern.permute.xlu0 1
      %2034 = vperm.xlu0 %2033, %v1796
      %v2035 = vpop.permute.xlu0 %2034
      %v2037 = vmul.f32 %v1800, %v1267
      %v2038 = vmul.f32 %v1805, %v1267
      %v2039 = vmul.f32 %v1810, %v1267
      %v2040 = vmul.f32 %v1815, %v1267
      %v2041 = vmul.f32 %v1820, %v1267
      %v2042 = vmul.f32 %v1825, %v1267
      %v2043 = vmul.f32 %v1830, %v1267
      %v2044 = vmul.f32 %v1835, %v1267
      %v2045 = vmul.f32 %v1840, %v1267
      %v2046 = vmul.f32 %v1845, %v1267
      %v2047 = vmul.f32 %v1850, %v1267
      %v2048 = vmul.f32 %v1855, %v1267
      %v2049 = vmul.f32 %v1860, %v1267
      %v2050 = vmul.f32 %v1865, %v1267
      %v2051 = vmul.f32 %v1870, %v1267
      %v2052 = vmul.f32 %v1875, %v1267
      %v2053 = vmul.f32 %v1880, %v1267
      %v2054 = vmul.f32 %v1885, %v1267
      %v2055 = vmul.f32 %v1890, %v1267
      %v2056 = vmul.f32 %v1895, %v1267
      %v2057 = vmul.f32 %v1900, %v1267
      %v2058 = vmul.f32 %v1905, %v1267
      %v2059 = vmul.f32 %v1910, %v1267
      %v2060 = vmul.f32 %v1915, %v1267
      %v2061 = vmul.f32 %v1920, %v1267
      %v2062 = vmul.f32 %v1925, %v1267
      %v2063 = vmul.f32 %v1930, %v1267
      %v2064 = vmul.f32 %v1935, %v1267
      %v2065 = vmul.f32 %v1940, %v1267
      %v2066 = vmul.f32 %v1945, %v1267
      %v2067 = vmul.f32 %v1950, %v1267
      %v2068 = vmul.f32 %v1955, %v1267
      %v2069 = vmul.f32 %v1960, %v1267
      %v2070 = vmul.f32 %v1965, %v1267
      %v2071 = vmul.f32 %v1970, %v1267
      %v2072 = vmul.f32 %v1975, %v1267
      %v2073 = vmul.f32 %v1980, %v1267
      %v2074 = vmul.f32 %v1985, %v1267
      %v2075 = vmul.f32 %v1990, %v1267
      %v2076 = vmul.f32 %v1995, %v1267
      %v2077 = vmul.f32 %v2000, %v1267
      %v2078 = vmul.f32 %v2005, %v1267
      %v2079 = vmul.f32 %v2010, %v1267
      %v2080 = vmul.f32 %v2015, %v1267
      %v2081 = vmul.f32 %v2020, %v1267
      %v2082 = vmul.f32 %v2025, %v1267
      %v2083 = vmul.f32 %v2030, %v1267
      %v2084 = vmul.f32 %v2035, %v1267
      %vm2085 = vcmp.gt.f32.partialorder %v1219, 0.0
      %vm2086 = vcmp.gt.f32.partialorder %v1220, 0.0
      %vm2087 = vcmp.gt.f32.partialorder %v1221, 0.0
      %vm2088 = vcmp.gt.f32.partialorder %v1222, 0.0
      %vm2089 = vcmp.gt.f32.partialorder %v1223, 0.0
      %vm2090 = vcmp.gt.f32.partialorder %v1224, 0.0
      %vm2091 = vcmp.gt.f32.partialorder %v1225, 0.0
      %vm2092 = vcmp.gt.f32.partialorder %v1226, 0.0
      %vm2093 = vcmp.gt.f32.partialorder %v1227, 0.0
      %vm2094 = vcmp.gt.f32.partialorder %v1228, 0.0
      %vm2095 = vcmp.gt.f32.partialorder %v1229, 0.0
      %vm2096 = vcmp.gt.f32.partialorder %v1230, 0.0
      %vm2097 = vcmp.gt.f32.partialorder %v1231, 0.0
      %vm2098 = vcmp.gt.f32.partialorder %v1232, 0.0
      %vm2099 = vcmp.gt.f32.partialorder %v1233, 0.0
      %vm2100 = vcmp.gt.f32.partialorder %v1234, 0.0
      %vm2101 = vcmp.gt.f32.partialorder %v1235, 0.0
      %vm2102 = vcmp.gt.f32.partialorder %v1236, 0.0
      %vm2103 = vcmp.gt.f32.partialorder %v1237, 0.0
      %vm2104 = vcmp.gt.f32.partialorder %v1238, 0.0
      %vm2105 = vcmp.gt.f32.partialorder %v1239, 0.0
      %vm2106 = vcmp.gt.f32.partialorder %v1240, 0.0
      %vm2107 = vcmp.gt.f32.partialorder %v1241, 0.0
      %vm2108 = vcmp.gt.f32.partialorder %v1242, 0.0
      %vm2109 = vcmp.gt.f32.partialorder %v1243, 0.0
      %vm2110 = vcmp.gt.f32.partialorder %v1244, 0.0
      %vm2111 = vcmp.gt.f32.partialorder %v1245, 0.0
      %vm2112 = vcmp.gt.f32.partialorder %v1246, 0.0
      %vm2113 = vcmp.gt.f32.partialorder %v1247, 0.0
      %vm2114 = vcmp.gt.f32.partialorder %v1248, 0.0
      %vm2115 = vcmp.gt.f32.partialorder %v1249, 0.0
      %vm2116 = vcmp.gt.f32.partialorder %v1250, 0.0
      %vm2117 = vcmp.gt.f32.partialorder %v1251, 0.0
      %vm2118 = vcmp.gt.f32.partialorder %v1252, 0.0
      %vm2119 = vcmp.gt.f32.partialorder %v1253, 0.0
      %vm2120 = vcmp.gt.f32.partialorder %v1254, 0.0
      %vm2121 = vcmp.gt.f32.partialorder %v1255, 0.0
      %vm2122 = vcmp.gt.f32.partialorder %v1256, 0.0
      %vm2123 = vcmp.gt.f32.partialorder %v1257, 0.0
      %vm2124 = vcmp.gt.f32.partialorder %v1258, 0.0
      %vm2125 = vcmp.gt.f32.partialorder %v1259, 0.0
      %vm2126 = vcmp.gt.f32.partialorder %v1260, 0.0
      %vm2127 = vcmp.gt.f32.partialorder %v1261, 0.0
      %vm2128 = vcmp.gt.f32.partialorder %v1262, 0.0
      %vm2129 = vcmp.gt.f32.partialorder %v1263, 0.0
      %vm2130 = vcmp.gt.f32.partialorder %v1264, 0.0
      %vm2131 = vcmp.gt.f32.partialorder %v1265, 0.0
      %vm2132 = vcmp.gt.f32.partialorder %v1266, 0.0
      %v2133 = vsel %vm2085, %v2037, 0.0
      %v2134 = vsel %vm2086, %v2038, 0.0
      %v2135 = vsel %vm2087, %v2039, 0.0
      %v2136 = vsel %vm2088, %v2040, 0.0
      %v2137 = vsel %vm2089, %v2041, 0.0
      %v2138 = vsel %vm2090, %v2042, 0.0
      %v2139 = vsel %vm2091, %v2043, 0.0
      %v2140 = vsel %vm2092, %v2044, 0.0
      %v2141 = vsel %vm2093, %v2045, 0.0
      %v2142 = vsel %vm2094, %v2046, 0.0
      %v2143 = vsel %vm2095, %v2047, 0.0
      %v2144 = vsel %vm2096, %v2048, 0.0
      %v2145 = vsel %vm2097, %v2049, 0.0
      %v2146 = vsel %vm2098, %v2050, 0.0
      %v2147 = vsel %vm2099, %v2051, 0.0
      %v2148 = vsel %vm2100, %v2052, 0.0
      %v2149 = vsel %vm2101, %v2053, 0.0
      %v2150 = vsel %vm2102, %v2054, 0.0
      %v2151 = vsel %vm2103, %v2055, 0.0
      %v2152 = vsel %vm2104, %v2056, 0.0
      %v2153 = vsel %vm2105, %v2057, 0.0
      %v2154 = vsel %vm2106, %v2058, 0.0
      %v2155 = vsel %vm2107, %v2059, 0.0
      %v2156 = vsel %vm2108, %v2060, 0.0
      %v2157 = vsel %vm2109, %v2061, 0.0
      %v2158 = vsel %vm2110, %v2062, 0.0
      %v2159 = vsel %vm2111, %v2063, 0.0
      %v2160 = vsel %vm2112, %v2064, 0.0
      %v2161 = vsel %vm2113, %v2065, 0.0
      %v2162 = vsel %vm2114, %v2066, 0.0
      %v2163 = vsel %vm2115, %v2067, 0.0
      %v2164 = vsel %vm2116, %v2068, 0.0
      %v2165 = vsel %vm2117, %v2069, 0.0
      %v2166 = vsel %vm2118, %v2070, 0.0
      %v2167 = vsel %vm2119, %v2071, 0.0
      %v2168 = vsel %vm2120, %v2072, 0.0
      %v2169 = vsel %vm2121, %v2073, 0.0
      %v2170 = vsel %vm2122, %v2074, 0.0
      %v2171 = vsel %vm2123, %v2075, 0.0
      %v2172 = vsel %vm2124, %v2076, 0.0
      %v2173 = vsel %vm2125, %v2077, 0.0
      %v2174 = vsel %vm2126, %v2078, 0.0
      %v2175 = vsel %vm2127, %v2079, 0.0
      %v2176 = vsel %vm2128, %v2080, 0.0
      %v2177 = vsel %vm2129, %v2081, 0.0
      %v2178 = vsel %vm2130, %v2082, 0.0
      %v2179 = vsel %vm2131, %v2083, 0.0
      %v2180 = vsel %vm2132, %v2084, 0.0
      %v2182 = vsel %vm511, %v2133, 0
      %v2185 = vsel %vm511, %v2134, 0
      %v2188 = vsel %vm511, %v2135, 0
      %v2191 = vsel %vm511, %v2136, 0
      %v2194 = vsel %vm511, %v2137, 0
      %v2197 = vsel %vm511, %v2138, 0
      %v2200 = vsel %vm511, %v2139, 0
      %v2203 = vsel %vm511, %v2140, 0
      %v2206 = vsel %vm511, %v2141, 0
      %v2209 = vsel %vm511, %v2142, 0
      %v2212 = vsel %vm511, %v2143, 0
      %v2215 = vsel %vm511, %v2144, 0
      %v2218 = vsel %vm511, %v2145, 0
      %v2221 = vsel %vm511, %v2146, 0
      %v2224 = vsel %vm511, %v2147, 0
      %v2227 = vsel %vm511, %v2148, 0
      %v2230 = vsel %vm511, %v2149, 0
      %v2233 = vsel %vm511, %v2150, 0
      %v2236 = vsel %vm511, %v2151, 0
      %v2239 = vsel %vm511, %v2152, 0
      %v2242 = vsel %vm511, %v2153, 0
      %v2245 = vsel %vm511, %v2154, 0
      %v2248 = vsel %vm511, %v2155, 0
      %v2251 = vsel %vm511, %v2156, 0
      %v2254 = vsel %vm511, %v2157, 0
      %v2257 = vsel %vm511, %v2158, 0
      %v2260 = vsel %vm511, %v2159, 0
      %v2263 = vsel %vm511, %v2160, 0
      %v2266 = vsel %vm511, %v2161, 0
      %v2269 = vsel %vm511, %v2162, 0
      %v2272 = vsel %vm511, %v2163, 0
      %v2275 = vsel %vm511, %v2164, 0
      %v2278 = vsel %vm511, %v2165, 0
      %v2281 = vsel %vm511, %v2166, 0
      %v2284 = vsel %vm511, %v2167, 0
      %v2287 = vsel %vm511, %v2168, 0
      %v2290 = vsel %vm511, %v2169, 0
      %v2293 = vsel %vm511, %v2170, 0
      %v2296 = vsel %vm511, %v2171, 0
      %v2299 = vsel %vm511, %v2172, 0
      %v2302 = vsel %vm511, %v2173, 0
      %v2305 = vsel %vm511, %v2174, 0
      %v2308 = vsel %vm511, %v2175, 0
      %v2311 = vsel %vm511, %v2176, 0
      %v2314 = vsel %vm511, %v2177, 0
      %v2317 = vsel %vm511, %v2178, 0
      %v2320 = vsel %vm511, %v2179, 0
      %v2323 = vsel %vm511, %v2180, 0
      %2325 = vmatpush.msra.mxu0 0.0
      %2326 = vmatpush.msra.mxu0 0.0
      %2327 = vmatpush.msra.mxu0 0.0
      %2328 = vmatpush.msra.mxu0 0.0
      %2329 = vmatpush.msra.mxu0 0.0
      %2330 = vmatpush.msra.mxu0 0.0
      %2331 = vmatpush.msra.mxu0 0.0
      %2332 = vmatpush.msra.mxu0 0.0
      %2333 = vmatpush.msra.mxu0 %v245
      %2334 = vmatpush.msra.mxu0 %v244
      %2335 = vmatpush.msra.mxu0 %v243
      %2336 = vmatpush.msra.mxu0 %v242
      %2337 = vmatpush.msra.mxu0 %v241
      %2338 = vmatpush.msra.mxu0 %v240
      %2339 = vmatpush.msra.mxu0 %v239
      %2340 = vmatpush.msra.mxu0 %v238
      %2341 = vmatmul.f32.gmra.mxu0 %v2182
      %v2342 = vpop.f32.mrf.mxu0
      %v2343 = vadd.f32 0.0, %v2342
      %2344 = vmatmul.f32.gmra.mxu0 %v2185
      %v2345 = vpop.f32.mrf.mxu0
      %v2346 = vadd.f32 0.0, %v2345
      %2347 = vmatmul.f32.gmra.mxu0 %v2188
      %v2348 = vpop.f32.mrf.mxu0
      %v2349 = vadd.f32 0.0, %v2348
      %2350 = vmatmul.f32.gmra.mxu0 %v2191
      %v2351 = vpop.f32.mrf.mxu0
      %v2352 = vadd.f32 0.0, %v2351
      %2353 = vmatmul.f32.gmra.mxu0 %v2194
      %v2354 = vpop.f32.mrf.mxu0
      %v2355 = vadd.f32 0.0, %v2354
      %2356 = vmatmul.f32.gmra.mxu0 %v2197
      %v2357 = vpop.f32.mrf.mxu0
      %v2358 = vadd.f32 0.0, %v2357
      %2359 = vmatmul.f32.gmra.mxu0 %v2200
      %v2360 = vpop.f32.mrf.mxu0
      %v2361 = vadd.f32 0.0, %v2360
      %2362 = vmatmul.f32.gmra.mxu0 %v2203
      %v2363 = vpop.f32.mrf.mxu0
      %v2364 = vadd.f32 0.0, %v2363
      %2365 = vmatmul.f32.gmra.mxu0 %v2206
      %v2366 = vpop.f32.mrf.mxu0
      %v2367 = vadd.f32 0.0, %v2366
      %2368 = vmatmul.f32.gmra.mxu0 %v2209
      %v2369 = vpop.f32.mrf.mxu0
      %v2370 = vadd.f32 0.0, %v2369
      %2371 = vmatmul.f32.gmra.mxu0 %v2212
      %v2372 = vpop.f32.mrf.mxu0
      %v2373 = vadd.f32 0.0, %v2372
      %2374 = vmatmul.f32.gmra.mxu0 %v2215
      %v2375 = vpop.f32.mrf.mxu0
      %v2376 = vadd.f32 0.0, %v2375
      %2377 = vmatmul.f32.gmra.mxu0 %v2218
      %v2378 = vpop.f32.mrf.mxu0
      %v2379 = vadd.f32 0.0, %v2378
      %2380 = vmatmul.f32.gmra.mxu0 %v2221
      %v2381 = vpop.f32.mrf.mxu0
      %v2382 = vadd.f32 0.0, %v2381
      %2383 = vmatmul.f32.gmra.mxu0 %v2224
      %v2384 = vpop.f32.mrf.mxu0
      %v2385 = vadd.f32 0.0, %v2384
      %2386 = vmatmul.f32.gmra.mxu0 %v2227
      %v2387 = vpop.f32.mrf.mxu0
      %v2388 = vadd.f32 0.0, %v2387
      %2389 = vmatmul.f32.gmra.mxu0 %v2230
      %v2390 = vpop.f32.mrf.mxu0
      %v2391 = vadd.f32 0.0, %v2390
      %2392 = vmatmul.f32.gmra.mxu0 %v2233
      %v2393 = vpop.f32.mrf.mxu0
      %v2394 = vadd.f32 0.0, %v2393
      %2395 = vmatmul.f32.gmra.mxu0 %v2236
      %v2396 = vpop.f32.mrf.mxu0
      %v2397 = vadd.f32 0.0, %v2396
      %2398 = vmatmul.f32.gmra.mxu0 %v2239
      %v2399 = vpop.f32.mrf.mxu0
      %v2400 = vadd.f32 0.0, %v2399
      %2401 = vmatmul.f32.gmra.mxu0 %v2242
      %v2402 = vpop.f32.mrf.mxu0
      %v2403 = vadd.f32 0.0, %v2402
      %2404 = vmatmul.f32.gmra.mxu0 %v2245
      %v2405 = vpop.f32.mrf.mxu0
      %v2406 = vadd.f32 0.0, %v2405
      %2407 = vmatmul.f32.gmra.mxu0 %v2248
      %v2408 = vpop.f32.mrf.mxu0
      %v2409 = vadd.f32 0.0, %v2408
      %2410 = vmatmul.f32.gmra.mxu0 %v2251
      %v2411 = vpop.f32.mrf.mxu0
      %v2412 = vadd.f32 0.0, %v2411
      %2413 = vmatmul.f32.gmra.mxu0 %v2254
      %v2414 = vpop.f32.mrf.mxu0
      %v2415 = vadd.f32 0.0, %v2414
      %2416 = vmatmul.f32.gmra.mxu0 %v2257
      %v2417 = vpop.f32.mrf.mxu0
      %v2418 = vadd.f32 0.0, %v2417
      %2419 = vmatmul.f32.gmra.mxu0 %v2260
      %v2420 = vpop.f32.mrf.mxu0
      %v2421 = vadd.f32 0.0, %v2420
      %2422 = vmatmul.f32.gmra.mxu0 %v2263
      %v2423 = vpop.f32.mrf.mxu0
      %v2424 = vadd.f32 0.0, %v2423
      %2425 = vmatmul.f32.gmra.mxu0 %v2266
      %v2426 = vpop.f32.mrf.mxu0
      %v2427 = vadd.f32 0.0, %v2426
      %2428 = vmatmul.f32.gmra.mxu0 %v2269
      %v2429 = vpop.f32.mrf.mxu0
      %v2430 = vadd.f32 0.0, %v2429
      %2431 = vmatmul.f32.gmra.mxu0 %v2272
      %v2432 = vpop.f32.mrf.mxu0
      %v2433 = vadd.f32 0.0, %v2432
      %2434 = vmatmul.f32.gmra.mxu0 %v2275
      %v2435 = vpop.f32.mrf.mxu0
      %v2436 = vadd.f32 0.0, %v2435
      %2437 = vmatmul.f32.gmra.mxu0 %v2278
      %v2438 = vpop.f32.mrf.mxu0
      %v2439 = vadd.f32 0.0, %v2438
      %2440 = vmatmul.f32.gmra.mxu0 %v2281
      %v2441 = vpop.f32.mrf.mxu0
      %v2442 = vadd.f32 0.0, %v2441
      %2443 = vmatmul.f32.gmra.mxu0 %v2284
      %v2444 = vpop.f32.mrf.mxu0
      %v2445 = vadd.f32 0.0, %v2444
      %2446 = vmatmul.f32.gmra.mxu0 %v2287
      %v2447 = vpop.f32.mrf.mxu0
      %v2448 = vadd.f32 0.0, %v2447
      %2449 = vmatmul.f32.gmra.mxu0 %v2290
      %v2450 = vpop.f32.mrf.mxu0
      %v2451 = vadd.f32 0.0, %v2450
      %2452 = vmatmul.f32.gmra.mxu0 %v2293
      %v2453 = vpop.f32.mrf.mxu0
      %v2454 = vadd.f32 0.0, %v2453
      %2455 = vmatmul.f32.gmra.mxu0 %v2296
      %v2456 = vpop.f32.mrf.mxu0
      %v2457 = vadd.f32 0.0, %v2456
      %2458 = vmatmul.f32.gmra.mxu0 %v2299
      %v2459 = vpop.f32.mrf.mxu0
      %v2460 = vadd.f32 0.0, %v2459
      %2461 = vmatmul.f32.gmra.mxu0 %v2302
      %v2462 = vpop.f32.mrf.mxu0
      %v2463 = vadd.f32 0.0, %v2462
      %2464 = vmatmul.f32.gmra.mxu0 %v2305
      %v2465 = vpop.f32.mrf.mxu0
      %v2466 = vadd.f32 0.0, %v2465
      %2467 = vmatmul.f32.gmra.mxu0 %v2308
      %v2468 = vpop.f32.mrf.mxu0
      %v2469 = vadd.f32 0.0, %v2468
      %2470 = vmatmul.f32.gmra.mxu0 %v2311
      %v2471 = vpop.f32.mrf.mxu0
      %v2472 = vadd.f32 0.0, %v2471
      %2473 = vmatmul.f32.gmra.mxu0 %v2314
      %v2474 = vpop.f32.mrf.mxu0
      %v2475 = vadd.f32 0.0, %v2474
      %2476 = vmatmul.f32.gmra.mxu0 %v2317
      %v2477 = vpop.f32.mrf.mxu0
      %v2478 = vadd.f32 0.0, %v2477
      %2479 = vmatmul.f32.gmra.mxu0 %v2320
      %v2480 = vpop.f32.mrf.mxu0
      %v2481 = vadd.f32 0.0, %v2480
      %2482 = vmatmul.f32.gmra.mxu0 %v2323
      %v2483 = vpop.f32.mrf.mxu0
      %v2484 = vadd.f32 0.0, %v2483
      %2485 = vdwg.mxu0
      %vm2486 = vcmp.gt.f32.partialorder %v841, 0.0
      %vm2487 = vcmp.gt.f32.partialorder %v842, 0.0
      %vm2488 = vcmp.gt.f32.partialorder %v843, 0.0
      %vm2489 = vcmp.gt.f32.partialorder %v844, 0.0
      %vm2490 = vcmp.gt.f32.partialorder %v845, 0.0
      %vm2491 = vcmp.gt.f32.partialorder %v846, 0.0
      %vm2492 = vcmp.gt.f32.partialorder %v847, 0.0
      %vm2493 = vcmp.gt.f32.partialorder %v848, 0.0
      %vm2494 = vcmp.gt.f32.partialorder %v849, 0.0
      %vm2495 = vcmp.gt.f32.partialorder %v850, 0.0
      %vm2496 = vcmp.gt.f32.partialorder %v851, 0.0
      %vm2497 = vcmp.gt.f32.partialorder %v852, 0.0
      %vm2498 = vcmp.gt.f32.partialorder %v853, 0.0
      %vm2499 = vcmp.gt.f32.partialorder %v854, 0.0
      %vm2500 = vcmp.gt.f32.partialorder %v855, 0.0
      %vm2501 = vcmp.gt.f32.partialorder %v856, 0.0
      %vm2502 = vcmp.gt.f32.partialorder %v857, 0.0
      %vm2503 = vcmp.gt.f32.partialorder %v858, 0.0
      %vm2504 = vcmp.gt.f32.partialorder %v859, 0.0
      %vm2505 = vcmp.gt.f32.partialorder %v860, 0.0
      %vm2506 = vcmp.gt.f32.partialorder %v861, 0.0
      %vm2507 = vcmp.gt.f32.partialorder %v862, 0.0
      %vm2508 = vcmp.gt.f32.partialorder %v863, 0.0
      %vm2509 = vcmp.gt.f32.partialorder %v864, 0.0
      %vm2510 = vcmp.gt.f32.partialorder %v865, 0.0
      %vm2511 = vcmp.gt.f32.partialorder %v866, 0.0
      %vm2512 = vcmp.gt.f32.partialorder %v867, 0.0
      %vm2513 = vcmp.gt.f32.partialorder %v868, 0.0
      %vm2514 = vcmp.gt.f32.partialorder %v869, 0.0
      %vm2515 = vcmp.gt.f32.partialorder %v870, 0.0
      %vm2516 = vcmp.gt.f32.partialorder %v871, 0.0
      %vm2517 = vcmp.gt.f32.partialorder %v872, 0.0
      %vm2518 = vcmp.gt.f32.partialorder %v873, 0.0
      %vm2519 = vcmp.gt.f32.partialorder %v874, 0.0
      %vm2520 = vcmp.gt.f32.partialorder %v875, 0.0
      %vm2521 = vcmp.gt.f32.partialorder %v876, 0.0
      %vm2522 = vcmp.gt.f32.partialorder %v877, 0.0
      %vm2523 = vcmp.gt.f32.partialorder %v878, 0.0
      %vm2524 = vcmp.gt.f32.partialorder %v879, 0.0
      %vm2525 = vcmp.gt.f32.partialorder %v880, 0.0
      %vm2526 = vcmp.gt.f32.partialorder %v881, 0.0
      %vm2527 = vcmp.gt.f32.partialorder %v882, 0.0
      %vm2528 = vcmp.gt.f32.partialorder %v883, 0.0
      %vm2529 = vcmp.gt.f32.partialorder %v884, 0.0
      %vm2530 = vcmp.gt.f32.partialorder %v885, 0.0
      %vm2531 = vcmp.gt.f32.partialorder %v886, 0.0
      %vm2532 = vcmp.gt.f32.partialorder %v887, 0.0
      %vm2533 = vcmp.gt.f32.partialorder %v888, 0.0
      %v2534 = vsel %vm2486, %v2343, 0.0
      %v2535 = vsel %vm2487, %v2346, 0.0
      %v2536 = vsel %vm2488, %v2349, 0.0
      %v2537 = vsel %vm2489, %v2352, 0.0
      %v2538 = vsel %vm2490, %v2355, 0.0
      %v2539 = vsel %vm2491, %v2358, 0.0
      %v2540 = vsel %vm2492, %v2361, 0.0
      %v2541 = vsel %vm2493, %v2364, 0.0
      %v2542 = vsel %vm2494, %v2367, 0.0
      %v2543 = vsel %vm2495, %v2370, 0.0
      %v2544 = vsel %vm2496, %v2373, 0.0
      %v2545 = vsel %vm2497, %v2376, 0.0
      %v2546 = vsel %vm2498, %v2379, 0.0
      %v2547 = vsel %vm2499, %v2382, 0.0
      %v2548 = vsel %vm2500, %v2385, 0.0
      %v2549 = vsel %vm2501, %v2388, 0.0
      %v2550 = vsel %vm2502, %v2391, 0.0
      %v2551 = vsel %vm2503, %v2394, 0.0
      %v2552 = vsel %vm2504, %v2397, 0.0
      %v2553 = vsel %vm2505, %v2400, 0.0
      %v2554 = vsel %vm2506, %v2403, 0.0
      %v2555 = vsel %vm2507, %v2406, 0.0
      %v2556 = vsel %vm2508, %v2409, 0.0
      %v2557 = vsel %vm2509, %v2412, 0.0
      %v2558 = vsel %vm2510, %v2415, 0.0
      %v2559 = vsel %vm2511, %v2418, 0.0
      %v2560 = vsel %vm2512, %v2421, 0.0
      %v2561 = vsel %vm2513, %v2424, 0.0
      %v2562 = vsel %vm2514, %v2427, 0.0
      %v2563 = vsel %vm2515, %v2430, 0.0
      %v2564 = vsel %vm2516, %v2433, 0.0
      %v2565 = vsel %vm2517, %v2436, 0.0
      %v2566 = vsel %vm2518, %v2439, 0.0
      %v2567 = vsel %vm2519, %v2442, 0.0
      %v2568 = vsel %vm2520, %v2445, 0.0
      %v2569 = vsel %vm2521, %v2448, 0.0
      %v2570 = vsel %vm2522, %v2451, 0.0
      %v2571 = vsel %vm2523, %v2454, 0.0
      %v2572 = vsel %vm2524, %v2457, 0.0
      %v2573 = vsel %vm2525, %v2460, 0.0
      %v2574 = vsel %vm2526, %v2463, 0.0
      %v2575 = vsel %vm2527, %v2466, 0.0
      %v2576 = vsel %vm2528, %v2469, 0.0
      %v2577 = vsel %vm2529, %v2472, 0.0
      %v2578 = vsel %vm2530, %v2475, 0.0
      %v2579 = vsel %vm2531, %v2478, 0.0
      %v2580 = vsel %vm2532, %v2481, 0.0
      %v2581 = vsel %vm2533, %v2484, 0.0
      %v2583 = vsel %vm511, %v2534, 0
      %v2586 = vsel %vm511, %v2535, 0
      %v2589 = vsel %vm511, %v2536, 0
      %v2592 = vsel %vm511, %v2537, 0
      %v2595 = vsel %vm511, %v2538, 0
      %v2598 = vsel %vm511, %v2539, 0
      %v2601 = vsel %vm511, %v2540, 0
      %v2604 = vsel %vm511, %v2541, 0
      %v2607 = vsel %vm511, %v2542, 0
      %v2610 = vsel %vm511, %v2543, 0
      %v2613 = vsel %vm511, %v2544, 0
      %v2616 = vsel %vm511, %v2545, 0
      %v2619 = vsel %vm511, %v2546, 0
      %v2622 = vsel %vm511, %v2547, 0
      %v2625 = vsel %vm511, %v2548, 0
      %v2628 = vsel %vm511, %v2549, 0
      %v2631 = vsel %vm511, %v2550, 0
      %v2634 = vsel %vm511, %v2551, 0
      %v2637 = vsel %vm511, %v2552, 0
      %v2640 = vsel %vm511, %v2553, 0
      %v2643 = vsel %vm511, %v2554, 0
      %v2646 = vsel %vm511, %v2555, 0
      %v2649 = vsel %vm511, %v2556, 0
      %v2652 = vsel %vm511, %v2557, 0
      %v2655 = vsel %vm511, %v2558, 0
      %v2658 = vsel %vm511, %v2559, 0
      %v2661 = vsel %vm511, %v2560, 0
      %v2664 = vsel %vm511, %v2561, 0
      %v2667 = vsel %vm511, %v2562, 0
      %v2670 = vsel %vm511, %v2563, 0
      %v2673 = vsel %vm511, %v2564, 0
      %v2676 = vsel %vm511, %v2565, 0
      %v2679 = vsel %vm511, %v2566, 0
      %v2682 = vsel %vm511, %v2567, 0
      %v2685 = vsel %vm511, %v2568, 0
      %v2688 = vsel %vm511, %v2569, 0
      %v2691 = vsel %vm511, %v2570, 0
      %v2694 = vsel %vm511, %v2571, 0
      %v2697 = vsel %vm511, %v2572, 0
      %v2700 = vsel %vm511, %v2573, 0
      %v2703 = vsel %vm511, %v2574, 0
      %v2706 = vsel %vm511, %v2575, 0
      %v2709 = vsel %vm511, %v2576, 0
      %v2712 = vsel %vm511, %v2577, 0
      %v2715 = vsel %vm511, %v2578, 0
      %v2718 = vsel %vm511, %v2579, 0
      %v2721 = vsel %vm511, %v2580, 0
      %v2724 = vsel %vm511, %v2581, 0
      %2726 = vmatpush.msra.mxu0 0.0
      %2727 = vmatpush.msra.mxu0 0.0
      %2728 = vmatpush.msra.mxu0 0.0
      %2729 = vmatpush.msra.mxu0 0.0
      %2730 = vmatpush.msra.mxu0 0.0
      %2731 = vmatpush.msra.mxu0 0.0
      %2732 = vmatpush.msra.mxu0 0.0
      %2733 = vmatpush.msra.mxu0 0.0
      %2734 = vmatpush.msra.mxu0 %v237
      %2735 = vmatpush.msra.mxu0 %v236
      %2736 = vmatpush.msra.mxu0 %v235
      %2737 = vmatpush.msra.mxu0 %v234
      %2738 = vmatpush.msra.mxu0 %v233
      %2739 = vmatpush.msra.mxu0 %v232
      %2740 = vmatpush.msra.mxu0 %v231
      %2741 = vmatpush.msra.mxu0 %v230
      %2742 = vmatmul.f32.gmra.mxu0 %v2583
      %v2743 = vpop.f32.mrf.mxu0
      %v2744 = vadd.f32 0.0, %v2743
      %2745 = vmatmul.f32.gmra.mxu0 %v2586
      %v2746 = vpop.f32.mrf.mxu0
      %v2747 = vadd.f32 0.0, %v2746
      %2748 = vmatmul.f32.gmra.mxu0 %v2589
      %v2749 = vpop.f32.mrf.mxu0
      %v2750 = vadd.f32 0.0, %v2749
      %2751 = vmatmul.f32.gmra.mxu0 %v2592
      %v2752 = vpop.f32.mrf.mxu0
      %v2753 = vadd.f32 0.0, %v2752
      %2754 = vmatmul.f32.gmra.mxu0 %v2595
      %v2755 = vpop.f32.mrf.mxu0
      %v2756 = vadd.f32 0.0, %v2755
      %2757 = vmatmul.f32.gmra.mxu0 %v2598
      %v2758 = vpop.f32.mrf.mxu0
      %v2759 = vadd.f32 0.0, %v2758
      %2760 = vmatmul.f32.gmra.mxu0 %v2601
      %v2761 = vpop.f32.mrf.mxu0
      %v2762 = vadd.f32 0.0, %v2761
      %2763 = vmatmul.f32.gmra.mxu0 %v2604
      %v2764 = vpop.f32.mrf.mxu0
      %v2765 = vadd.f32 0.0, %v2764
      %2766 = vmatmul.f32.gmra.mxu0 %v2607
      %v2767 = vpop.f32.mrf.mxu0
      %v2768 = vadd.f32 0.0, %v2767
      %2769 = vmatmul.f32.gmra.mxu0 %v2610
      %v2770 = vpop.f32.mrf.mxu0
      %v2771 = vadd.f32 0.0, %v2770
      %2772 = vmatmul.f32.gmra.mxu0 %v2613
      %v2773 = vpop.f32.mrf.mxu0
      %v2774 = vadd.f32 0.0, %v2773
      %2775 = vmatmul.f32.gmra.mxu0 %v2616
      %v2776 = vpop.f32.mrf.mxu0
      %v2777 = vadd.f32 0.0, %v2776
      %2778 = vmatmul.f32.gmra.mxu0 %v2619
      %v2779 = vpop.f32.mrf.mxu0
      %v2780 = vadd.f32 0.0, %v2779
      %2781 = vmatmul.f32.gmra.mxu0 %v2622
      %v2782 = vpop.f32.mrf.mxu0
      %v2783 = vadd.f32 0.0, %v2782
      %2784 = vmatmul.f32.gmra.mxu0 %v2625
      %v2785 = vpop.f32.mrf.mxu0
      %v2786 = vadd.f32 0.0, %v2785
      %2787 = vmatmul.f32.gmra.mxu0 %v2628
      %v2788 = vpop.f32.mrf.mxu0
      %v2789 = vadd.f32 0.0, %v2788
      %2790 = vmatmul.f32.gmra.mxu0 %v2631
      %v2791 = vpop.f32.mrf.mxu0
      %v2792 = vadd.f32 0.0, %v2791
      %2793 = vmatmul.f32.gmra.mxu0 %v2634
      %v2794 = vpop.f32.mrf.mxu0
      %v2795 = vadd.f32 0.0, %v2794
      %2796 = vmatmul.f32.gmra.mxu0 %v2637
      %v2797 = vpop.f32.mrf.mxu0
      %v2798 = vadd.f32 0.0, %v2797
      %2799 = vmatmul.f32.gmra.mxu0 %v2640
      %v2800 = vpop.f32.mrf.mxu0
      %v2801 = vadd.f32 0.0, %v2800
      %2802 = vmatmul.f32.gmra.mxu0 %v2643
      %v2803 = vpop.f32.mrf.mxu0
      %v2804 = vadd.f32 0.0, %v2803
      %2805 = vmatmul.f32.gmra.mxu0 %v2646
      %v2806 = vpop.f32.mrf.mxu0
      %v2807 = vadd.f32 0.0, %v2806
      %2808 = vmatmul.f32.gmra.mxu0 %v2649
      %v2809 = vpop.f32.mrf.mxu0
      %v2810 = vadd.f32 0.0, %v2809
      %2811 = vmatmul.f32.gmra.mxu0 %v2652
      %v2812 = vpop.f32.mrf.mxu0
      %v2813 = vadd.f32 0.0, %v2812
      %2814 = vmatmul.f32.gmra.mxu0 %v2655
      %v2815 = vpop.f32.mrf.mxu0
      %v2816 = vadd.f32 0.0, %v2815
      %2817 = vmatmul.f32.gmra.mxu0 %v2658
      %v2818 = vpop.f32.mrf.mxu0
      %v2819 = vadd.f32 0.0, %v2818
      %2820 = vmatmul.f32.gmra.mxu0 %v2661
      %v2821 = vpop.f32.mrf.mxu0
      %v2822 = vadd.f32 0.0, %v2821
      %2823 = vmatmul.f32.gmra.mxu0 %v2664
      %v2824 = vpop.f32.mrf.mxu0
      %v2825 = vadd.f32 0.0, %v2824
      %2826 = vmatmul.f32.gmra.mxu0 %v2667
      %v2827 = vpop.f32.mrf.mxu0
      %v2828 = vadd.f32 0.0, %v2827
      %2829 = vmatmul.f32.gmra.mxu0 %v2670
      %v2830 = vpop.f32.mrf.mxu0
      %v2831 = vadd.f32 0.0, %v2830
      %2832 = vmatmul.f32.gmra.mxu0 %v2673
      %v2833 = vpop.f32.mrf.mxu0
      %v2834 = vadd.f32 0.0, %v2833
      %2835 = vmatmul.f32.gmra.mxu0 %v2676
      %v2836 = vpop.f32.mrf.mxu0
      %v2837 = vadd.f32 0.0, %v2836
      %2838 = vmatmul.f32.gmra.mxu0 %v2679
      %v2839 = vpop.f32.mrf.mxu0
      %v2840 = vadd.f32 0.0, %v2839
      %2841 = vmatmul.f32.gmra.mxu0 %v2682
      %v2842 = vpop.f32.mrf.mxu0
      %v2843 = vadd.f32 0.0, %v2842
      %2844 = vmatmul.f32.gmra.mxu0 %v2685
      %v2845 = vpop.f32.mrf.mxu0
      %v2846 = vadd.f32 0.0, %v2845
      %2847 = vmatmul.f32.gmra.mxu0 %v2688
      %v2848 = vpop.f32.mrf.mxu0
      %v2849 = vadd.f32 0.0, %v2848
      %2850 = vmatmul.f32.gmra.mxu0 %v2691
      %v2851 = vpop.f32.mrf.mxu0
      %v2852 = vadd.f32 0.0, %v2851
      %2853 = vmatmul.f32.gmra.mxu0 %v2694
      %v2854 = vpop.f32.mrf.mxu0
      %v2855 = vadd.f32 0.0, %v2854
      %2856 = vmatmul.f32.gmra.mxu0 %v2697
      %v2857 = vpop.f32.mrf.mxu0
      %v2858 = vadd.f32 0.0, %v2857
      %2859 = vmatmul.f32.gmra.mxu0 %v2700
      %v2860 = vpop.f32.mrf.mxu0
      %v2861 = vadd.f32 0.0, %v2860
      %2862 = vmatmul.f32.gmra.mxu0 %v2703
      %v2863 = vpop.f32.mrf.mxu0
      %v2864 = vadd.f32 0.0, %v2863
      %2865 = vmatmul.f32.gmra.mxu0 %v2706
      %v2866 = vpop.f32.mrf.mxu0
      %v2867 = vadd.f32 0.0, %v2866
      %2868 = vmatmul.f32.gmra.mxu0 %v2709
      %v2869 = vpop.f32.mrf.mxu0
      %v2870 = vadd.f32 0.0, %v2869
      %2871 = vmatmul.f32.gmra.mxu0 %v2712
      %v2872 = vpop.f32.mrf.mxu0
      %v2873 = vadd.f32 0.0, %v2872
      %2874 = vmatmul.f32.gmra.mxu0 %v2715
      %v2875 = vpop.f32.mrf.mxu0
      %v2876 = vadd.f32 0.0, %v2875
      %2877 = vmatmul.f32.gmra.mxu0 %v2718
      %v2878 = vpop.f32.mrf.mxu0
      %v2879 = vadd.f32 0.0, %v2878
      %2880 = vmatmul.f32.gmra.mxu0 %v2721
      %v2881 = vpop.f32.mrf.mxu0
      %v2882 = vadd.f32 0.0, %v2881
      %2883 = vmatmul.f32.gmra.mxu0 %v2724
      %v2884 = vpop.f32.mrf.mxu0
      %v2885 = vadd.f32 0.0, %v2884
      %2886 = vdwg.mxu0
      %vm2887 = vcmp.gt.f32.partialorder %v462, 0.0
      %vm2888 = vcmp.gt.f32.partialorder %v463, 0.0
      %vm2889 = vcmp.gt.f32.partialorder %v464, 0.0
      %vm2890 = vcmp.gt.f32.partialorder %v465, 0.0
      %vm2891 = vcmp.gt.f32.partialorder %v466, 0.0
      %vm2892 = vcmp.gt.f32.partialorder %v467, 0.0
      %vm2893 = vcmp.gt.f32.partialorder %v468, 0.0
      %vm2894 = vcmp.gt.f32.partialorder %v469, 0.0
      %vm2895 = vcmp.gt.f32.partialorder %v470, 0.0
      %vm2896 = vcmp.gt.f32.partialorder %v471, 0.0
      %vm2897 = vcmp.gt.f32.partialorder %v472, 0.0
      %vm2898 = vcmp.gt.f32.partialorder %v473, 0.0
      %vm2899 = vcmp.gt.f32.partialorder %v474, 0.0
      %vm2900 = vcmp.gt.f32.partialorder %v475, 0.0
      %vm2901 = vcmp.gt.f32.partialorder %v476, 0.0
      %vm2902 = vcmp.gt.f32.partialorder %v477, 0.0
      %vm2903 = vcmp.gt.f32.partialorder %v478, 0.0
      %vm2904 = vcmp.gt.f32.partialorder %v479, 0.0
      %vm2905 = vcmp.gt.f32.partialorder %v480, 0.0
      %vm2906 = vcmp.gt.f32.partialorder %v481, 0.0
      %vm2907 = vcmp.gt.f32.partialorder %v482, 0.0
      %vm2908 = vcmp.gt.f32.partialorder %v483, 0.0
      %vm2909 = vcmp.gt.f32.partialorder %v484, 0.0
      %vm2910 = vcmp.gt.f32.partialorder %v485, 0.0
      %vm2911 = vcmp.gt.f32.partialorder %v486, 0.0
      %vm2912 = vcmp.gt.f32.partialorder %v487, 0.0
      %vm2913 = vcmp.gt.f32.partialorder %v488, 0.0
      %vm2914 = vcmp.gt.f32.partialorder %v489, 0.0
      %vm2915 = vcmp.gt.f32.partialorder %v490, 0.0
      %vm2916 = vcmp.gt.f32.partialorder %v491, 0.0
      %vm2917 = vcmp.gt.f32.partialorder %v492, 0.0
      %vm2918 = vcmp.gt.f32.partialorder %v493, 0.0
      %vm2919 = vcmp.gt.f32.partialorder %v494, 0.0
      %vm2920 = vcmp.gt.f32.partialorder %v495, 0.0
      %vm2921 = vcmp.gt.f32.partialorder %v496, 0.0
      %vm2922 = vcmp.gt.f32.partialorder %v497, 0.0
      %vm2923 = vcmp.gt.f32.partialorder %v498, 0.0
      %vm2924 = vcmp.gt.f32.partialorder %v499, 0.0
      %vm2925 = vcmp.gt.f32.partialorder %v500, 0.0
      %vm2926 = vcmp.gt.f32.partialorder %v501, 0.0
      %vm2927 = vcmp.gt.f32.partialorder %v502, 0.0
      %vm2928 = vcmp.gt.f32.partialorder %v503, 0.0
      %vm2929 = vcmp.gt.f32.partialorder %v504, 0.0
      %vm2930 = vcmp.gt.f32.partialorder %v505, 0.0
      %vm2931 = vcmp.gt.f32.partialorder %v506, 0.0
      %vm2932 = vcmp.gt.f32.partialorder %v507, 0.0
      %vm2933 = vcmp.gt.f32.partialorder %v508, 0.0
      %vm2934 = vcmp.gt.f32.partialorder %v509, 0.0
      %v2935 = vsel %vm2887, %v2744, 0.0
      %v2936 = vsel %vm2888, %v2747, 0.0
      %v2937 = vsel %vm2889, %v2750, 0.0
      %v2938 = vsel %vm2890, %v2753, 0.0
      %v2939 = vsel %vm2891, %v2756, 0.0
      %v2940 = vsel %vm2892, %v2759, 0.0
      %v2941 = vsel %vm2893, %v2762, 0.0
      %v2942 = vsel %vm2894, %v2765, 0.0
      %v2943 = vsel %vm2895, %v2768, 0.0
      %v2944 = vsel %vm2896, %v2771, 0.0
      %v2945 = vsel %vm2897, %v2774, 0.0
      %v2946 = vsel %vm2898, %v2777, 0.0
      %v2947 = vsel %vm2899, %v2780, 0.0
      %v2948 = vsel %vm2900, %v2783, 0.0
      %v2949 = vsel %vm2901, %v2786, 0.0
      %v2950 = vsel %vm2902, %v2789, 0.0
      %v2951 = vsel %vm2903, %v2792, 0.0
      %v2952 = vsel %vm2904, %v2795, 0.0
      %v2953 = vsel %vm2905, %v2798, 0.0
      %v2954 = vsel %vm2906, %v2801, 0.0
      %v2955 = vsel %vm2907, %v2804, 0.0
      %v2956 = vsel %vm2908, %v2807, 0.0
      %v2957 = vsel %vm2909, %v2810, 0.0
      %v2958 = vsel %vm2910, %v2813, 0.0
      %v2959 = vsel %vm2911, %v2816, 0.0
      %v2960 = vsel %vm2912, %v2819, 0.0
      %v2961 = vsel %vm2913, %v2822, 0.0
      %v2962 = vsel %vm2914, %v2825, 0.0
      %v2963 = vsel %vm2915, %v2828, 0.0
      %v2964 = vsel %vm2916, %v2831, 0.0
      %v2965 = vsel %vm2917, %v2834, 0.0
      %v2966 = vsel %vm2918, %v2837, 0.0
      %v2967 = vsel %vm2919, %v2840, 0.0
      %v2968 = vsel %vm2920, %v2843, 0.0
      %v2969 = vsel %vm2921, %v2846, 0.0
      %v2970 = vsel %vm2922, %v2849, 0.0
      %v2971 = vsel %vm2923, %v2852, 0.0
      %v2972 = vsel %vm2924, %v2855, 0.0
      %v2973 = vsel %vm2925, %v2858, 0.0
      %v2974 = vsel %vm2926, %v2861, 0.0
      %v2975 = vsel %vm2927, %v2864, 0.0
      %v2976 = vsel %vm2928, %v2867, 0.0
      %v2977 = vsel %vm2929, %v2870, 0.0
      %v2978 = vsel %vm2930, %v2873, 0.0
      %v2979 = vsel %vm2931, %v2876, 0.0
      %v2980 = vsel %vm2932, %v2879, 0.0
      %v2981 = vsel %vm2933, %v2882, 0.0
      %v2982 = vsel %vm2934, %v2885, 0.0
      %2983 = vxpose.xlu0.b32.start [1/16] %v2133, 128
      %2984 = vxpose.xlu0.b32.cont [2/16] %v2134, 128
      %2985 = vxpose.xlu0.b32.cont [3/16] %v2135, 128
      %2986 = vxpose.xlu0.b32.cont [4/16] 0.0, 128
      %2987 = vxpose.xlu0.b32.cont [5/16] 0.0, 128
      %2988 = vxpose.xlu0.b32.cont [6/16] 0.0, 128
      %2989 = vxpose.xlu0.b32.cont [7/16] 0.0, 128
      %2990 = vxpose.xlu0.b32.cont [8/16] 0.0, 128
      %2991 = vxpose.xlu0.b32.cont [9/16] 0.0, 128
      %2992 = vxpose.xlu0.b32.cont [10/16] 0.0, 128
      %2993 = vxpose.xlu0.b32.cont [11/16] 0.0, 128
      %2994 = vxpose.xlu0.b32.cont [12/16] 0.0, 128
      %2995 = vxpose.xlu0.b32.cont [13/16] 0.0, 128
      %2996 = vxpose.xlu0.b32.cont [14/16] 0.0, 128
      %2997 = vxpose.xlu0.b32.cont [15/16] 0.0, 128
      %2998 = vxpose.xlu0.b32.end [16/16] 0.0, 128
      %v2999 = vpop.trf.xlu0
      %v3000 = vpop.trf.xlu0
      %v3001 = vpop.trf.xlu0
      %v3002 = vpop.trf.xlu0
      %v3003 = vpop.trf.xlu0
      %v3004 = vpop.trf.xlu0
      %v3005 = vpop.trf.xlu0
      %v3006 = vpop.trf.xlu0
      %v3007 = vpop.trf.xlu0
      %v3008 = vpop.trf.xlu0
      %v3009 = vpop.trf.xlu0
      %v3010 = vpop.trf.xlu0
      %v3011 = vpop.trf.xlu0
      %v3012 = vpop.trf.xlu0
      %v3013 = vpop.trf.xlu0
      %v3014 = vpop.trf.xlu0
      %vm3015 = vcmask 195584
      %v3017 = vsel %vm3015, %v2999, 0
      %v3020 = vsel %vm3015, %v3000, 0
      %v3023 = vsel %vm3015, %v3001, 0
      %v3026 = vsel %vm3015, %v3002, 0
      %v3029 = vsel %vm3015, %v3003, 0
      %v3032 = vsel %vm3015, %v3004, 0
      %v3035 = vsel %vm3015, %v3005, 0
      %v3038 = vsel %vm3015, %v3006, 0
      %3040 = vmatpush.msra.mxu0 0.0
      %3041 = vmatpush.msra.mxu0 0.0
      %3042 = vmatpush.msra.mxu0 0.0
      %3043 = vmatpush.msra.mxu0 0.0
      %3044 = vmatpush.msra.mxu0 0.0
      %3045 = vmatpush.msra.mxu0 0.0
      %3046 = vmatpush.msra.mxu0 0.0
      %3047 = vmatpush.msra.mxu0 0.0
      %3048 = vmatpush.msra.mxu0 0.0
      %3049 = vmatpush.msra.mxu0 0.0
      %3050 = vmatpush.msra.mxu0 0.0
      %3051 = vmatpush.msra.mxu0 0.0
      %3052 = vmatpush.msra.mxu0 0.0
      %3053 = vmatpush.msra.mxu0 %v843
      %3054 = vmatpush.msra.mxu0 %v842
      %3055 = vmatpush.msra.mxu0 %v841
      %3056 = vmatmul.f32.gmra.mxu0 %v3017
      %v3057 = vpop.f32.mrf.mxu0
      %v3058 = vadd.f32 0.0, %v3057
      %3059 = vmatmul.f32.gmra.mxu0 %v3020
      %v3060 = vpop.f32.mrf.mxu0
      %v3061 = vadd.f32 0.0, %v3060
      %3062 = vmatmul.f32.gmra.mxu0 %v3023
      %v3063 = vpop.f32.mrf.mxu0
      %v3064 = vadd.f32 0.0, %v3063
      %3065 = vmatmul.f32.gmra.mxu0 %v3026
      %v3066 = vpop.f32.mrf.mxu0
      %v3067 = vadd.f32 0.0, %v3066
      %3068 = vmatmul.f32.gmra.mxu0 %v3029
      %v3069 = vpop.f32.mrf.mxu0
      %v3070 = vadd.f32 0.0, %v3069
      %3071 = vmatmul.f32.gmra.mxu0 %v3032
      %v3072 = vpop.f32.mrf.mxu0
      %v3073 = vadd.f32 0.0, %v3072
      %3074 = vmatmul.f32.gmra.mxu0 %v3035
      %v3075 = vpop.f32.mrf.mxu0
      %v3076 = vadd.f32 0.0, %v3075
      %3077 = vmatmul.f32.gmra.mxu0 %v3038
      %v3078 = vpop.f32.mrf.mxu0
      %v3079 = vadd.f32 0.0, %v3078
      %3080 = vdwg.mxu0
      %3081 = vxpose.xlu0.b32.start [1/16] %v2136, 128
      %3082 = vxpose.xlu0.b32.cont [2/16] %v2137, 128
      %3083 = vxpose.xlu0.b32.cont [3/16] %v2138, 128
      %3084 = vxpose.xlu0.b32.cont [4/16] 0.0, 128
      %3085 = vxpose.xlu0.b32.cont [5/16] 0.0, 128
      %3086 = vxpose.xlu0.b32.cont [6/16] 0.0, 128
      %3087 = vxpose.xlu0.b32.cont [7/16] 0.0, 128
      %3088 = vxpose.xlu0.b32.cont [8/16] 0.0, 128
      %3089 = vxpose.xlu0.b32.cont [9/16] 0.0, 128
      %3090 = vxpose.xlu0.b32.cont [10/16] 0.0, 128
      %3091 = vxpose.xlu0.b32.cont [11/16] 0.0, 128
      %3092 = vxpose.xlu0.b32.cont [12/16] 0.0, 128
      %3093 = vxpose.xlu0.b32.cont [13/16] 0.0, 128
      %3094 = vxpose.xlu0.b32.cont [14/16] 0.0, 128
      %3095 = vxpose.xlu0.b32.cont [15/16] 0.0, 128
      %3096 = vxpose.xlu0.b32.end [16/16] 0.0, 128
      %v3097 = vpop.trf.xlu0
      %v3098 = vpop.trf.xlu0
      %v3099 = vpop.trf.xlu0
      %v3100 = vpop.trf.xlu0
      %v3101 = vpop.trf.xlu0
      %v3102 = vpop.trf.xlu0
      %v3103 = vpop.trf.xlu0
      %v3104 = vpop.trf.xlu0
      %v3105 = vpop.trf.xlu0
      %v3106 = vpop.trf.xlu0
      %v3107 = vpop.trf.xlu0
      %v3108 = vpop.trf.xlu0
      %v3109 = vpop.trf.xlu0
      %v3110 = vpop.trf.xlu0
      %v3111 = vpop.trf.xlu0
      %v3112 = vpop.trf.xlu0
      %v3114 = vsel %vm3015, %v3097, 0
      %v3117 = vsel %vm3015, %v3098, 0
      %v3120 = vsel %vm3015, %v3099, 0
      %v3123 = vsel %vm3015, %v3100, 0
      %v3126 = vsel %vm3015, %v3101, 0
      %v3129 = vsel %vm3015, %v3102, 0
      %v3132 = vsel %vm3015, %v3103, 0
      %v3135 = vsel %vm3015, %v3104, 0
      %3137 = vmatpush.msra.mxu0 0.0
      %3138 = vmatpush.msra.mxu0 0.0
      %3139 = vmatpush.msra.mxu0 0.0
      %3140 = vmatpush.msra.mxu0 0.0
      %3141 = vmatpush.msra.mxu0 0.0
      %3142 = vmatpush.msra.mxu0 0.0
      %3143 = vmatpush.msra.mxu0 0.0
      %3144 = vmatpush.msra.mxu0 0.0
      %3145 = vmatpush.msra.mxu0 0.0
      %3146 = vmatpush.msra.mxu0 0.0
      %3147 = vmatpush.msra.mxu0 0.0
      %3148 = vmatpush.msra.mxu0 0.0
      %3149 = vmatpush.msra.mxu0 0.0
      %3150 = vmatpush.msra.mxu0 %v846
      %3151 = vmatpush.msra.mxu0 %v845
      %3152 = vmatpush.msra.mxu0 %v844
      %3153 = vmatmul.f32.gmra.mxu0 %v3114
      %v3154 = vpop.f32.mrf.mxu0
      %v3155 = vadd.f32 0.0, %v3154
      %3156 = vmatmul.f32.gmra.mxu0 %v3117
      %v3157 = vpop.f32.mrf.mxu0
      %v3158 = vadd.f32 0.0, %v3157
      %3159 = vmatmul.f32.gmra.mxu0 %v3120
      %v3160 = vpop.f32.mrf.mxu0
      %v3161 = vadd.f32 0.0, %v3160
      %3162 = vmatmul.f32.gmra.mxu0 %v3123
      %v3163 = vpop.f32.mrf.mxu0
      %v3164 = vadd.f32 0.0, %v3163
      %3165 = vmatmul.f32.gmra.mxu0 %v3126
      %v3166 = vpop.f32.mrf.mxu0
      %v3167 = vadd.f32 0.0, %v3166
      %3168 = vmatmul.f32.gmra.mxu0 %v3129
      %v3169 = vpop.f32.mrf.mxu0
      %v3170 = vadd.f32 0.0, %v3169
      %3171 = vmatmul.f32.gmra.mxu0 %v3132
      %v3172 = vpop.f32.mrf.mxu0
      %v3173 = vadd.f32 0.0, %v3172
      %3174 = vmatmul.f32.gmra.mxu0 %v3135
      %v3175 = vpop.f32.mrf.mxu0
      %v3176 = vadd.f32 0.0, %v3175
      %3177 = vdwg.mxu0
      %3178 = vxpose.xlu0.b32.start [1/16] %v2139, 128
      %3179 = vxpose.xlu0.b32.cont [2/16] %v2140, 128
      %3180 = vxpose.xlu0.b32.cont [3/16] %v2141, 128
      %3181 = vxpose.xlu0.b32.cont [4/16] 0.0, 128
      %3182 = vxpose.xlu0.b32.cont [5/16] 0.0, 128
      %3183 = vxpose.xlu0.b32.cont [6/16] 0.0, 128
      %3184 = vxpose.xlu0.b32.cont [7/16] 0.0, 128
      %3185 = vxpose.xlu0.b32.cont [8/16] 0.0, 128
      %3186 = vxpose.xlu0.b32.cont [9/16] 0.0, 128
      %3187 = vxpose.xlu0.b32.cont [10/16] 0.0, 128
      %3188 = vxpose.xlu0.b32.cont [11/16] 0.0, 128
      %3189 = vxpose.xlu0.b32.cont [12/16] 0.0, 128
      %3190 = vxpose.xlu0.b32.cont [13/16] 0.0, 128
      %3191 = vxpose.xlu0.b32.cont [14/16] 0.0, 128
      %3192 = vxpose.xlu0.b32.cont [15/16] 0.0, 128
      %3193 = vxpose.xlu0.b32.end [16/16] 0.0, 128
      %v3194 = vpop.trf.xlu0
      %v3195 = vpop.trf.xlu0
      %v3196 = vpop.trf.xlu0
      %v3197 = vpop.trf.xlu0
      %v3198 = vpop.trf.xlu0
      %v3199 = vpop.trf.xlu0
      %v3200 = vpop.trf.xlu0
      %v3201 = vpop.trf.xlu0
      %v3202 = vpop.trf.xlu0
      %v3203 = vpop.trf.xlu0
      %v3204 = vpop.trf.xlu0
      %v3205 = vpop.trf.xlu0
      %v3206 = vpop.trf.xlu0
      %v3207 = vpop.trf.xlu0
      %v3208 = vpop.trf.xlu0
      %v3209 = vpop.trf.xlu0
      %v3211 = vsel %vm3015, %v3194, 0
      %v3214 = vsel %vm3015, %v3195, 0
      %v3217 = vsel %vm3015, %v3196, 0
      %v3220 = vsel %vm3015, %v3197, 0
      %v3223 = vsel %vm3015, %v3198, 0
      %v3226 = vsel %vm3015, %v3199, 0
      %v3229 = vsel %vm3015, %v3200, 0
      %v3232 = vsel %vm3015, %v3201, 0
      %3234 = vmatpush.msra.mxu0 0.0
      %3235 = vmatpush.msra.mxu0 0.0
      %3236 = vmatpush.msra.mxu0 0.0
      %3237 = vmatpush.msra.mxu0 0.0
      %3238 = vmatpush.msra.mxu0 0.0
      %3239 = vmatpush.msra.mxu0 0.0
      %3240 = vmatpush.msra.mxu0 0.0
      %3241 = vmatpush.msra.mxu0 0.0
      %3242 = vmatpush.msra.mxu0 0.0
      %3243 = vmatpush.msra.mxu0 0.0
      %3244 = vmatpush.msra.mxu0 0.0
      %3245 = vmatpush.msra.mxu0 0.0
      %3246 = vmatpush.msra.mxu0 0.0
      %3247 = vmatpush.msra.mxu0 %v849
      %3248 = vmatpush.msra.mxu0 %v848
      %3249 = vmatpush.msra.mxu0 %v847
      %3250 = vmatmul.f32.gmra.mxu0 %v3211
      %v3251 = vpop.f32.mrf.mxu0
      %v3252 = vadd.f32 0.0, %v3251
      %3253 = vmatmul.f32.gmra.mxu0 %v3214
      %v3254 = vpop.f32.mrf.mxu0
      %v3255 = vadd.f32 0.0, %v3254
      %3256 = vmatmul.f32.gmra.mxu0 %v3217
      %v3257 = vpop.f32.mrf.mxu0
      %v3258 = vadd.f32 0.0, %v3257
      %3259 = vmatmul.f32.gmra.mxu0 %v3220
      %v3260 = vpop.f32.mrf.mxu0
      %v3261 = vadd.f32 0.0, %v3260
      %3262 = vmatmul.f32.gmra.mxu0 %v3223
      %v3263 = vpop.f32.mrf.mxu0
      %v3264 = vadd.f32 0.0, %v3263
      %3265 = vmatmul.f32.gmra.mxu0 %v3226
      %v3266 = vpop.f32.mrf.mxu0
      %v3267 = vadd.f32 0.0, %v3266
      %3268 = vmatmul.f32.gmra.mxu0 %v3229
      %v3269 = vpop.f32.mrf.mxu0
      %v3270 = vadd.f32 0.0, %v3269
      %3271 = vmatmul.f32.gmra.mxu0 %v3232
      %v3272 = vpop.f32.mrf.mxu0
      %v3273 = vadd.f32 0.0, %v3272
      %3274 = vdwg.mxu0
      %3275 = vxpose.xlu0.b32.start [1/16] %v2142, 128
      %3276 = vxpose.xlu0.b32.cont [2/16] %v2143, 128
      %3277 = vxpose.xlu0.b32.cont [3/16] %v2144, 128
      %3278 = vxpose.xlu0.b32.cont [4/16] 0.0, 128
      %3279 = vxpose.xlu0.b32.cont [5/16] 0.0, 128
      %3280 = vxpose.xlu0.b32.cont [6/16] 0.0, 128
      %3281 = vxpose.xlu0.b32.cont [7/16] 0.0, 128
      %3282 = vxpose.xlu0.b32.cont [8/16] 0.0, 128
      %3283 = vxpose.xlu0.b32.cont [9/16] 0.0, 128
      %3284 = vxpose.xlu0.b32.cont [10/16] 0.0, 128
      %3285 = vxpose.xlu0.b32.cont [11/16] 0.0, 128
      %3286 = vxpose.xlu0.b32.cont [12/16] 0.0, 128
      %3287 = vxpose.xlu0.b32.cont [13/16] 0.0, 128
      %3288 = vxpose.xlu0.b32.cont [14/16] 0.0, 128
      %3289 = vxpose.xlu0.b32.cont [15/16] 0.0, 128
      %3290 = vxpose.xlu0.b32.end [16/16] 0.0, 128
      %v3291 = vpop.trf.xlu0
      %v3292 = vpop.trf.xlu0
      %v3293 = vpop.trf.xlu0
      %v3294 = vpop.trf.xlu0
      %v3295 = vpop.trf.xlu0
      %v3296 = vpop.trf.xlu0
      %v3297 = vpop.trf.xlu0
      %v3298 = vpop.trf.xlu0
      %v3299 = vpop.trf.xlu0
      %v3300 = vpop.trf.xlu0
      %v3301 = vpop.trf.xlu0
      %v3302 = vpop.trf.xlu0
      %v3303 = vpop.trf.xlu0
      %v3304 = vpop.trf.xlu0
      %v3305 = vpop.trf.xlu0
      %v3306 = vpop.trf.xlu0
      %v3308 = vsel %vm3015, %v3291, 0
      %v3311 = vsel %vm3015, %v3292, 0
      %v3314 = vsel %vm3015, %v3293, 0
      %v3317 = vsel %vm3015, %v3294, 0
      %v3320 = vsel %vm3015, %v3295, 0
      %v3323 = vsel %vm3015, %v3296, 0
      %v3326 = vsel %vm3015, %v3297, 0
      %v3329 = vsel %vm3015, %v3298, 0
      %3331 = vmatpush.msra.mxu0 0.0
      %3332 = vmatpush.msra.mxu0 0.0
      %3333 = vmatpush.msra.mxu0 0.0
      %3334 = vmatpush.msra.mxu0 0.0
      %3335 = vmatpush.msra.mxu0 0.0
      %3336 = vmatpush.msra.mxu0 0.0
      %3337 = vmatpush.msra.mxu0 0.0
      %3338 = vmatpush.msra.mxu0 0.0
      %3339 = vmatpush.msra.mxu0 0.0
      %3340 = vmatpush.msra.mxu0 0.0
      %3341 = vmatpush.msra.mxu0 0.0
      %3342 = vmatpush.msra.mxu0 0.0
      %3343 = vmatpush.msra.mxu0 0.0
      %3344 = vmatpush.msra.mxu0 %v852
      %3345 = vmatpush.msra.mxu0 %v851
      %3346 = vmatpush.msra.mxu0 %v850
      %3347 = vmatmul.f32.gmra.mxu0 %v3308
      %v3348 = vpop.f32.mrf.mxu0
      %v3349 = vadd.f32 0.0, %v3348
      %3350 = vmatmul.f32.gmra.mxu0 %v3311
      %v3351 = vpop.f32.mrf.mxu0
      %v3352 = vadd.f32 0.0, %v3351
      %3353 = vmatmul.f32.gmra.mxu0 %v3314
      %v3354 = vpop.f32.mrf.mxu0
      %v3355 = vadd.f32 0.0, %v3354
      %3356 = vmatmul.f32.gmra.mxu0 %v3317
      %v3357 = vpop.f32.mrf.mxu0
      %v3358 = vadd.f32 0.0, %v3357
      %3359 = vmatmul.f32.gmra.mxu0 %v3320
      %v3360 = vpop.f32.mrf.mxu0
      %v3361 = vadd.f32 0.0, %v3360
      %3362 = vmatmul.f32.gmra.mxu0 %v3323
      %v3363 = vpop.f32.mrf.mxu0
      %v3364 = vadd.f32 0.0, %v3363
      %3365 = vmatmul.f32.gmra.mxu0 %v3326
      %v3366 = vpop.f32.mrf.mxu0
      %v3367 = vadd.f32 0.0, %v3366
      %3368 = vmatmul.f32.gmra.mxu0 %v3329
      %v3369 = vpop.f32.mrf.mxu0
      %v3370 = vadd.f32 0.0, %v3369
      %3371 = vdwg.mxu0
      %3372 = vxpose.xlu0.b32.start [1/16] %v2145, 128
      %3373 = vxpose.xlu0.b32.cont [2/16] %v2146, 128
      %3374 = vxpose.xlu0.b32.cont [3/16] %v2147, 128
      %3375 = vxpose.xlu0.b32.cont [4/16] 0.0, 128
      %3376 = vxpose.xlu0.b32.cont [5/16] 0.0, 128
      %3377 = vxpose.xlu0.b32.cont [6/16] 0.0, 128
      %3378 = vxpose.xlu0.b32.cont [7/16] 0.0, 128
      %3379 = vxpose.xlu0.b32.cont [8/16] 0.0, 128
      %3380 = vxpose.xlu0.b32.cont [9/16] 0.0, 128
      %3381 = vxpose.xlu0.b32.cont [10/16] 0.0, 128
      %3382 = vxpose.xlu0.b32.cont [11/16] 0.0, 128
      %3383 = vxpose.xlu0.b32.cont [12/16] 0.0, 128
      %3384 = vxpose.xlu0.b32.cont [13/16] 0.0, 128
      %3385 = vxpose.xlu0.b32.cont [14/16] 0.0, 128
      %3386 = vxpose.xlu0.b32.cont [15/16] 0.0, 128
      %3387 = vxpose.xlu0.b32.end [16/16] 0.0, 128
      %v3388 = vpop.trf.xlu0
      %v3389 = vpop.trf.xlu0
      %v3390 = vpop.trf.xlu0
      %v3391 = vpop.trf.xlu0
      %v3392 = vpop.trf.xlu0
      %v3393 = vpop.trf.xlu0
      %v3394 = vpop.trf.xlu0
      %v3395 = vpop.trf.xlu0
      %v3396 = vpop.trf.xlu0
      %v3397 = vpop.trf.xlu0
      %v3398 = vpop.trf.xlu0
      %v3399 = vpop.trf.xlu0
      %v3400 = vpop.trf.xlu0
      %v3401 = vpop.trf.xlu0
      %v3402 = vpop.trf.xlu0
      %v3403 = vpop.trf.xlu0
      %v3405 = vsel %vm3015, %v3388, 0
      %v3408 = vsel %vm3015, %v3389, 0
      %v3411 = vsel %vm3015, %v3390, 0
      %v3414 = vsel %vm3015, %v3391, 0
      %v3417 = vsel %vm3015, %v3392, 0
      %v3420 = vsel %vm3015, %v3393, 0
      %v3423 = vsel %vm3015, %v3394, 0
      %v3426 = vsel %vm3015, %v3395, 0
      %3428 = vmatpush.msra.mxu0 0.0
      %3429 = vmatpush.msra.mxu0 0.0
      %3430 = vmatpush.msra.mxu0 0.0
      %3431 = vmatpush.msra.mxu0 0.0
      %3432 = vmatpush.msra.mxu0 0.0
      %3433 = vmatpush.msra.mxu0 0.0
      %3434 = vmatpush.msra.mxu0 0.0
      %3435 = vmatpush.msra.mxu0 0.0
      %3436 = vmatpush.msra.mxu0 0.0
      %3437 = vmatpush.msra.mxu0 0.0
      %3438 = vmatpush.msra.mxu0 0.0
      %3439 = vmatpush.msra.mxu0 0.0
      %3440 = vmatpush.msra.mxu0 0.0
      %3441 = vmatpush.msra.mxu0 %v855
      %3442 = vmatpush.msra.mxu0 %v854
      %3443 = vmatpush.msra.mxu0 %v853
      %3444 = vmatmul.f32.gmra.mxu0 %v3405
      %v3445 = vpop.f32.mrf.mxu0
      %v3446 = vadd.f32 0.0, %v3445
      %3447 = vmatmul.f32.gmra.mxu0 %v3408
      %v3448 = vpop.f32.mrf.mxu0
      %v3449 = vadd.f32 0.0, %v3448
      %3450 = vmatmul.f32.gmra.mxu0 %v3411
      %v3451 = vpop.f32.mrf.mxu0
      %v3452 = vadd.f32 0.0, %v3451
      %3453 = vmatmul.f32.gmra.mxu0 %v3414
      %v3454 = vpop.f32.mrf.mxu0
      %v3455 = vadd.f32 0.0, %v3454
      %3456 = vmatmul.f32.gmra.mxu0 %v3417
      %v3457 = vpop.f32.mrf.mxu0
      %v3458 = vadd.f32 0.0, %v3457
      %3459 = vmatmul.f32.gmra.mxu0 %v3420
      %v3460 = vpop.f32.mrf.mxu0
      %v3461 = vadd.f32 0.0, %v3460
      %3462 = vmatmul.f32.gmra.mxu0 %v3423
      %v3463 = vpop.f32.mrf.mxu0
      %v3464 = vadd.f32 0.0, %v3463
      %3465 = vmatmul.f32.gmra.mxu0 %v3426
      %v3466 = vpop.f32.mrf.mxu0
      %v3467 = vadd.f32 0.0, %v3466
      %3468 = vdwg.mxu0
      %3469 = vxpose.xlu0.b32.start [1/16] %v2148, 128
      %3470 = vxpose.xlu0.b32.cont [2/16] %v2149, 128
      %3471 = vxpose.xlu0.b32.cont [3/16] %v2150, 128
      %3472 = vxpose.xlu0.b32.cont [4/16] 0.0, 128
      %3473 = vxpose.xlu0.b32.cont [5/16] 0.0, 128
      %3474 = vxpose.xlu0.b32.cont [6/16] 0.0, 128
      %3475 = vxpose.xlu0.b32.cont [7/16] 0.0, 128
      %3476 = vxpose.xlu0.b32.cont [8/16] 0.0, 128
      %3477 = vxpose.xlu0.b32.cont [9/16] 0.0, 128
      %3478 = vxpose.xlu0.b32.cont [10/16] 0.0, 128
      %3479 = vxpose.xlu0.b32.cont [11/16] 0.0, 128
      %3480 = vxpose.xlu0.b32.cont [12/16] 0.0, 128
      %3481 = vxpose.xlu0.b32.cont [13/16] 0.0, 128
      %3482 = vxpose.xlu0.b32.cont [14/16] 0.0, 128
      %3483 = vxpose.xlu0.b32.cont [15/16] 0.0, 128
      %3484 = vxpose.xlu0.b32.end [16/16] 0.0, 128
      %v3485 = vpop.trf.xlu0
      %v3486 = vpop.trf.xlu0
      %v3487 = vpop.trf.xlu0
      %v3488 = vpop.trf.xlu0
      %v3489 = vpop.trf.xlu0
      %v3490 = vpop.trf.xlu0
      %v3491 = vpop.trf.xlu0
      %v3492 = vpop.trf.xlu0
      %v3493 = vpop.trf.xlu0
      %v3494 = vpop.trf.xlu0
      %v3495 = vpop.trf.xlu0
      %v3496 = vpop.trf.xlu0
      %v3497 = vpop.trf.xlu0
      %v3498 = vpop.trf.xlu0
      %v3499 = vpop.trf.xlu0
      %v3500 = vpop.trf.xlu0
      %v3502 = vsel %vm3015, %v3485, 0
      %v3505 = vsel %vm3015, %v3486, 0
      %v3508 = vsel %vm3015, %v3487, 0
      %v3511 = vsel %vm3015, %v3488, 0
      %v3514 = vsel %vm3015, %v3489, 0
      %v3517 = vsel %vm3015, %v3490, 0
      %v3520 = vsel %vm3015, %v3491, 0
      %v3523 = vsel %vm3015, %v3492, 0
      %3525 = vmatpush.msra.mxu0 0.0
      %3526 = vmatpush.msra.mxu0 0.0
      %3527 = vmatpush.msra.mxu0 0.0
      %3528 = vmatpush.msra.mxu0 0.0
      %3529 = vmatpush.msra.mxu0 0.0
      %3530 = vmatpush.msra.mxu0 0.0
      %3531 = vmatpush.msra.mxu0 0.0
      %3532 = vmatpush.msra.mxu0 0.0
      %3533 = vmatpush.msra.mxu0 0.0
      %3534 = vmatpush.msra.mxu0 0.0
      %3535 = vmatpush.msra.mxu0 0.0
      %3536 = vmatpush.msra.mxu0 0.0
      %3537 = vmatpush.msra.mxu0 0.0
      %3538 = vmatpush.msra.mxu0 %v858
      %3539 = vmatpush.msra.mxu0 %v857
      %3540 = vmatpush.msra.mxu0 %v856
      %3541 = vmatmul.f32.gmra.mxu0 %v3502
      %v3542 = vpop.f32.mrf.mxu0
      %v3543 = vadd.f32 0.0, %v3542
      %3544 = vmatmul.f32.gmra.mxu0 %v3505
      %v3545 = vpop.f32.mrf.mxu0
      %v3546 = vadd.f32 0.0, %v3545
      %3547 = vmatmul.f32.gmra.mxu0 %v3508
      %v3548 = vpop.f32.mrf.mxu0
      %v3549 = vadd.f32 0.0, %v3548
      %3550 = vmatmul.f32.gmra.mxu0 %v3511
      %v3551 = vpop.f32.mrf.mxu0
      %v3552 = vadd.f32 0.0, %v3551
      %3553 = vmatmul.f32.gmra.mxu0 %v3514
      %v3554 = vpop.f32.mrf.mxu0
      %v3555 = vadd.f32 0.0, %v3554
      %3556 = vmatmul.f32.gmra.mxu0 %v3517
      %v3557 = vpop.f32.mrf.mxu0
      %v3558 = vadd.f32 0.0, %v3557
      %3559 = vmatmul.f32.gmra.mxu0 %v3520
      %v3560 = vpop.f32.mrf.mxu0
      %v3561 = vadd.f32 0.0, %v3560
      %3562 = vmatmul.f32.gmra.mxu0 %v3523
      %v3563 = vpop.f32.mrf.mxu0
      %v3564 = vadd.f32 0.0, %v3563
      %3565 = vdwg.mxu0
      %3566 = vxpose.xlu0.b32.start [1/16] %v2151, 128
      %3567 = vxpose.xlu0.b32.cont [2/16] %v2152, 128
      %3568 = vxpose.xlu0.b32.cont [3/16] %v2153, 128
      %3569 = vxpose.xlu0.b32.cont [4/16] 0.0, 128
      %3570 = vxpose.xlu0.b32.cont [5/16] 0.0, 128
      %3571 = vxpose.xlu0.b32.cont [6/16] 0.0, 128
      %3572 = vxpose.xlu0.b32.cont [7/16] 0.0, 128
      %3573 = vxpose.xlu0.b32.cont [8/16] 0.0, 128
      %3574 = vxpose.xlu0.b32.cont [9/16] 0.0, 128
      %3575 = vxpose.xlu0.b32.cont [10/16] 0.0, 128
      %3576 = vxpose.xlu0.b32.cont [11/16] 0.0, 128
      %3577 = vxpose.xlu0.b32.cont [12/16] 0.0, 128
      %3578 = vxpose.xlu0.b32.cont [13/16] 0.0, 128
      %3579 = vxpose.xlu0.b32.cont [14/16] 0.0, 128
      %3580 = vxpose.xlu0.b32.cont [15/16] 0.0, 128
      %3581 = vxpose.xlu0.b32.end [16/16] 0.0, 128
      %v3582 = vpop.trf.xlu0
      %v3583 = vpop.trf.xlu0
      %v3584 = vpop.trf.xlu0
      %v3585 = vpop.trf.xlu0
      %v3586 = vpop.trf.xlu0
      %v3587 = vpop.trf.xlu0
      %v3588 = vpop.trf.xlu0
      %v3589 = vpop.trf.xlu0
      %v3590 = vpop.trf.xlu0
      %v3591 = vpop.trf.xlu0
      %v3592 = vpop.trf.xlu0
      %v3593 = vpop.trf.xlu0
      %v3594 = vpop.trf.xlu0
      %v3595 = vpop.trf.xlu0
      %v3596 = vpop.trf.xlu0
      %v3597 = vpop.trf.xlu0
      %v3599 = vsel %vm3015, %v3582, 0
      %v3602 = vsel %vm3015, %v3583, 0
      %v3605 = vsel %vm3015, %v3584, 0
      %v3608 = vsel %vm3015, %v3585, 0
      %v3611 = vsel %vm3015, %v3586, 0
      %v3614 = vsel %vm3015, %v3587, 0
      %v3617 = vsel %vm3015, %v3588, 0
      %v3620 = vsel %vm3015, %v3589, 0
      %3622 = vmatpush.msra.mxu0 0.0
      %3623 = vmatpush.msra.mxu0 0.0
      %3624 = vmatpush.msra.mxu0 0.0
      %3625 = vmatpush.msra.mxu0 0.0
      %3626 = vmatpush.msra.mxu0 0.0
      %3627 = vmatpush.msra.mxu0 0.0
      %3628 = vmatpush.msra.mxu0 0.0
      %3629 = vmatpush.msra.mxu0 0.0
      %3630 = vmatpush.msra.mxu0 0.0
      %3631 = vmatpush.msra.mxu0 0.0
      %3632 = vmatpush.msra.mxu0 0.0
      %3633 = vmatpush.msra.mxu0 0.0
      %3634 = vmatpush.msra.mxu0 0.0
      %3635 = vmatpush.msra.mxu0 %v861
      %3636 = vmatpush.msra.mxu0 %v860
      %3637 = vmatpush.msra.mxu0 %v859
      %3638 = vmatmul.f32.gmra.mxu0 %v3599
      %v3639 = vpop.f32.mrf.mxu0
      %v3640 = vadd.f32 0.0, %v3639
      %3641 = vmatmul.f32.gmra.mxu0 %v3602
      %v3642 = vpop.f32.mrf.mxu0
      %v3643 = vadd.f32 0.0, %v3642
      %3644 = vmatmul.f32.gmra.mxu0 %v3605
      %v3645 = vpop.f32.mrf.mxu0
      %v3646 = vadd.f32 0.0, %v3645
      %3647 = vmatmul.f32.gmra.mxu0 %v3608
      %v3648 = vpop.f32.mrf.mxu0
      %v3649 = vadd.f32 0.0, %v3648
      %3650 = vmatmul.f32.gmra.mxu0 %v3611
      %v3651 = vpop.f32.mrf.mxu0
      %v3652 = vadd.f32 0.0, %v3651
      %3653 = vmatmul.f32.gmra.mxu0 %v3614
      %v3654 = vpop.f32.mrf.mxu0
      %v3655 = vadd.f32 0.0, %v3654
      %3656 = vmatmul.f32.gmra.mxu0 %v3617
      %v3657 = vpop.f32.mrf.mxu0
      %v3658 = vadd.f32 0.0, %v3657
      %3659 = vmatmul.f32.gmra.mxu0 %v3620
      %v3660 = vpop.f32.mrf.mxu0
      %v3661 = vadd.f32 0.0, %v3660
      %3662 = vdwg.mxu0
      %3663 = vxpose.xlu0.b32.start [1/16] %v2154, 128
      %3664 = vxpose.xlu0.b32.cont [2/16] %v2155, 128
      %3665 = vxpose.xlu0.b32.cont [3/16] %v2156, 128
      %3666 = vxpose.xlu0.b32.cont [4/16] 0.0, 128
      %3667 = vxpose.xlu0.b32.cont [5/16] 0.0, 128
      %3668 = vxpose.xlu0.b32.cont [6/16] 0.0, 128
      %3669 = vxpose.xlu0.b32.cont [7/16] 0.0, 128
      %3670 = vxpose.xlu0.b32.cont [8/16] 0.0, 128
      %3671 = vxpose.xlu0.b32.cont [9/16] 0.0, 128
      %3672 = vxpose.xlu0.b32.cont [10/16] 0.0, 128
      %3673 = vxpose.xlu0.b32.cont [11/16] 0.0, 128
      %3674 = vxpose.xlu0.b32.cont [12/16] 0.0, 128
      %3675 = vxpose.xlu0.b32.cont [13/16] 0.0, 128
      %3676 = vxpose.xlu0.b32.cont [14/16] 0.0, 128
      %3677 = vxpose.xlu0.b32.cont [15/16] 0.0, 128
      %3678 = vxpose.xlu0.b32.end [16/16] 0.0, 128
      %v3679 = vpop.trf.xlu0
      %v3680 = vpop.trf.xlu0
      %v3681 = vpop.trf.xlu0
      %v3682 = vpop.trf.xlu0
      %v3683 = vpop.trf.xlu0
      %v3684 = vpop.trf.xlu0
      %v3685 = vpop.trf.xlu0
      %v3686 = vpop.trf.xlu0
      %v3687 = vpop.trf.xlu0
      %v3688 = vpop.trf.xlu0
      %v3689 = vpop.trf.xlu0
      %v3690 = vpop.trf.xlu0
      %v3691 = vpop.trf.xlu0
      %v3692 = vpop.trf.xlu0
      %v3693 = vpop.trf.xlu0
      %v3694 = vpop.trf.xlu0
      %v3696 = vsel %vm3015, %v3679, 0
      %v3699 = vsel %vm3015, %v3680, 0
      %v3702 = vsel %vm3015, %v3681, 0
      %v3705 = vsel %vm3015, %v3682, 0
      %v3708 = vsel %vm3015, %v3683, 0
      %v3711 = vsel %vm3015, %v3684, 0
      %v3714 = vsel %vm3015, %v3685, 0
      %v3717 = vsel %vm3015, %v3686, 0
      %3719 = vmatpush.msra.mxu0 0.0
      %3720 = vmatpush.msra.mxu0 0.0
      %3721 = vmatpush.msra.mxu0 0.0
      %3722 = vmatpush.msra.mxu0 0.0
      %3723 = vmatpush.msra.mxu0 0.0
      %3724 = vmatpush.msra.mxu0 0.0
      %3725 = vmatpush.msra.mxu0 0.0
      %3726 = vmatpush.msra.mxu0 0.0
      %3727 = vmatpush.msra.mxu0 0.0
      %3728 = vmatpush.msra.mxu0 0.0
      %3729 = vmatpush.msra.mxu0 0.0
      %3730 = vmatpush.msra.mxu0 0.0
      %3731 = vmatpush.msra.mxu0 0.0
      %3732 = vmatpush.msra.mxu0 %v864
      %3733 = vmatpush.msra.mxu0 %v863
      %3734 = vmatpush.msra.mxu0 %v862
      %3735 = vmatmul.f32.gmra.mxu0 %v3696
      %v3736 = vpop.f32.mrf.mxu0
      %v3737 = vadd.f32 0.0, %v3736
      %3738 = vmatmul.f32.gmra.mxu0 %v3699
      %v3739 = vpop.f32.mrf.mxu0
      %v3740 = vadd.f32 0.0, %v3739
      %3741 = vmatmul.f32.gmra.mxu0 %v3702
      %v3742 = vpop.f32.mrf.mxu0
      %v3743 = vadd.f32 0.0, %v3742
      %3744 = vmatmul.f32.gmra.mxu0 %v3705
      %v3745 = vpop.f32.mrf.mxu0
      %v3746 = vadd.f32 0.0, %v3745
      %3747 = vmatmul.f32.gmra.mxu0 %v3708
      %v3748 = vpop.f32.mrf.mxu0
      %v3749 = vadd.f32 0.0, %v3748
      %3750 = vmatmul.f32.gmra.mxu0 %v3711
      %v3751 = vpop.f32.mrf.mxu0
      %v3752 = vadd.f32 0.0, %v3751
      %3753 = vmatmul.f32.gmra.mxu0 %v3714
      %v3754 = vpop.f32.mrf.mxu0
      %v3755 = vadd.f32 0.0, %v3754
      %3756 = vmatmul.f32.gmra.mxu0 %v3717
      %v3757 = vpop.f32.mrf.mxu0
      %v3758 = vadd.f32 0.0, %v3757
      %3759 = vdwg.mxu0
      %3760 = vxpose.xlu0.b32.start [1/16] %v2157, 128
      %3761 = vxpose.xlu0.b32.cont [2/16] %v2158, 128
      %3762 = vxpose.xlu0.b32.cont [3/16] %v2159, 128
      %3763 = vxpose.xlu0.b32.cont [4/16] 0.0, 128
      %3764 = vxpose.xlu0.b32.cont [5/16] 0.0, 128
      %3765 = vxpose.xlu0.b32.cont [6/16] 0.0, 128
      %3766 = vxpose.xlu0.b32.cont [7/16] 0.0, 128
      %3767 = vxpose.xlu0.b32.cont [8/16] 0.0, 128
      %3768 = vxpose.xlu0.b32.cont [9/16] 0.0, 128
      %3769 = vxpose.xlu0.b32.cont [10/16] 0.0, 128
      %3770 = vxpose.xlu0.b32.cont [11/16] 0.0, 128
      %3771 = vxpose.xlu0.b32.cont [12/16] 0.0, 128
      %3772 = vxpose.xlu0.b32.cont [13/16] 0.0, 128
      %3773 = vxpose.xlu0.b32.cont [14/16] 0.0, 128
      %3774 = vxpose.xlu0.b32.cont [15/16] 0.0, 128
      %3775 = vxpose.xlu0.b32.end [16/16] 0.0, 128
      %v3776 = vpop.trf.xlu0
      %v3777 = vpop.trf.xlu0
      %v3778 = vpop.trf.xlu0
      %v3779 = vpop.trf.xlu0
      %v3780 = vpop.trf.xlu0
      %v3781 = vpop.trf.xlu0
      %v3782 = vpop.trf.xlu0
      %v3783 = vpop.trf.xlu0
      %v3784 = vpop.trf.xlu0
      %v3785 = vpop.trf.xlu0
      %v3786 = vpop.trf.xlu0
      %v3787 = vpop.trf.xlu0
      %v3788 = vpop.trf.xlu0
      %v3789 = vpop.trf.xlu0
      %v3790 = vpop.trf.xlu0
      %v3791 = vpop.trf.xlu0
      %v3793 = vsel %vm3015, %v3776, 0
      %v3796 = vsel %vm3015, %v3777, 0
      %v3799 = vsel %vm3015, %v3778, 0
      %v3802 = vsel %vm3015, %v3779, 0
      %v3805 = vsel %vm3015, %v3780, 0
      %v3808 = vsel %vm3015, %v3781, 0
      %v3811 = vsel %vm3015, %v3782, 0
      %v3814 = vsel %vm3015, %v3783, 0
      %3816 = vmatpush.msra.mxu0 0.0
      %3817 = vmatpush.msra.mxu0 0.0
      %3818 = vmatpush.msra.mxu0 0.0
      %3819 = vmatpush.msra.mxu0 0.0
      %3820 = vmatpush.msra.mxu0 0.0
      %3821 = vmatpush.msra.mxu0 0.0
      %3822 = vmatpush.msra.mxu0 0.0
      %3823 = vmatpush.msra.mxu0 0.0
      %3824 = vmatpush.msra.mxu0 0.0
      %3825 = vmatpush.msra.mxu0 0.0
      %3826 = vmatpush.msra.mxu0 0.0
      %3827 = vmatpush.msra.mxu0 0.0
      %3828 = vmatpush.msra.mxu0 0.0
      %3829 = vmatpush.msra.mxu0 %v867
      %3830 = vmatpush.msra.mxu0 %v866
      %3831 = vmatpush.msra.mxu0 %v865
      %3832 = vmatmul.f32.gmra.mxu0 %v3793
      %v3833 = vpop.f32.mrf.mxu0
      %v3834 = vadd.f32 0.0, %v3833
      %3835 = vmatmul.f32.gmra.mxu0 %v3796
      %v3836 = vpop.f32.mrf.mxu0
      %v3837 = vadd.f32 0.0, %v3836
      %3838 = vmatmul.f32.gmra.mxu0 %v3799
      %v3839 = vpop.f32.mrf.mxu0
      %v3840 = vadd.f32 0.0, %v3839
      %3841 = vmatmul.f32.gmra.mxu0 %v3802
      %v3842 = vpop.f32.mrf.mxu0
      %v3843 = vadd.f32 0.0, %v3842
      %3844 = vmatmul.f32.gmra.mxu0 %v3805
      %v3845 = vpop.f32.mrf.mxu0
      %v3846 = vadd.f32 0.0, %v3845
      %3847 = vmatmul.f32.gmra.mxu0 %v3808
      %v3848 = vpop.f32.mrf.mxu0
      %v3849 = vadd.f32 0.0, %v3848
      %3850 = vmatmul.f32.gmra.mxu0 %v3811
      %v3851 = vpop.f32.mrf.mxu0
      %v3852 = vadd.f32 0.0, %v3851
      %3853 = vmatmul.f32.gmra.mxu0 %v3814
      %v3854 = vpop.f32.mrf.mxu0
      %v3855 = vadd.f32 0.0, %v3854
      %3856 = vdwg.mxu0
      %3857 = vxpose.xlu0.b32.start [1/16] %v2160, 128
      %3858 = vxpose.xlu0.b32.cont [2/16] %v2161, 128
      %3859 = vxpose.xlu0.b32.cont [3/16] %v2162, 128
      %3860 = vxpose.xlu0.b32.cont [4/16] 0.0, 128
      %3861 = vxpose.xlu0.b32.cont [5/16] 0.0, 128
      %3862 = vxpose.xlu0.b32.cont [6/16] 0.0, 128
      %3863 = vxpose.xlu0.b32.cont [7/16] 0.0, 128
      %3864 = vxpose.xlu0.b32.cont [8/16] 0.0, 128
      %3865 = vxpose.xlu0.b32.cont [9/16] 0.0, 128
      %3866 = vxpose.xlu0.b32.cont [10/16] 0.0, 128
      %3867 = vxpose.xlu0.b32.cont [11/16] 0.0, 128
      %3868 = vxpose.xlu0.b32.cont [12/16] 0.0, 128
      %3869 = vxpose.xlu0.b32.cont [13/16] 0.0, 128
      %3870 = vxpose.xlu0.b32.cont [14/16] 0.0, 128
      %3871 = vxpose.xlu0.b32.cont [15/16] 0.0, 128
      %3872 = vxpose.xlu0.b32.end [16/16] 0.0, 128
      %v3873 = vpop.trf.xlu0
      %v3874 = vpop.trf.xlu0
      %v3875 = vpop.trf.xlu0
      %v3876 = vpop.trf.xlu0
      %v3877 = vpop.trf.xlu0
      %v3878 = vpop.trf.xlu0
      %v3879 = vpop.trf.xlu0
      %v3880 = vpop.trf.xlu0
      %v3881 = vpop.trf.xlu0
      %v3882 = vpop.trf.xlu0
      %v3883 = vpop.trf.xlu0
      %v3884 = vpop.trf.xlu0
      %v3885 = vpop.trf.xlu0
      %v3886 = vpop.trf.xlu0
      %v3887 = vpop.trf.xlu0
      %v3888 = vpop.trf.xlu0
      %v3890 = vsel %vm3015, %v3873, 0
      %v3893 = vsel %vm3015, %v3874, 0
      %v3896 = vsel %vm3015, %v3875, 0
      %v3899 = vsel %vm3015, %v3876, 0
      %v3902 = vsel %vm3015, %v3877, 0
      %v3905 = vsel %vm3015, %v3878, 0
      %v3908 = vsel %vm3015, %v3879, 0
      %v3911 = vsel %vm3015, %v3880, 0
      %3913 = vmatpush.msra.mxu0 0.0
      %3914 = vmatpush.msra.mxu0 0.0
      %3915 = vmatpush.msra.mxu0 0.0
      %3916 = vmatpush.msra.mxu0 0.0
      %3917 = vmatpush.msra.mxu0 0.0
      %3918 = vmatpush.msra.mxu0 0.0
      %3919 = vmatpush.msra.mxu0 0.0
      %3920 = vmatpush.msra.mxu0 0.0
      %3921 = vmatpush.msra.mxu0 0.0
      %3922 = vmatpush.msra.mxu0 0.0
      %3923 = vmatpush.msra.mxu0 0.0
      %3924 = vmatpush.msra.mxu0 0.0
      %3925 = vmatpush.msra.mxu0 0.0
      %3926 = vmatpush.msra.mxu0 %v870
      %3927 = vmatpush.msra.mxu0 %v869
      %3928 = vmatpush.msra.mxu0 %v868
      %3929 = vmatmul.f32.gmra.mxu0 %v3890
      %v3930 = vpop.f32.mrf.mxu0
      %v3931 = vadd.f32 0.0, %v3930
      %3932 = vmatmul.f32.gmra.mxu0 %v3893
      %v3933 = vpop.f32.mrf.mxu0
      %v3934 = vadd.f32 0.0, %v3933
      %3935 = vmatmul.f32.gmra.mxu0 %v3896
      %v3936 = vpop.f32.mrf.mxu0
      %v3937 = vadd.f32 0.0, %v3936
      %3938 = vmatmul.f32.gmra.mxu0 %v3899
      %v3939 = vpop.f32.mrf.mxu0
      %v3940 = vadd.f32 0.0, %v3939
      %3941 = vmatmul.f32.gmra.mxu0 %v3902
      %v3942 = vpop.f32.mrf.mxu0
      %v3943 = vadd.f32 0.0, %v3942
      %3944 = vmatmul.f32.gmra.mxu0 %v3905
      %v3945 = vpop.f32.mrf.mxu0
      %v3946 = vadd.f32 0.0, %v3945
      %3947 = vmatmul.f32.gmra.mxu0 %v3908
      %v3948 = vpop.f32.mrf.mxu0
      %v3949 = vadd.f32 0.0, %v3948
      %3950 = vmatmul.f32.gmra.mxu0 %v3911
      %v3951 = vpop.f32.mrf.mxu0
      %v3952 = vadd.f32 0.0, %v3951
      %3953 = vdwg.mxu0
      %3954 = vxpose.xlu0.b32.start [1/16] %v2163, 128
      %3955 = vxpose.xlu0.b32.cont [2/16] %v2164, 128
      %3956 = vxpose.xlu0.b32.cont [3/16] %v2165, 128
      %3957 = vxpose.xlu0.b32.cont [4/16] 0.0, 128
      %3958 = vxpose.xlu0.b32.cont [5/16] 0.0, 128
      %3959 = vxpose.xlu0.b32.cont [6/16] 0.0, 128
      %3960 = vxpose.xlu0.b32.cont [7/16] 0.0, 128
      %3961 = vxpose.xlu0.b32.cont [8/16] 0.0, 128
      %3962 = vxpose.xlu0.b32.cont [9/16] 0.0, 128
      %3963 = vxpose.xlu0.b32.cont [10/16] 0.0, 128
      %3964 = vxpose.xlu0.b32.cont [11/16] 0.0, 128
      %3965 = vxpose.xlu0.b32.cont [12/16] 0.0, 128
      %3966 = vxpose.xlu0.b32.cont [13/16] 0.0, 128
      %3967 = vxpose.xlu0.b32.cont [14/16] 0.0, 128
      %3968 = vxpose.xlu0.b32.cont [15/16] 0.0, 128
      %3969 = vxpose.xlu0.b32.end [16/16] 0.0, 128
      %v3970 = vpop.trf.xlu0
      %v3971 = vpop.trf.xlu0
      %v3972 = vpop.trf.xlu0
      %v3973 = vpop.trf.xlu0
      %v3974 = vpop.trf.xlu0
      %v3975 = vpop.trf.xlu0
      %v3976 = vpop.trf.xlu0
      %v3977 = vpop.trf.xlu0
      %v3978 = vpop.trf.xlu0
      %v3979 = vpop.trf.xlu0
      %v3980 = vpop.trf.xlu0
      %v3981 = vpop.trf.xlu0
      %v3982 = vpop.trf.xlu0
      %v3983 = vpop.trf.xlu0
      %v3984 = vpop.trf.xlu0
      %v3985 = vpop.trf.xlu0
      %v3987 = vsel %vm3015, %v3970, 0
      %v3990 = vsel %vm3015, %v3971, 0
      %v3993 = vsel %vm3015, %v3972, 0
      %v3996 = vsel %vm3015, %v3973, 0
      %v3999 = vsel %vm3015, %v3974, 0
      %v4002 = vsel %vm3015, %v3975, 0
      %v4005 = vsel %vm3015, %v3976, 0
      %v4008 = vsel %vm3015, %v3977, 0
      %4010 = vmatpush.msra.mxu0 0.0
      %4011 = vmatpush.msra.mxu0 0.0
      %4012 = vmatpush.msra.mxu0 0.0
      %4013 = vmatpush.msra.mxu0 0.0
      %4014 = vmatpush.msra.mxu0 0.0
      %4015 = vmatpush.msra.mxu0 0.0
      %4016 = vmatpush.msra.mxu0 0.0
      %4017 = vmatpush.msra.mxu0 0.0
      %4018 = vmatpush.msra.mxu0 0.0
      %4019 = vmatpush.msra.mxu0 0.0
      %4020 = vmatpush.msra.mxu0 0.0
      %4021 = vmatpush.msra.mxu0 0.0
      %4022 = vmatpush.msra.mxu0 0.0
      %4023 = vmatpush.msra.mxu0 %v873
      %4024 = vmatpush.msra.mxu0 %v872
      %4025 = vmatpush.msra.mxu0 %v871
      %4026 = vmatmul.f32.gmra.mxu0 %v3987
      %v4027 = vpop.f32.mrf.mxu0
      %v4028 = vadd.f32 0.0, %v4027
      %4029 = vmatmul.f32.gmra.mxu0 %v3990
      %v4030 = vpop.f32.mrf.mxu0
      %v4031 = vadd.f32 0.0, %v4030
      %4032 = vmatmul.f32.gmra.mxu0 %v3993
      %v4033 = vpop.f32.mrf.mxu0
      %v4034 = vadd.f32 0.0, %v4033
      %4035 = vmatmul.f32.gmra.mxu0 %v3996
      %v4036 = vpop.f32.mrf.mxu0
      %v4037 = vadd.f32 0.0, %v4036
      %4038 = vmatmul.f32.gmra.mxu0 %v3999
      %v4039 = vpop.f32.mrf.mxu0
      %v4040 = vadd.f32 0.0, %v4039
      %4041 = vmatmul.f32.gmra.mxu0 %v4002
      %v4042 = vpop.f32.mrf.mxu0
      %v4043 = vadd.f32 0.0, %v4042
      %4044 = vmatmul.f32.gmra.mxu0 %v4005
      %v4045 = vpop.f32.mrf.mxu0
      %v4046 = vadd.f32 0.0, %v4045
      %4047 = vmatmul.f32.gmra.mxu0 %v4008
      %v4048 = vpop.f32.mrf.mxu0
      %v4049 = vadd.f32 0.0, %v4048
      %4050 = vdwg.mxu0
      %4051 = vxpose.xlu0.b32.start [1/16] %v2166, 128
      %4052 = vxpose.xlu0.b32.cont [2/16] %v2167, 128
      %4053 = vxpose.xlu0.b32.cont [3/16] %v2168, 128
      %4054 = vxpose.xlu0.b32.cont [4/16] 0.0, 128
      %4055 = vxpose.xlu0.b32.cont [5/16] 0.0, 128
      %4056 = vxpose.xlu0.b32.cont [6/16] 0.0, 128
      %4057 = vxpose.xlu0.b32.cont [7/16] 0.0, 128
      %4058 = vxpose.xlu0.b32.cont [8/16] 0.0, 128
      %4059 = vxpose.xlu0.b32.cont [9/16] 0.0, 128
      %4060 = vxpose.xlu0.b32.cont [10/16] 0.0, 128
      %4061 = vxpose.xlu0.b32.cont [11/16] 0.0, 128
      %4062 = vxpose.xlu0.b32.cont [12/16] 0.0, 128
      %4063 = vxpose.xlu0.b32.cont [13/16] 0.0, 128
      %4064 = vxpose.xlu0.b32.cont [14/16] 0.0, 128
      %4065 = vxpose.xlu0.b32.cont [15/16] 0.0, 128
      %4066 = vxpose.xlu0.b32.end [16/16] 0.0, 128
      %v4067 = vpop.trf.xlu0
      %v4068 = vpop.trf.xlu0
      %v4069 = vpop.trf.xlu0
      %v4070 = vpop.trf.xlu0
      %v4071 = vpop.trf.xlu0
      %v4072 = vpop.trf.xlu0
      %v4073 = vpop.trf.xlu0
      %v4074 = vpop.trf.xlu0
      %v4075 = vpop.trf.xlu0
      %v4076 = vpop.trf.xlu0
      %v4077 = vpop.trf.xlu0
      %v4078 = vpop.trf.xlu0
      %v4079 = vpop.trf.xlu0
      %v4080 = vpop.trf.xlu0
      %v4081 = vpop.trf.xlu0
      %v4082 = vpop.trf.xlu0
      %v4084 = vsel %vm3015, %v4067, 0
      %v4087 = vsel %vm3015, %v4068, 0
      %v4090 = vsel %vm3015, %v4069, 0
      %v4093 = vsel %vm3015, %v4070, 0
      %v4096 = vsel %vm3015, %v4071, 0
      %v4099 = vsel %vm3015, %v4072, 0
      %v4102 = vsel %vm3015, %v4073, 0
      %v4105 = vsel %vm3015, %v4074, 0
      %4107 = vmatpush.msra.mxu0 0.0
      %4108 = vmatpush.msra.mxu0 0.0
      %4109 = vmatpush.msra.mxu0 0.0
      %4110 = vmatpush.msra.mxu0 0.0
      %4111 = vmatpush.msra.mxu0 0.0
      %4112 = vmatpush.msra.mxu0 0.0
      %4113 = vmatpush.msra.mxu0 0.0
      %4114 = vmatpush.msra.mxu0 0.0
      %4115 = vmatpush.msra.mxu0 0.0
      %4116 = vmatpush.msra.mxu0 0.0
      %4117 = vmatpush.msra.mxu0 0.0
      %4118 = vmatpush.msra.mxu0 0.0
      %4119 = vmatpush.msra.mxu0 0.0
      %4120 = vmatpush.msra.mxu0 %v876
      %4121 = vmatpush.msra.mxu0 %v875
      %4122 = vmatpush.msra.mxu0 %v874
      %4123 = vmatmul.f32.gmra.mxu0 %v4084
      %v4124 = vpop.f32.mrf.mxu0
      %v4125 = vadd.f32 0.0, %v4124
      %4126 = vmatmul.f32.gmra.mxu0 %v4087
      %v4127 = vpop.f32.mrf.mxu0
      %v4128 = vadd.f32 0.0, %v4127
      %4129 = vmatmul.f32.gmra.mxu0 %v4090
      %v4130 = vpop.f32.mrf.mxu0
      %v4131 = vadd.f32 0.0, %v4130
      %4132 = vmatmul.f32.gmra.mxu0 %v4093
      %v4133 = vpop.f32.mrf.mxu0
      %v4134 = vadd.f32 0.0, %v4133
      %4135 = vmatmul.f32.gmra.mxu0 %v4096
      %v4136 = vpop.f32.mrf.mxu0
      %v4137 = vadd.f32 0.0, %v4136
      %4138 = vmatmul.f32.gmra.mxu0 %v4099
      %v4139 = vpop.f32.mrf.mxu0
      %v4140 = vadd.f32 0.0, %v4139
      %4141 = vmatmul.f32.gmra.mxu0 %v4102
      %v4142 = vpop.f32.mrf.mxu0
      %v4143 = vadd.f32 0.0, %v4142
      %4144 = vmatmul.f32.gmra.mxu0 %v4105
      %v4145 = vpop.f32.mrf.mxu0
      %v4146 = vadd.f32 0.0, %v4145
      %4147 = vdwg.mxu0
      %4148 = vxpose.xlu0.b32.start [1/16] %v2169, 128
      %4149 = vxpose.xlu0.b32.cont [2/16] %v2170, 128
      %4150 = vxpose.xlu0.b32.cont [3/16] %v2171, 128
      %4151 = vxpose.xlu0.b32.cont [4/16] 0.0, 128
      %4152 = vxpose.xlu0.b32.cont [5/16] 0.0, 128
      %4153 = vxpose.xlu0.b32.cont [6/16] 0.0, 128
      %4154 = vxpose.xlu0.b32.cont [7/16] 0.0, 128
      %4155 = vxpose.xlu0.b32.cont [8/16] 0.0, 128
      %4156 = vxpose.xlu0.b32.cont [9/16] 0.0, 128
      %4157 = vxpose.xlu0.b32.cont [10/16] 0.0, 128
      %4158 = vxpose.xlu0.b32.cont [11/16] 0.0, 128
      %4159 = vxpose.xlu0.b32.cont [12/16] 0.0, 128
      %4160 = vxpose.xlu0.b32.cont [13/16] 0.0, 128
      %4161 = vxpose.xlu0.b32.cont [14/16] 0.0, 128
      %4162 = vxpose.xlu0.b32.cont [15/16] 0.0, 128
      %4163 = vxpose.xlu0.b32.end [16/16] 0.0, 128
      %v4164 = vpop.trf.xlu0
      %v4165 = vpop.trf.xlu0
      %v4166 = vpop.trf.xlu0
      %v4167 = vpop.trf.xlu0
      %v4168 = vpop.trf.xlu0
      %v4169 = vpop.trf.xlu0
      %v4170 = vpop.trf.xlu0
      %v4171 = vpop.trf.xlu0
      %v4172 = vpop.trf.xlu0
      %v4173 = vpop.trf.xlu0
      %v4174 = vpop.trf.xlu0
      %v4175 = vpop.trf.xlu0
      %v4176 = vpop.trf.xlu0
      %v4177 = vpop.trf.xlu0
      %v4178 = vpop.trf.xlu0
      %v4179 = vpop.trf.xlu0
      %v4181 = vsel %vm3015, %v4164, 0
      %v4184 = vsel %vm3015, %v4165, 0
      %v4187 = vsel %vm3015, %v4166, 0
      %v4190 = vsel %vm3015, %v4167, 0
      %v4193 = vsel %vm3015, %v4168, 0
      %v4196 = vsel %vm3015, %v4169, 0
      %v4199 = vsel %vm3015, %v4170, 0
      %v4202 = vsel %vm3015, %v4171, 0
      %4204 = vmatpush.msra.mxu0 0.0
      %4205 = vmatpush.msra.mxu0 0.0
      %4206 = vmatpush.msra.mxu0 0.0
      %4207 = vmatpush.msra.mxu0 0.0
      %4208 = vmatpush.msra.mxu0 0.0
      %4209 = vmatpush.msra.mxu0 0.0
      %4210 = vmatpush.msra.mxu0 0.0
      %4211 = vmatpush.msra.mxu0 0.0
      %4212 = vmatpush.msra.mxu0 0.0
      %4213 = vmatpush.msra.mxu0 0.0
      %4214 = vmatpush.msra.mxu0 0.0
      %4215 = vmatpush.msra.mxu0 0.0
      %4216 = vmatpush.msra.mxu0 0.0
      %4217 = vmatpush.msra.mxu0 %v879
      %4218 = vmatpush.msra.mxu0 %v878
      %4219 = vmatpush.msra.mxu0 %v877
      %4220 = vmatmul.f32.gmra.mxu0 %v4181
      %v4221 = vpop.f32.mrf.mxu0
      %v4222 = vadd.f32 0.0, %v4221
      %4223 = vmatmul.f32.gmra.mxu0 %v4184
      %v4224 = vpop.f32.mrf.mxu0
      %v4225 = vadd.f32 0.0, %v4224
      %4226 = vmatmul.f32.gmra.mxu0 %v4187
      %v4227 = vpop.f32.mrf.mxu0
      %v4228 = vadd.f32 0.0, %v4227
      %4229 = vmatmul.f32.gmra.mxu0 %v4190
      %v4230 = vpop.f32.mrf.mxu0
      %v4231 = vadd.f32 0.0, %v4230
      %4232 = vmatmul.f32.gmra.mxu0 %v4193
      %v4233 = vpop.f32.mrf.mxu0
      %v4234 = vadd.f32 0.0, %v4233
      %4235 = vmatmul.f32.gmra.mxu0 %v4196
      %v4236 = vpop.f32.mrf.mxu0
      %v4237 = vadd.f32 0.0, %v4236
      %4238 = vmatmul.f32.gmra.mxu0 %v4199
      %v4239 = vpop.f32.mrf.mxu0
      %v4240 = vadd.f32 0.0, %v4239
      %4241 = vmatmul.f32.gmra.mxu0 %v4202
      %v4242 = vpop.f32.mrf.mxu0
      %v4243 = vadd.f32 0.0, %v4242
      %4244 = vdwg.mxu0
      %4245 = vxpose.xlu0.b32.start [1/16] %v2172, 128
      %4246 = vxpose.xlu0.b32.cont [2/16] %v2173, 128
      %4247 = vxpose.xlu0.b32.cont [3/16] %v2174, 128
      %4248 = vxpose.xlu0.b32.cont [4/16] 0.0, 128
      %4249 = vxpose.xlu0.b32.cont [5/16] 0.0, 128
      %4250 = vxpose.xlu0.b32.cont [6/16] 0.0, 128
      %4251 = vxpose.xlu0.b32.cont [7/16] 0.0, 128
      %4252 = vxpose.xlu0.b32.cont [8/16] 0.0, 128
      %4253 = vxpose.xlu0.b32.cont [9/16] 0.0, 128
      %4254 = vxpose.xlu0.b32.cont [10/16] 0.0, 128
      %4255 = vxpose.xlu0.b32.cont [11/16] 0.0, 128
      %4256 = vxpose.xlu0.b32.cont [12/16] 0.0, 128
      %4257 = vxpose.xlu0.b32.cont [13/16] 0.0, 128
      %4258 = vxpose.xlu0.b32.cont [14/16] 0.0, 128
      %4259 = vxpose.xlu0.b32.cont [15/16] 0.0, 128
      %4260 = vxpose.xlu0.b32.end [16/16] 0.0, 128
      %v4261 = vpop.trf.xlu0
      %v4262 = vpop.trf.xlu0
      %v4263 = vpop.trf.xlu0
      %v4264 = vpop.trf.xlu0
      %v4265 = vpop.trf.xlu0
      %v4266 = vpop.trf.xlu0
      %v4267 = vpop.trf.xlu0
      %v4268 = vpop.trf.xlu0
      %v4269 = vpop.trf.xlu0
      %v4270 = vpop.trf.xlu0
      %v4271 = vpop.trf.xlu0
      %v4272 = vpop.trf.xlu0
      %v4273 = vpop.trf.xlu0
      %v4274 = vpop.trf.xlu0
      %v4275 = vpop.trf.xlu0
      %v4276 = vpop.trf.xlu0
      %v4278 = vsel %vm3015, %v4261, 0
      %v4281 = vsel %vm3015, %v4262, 0
      %v4284 = vsel %vm3015, %v4263, 0
      %v4287 = vsel %vm3015, %v4264, 0
      %v4290 = vsel %vm3015, %v4265, 0
      %v4293 = vsel %vm3015, %v4266, 0
      %v4296 = vsel %vm3015, %v4267, 0
      %v4299 = vsel %vm3015, %v4268, 0
      %4301 = vmatpush.msra.mxu0 0.0
      %4302 = vmatpush.msra.mxu0 0.0
      %4303 = vmatpush.msra.mxu0 0.0
      %4304 = vmatpush.msra.mxu0 0.0
      %4305 = vmatpush.msra.mxu0 0.0
      %4306 = vmatpush.msra.mxu0 0.0
      %4307 = vmatpush.msra.mxu0 0.0
      %4308 = vmatpush.msra.mxu0 0.0
      %4309 = vmatpush.msra.mxu0 0.0
      %4310 = vmatpush.msra.mxu0 0.0
      %4311 = vmatpush.msra.mxu0 0.0
      %4312 = vmatpush.msra.mxu0 0.0
      %4313 = vmatpush.msra.mxu0 0.0
      %4314 = vmatpush.msra.mxu0 %v882
      %4315 = vmatpush.msra.mxu0 %v881
      %4316 = vmatpush.msra.mxu0 %v880
      %4317 = vmatmul.f32.gmra.mxu0 %v4278
      %v4318 = vpop.f32.mrf.mxu0
      %v4319 = vadd.f32 0.0, %v4318
      %4320 = vmatmul.f32.gmra.mxu0 %v4281
      %v4321 = vpop.f32.mrf.mxu0
      %v4322 = vadd.f32 0.0, %v4321
      %4323 = vmatmul.f32.gmra.mxu0 %v4284
      %v4324 = vpop.f32.mrf.mxu0
      %v4325 = vadd.f32 0.0, %v4324
      %4326 = vmatmul.f32.gmra.mxu0 %v4287
      %v4327 = vpop.f32.mrf.mxu0
      %v4328 = vadd.f32 0.0, %v4327
      %4329 = vmatmul.f32.gmra.mxu0 %v4290
      %v4330 = vpop.f32.mrf.mxu0
      %v4331 = vadd.f32 0.0, %v4330
      %4332 = vmatmul.f32.gmra.mxu0 %v4293
      %v4333 = vpop.f32.mrf.mxu0
      %v4334 = vadd.f32 0.0, %v4333
      %4335 = vmatmul.f32.gmra.mxu0 %v4296
      %v4336 = vpop.f32.mrf.mxu0
      %v4337 = vadd.f32 0.0, %v4336
      %4338 = vmatmul.f32.gmra.mxu0 %v4299
      %v4339 = vpop.f32.mrf.mxu0
      %v4340 = vadd.f32 0.0, %v4339
      %4341 = vdwg.mxu0
      %4342 = vxpose.xlu0.b32.start [1/16] %v2175, 128
      %4343 = vxpose.xlu0.b32.cont [2/16] %v2176, 128
      %4344 = vxpose.xlu0.b32.cont [3/16] %v2177, 128
      %4345 = vxpose.xlu0.b32.cont [4/16] 0.0, 128
      %4346 = vxpose.xlu0.b32.cont [5/16] 0.0, 128
      %4347 = vxpose.xlu0.b32.cont [6/16] 0.0, 128
      %4348 = vxpose.xlu0.b32.cont [7/16] 0.0, 128
      %4349 = vxpose.xlu0.b32.cont [8/16] 0.0, 128
      %4350 = vxpose.xlu0.b32.cont [9/16] 0.0, 128
      %4351 = vxpose.xlu0.b32.cont [10/16] 0.0, 128
      %4352 = vxpose.xlu0.b32.cont [11/16] 0.0, 128
      %4353 = vxpose.xlu0.b32.cont [12/16] 0.0, 128
      %4354 = vxpose.xlu0.b32.cont [13/16] 0.0, 128
      %4355 = vxpose.xlu0.b32.cont [14/16] 0.0, 128
      %4356 = vxpose.xlu0.b32.cont [15/16] 0.0, 128
      %4357 = vxpose.xlu0.b32.end [16/16] 0.0, 128
      %v4358 = vpop.trf.xlu0
      %v4359 = vpop.trf.xlu0
      %v4360 = vpop.trf.xlu0
      %v4361 = vpop.trf.xlu0
      %v4362 = vpop.trf.xlu0
      %v4363 = vpop.trf.xlu0
      %v4364 = vpop.trf.xlu0
      %v4365 = vpop.trf.xlu0
      %v4366 = vpop.trf.xlu0
      %v4367 = vpop.trf.xlu0
      %v4368 = vpop.trf.xlu0
      %v4369 = vpop.trf.xlu0
      %v4370 = vpop.trf.xlu0
      %v4371 = vpop.trf.xlu0
      %v4372 = vpop.trf.xlu0
      %v4373 = vpop.trf.xlu0
      %v4375 = vsel %vm3015, %v4358, 0
      %v4378 = vsel %vm3015, %v4359, 0
      %v4381 = vsel %vm3015, %v4360, 0
      %v4384 = vsel %vm3015, %v4361, 0
      %v4387 = vsel %vm3015, %v4362, 0
      %v4390 = vsel %vm3015, %v4363, 0
      %v4393 = vsel %vm3015, %v4364, 0
      %v4396 = vsel %vm3015, %v4365, 0
      %4398 = vmatpush.msra.mxu0 0.0
      %4399 = vmatpush.msra.mxu0 0.0
      %4400 = vmatpush.msra.mxu0 0.0
      %4401 = vmatpush.msra.mxu0 0.0
      %4402 = vmatpush.msra.mxu0 0.0
      %4403 = vmatpush.msra.mxu0 0.0
      %4404 = vmatpush.msra.mxu0 0.0
      %4405 = vmatpush.msra.mxu0 0.0
      %4406 = vmatpush.msra.mxu0 0.0
      %4407 = vmatpush.msra.mxu0 0.0
      %4408 = vmatpush.msra.mxu0 0.0
      %4409 = vmatpush.msra.mxu0 0.0
      %4410 = vmatpush.msra.mxu0 0.0
      %4411 = vmatpush.msra.mxu0 %v885
      %4412 = vmatpush.msra.mxu0 %v884
      %4413 = vmatpush.msra.mxu0 %v883
      %4414 = vmatmul.f32.gmra.mxu0 %v4375
      %v4415 = vpop.f32.mrf.mxu0
      %v4416 = vadd.f32 0.0, %v4415
      %4417 = vmatmul.f32.gmra.mxu0 %v4378
      %v4418 = vpop.f32.mrf.mxu0
      %v4419 = vadd.f32 0.0, %v4418
      %4420 = vmatmul.f32.gmra.mxu0 %v4381
      %v4421 = vpop.f32.mrf.mxu0
      %v4422 = vadd.f32 0.0, %v4421
      %4423 = vmatmul.f32.gmra.mxu0 %v4384
      %v4424 = vpop.f32.mrf.mxu0
      %v4425 = vadd.f32 0.0, %v4424
      %4426 = vmatmul.f32.gmra.mxu0 %v4387
      %v4427 = vpop.f32.mrf.mxu0
      %v4428 = vadd.f32 0.0, %v4427
      %4429 = vmatmul.f32.gmra.mxu0 %v4390
      %v4430 = vpop.f32.mrf.mxu0
      %v4431 = vadd.f32 0.0, %v4430
      %4432 = vmatmul.f32.gmra.mxu0 %v4393
      %v4433 = vpop.f32.mrf.mxu0
      %v4434 = vadd.f32 0.0, %v4433
      %4435 = vmatmul.f32.gmra.mxu0 %v4396
      %v4436 = vpop.f32.mrf.mxu0
      %v4437 = vadd.f32 0.0, %v4436
      %4438 = vdwg.mxu0
      %4439 = vxpose.xlu0.b32.start [1/16] %v2178, 128
      %4440 = vxpose.xlu0.b32.cont [2/16] %v2179, 128
      %4441 = vxpose.xlu0.b32.cont [3/16] %v2180, 128
      %4442 = vxpose.xlu0.b32.cont [4/16] 0.0, 128
      %4443 = vxpose.xlu0.b32.cont [5/16] 0.0, 128
      %4444 = vxpose.xlu0.b32.cont [6/16] 0.0, 128
      %4445 = vxpose.xlu0.b32.cont [7/16] 0.0, 128
      %4446 = vxpose.xlu0.b32.cont [8/16] 0.0, 128
      %4447 = vxpose.xlu0.b32.cont [9/16] 0.0, 128
      %4448 = vxpose.xlu0.b32.cont [10/16] 0.0, 128
      %4449 = vxpose.xlu0.b32.cont [11/16] 0.0, 128
      %4450 = vxpose.xlu0.b32.cont [12/16] 0.0, 128
      %4451 = vxpose.xlu0.b32.cont [13/16] 0.0, 128
      %4452 = vxpose.xlu0.b32.cont [14/16] 0.0, 128
      %4453 = vxpose.xlu0.b32.cont [15/16] 0.0, 128
      %4454 = vxpose.xlu0.b32.end [16/16] 0.0, 128
      %v4455 = vpop.trf.xlu0
      %v4456 = vpop.trf.xlu0
      %v4457 = vpop.trf.xlu0
      %v4458 = vpop.trf.xlu0
      %v4459 = vpop.trf.xlu0
      %v4460 = vpop.trf.xlu0
      %v4461 = vpop.trf.xlu0
      %v4462 = vpop.trf.xlu0
      %v4463 = vpop.trf.xlu0
      %v4464 = vpop.trf.xlu0
      %v4465 = vpop.trf.xlu0
      %v4466 = vpop.trf.xlu0
      %v4467 = vpop.trf.xlu0
      %v4468 = vpop.trf.xlu0
      %v4469 = vpop.trf.xlu0
      %v4470 = vpop.trf.xlu0
      %v4472 = vsel %vm3015, %v4455, 0
      %v4475 = vsel %vm3015, %v4456, 0
      %v4478 = vsel %vm3015, %v4457, 0
      %v4481 = vsel %vm3015, %v4458, 0
      %v4484 = vsel %vm3015, %v4459, 0
      %v4487 = vsel %vm3015, %v4460, 0
      %v4490 = vsel %vm3015, %v4461, 0
      %v4493 = vsel %vm3015, %v4462, 0
      %4495 = vmatpush.msra.mxu0 0.0
      %4496 = vmatpush.msra.mxu0 0.0
      %4497 = vmatpush.msra.mxu0 0.0
      %4498 = vmatpush.msra.mxu0 0.0
      %4499 = vmatpush.msra.mxu0 0.0
      %4500 = vmatpush.msra.mxu0 0.0
      %4501 = vmatpush.msra.mxu0 0.0
      %4502 = vmatpush.msra.mxu0 0.0
      %4503 = vmatpush.msra.mxu0 0.0
      %4504 = vmatpush.msra.mxu0 0.0
      %4505 = vmatpush.msra.mxu0 0.0
      %4506 = vmatpush.msra.mxu0 0.0
      %4507 = vmatpush.msra.mxu0 0.0
      %4508 = vmatpush.msra.mxu0 %v888
      %4509 = vmatpush.msra.mxu0 %v887
      %4510 = vmatpush.msra.mxu0 %v886
      %4511 = vmatmul.f32.gmra.mxu0 %v4472
      %v4512 = vpop.f32.mrf.mxu0
      %v4513 = vadd.f32 0.0, %v4512
      %4514 = vmatmul.f32.gmra.mxu0 %v4475
      %v4515 = vpop.f32.mrf.mxu0
      %v4516 = vadd.f32 0.0, %v4515
      %4517 = vmatmul.f32.gmra.mxu0 %v4478
      %v4518 = vpop.f32.mrf.mxu0
      %v4519 = vadd.f32 0.0, %v4518
      %4520 = vmatmul.f32.gmra.mxu0 %v4481
      %v4521 = vpop.f32.mrf.mxu0
      %v4522 = vadd.f32 0.0, %v4521
      %4523 = vmatmul.f32.gmra.mxu0 %v4484
      %v4524 = vpop.f32.mrf.mxu0
      %v4525 = vadd.f32 0.0, %v4524
      %4526 = vmatmul.f32.gmra.mxu0 %v4487
      %v4527 = vpop.f32.mrf.mxu0
      %v4528 = vadd.f32 0.0, %v4527
      %4529 = vmatmul.f32.gmra.mxu0 %v4490
      %v4530 = vpop.f32.mrf.mxu0
      %v4531 = vadd.f32 0.0, %v4530
      %4532 = vmatmul.f32.gmra.mxu0 %v4493
      %v4533 = vpop.f32.mrf.mxu0
      %v4534 = vadd.f32 0.0, %v4533
      %4535 = vdwg.mxu0
      %4536 = vxpose.xlu0.b32.start [1/16] %v2534, 128
      %4537 = vxpose.xlu0.b32.cont [2/16] %v2535, 128
      %4538 = vxpose.xlu0.b32.cont [3/16] %v2536, 128
      %4539 = vxpose.xlu0.b32.cont [4/16] 0.0, 128
      %4540 = vxpose.xlu0.b32.cont [5/16] 0.0, 128
      %4541 = vxpose.xlu0.b32.cont [6/16] 0.0, 128
      %4542 = vxpose.xlu0.b32.cont [7/16] 0.0, 128
      %4543 = vxpose.xlu0.b32.cont [8/16] 0.0, 128
      %4544 = vxpose.xlu0.b32.cont [9/16] 0.0, 128
      %4545 = vxpose.xlu0.b32.cont [10/16] 0.0, 128
      %4546 = vxpose.xlu0.b32.cont [11/16] 0.0, 128
      %4547 = vxpose.xlu0.b32.cont [12/16] 0.0, 128
      %4548 = vxpose.xlu0.b32.cont [13/16] 0.0, 128
      %4549 = vxpose.xlu0.b32.cont [14/16] 0.0, 128
      %4550 = vxpose.xlu0.b32.cont [15/16] 0.0, 128
      %4551 = vxpose.xlu0.b32.end [16/16] 0.0, 128
      %v4552 = vpop.trf.xlu0
      %v4553 = vpop.trf.xlu0
      %v4554 = vpop.trf.xlu0
      %v4555 = vpop.trf.xlu0
      %v4556 = vpop.trf.xlu0
      %v4557 = vpop.trf.xlu0
      %v4558 = vpop.trf.xlu0
      %v4559 = vpop.trf.xlu0
      %v4560 = vpop.trf.xlu0
      %v4561 = vpop.trf.xlu0
      %v4562 = vpop.trf.xlu0
      %v4563 = vpop.trf.xlu0
      %v4564 = vpop.trf.xlu0
      %v4565 = vpop.trf.xlu0
      %v4566 = vpop.trf.xlu0
      %v4567 = vpop.trf.xlu0
      %v4569 = vsel %vm3015, %v4552, 0
      %v4572 = vsel %vm3015, %v4553, 0
      %v4575 = vsel %vm3015, %v4554, 0
      %v4578 = vsel %vm3015, %v4555, 0
      %v4581 = vsel %vm3015, %v4556, 0
      %v4584 = vsel %vm3015, %v4557, 0
      %v4587 = vsel %vm3015, %v4558, 0
      %v4590 = vsel %vm3015, %v4559, 0
      %4592 = vmatpush.msra.mxu0 0.0
      %4593 = vmatpush.msra.mxu0 0.0
      %4594 = vmatpush.msra.mxu0 0.0
      %4595 = vmatpush.msra.mxu0 0.0
      %4596 = vmatpush.msra.mxu0 0.0
      %4597 = vmatpush.msra.mxu0 0.0
      %4598 = vmatpush.msra.mxu0 0.0
      %4599 = vmatpush.msra.mxu0 0.0
      %4600 = vmatpush.msra.mxu0 0.0
      %4601 = vmatpush.msra.mxu0 0.0
      %4602 = vmatpush.msra.mxu0 0.0
      %4603 = vmatpush.msra.mxu0 0.0
      %4604 = vmatpush.msra.mxu0 0.0
      %4605 = vmatpush.msra.mxu0 %v464
      %4606 = vmatpush.msra.mxu0 %v463
      %4607 = vmatpush.msra.mxu0 %v462
      %4608 = vmatmul.f32.gmra.mxu0 %v4569
      %v4609 = vpop.f32.mrf.mxu0
      %v4610 = vadd.f32 0.0, %v4609
      %4611 = vmatmul.f32.gmra.mxu0 %v4572
      %v4612 = vpop.f32.mrf.mxu0
      %v4613 = vadd.f32 0.0, %v4612
      %4614 = vmatmul.f32.gmra.mxu0 %v4575
      %v4615 = vpop.f32.mrf.mxu0
      %v4616 = vadd.f32 0.0, %v4615
      %4617 = vmatmul.f32.gmra.mxu0 %v4578
      %v4618 = vpop.f32.mrf.mxu0
      %v4619 = vadd.f32 0.0, %v4618
      %4620 = vmatmul.f32.gmra.mxu0 %v4581
      %v4621 = vpop.f32.mrf.mxu0
      %v4622 = vadd.f32 0.0, %v4621
      %4623 = vmatmul.f32.gmra.mxu0 %v4584
      %v4624 = vpop.f32.mrf.mxu0
      %v4625 = vadd.f32 0.0, %v4624
      %4626 = vmatmul.f32.gmra.mxu0 %v4587
      %v4627 = vpop.f32.mrf.mxu0
      %v4628 = vadd.f32 0.0, %v4627
      %4629 = vmatmul.f32.gmra.mxu0 %v4590
      %v4630 = vpop.f32.mrf.mxu0
      %v4631 = vadd.f32 0.0, %v4630
      %4632 = vdwg.mxu0
      %4633 = vxpose.xlu0.b32.start [1/16] %v2537, 128
      %4634 = vxpose.xlu0.b32.cont [2/16] %v2538, 128
      %4635 = vxpose.xlu0.b32.cont [3/16] %v2539, 128
      %4636 = vxpose.xlu0.b32.cont [4/16] 0.0, 128
      %4637 = vxpose.xlu0.b32.cont [5/16] 0.0, 128
      %4638 = vxpose.xlu0.b32.cont [6/16] 0.0, 128
      %4639 = vxpose.xlu0.b32.cont [7/16] 0.0, 128
      %4640 = vxpose.xlu0.b32.cont [8/16] 0.0, 128
      %4641 = vxpose.xlu0.b32.cont [9/16] 0.0, 128
      %4642 = vxpose.xlu0.b32.cont [10/16] 0.0, 128
      %4643 = vxpose.xlu0.b32.cont [11/16] 0.0, 128
      %4644 = vxpose.xlu0.b32.cont [12/16] 0.0, 128
      %4645 = vxpose.xlu0.b32.cont [13/16] 0.0, 128
      %4646 = vxpose.xlu0.b32.cont [14/16] 0.0, 128
      %4647 = vxpose.xlu0.b32.cont [15/16] 0.0, 128
      %4648 = vxpose.xlu0.b32.end [16/16] 0.0, 128
      %v4649 = vpop.trf.xlu0
      %v4650 = vpop.trf.xlu0
      %v4651 = vpop.trf.xlu0
      %v4652 = vpop.trf.xlu0
      %v4653 = vpop.trf.xlu0
      %v4654 = vpop.trf.xlu0
      %v4655 = vpop.trf.xlu0
      %v4656 = vpop.trf.xlu0
      %v4657 = vpop.trf.xlu0
      %v4658 = vpop.trf.xlu0
      %v4659 = vpop.trf.xlu0
      %v4660 = vpop.trf.xlu0
      %v4661 = vpop.trf.xlu0
      %v4662 = vpop.trf.xlu0
      %v4663 = vpop.trf.xlu0
      %v4664 = vpop.trf.xlu0
      %v4666 = vsel %vm3015, %v4649, 0
      %v4669 = vsel %vm3015, %v4650, 0
      %v4672 = vsel %vm3015, %v4651, 0
      %v4675 = vsel %vm3015, %v4652, 0
      %v4678 = vsel %vm3015, %v4653, 0
      %v4681 = vsel %vm3015, %v4654, 0
      %v4684 = vsel %vm3015, %v4655, 0
      %v4687 = vsel %vm3015, %v4656, 0
      %4689 = vmatpush.msra.mxu0 0.0
      %4690 = vmatpush.msra.mxu0 0.0
      %4691 = vmatpush.msra.mxu0 0.0
      %4692 = vmatpush.msra.mxu0 0.0
      %4693 = vmatpush.msra.mxu0 0.0
      %4694 = vmatpush.msra.mxu0 0.0
      %4695 = vmatpush.msra.mxu0 0.0
      %4696 = vmatpush.msra.mxu0 0.0
      %4697 = vmatpush.msra.mxu0 0.0
      %4698 = vmatpush.msra.mxu0 0.0
      %4699 = vmatpush.msra.mxu0 0.0
      %4700 = vmatpush.msra.mxu0 0.0
      %4701 = vmatpush.msra.mxu0 0.0
      %4702 = vmatpush.msra.mxu0 %v467
      %4703 = vmatpush.msra.mxu0 %v466
      %4704 = vmatpush.msra.mxu0 %v465
      %4705 = vmatmul.f32.gmra.mxu0 %v4666
      %v4706 = vpop.f32.mrf.mxu0
      %v4707 = vadd.f32 0.0, %v4706
      %4708 = vmatmul.f32.gmra.mxu0 %v4669
      %v4709 = vpop.f32.mrf.mxu0
      %v4710 = vadd.f32 0.0, %v4709
      %4711 = vmatmul.f32.gmra.mxu0 %v4672
      %v4712 = vpop.f32.mrf.mxu0
      %v4713 = vadd.f32 0.0, %v4712
      %4714 = vmatmul.f32.gmra.mxu0 %v4675
      %v4715 = vpop.f32.mrf.mxu0
      %v4716 = vadd.f32 0.0, %v4715
      %4717 = vmatmul.f32.gmra.mxu0 %v4678
      %v4718 = vpop.f32.mrf.mxu0
      %v4719 = vadd.f32 0.0, %v4718
      %4720 = vmatmul.f32.gmra.mxu0 %v4681
      %v4721 = vpop.f32.mrf.mxu0
      %v4722 = vadd.f32 0.0, %v4721
      %4723 = vmatmul.f32.gmra.mxu0 %v4684
      %v4724 = vpop.f32.mrf.mxu0
      %v4725 = vadd.f32 0.0, %v4724
      %4726 = vmatmul.f32.gmra.mxu0 %v4687
      %v4727 = vpop.f32.mrf.mxu0
      %v4728 = vadd.f32 0.0, %v4727
      %4729 = vdwg.mxu0
      %4730 = vxpose.xlu0.b32.start [1/16] %v2540, 128
      %4731 = vxpose.xlu0.b32.cont [2/16] %v2541, 128
      %4732 = vxpose.xlu0.b32.cont [3/16] %v2542, 128
      %4733 = vxpose.xlu0.b32.cont [4/16] 0.0, 128
      %4734 = vxpose.xlu0.b32.cont [5/16] 0.0, 128
      %4735 = vxpose.xlu0.b32.cont [6/16] 0.0, 128
      %4736 = vxpose.xlu0.b32.cont [7/16] 0.0, 128
      %4737 = vxpose.xlu0.b32.cont [8/16] 0.0, 128
      %4738 = vxpose.xlu0.b32.cont [9/16] 0.0, 128
      %4739 = vxpose.xlu0.b32.cont [10/16] 0.0, 128
      %4740 = vxpose.xlu0.b32.cont [11/16] 0.0, 128
      %4741 = vxpose.xlu0.b32.cont [12/16] 0.0, 128
      %4742 = vxpose.xlu0.b32.cont [13/16] 0.0, 128
      %4743 = vxpose.xlu0.b32.cont [14/16] 0.0, 128
      %4744 = vxpose.xlu0.b32.cont [15/16] 0.0, 128
      %4745 = vxpose.xlu0.b32.end [16/16] 0.0, 128
      %v4746 = vpop.trf.xlu0
      %v4747 = vpop.trf.xlu0
      %v4748 = vpop.trf.xlu0
      %v4749 = vpop.trf.xlu0
      %v4750 = vpop.trf.xlu0
      %v4751 = vpop.trf.xlu0
      %v4752 = vpop.trf.xlu0
      %v4753 = vpop.trf.xlu0
      %v4754 = vpop.trf.xlu0
      %v4755 = vpop.trf.xlu0
      %v4756 = vpop.trf.xlu0
      %v4757 = vpop.trf.xlu0
      %v4758 = vpop.trf.xlu0
      %v4759 = vpop.trf.xlu0
      %v4760 = vpop.trf.xlu0
      %v4761 = vpop.trf.xlu0
      %v4763 = vsel %vm3015, %v4746, 0
      %v4766 = vsel %vm3015, %v4747, 0
      %v4769 = vsel %vm3015, %v4748, 0
      %v4772 = vsel %vm3015, %v4749, 0
      %v4775 = vsel %vm3015, %v4750, 0
      %v4778 = vsel %vm3015, %v4751, 0
      %v4781 = vsel %vm3015, %v4752, 0
      %v4784 = vsel %vm3015, %v4753, 0
      %4786 = vmatpush.msra.mxu0 0.0
      %4787 = vmatpush.msra.mxu0 0.0
      %4788 = vmatpush.msra.mxu0 0.0
      %4789 = vmatpush.msra.mxu0 0.0
      %4790 = vmatpush.msra.mxu0 0.0
      %4791 = vmatpush.msra.mxu0 0.0
      %4792 = vmatpush.msra.mxu0 0.0
      %4793 = vmatpush.msra.mxu0 0.0
      %4794 = vmatpush.msra.mxu0 0.0
      %4795 = vmatpush.msra.mxu0 0.0
      %4796 = vmatpush.msra.mxu0 0.0
      %4797 = vmatpush.msra.mxu0 0.0
      %4798 = vmatpush.msra.mxu0 0.0
      %4799 = vmatpush.msra.mxu0 %v470
      %4800 = vmatpush.msra.mxu0 %v469
      %4801 = vmatpush.msra.mxu0 %v468
      %4802 = vmatmul.f32.gmra.mxu0 %v4763
      %v4803 = vpop.f32.mrf.mxu0
      %v4804 = vadd.f32 0.0, %v4803
      %4805 = vmatmul.f32.gmra.mxu0 %v4766
      %v4806 = vpop.f32.mrf.mxu0
      %v4807 = vadd.f32 0.0, %v4806
      %4808 = vmatmul.f32.gmra.mxu0 %v4769
      %v4809 = vpop.f32.mrf.mxu0
      %v4810 = vadd.f32 0.0, %v4809
      %4811 = vmatmul.f32.gmra.mxu0 %v4772
      %v4812 = vpop.f32.mrf.mxu0
      %v4813 = vadd.f32 0.0, %v4812
      %4814 = vmatmul.f32.gmra.mxu0 %v4775
      %v4815 = vpop.f32.mrf.mxu0
      %v4816 = vadd.f32 0.0, %v4815
      %4817 = vmatmul.f32.gmra.mxu0 %v4778
      %v4818 = vpop.f32.mrf.mxu0
      %v4819 = vadd.f32 0.0, %v4818
      %4820 = vmatmul.f32.gmra.mxu0 %v4781
      %v4821 = vpop.f32.mrf.mxu0
      %v4822 = vadd.f32 0.0, %v4821
      %4823 = vmatmul.f32.gmra.mxu0 %v4784
      %v4824 = vpop.f32.mrf.mxu0
      %v4825 = vadd.f32 0.0, %v4824
      %4826 = vdwg.mxu0
      %4827 = vxpose.xlu0.b32.start [1/16] %v2543, 128
      %4828 = vxpose.xlu0.b32.cont [2/16] %v2544, 128
      %4829 = vxpose.xlu0.b32.cont [3/16] %v2545, 128
      %4830 = vxpose.xlu0.b32.cont [4/16] 0.0, 128
      %4831 = vxpose.xlu0.b32.cont [5/16] 0.0, 128
      %4832 = vxpose.xlu0.b32.cont [6/16] 0.0, 128
      %4833 = vxpose.xlu0.b32.cont [7/16] 0.0, 128
      %4834 = vxpose.xlu0.b32.cont [8/16] 0.0, 128
      %4835 = vxpose.xlu0.b32.cont [9/16] 0.0, 128
      %4836 = vxpose.xlu0.b32.cont [10/16] 0.0, 128
      %4837 = vxpose.xlu0.b32.cont [11/16] 0.0, 128
      %4838 = vxpose.xlu0.b32.cont [12/16] 0.0, 128
      %4839 = vxpose.xlu0.b32.cont [13/16] 0.0, 128
      %4840 = vxpose.xlu0.b32.cont [14/16] 0.0, 128
      %4841 = vxpose.xlu0.b32.cont [15/16] 0.0, 128
      %4842 = vxpose.xlu0.b32.end [16/16] 0.0, 128
      %v4843 = vpop.trf.xlu0
      %v4844 = vpop.trf.xlu0
      %v4845 = vpop.trf.xlu0
      %v4846 = vpop.trf.xlu0
      %v4847 = vpop.trf.xlu0
      %v4848 = vpop.trf.xlu0
      %v4849 = vpop.trf.xlu0
      %v4850 = vpop.trf.xlu0
      %v4851 = vpop.trf.xlu0
      %v4852 = vpop.trf.xlu0
      %v4853 = vpop.trf.xlu0
      %v4854 = vpop.trf.xlu0
      %v4855 = vpop.trf.xlu0
      %v4856 = vpop.trf.xlu0
      %v4857 = vpop.trf.xlu0
      %v4858 = vpop.trf.xlu0
      %v4860 = vsel %vm3015, %v4843, 0
      %v4863 = vsel %vm3015, %v4844, 0
      %v4866 = vsel %vm3015, %v4845, 0
      %v4869 = vsel %vm3015, %v4846, 0
      %v4872 = vsel %vm3015, %v4847, 0
      %v4875 = vsel %vm3015, %v4848, 0
      %v4878 = vsel %vm3015, %v4849, 0
      %v4881 = vsel %vm3015, %v4850, 0
      %4883 = vmatpush.msra.mxu0 0.0
      %4884 = vmatpush.msra.mxu0 0.0
      %4885 = vmatpush.msra.mxu0 0.0
      %4886 = vmatpush.msra.mxu0 0.0
      %4887 = vmatpush.msra.mxu0 0.0
      %4888 = vmatpush.msra.mxu0 0.0
      %4889 = vmatpush.msra.mxu0 0.0
      %4890 = vmatpush.msra.mxu0 0.0
      %4891 = vmatpush.msra.mxu0 0.0
      %4892 = vmatpush.msra.mxu0 0.0
      %4893 = vmatpush.msra.mxu0 0.0
      %4894 = vmatpush.msra.mxu0 0.0
      %4895 = vmatpush.msra.mxu0 0.0
      %4896 = vmatpush.msra.mxu0 %v473
      %4897 = vmatpush.msra.mxu0 %v472
      %4898 = vmatpush.msra.mxu0 %v471
      %4899 = vmatmul.f32.gmra.mxu0 %v4860
      %v4900 = vpop.f32.mrf.mxu0
      %v4901 = vadd.f32 0.0, %v4900
      %4902 = vmatmul.f32.gmra.mxu0 %v4863
      %v4903 = vpop.f32.mrf.mxu0
      %v4904 = vadd.f32 0.0, %v4903
      %4905 = vmatmul.f32.gmra.mxu0 %v4866
      %v4906 = vpop.f32.mrf.mxu0
      %v4907 = vadd.f32 0.0, %v4906
      %4908 = vmatmul.f32.gmra.mxu0 %v4869
      %v4909 = vpop.f32.mrf.mxu0
      %v4910 = vadd.f32 0.0, %v4909
      %4911 = vmatmul.f32.gmra.mxu0 %v4872
      %v4912 = vpop.f32.mrf.mxu0
      %v4913 = vadd.f32 0.0, %v4912
      %4914 = vmatmul.f32.gmra.mxu0 %v4875
      %v4915 = vpop.f32.mrf.mxu0
      %v4916 = vadd.f32 0.0, %v4915
      %4917 = vmatmul.f32.gmra.mxu0 %v4878
      %v4918 = vpop.f32.mrf.mxu0
      %v4919 = vadd.f32 0.0, %v4918
      %4920 = vmatmul.f32.gmra.mxu0 %v4881
      %v4921 = vpop.f32.mrf.mxu0
      %v4922 = vadd.f32 0.0, %v4921
      %4923 = vdwg.mxu0
      %4924 = vxpose.xlu0.b32.start [1/16] %v2546, 128
      %4925 = vxpose.xlu0.b32.cont [2/16] %v2547, 128
      %4926 = vxpose.xlu0.b32.cont [3/16] %v2548, 128
      %4927 = vxpose.xlu0.b32.cont [4/16] 0.0, 128
      %4928 = vxpose.xlu0.b32.cont [5/16] 0.0, 128
      %4929 = vxpose.xlu0.b32.cont [6/16] 0.0, 128
      %4930 = vxpose.xlu0.b32.cont [7/16] 0.0, 128
      %4931 = vxpose.xlu0.b32.cont [8/16] 0.0, 128
      %4932 = vxpose.xlu0.b32.cont [9/16] 0.0, 128
      %4933 = vxpose.xlu0.b32.cont [10/16] 0.0, 128
      %4934 = vxpose.xlu0.b32.cont [11/16] 0.0, 128
      %4935 = vxpose.xlu0.b32.cont [12/16] 0.0, 128
      %4936 = vxpose.xlu0.b32.cont [13/16] 0.0, 128
      %4937 = vxpose.xlu0.b32.cont [14/16] 0.0, 128
      %4938 = vxpose.xlu0.b32.cont [15/16] 0.0, 128
      %4939 = vxpose.xlu0.b32.end [16/16] 0.0, 128
      %v4940 = vpop.trf.xlu0
      %v4941 = vpop.trf.xlu0
      %v4942 = vpop.trf.xlu0
      %v4943 = vpop.trf.xlu0
      %v4944 = vpop.trf.xlu0
      %v4945 = vpop.trf.xlu0
      %v4946 = vpop.trf.xlu0
      %v4947 = vpop.trf.xlu0
      %v4948 = vpop.trf.xlu0
      %v4949 = vpop.trf.xlu0
      %v4950 = vpop.trf.xlu0
      %v4951 = vpop.trf.xlu0
      %v4952 = vpop.trf.xlu0
      %v4953 = vpop.trf.xlu0
      %v4954 = vpop.trf.xlu0
      %v4955 = vpop.trf.xlu0
      %v4957 = vsel %vm3015, %v4940, 0
      %v4960 = vsel %vm3015, %v4941, 0
      %v4963 = vsel %vm3015, %v4942, 0
      %v4966 = vsel %vm3015, %v4943, 0
      %v4969 = vsel %vm3015, %v4944, 0
      %v4972 = vsel %vm3015, %v4945, 0
      %v4975 = vsel %vm3015, %v4946, 0
      %v4978 = vsel %vm3015, %v4947, 0
      %4980 = vmatpush.msra.mxu0 0.0
      %4981 = vmatpush.msra.mxu0 0.0
      %4982 = vmatpush.msra.mxu0 0.0
      %4983 = vmatpush.msra.mxu0 0.0
      %4984 = vmatpush.msra.mxu0 0.0
      %4985 = vmatpush.msra.mxu0 0.0
      %4986 = vmatpush.msra.mxu0 0.0
      %4987 = vmatpush.msra.mxu0 0.0
      %4988 = vmatpush.msra.mxu0 0.0
      %4989 = vmatpush.msra.mxu0 0.0
      %4990 = vmatpush.msra.mxu0 0.0
      %4991 = vmatpush.msra.mxu0 0.0
      %4992 = vmatpush.msra.mxu0 0.0
      %4993 = vmatpush.msra.mxu0 %v476
      %4994 = vmatpush.msra.mxu0 %v475
      %4995 = vmatpush.msra.mxu0 %v474
      %4996 = vmatmul.f32.gmra.mxu0 %v4957
      %v4997 = vpop.f32.mrf.mxu0
      %v4998 = vadd.f32 0.0, %v4997
      %4999 = vmatmul.f32.gmra.mxu0 %v4960
      %v5000 = vpop.f32.mrf.mxu0
      %v5001 = vadd.f32 0.0, %v5000
      %5002 = vmatmul.f32.gmra.mxu0 %v4963
      %v5003 = vpop.f32.mrf.mxu0
      %v5004 = vadd.f32 0.0, %v5003
      %5005 = vmatmul.f32.gmra.mxu0 %v4966
      %v5006 = vpop.f32.mrf.mxu0
      %v5007 = vadd.f32 0.0, %v5006
      %5008 = vmatmul.f32.gmra.mxu0 %v4969
      %v5009 = vpop.f32.mrf.mxu0
      %v5010 = vadd.f32 0.0, %v5009
      %5011 = vmatmul.f32.gmra.mxu0 %v4972
      %v5012 = vpop.f32.mrf.mxu0
      %v5013 = vadd.f32 0.0, %v5012
      %5014 = vmatmul.f32.gmra.mxu0 %v4975
      %v5015 = vpop.f32.mrf.mxu0
      %v5016 = vadd.f32 0.0, %v5015
      %5017 = vmatmul.f32.gmra.mxu0 %v4978
      %v5018 = vpop.f32.mrf.mxu0
      %v5019 = vadd.f32 0.0, %v5018
      %5020 = vdwg.mxu0
      %5021 = vxpose.xlu0.b32.start [1/16] %v2549, 128
      %5022 = vxpose.xlu0.b32.cont [2/16] %v2550, 128
      %5023 = vxpose.xlu0.b32.cont [3/16] %v2551, 128
      %5024 = vxpose.xlu0.b32.cont [4/16] 0.0, 128
      %5025 = vxpose.xlu0.b32.cont [5/16] 0.0, 128
      %5026 = vxpose.xlu0.b32.cont [6/16] 0.0, 128
      %5027 = vxpose.xlu0.b32.cont [7/16] 0.0, 128
      %5028 = vxpose.xlu0.b32.cont [8/16] 0.0, 128
      %5029 = vxpose.xlu0.b32.cont [9/16] 0.0, 128
      %5030 = vxpose.xlu0.b32.cont [10/16] 0.0, 128
      %5031 = vxpose.xlu0.b32.cont [11/16] 0.0, 128
      %5032 = vxpose.xlu0.b32.cont [12/16] 0.0, 128
      %5033 = vxpose.xlu0.b32.cont [13/16] 0.0, 128
      %5034 = vxpose.xlu0.b32.cont [14/16] 0.0, 128
      %5035 = vxpose.xlu0.b32.cont [15/16] 0.0, 128
      %5036 = vxpose.xlu0.b32.end [16/16] 0.0, 128
      %v5037 = vpop.trf.xlu0
      %v5038 = vpop.trf.xlu0
      %v5039 = vpop.trf.xlu0
      %v5040 = vpop.trf.xlu0
      %v5041 = vpop.trf.xlu0
      %v5042 = vpop.trf.xlu0
      %v5043 = vpop.trf.xlu0
      %v5044 = vpop.trf.xlu0
      %v5045 = vpop.trf.xlu0
      %v5046 = vpop.trf.xlu0
      %v5047 = vpop.trf.xlu0
      %v5048 = vpop.trf.xlu0
      %v5049 = vpop.trf.xlu0
      %v5050 = vpop.trf.xlu0
      %v5051 = vpop.trf.xlu0
      %v5052 = vpop.trf.xlu0
      %v5054 = vsel %vm3015, %v5037, 0
      %v5057 = vsel %vm3015, %v5038, 0
      %v5060 = vsel %vm3015, %v5039, 0
      %v5063 = vsel %vm3015, %v5040, 0
      %v5066 = vsel %vm3015, %v5041, 0
      %v5069 = vsel %vm3015, %v5042, 0
      %v5072 = vsel %vm3015, %v5043, 0
      %v5075 = vsel %vm3015, %v5044, 0
      %5077 = vmatpush.msra.mxu0 0.0
      %5078 = vmatpush.msra.mxu0 0.0
      %5079 = vmatpush.msra.mxu0 0.0
      %5080 = vmatpush.msra.mxu0 0.0
      %5081 = vmatpush.msra.mxu0 0.0
      %5082 = vmatpush.msra.mxu0 0.0
      %5083 = vmatpush.msra.mxu0 0.0
      %5084 = vmatpush.msra.mxu0 0.0
      %5085 = vmatpush.msra.mxu0 0.0
      %5086 = vmatpush.msra.mxu0 0.0
      %5087 = vmatpush.msra.mxu0 0.0
      %5088 = vmatpush.msra.mxu0 0.0
      %5089 = vmatpush.msra.mxu0 0.0
      %5090 = vmatpush.msra.mxu0 %v479
      %5091 = vmatpush.msra.mxu0 %v478
      %5092 = vmatpush.msra.mxu0 %v477
      %5093 = vmatmul.f32.gmra.mxu0 %v5054
      %v5094 = vpop.f32.mrf.mxu0
      %v5095 = vadd.f32 0.0, %v5094
      %5096 = vmatmul.f32.gmra.mxu0 %v5057
      %v5097 = vpop.f32.mrf.mxu0
      %v5098 = vadd.f32 0.0, %v5097
      %5099 = vmatmul.f32.gmra.mxu0 %v5060
      %v5100 = vpop.f32.mrf.mxu0
      %v5101 = vadd.f32 0.0, %v5100
      %5102 = vmatmul.f32.gmra.mxu0 %v5063
      %v5103 = vpop.f32.mrf.mxu0
      %v5104 = vadd.f32 0.0, %v5103
      %5105 = vmatmul.f32.gmra.mxu0 %v5066
      %v5106 = vpop.f32.mrf.mxu0
      %v5107 = vadd.f32 0.0, %v5106
      %5108 = vmatmul.f32.gmra.mxu0 %v5069
      %v5109 = vpop.f32.mrf.mxu0
      %v5110 = vadd.f32 0.0, %v5109
      %5111 = vmatmul.f32.gmra.mxu0 %v5072
      %v5112 = vpop.f32.mrf.mxu0
      %v5113 = vadd.f32 0.0, %v5112
      %5114 = vmatmul.f32.gmra.mxu0 %v5075
      %v5115 = vpop.f32.mrf.mxu0
      %v5116 = vadd.f32 0.0, %v5115
      %5117 = vdwg.mxu0
      %5118 = vxpose.xlu0.b32.start [1/16] %v2552, 128
      %5119 = vxpose.xlu0.b32.cont [2/16] %v2553, 128
      %5120 = vxpose.xlu0.b32.cont [3/16] %v2554, 128
      %5121 = vxpose.xlu0.b32.cont [4/16] 0.0, 128
      %5122 = vxpose.xlu0.b32.cont [5/16] 0.0, 128
      %5123 = vxpose.xlu0.b32.cont [6/16] 0.0, 128
      %5124 = vxpose.xlu0.b32.cont [7/16] 0.0, 128
      %5125 = vxpose.xlu0.b32.cont [8/16] 0.0, 128
      %5126 = vxpose.xlu0.b32.cont [9/16] 0.0, 128
      %5127 = vxpose.xlu0.b32.cont [10/16] 0.0, 128
      %5128 = vxpose.xlu0.b32.cont [11/16] 0.0, 128
      %5129 = vxpose.xlu0.b32.cont [12/16] 0.0, 128
      %5130 = vxpose.xlu0.b32.cont [13/16] 0.0, 128
      %5131 = vxpose.xlu0.b32.cont [14/16] 0.0, 128
      %5132 = vxpose.xlu0.b32.cont [15/16] 0.0, 128
      %5133 = vxpose.xlu0.b32.end [16/16] 0.0, 128
      %v5134 = vpop.trf.xlu0
      %v5135 = vpop.trf.xlu0
      %v5136 = vpop.trf.xlu0
      %v5137 = vpop.trf.xlu0
      %v5138 = vpop.trf.xlu0
      %v5139 = vpop.trf.xlu0
      %v5140 = vpop.trf.xlu0
      %v5141 = vpop.trf.xlu0
      %v5142 = vpop.trf.xlu0
      %v5143 = vpop.trf.xlu0
      %v5144 = vpop.trf.xlu0
      %v5145 = vpop.trf.xlu0
      %v5146 = vpop.trf.xlu0
      %v5147 = vpop.trf.xlu0
      %v5148 = vpop.trf.xlu0
      %v5149 = vpop.trf.xlu0
      %v5151 = vsel %vm3015, %v5134, 0
      %v5154 = vsel %vm3015, %v5135, 0
      %v5157 = vsel %vm3015, %v5136, 0
      %v5160 = vsel %vm3015, %v5137, 0
      %v5163 = vsel %vm3015, %v5138, 0
      %v5166 = vsel %vm3015, %v5139, 0
      %v5169 = vsel %vm3015, %v5140, 0
      %v5172 = vsel %vm3015, %v5141, 0
      %5174 = vmatpush.msra.mxu0 0.0
      %5175 = vmatpush.msra.mxu0 0.0
      %5176 = vmatpush.msra.mxu0 0.0
      %5177 = vmatpush.msra.mxu0 0.0
      %5178 = vmatpush.msra.mxu0 0.0
      %5179 = vmatpush.msra.mxu0 0.0
      %5180 = vmatpush.msra.mxu0 0.0
      %5181 = vmatpush.msra.mxu0 0.0
      %5182 = vmatpush.msra.mxu0 0.0
      %5183 = vmatpush.msra.mxu0 0.0
      %5184 = vmatpush.msra.mxu0 0.0
      %5185 = vmatpush.msra.mxu0 0.0
      %5186 = vmatpush.msra.mxu0 0.0
      %5187 = vmatpush.msra.mxu0 %v482
      %5188 = vmatpush.msra.mxu0 %v481
      %5189 = vmatpush.msra.mxu0 %v480
      %5190 = vmatmul.f32.gmra.mxu0 %v5151
      %v5191 = vpop.f32.mrf.mxu0
      %v5192 = vadd.f32 0.0, %v5191
      %5193 = vmatmul.f32.gmra.mxu0 %v5154
      %v5194 = vpop.f32.mrf.mxu0
      %v5195 = vadd.f32 0.0, %v5194
      %5196 = vmatmul.f32.gmra.mxu0 %v5157
      %v5197 = vpop.f32.mrf.mxu0
      %v5198 = vadd.f32 0.0, %v5197
      %5199 = vmatmul.f32.gmra.mxu0 %v5160
      %v5200 = vpop.f32.mrf.mxu0
      %v5201 = vadd.f32 0.0, %v5200
      %5202 = vmatmul.f32.gmra.mxu0 %v5163
      %v5203 = vpop.f32.mrf.mxu0
      %v5204 = vadd.f32 0.0, %v5203
      %5205 = vmatmul.f32.gmra.mxu0 %v5166
      %v5206 = vpop.f32.mrf.mxu0
      %v5207 = vadd.f32 0.0, %v5206
      %5208 = vmatmul.f32.gmra.mxu0 %v5169
      %v5209 = vpop.f32.mrf.mxu0
      %v5210 = vadd.f32 0.0, %v5209
      %5211 = vmatmul.f32.gmra.mxu0 %v5172
      %v5212 = vpop.f32.mrf.mxu0
      %v5213 = vadd.f32 0.0, %v5212
      %5214 = vdwg.mxu0
      %5215 = vxpose.xlu0.b32.start [1/16] %v2555, 128
      %5216 = vxpose.xlu0.b32.cont [2/16] %v2556, 128
      %5217 = vxpose.xlu0.b32.cont [3/16] %v2557, 128
      %5218 = vxpose.xlu0.b32.cont [4/16] 0.0, 128
      %5219 = vxpose.xlu0.b32.cont [5/16] 0.0, 128
      %5220 = vxpose.xlu0.b32.cont [6/16] 0.0, 128
      %5221 = vxpose.xlu0.b32.cont [7/16] 0.0, 128
      %5222 = vxpose.xlu0.b32.cont [8/16] 0.0, 128
      %5223 = vxpose.xlu0.b32.cont [9/16] 0.0, 128
      %5224 = vxpose.xlu0.b32.cont [10/16] 0.0, 128
      %5225 = vxpose.xlu0.b32.cont [11/16] 0.0, 128
      %5226 = vxpose.xlu0.b32.cont [12/16] 0.0, 128
      %5227 = vxpose.xlu0.b32.cont [13/16] 0.0, 128
      %5228 = vxpose.xlu0.b32.cont [14/16] 0.0, 128
      %5229 = vxpose.xlu0.b32.cont [15/16] 0.0, 128
      %5230 = vxpose.xlu0.b32.end [16/16] 0.0, 128
      %v5231 = vpop.trf.xlu0
      %v5232 = vpop.trf.xlu0
      %v5233 = vpop.trf.xlu0
      %v5234 = vpop.trf.xlu0
      %v5235 = vpop.trf.xlu0
      %v5236 = vpop.trf.xlu0
      %v5237 = vpop.trf.xlu0
      %v5238 = vpop.trf.xlu0
      %v5239 = vpop.trf.xlu0
      %v5240 = vpop.trf.xlu0
      %v5241 = vpop.trf.xlu0
      %v5242 = vpop.trf.xlu0
      %v5243 = vpop.trf.xlu0
      %v5244 = vpop.trf.xlu0
      %v5245 = vpop.trf.xlu0
      %v5246 = vpop.trf.xlu0
      %v5248 = vsel %vm3015, %v5231, 0
      %v5251 = vsel %vm3015, %v5232, 0
      %v5254 = vsel %vm3015, %v5233, 0
      %v5257 = vsel %vm3015, %v5234, 0
      %v5260 = vsel %vm3015, %v5235, 0
      %v5263 = vsel %vm3015, %v5236, 0
      %v5266 = vsel %vm3015, %v5237, 0
      %v5269 = vsel %vm3015, %v5238, 0
      %5271 = vmatpush.msra.mxu0 0.0
      %5272 = vmatpush.msra.mxu0 0.0
      %5273 = vmatpush.msra.mxu0 0.0
      %5274 = vmatpush.msra.mxu0 0.0
      %5275 = vmatpush.msra.mxu0 0.0
      %5276 = vmatpush.msra.mxu0 0.0
      %5277 = vmatpush.msra.mxu0 0.0
      %5278 = vmatpush.msra.mxu0 0.0
      %5279 = vmatpush.msra.mxu0 0.0
      %5280 = vmatpush.msra.mxu0 0.0
      %5281 = vmatpush.msra.mxu0 0.0
      %5282 = vmatpush.msra.mxu0 0.0
      %5283 = vmatpush.msra.mxu0 0.0
      %5284 = vmatpush.msra.mxu0 %v485
      %5285 = vmatpush.msra.mxu0 %v484
      %5286 = vmatpush.msra.mxu0 %v483
      %5287 = vmatmul.f32.gmra.mxu0 %v5248
      %v5288 = vpop.f32.mrf.mxu0
      %v5289 = vadd.f32 0.0, %v5288
      %5290 = vmatmul.f32.gmra.mxu0 %v5251
      %v5291 = vpop.f32.mrf.mxu0
      %v5292 = vadd.f32 0.0, %v5291
      %5293 = vmatmul.f32.gmra.mxu0 %v5254
      %v5294 = vpop.f32.mrf.mxu0
      %v5295 = vadd.f32 0.0, %v5294
      %5296 = vmatmul.f32.gmra.mxu0 %v5257
      %v5297 = vpop.f32.mrf.mxu0
      %v5298 = vadd.f32 0.0, %v5297
      %5299 = vmatmul.f32.gmra.mxu0 %v5260
      %v5300 = vpop.f32.mrf.mxu0
      %v5301 = vadd.f32 0.0, %v5300
      %5302 = vmatmul.f32.gmra.mxu0 %v5263
      %v5303 = vpop.f32.mrf.mxu0
      %v5304 = vadd.f32 0.0, %v5303
      %5305 = vmatmul.f32.gmra.mxu0 %v5266
      %v5306 = vpop.f32.mrf.mxu0
      %v5307 = vadd.f32 0.0, %v5306
      %5308 = vmatmul.f32.gmra.mxu0 %v5269
      %v5309 = vpop.f32.mrf.mxu0
      %v5310 = vadd.f32 0.0, %v5309
      %5311 = vdwg.mxu0
      %5312 = vxpose.xlu0.b32.start [1/16] %v2558, 128
      %5313 = vxpose.xlu0.b32.cont [2/16] %v2559, 128
      %5314 = vxpose.xlu0.b32.cont [3/16] %v2560, 128
      %5315 = vxpose.xlu0.b32.cont [4/16] 0.0, 128
      %5316 = vxpose.xlu0.b32.cont [5/16] 0.0, 128
      %5317 = vxpose.xlu0.b32.cont [6/16] 0.0, 128
      %5318 = vxpose.xlu0.b32.cont [7/16] 0.0, 128
      %5319 = vxpose.xlu0.b32.cont [8/16] 0.0, 128
      %5320 = vxpose.xlu0.b32.cont [9/16] 0.0, 128
      %5321 = vxpose.xlu0.b32.cont [10/16] 0.0, 128
      %5322 = vxpose.xlu0.b32.cont [11/16] 0.0, 128
      %5323 = vxpose.xlu0.b32.cont [12/16] 0.0, 128
      %5324 = vxpose.xlu0.b32.cont [13/16] 0.0, 128
      %5325 = vxpose.xlu0.b32.cont [14/16] 0.0, 128
      %5326 = vxpose.xlu0.b32.cont [15/16] 0.0, 128
      %5327 = vxpose.xlu0.b32.end [16/16] 0.0, 128
      %v5328 = vpop.trf.xlu0
      %v5329 = vpop.trf.xlu0
      %v5330 = vpop.trf.xlu0
      %v5331 = vpop.trf.xlu0
      %v5332 = vpop.trf.xlu0
      %v5333 = vpop.trf.xlu0
      %v5334 = vpop.trf.xlu0
      %v5335 = vpop.trf.xlu0
      %v5336 = vpop.trf.xlu0
      %v5337 = vpop.trf.xlu0
      %v5338 = vpop.trf.xlu0
      %v5339 = vpop.trf.xlu0
      %v5340 = vpop.trf.xlu0
      %v5341 = vpop.trf.xlu0
      %v5342 = vpop.trf.xlu0
      %v5343 = vpop.trf.xlu0
      %v5345 = vsel %vm3015, %v5328, 0
      %v5348 = vsel %vm3015, %v5329, 0
      %v5351 = vsel %vm3015, %v5330, 0
      %v5354 = vsel %vm3015, %v5331, 0
      %v5357 = vsel %vm3015, %v5332, 0
      %v5360 = vsel %vm3015, %v5333, 0
      %v5363 = vsel %vm3015, %v5334, 0
      %v5366 = vsel %vm3015, %v5335, 0
      %5368 = vmatpush.msra.mxu0 0.0
      %5369 = vmatpush.msra.mxu0 0.0
      %5370 = vmatpush.msra.mxu0 0.0
      %5371 = vmatpush.msra.mxu0 0.0
      %5372 = vmatpush.msra.mxu0 0.0
      %5373 = vmatpush.msra.mxu0 0.0
      %5374 = vmatpush.msra.mxu0 0.0
      %5375 = vmatpush.msra.mxu0 0.0
      %5376 = vmatpush.msra.mxu0 0.0
      %5377 = vmatpush.msra.mxu0 0.0
      %5378 = vmatpush.msra.mxu0 0.0
      %5379 = vmatpush.msra.mxu0 0.0
      %5380 = vmatpush.msra.mxu0 0.0
      %5381 = vmatpush.msra.mxu0 %v488
      %5382 = vmatpush.msra.mxu0 %v487
      %5383 = vmatpush.msra.mxu0 %v486
      %5384 = vmatmul.f32.gmra.mxu0 %v5345
      %v5385 = vpop.f32.mrf.mxu0
      %v5386 = vadd.f32 0.0, %v5385
      %5387 = vmatmul.f32.gmra.mxu0 %v5348
      %v5388 = vpop.f32.mrf.mxu0
      %v5389 = vadd.f32 0.0, %v5388
      %5390 = vmatmul.f32.gmra.mxu0 %v5351
      %v5391 = vpop.f32.mrf.mxu0
      %v5392 = vadd.f32 0.0, %v5391
      %5393 = vmatmul.f32.gmra.mxu0 %v5354
      %v5394 = vpop.f32.mrf.mxu0
      %v5395 = vadd.f32 0.0, %v5394
      %5396 = vmatmul.f32.gmra.mxu0 %v5357
      %v5397 = vpop.f32.mrf.mxu0
      %v5398 = vadd.f32 0.0, %v5397
      %5399 = vmatmul.f32.gmra.mxu0 %v5360
      %v5400 = vpop.f32.mrf.mxu0
      %v5401 = vadd.f32 0.0, %v5400
      %5402 = vmatmul.f32.gmra.mxu0 %v5363
      %v5403 = vpop.f32.mrf.mxu0
      %v5404 = vadd.f32 0.0, %v5403
      %5405 = vmatmul.f32.gmra.mxu0 %v5366
      %v5406 = vpop.f32.mrf.mxu0
      %v5407 = vadd.f32 0.0, %v5406
      %5408 = vdwg.mxu0
      %5409 = vxpose.xlu0.b32.start [1/16] %v2561, 128
      %5410 = vxpose.xlu0.b32.cont [2/16] %v2562, 128
      %5411 = vxpose.xlu0.b32.cont [3/16] %v2563, 128
      %5412 = vxpose.xlu0.b32.cont [4/16] 0.0, 128
      %5413 = vxpose.xlu0.b32.cont [5/16] 0.0, 128
      %5414 = vxpose.xlu0.b32.cont [6/16] 0.0, 128
      %5415 = vxpose.xlu0.b32.cont [7/16] 0.0, 128
      %5416 = vxpose.xlu0.b32.cont [8/16] 0.0, 128
      %5417 = vxpose.xlu0.b32.cont [9/16] 0.0, 128
      %5418 = vxpose.xlu0.b32.cont [10/16] 0.0, 128
      %5419 = vxpose.xlu0.b32.cont [11/16] 0.0, 128
      %5420 = vxpose.xlu0.b32.cont [12/16] 0.0, 128
      %5421 = vxpose.xlu0.b32.cont [13/16] 0.0, 128
      %5422 = vxpose.xlu0.b32.cont [14/16] 0.0, 128
      %5423 = vxpose.xlu0.b32.cont [15/16] 0.0, 128
      %5424 = vxpose.xlu0.b32.end [16/16] 0.0, 128
      %v5425 = vpop.trf.xlu0
      %v5426 = vpop.trf.xlu0
      %v5427 = vpop.trf.xlu0
      %v5428 = vpop.trf.xlu0
      %v5429 = vpop.trf.xlu0
      %v5430 = vpop.trf.xlu0
      %v5431 = vpop.trf.xlu0
      %v5432 = vpop.trf.xlu0
      %v5433 = vpop.trf.xlu0
      %v5434 = vpop.trf.xlu0
      %v5435 = vpop.trf.xlu0
      %v5436 = vpop.trf.xlu0
      %v5437 = vpop.trf.xlu0
      %v5438 = vpop.trf.xlu0
      %v5439 = vpop.trf.xlu0
      %v5440 = vpop.trf.xlu0
      %v5442 = vsel %vm3015, %v5425, 0
      %v5445 = vsel %vm3015, %v5426, 0
      %v5448 = vsel %vm3015, %v5427, 0
      %v5451 = vsel %vm3015, %v5428, 0
      %v5454 = vsel %vm3015, %v5429, 0
      %v5457 = vsel %vm3015, %v5430, 0
      %v5460 = vsel %vm3015, %v5431, 0
      %v5463 = vsel %vm3015, %v5432, 0
      %5465 = vmatpush.msra.mxu0 0.0
      %5466 = vmatpush.msra.mxu0 0.0
      %5467 = vmatpush.msra.mxu0 0.0
      %5468 = vmatpush.msra.mxu0 0.0
      %5469 = vmatpush.msra.mxu0 0.0
      %5470 = vmatpush.msra.mxu0 0.0
      %5471 = vmatpush.msra.mxu0 0.0
      %5472 = vmatpush.msra.mxu0 0.0
      %5473 = vmatpush.msra.mxu0 0.0
      %5474 = vmatpush.msra.mxu0 0.0
      %5475 = vmatpush.msra.mxu0 0.0
      %5476 = vmatpush.msra.mxu0 0.0
      %5477 = vmatpush.msra.mxu0 0.0
      %5478 = vmatpush.msra.mxu0 %v491
      %5479 = vmatpush.msra.mxu0 %v490
      %5480 = vmatpush.msra.mxu0 %v489
      %5481 = vmatmul.f32.gmra.mxu0 %v5442
      %v5482 = vpop.f32.mrf.mxu0
      %v5483 = vadd.f32 0.0, %v5482
      %5484 = vmatmul.f32.gmra.mxu0 %v5445
      %v5485 = vpop.f32.mrf.mxu0
      %v5486 = vadd.f32 0.0, %v5485
      %5487 = vmatmul.f32.gmra.mxu0 %v5448
      %v5488 = vpop.f32.mrf.mxu0
      %v5489 = vadd.f32 0.0, %v5488
      %5490 = vmatmul.f32.gmra.mxu0 %v5451
      %v5491 = vpop.f32.mrf.mxu0
      %v5492 = vadd.f32 0.0, %v5491
      %5493 = vmatmul.f32.gmra.mxu0 %v5454
      %v5494 = vpop.f32.mrf.mxu0
      %v5495 = vadd.f32 0.0, %v5494
      %5496 = vmatmul.f32.gmra.mxu0 %v5457
      %v5497 = vpop.f32.mrf.mxu0
      %v5498 = vadd.f32 0.0, %v5497
      %5499 = vmatmul.f32.gmra.mxu0 %v5460
      %v5500 = vpop.f32.mrf.mxu0
      %v5501 = vadd.f32 0.0, %v5500
      %5502 = vmatmul.f32.gmra.mxu0 %v5463
      %v5503 = vpop.f32.mrf.mxu0
      %v5504 = vadd.f32 0.0, %v5503
      %5505 = vdwg.mxu0
      %5506 = vxpose.xlu0.b32.start [1/16] %v2564, 128
      %5507 = vxpose.xlu0.b32.cont [2/16] %v2565, 128
      %5508 = vxpose.xlu0.b32.cont [3/16] %v2566, 128
      %5509 = vxpose.xlu0.b32.cont [4/16] 0.0, 128
      %5510 = vxpose.xlu0.b32.cont [5/16] 0.0, 128
      %5511 = vxpose.xlu0.b32.cont [6/16] 0.0, 128
      %5512 = vxpose.xlu0.b32.cont [7/16] 0.0, 128
      %5513 = vxpose.xlu0.b32.cont [8/16] 0.0, 128
      %5514 = vxpose.xlu0.b32.cont [9/16] 0.0, 128
      %5515 = vxpose.xlu0.b32.cont [10/16] 0.0, 128
      %5516 = vxpose.xlu0.b32.cont [11/16] 0.0, 128
      %5517 = vxpose.xlu0.b32.cont [12/16] 0.0, 128
      %5518 = vxpose.xlu0.b32.cont [13/16] 0.0, 128
      %5519 = vxpose.xlu0.b32.cont [14/16] 0.0, 128
      %5520 = vxpose.xlu0.b32.cont [15/16] 0.0, 128
      %5521 = vxpose.xlu0.b32.end [16/16] 0.0, 128
      %v5522 = vpop.trf.xlu0
      %v5523 = vpop.trf.xlu0
      %v5524 = vpop.trf.xlu0
      %v5525 = vpop.trf.xlu0
      %v5526 = vpop.trf.xlu0
      %v5527 = vpop.trf.xlu0
      %v5528 = vpop.trf.xlu0
      %v5529 = vpop.trf.xlu0
      %v5530 = vpop.trf.xlu0
      %v5531 = vpop.trf.xlu0
      %v5532 = vpop.trf.xlu0
      %v5533 = vpop.trf.xlu0
      %v5534 = vpop.trf.xlu0
      %v5535 = vpop.trf.xlu0
      %v5536 = vpop.trf.xlu0
      %v5537 = vpop.trf.xlu0
      %v5539 = vsel %vm3015, %v5522, 0
      %v5542 = vsel %vm3015, %v5523, 0
      %v5545 = vsel %vm3015, %v5524, 0
      %v5548 = vsel %vm3015, %v5525, 0
      %v5551 = vsel %vm3015, %v5526, 0
      %v5554 = vsel %vm3015, %v5527, 0
      %v5557 = vsel %vm3015, %v5528, 0
      %v5560 = vsel %vm3015, %v5529, 0
      %5562 = vmatpush.msra.mxu0 0.0
      %5563 = vmatpush.msra.mxu0 0.0
      %5564 = vmatpush.msra.mxu0 0.0
      %5565 = vmatpush.msra.mxu0 0.0
      %5566 = vmatpush.msra.mxu0 0.0
      %5567 = vmatpush.msra.mxu0 0.0
      %5568 = vmatpush.msra.mxu0 0.0
      %5569 = vmatpush.msra.mxu0 0.0
      %5570 = vmatpush.msra.mxu0 0.0
      %5571 = vmatpush.msra.mxu0 0.0
      %5572 = vmatpush.msra.mxu0 0.0
      %5573 = vmatpush.msra.mxu0 0.0
      %5574 = vmatpush.msra.mxu0 0.0
      %5575 = vmatpush.msra.mxu0 %v494
      %5576 = vmatpush.msra.mxu0 %v493
      %5577 = vmatpush.msra.mxu0 %v492
      %5578 = vmatmul.f32.gmra.mxu0 %v5539
      %v5579 = vpop.f32.mrf.mxu0
      %v5580 = vadd.f32 0.0, %v5579
      %5581 = vmatmul.f32.gmra.mxu0 %v5542
      %v5582 = vpop.f32.mrf.mxu0
      %v5583 = vadd.f32 0.0, %v5582
      %5584 = vmatmul.f32.gmra.mxu0 %v5545
      %v5585 = vpop.f32.mrf.mxu0
      %v5586 = vadd.f32 0.0, %v5585
      %5587 = vmatmul.f32.gmra.mxu0 %v5548
      %v5588 = vpop.f32.mrf.mxu0
      %v5589 = vadd.f32 0.0, %v5588
      %5590 = vmatmul.f32.gmra.mxu0 %v5551
      %v5591 = vpop.f32.mrf.mxu0
      %v5592 = vadd.f32 0.0, %v5591
      %5593 = vmatmul.f32.gmra.mxu0 %v5554
      %v5594 = vpop.f32.mrf.mxu0
      %v5595 = vadd.f32 0.0, %v5594
      %5596 = vmatmul.f32.gmra.mxu0 %v5557
      %v5597 = vpop.f32.mrf.mxu0
      %v5598 = vadd.f32 0.0, %v5597
      %5599 = vmatmul.f32.gmra.mxu0 %v5560
      %v5600 = vpop.f32.mrf.mxu0
      %v5601 = vadd.f32 0.0, %v5600
      %5602 = vdwg.mxu0
      %5603 = vxpose.xlu0.b32.start [1/16] %v2567, 128
      %5604 = vxpose.xlu0.b32.cont [2/16] %v2568, 128
      %5605 = vxpose.xlu0.b32.cont [3/16] %v2569, 128
      %5606 = vxpose.xlu0.b32.cont [4/16] 0.0, 128
      %5607 = vxpose.xlu0.b32.cont [5/16] 0.0, 128
      %5608 = vxpose.xlu0.b32.cont [6/16] 0.0, 128
      %5609 = vxpose.xlu0.b32.cont [7/16] 0.0, 128
      %5610 = vxpose.xlu0.b32.cont [8/16] 0.0, 128
      %5611 = vxpose.xlu0.b32.cont [9/16] 0.0, 128
      %5612 = vxpose.xlu0.b32.cont [10/16] 0.0, 128
      %5613 = vxpose.xlu0.b32.cont [11/16] 0.0, 128
      %5614 = vxpose.xlu0.b32.cont [12/16] 0.0, 128
      %5615 = vxpose.xlu0.b32.cont [13/16] 0.0, 128
      %5616 = vxpose.xlu0.b32.cont [14/16] 0.0, 128
      %5617 = vxpose.xlu0.b32.cont [15/16] 0.0, 128
      %5618 = vxpose.xlu0.b32.end [16/16] 0.0, 128
      %v5619 = vpop.trf.xlu0
      %v5620 = vpop.trf.xlu0
      %v5621 = vpop.trf.xlu0
      %v5622 = vpop.trf.xlu0
      %v5623 = vpop.trf.xlu0
      %v5624 = vpop.trf.xlu0
      %v5625 = vpop.trf.xlu0
      %v5626 = vpop.trf.xlu0
      %v5627 = vpop.trf.xlu0
      %v5628 = vpop.trf.xlu0
      %v5629 = vpop.trf.xlu0
      %v5630 = vpop.trf.xlu0
      %v5631 = vpop.trf.xlu0
      %v5632 = vpop.trf.xlu0
      %v5633 = vpop.trf.xlu0
      %v5634 = vpop.trf.xlu0
      %v5636 = vsel %vm3015, %v5619, 0
      %v5639 = vsel %vm3015, %v5620, 0
      %v5642 = vsel %vm3015, %v5621, 0
      %v5645 = vsel %vm3015, %v5622, 0
      %v5648 = vsel %vm3015, %v5623, 0
      %v5651 = vsel %vm3015, %v5624, 0
      %v5654 = vsel %vm3015, %v5625, 0
      %v5657 = vsel %vm3015, %v5626, 0
      %5659 = vmatpush.msra.mxu0 0.0
      %5660 = vmatpush.msra.mxu0 0.0
      %5661 = vmatpush.msra.mxu0 0.0
      %5662 = vmatpush.msra.mxu0 0.0
      %5663 = vmatpush.msra.mxu0 0.0
      %5664 = vmatpush.msra.mxu0 0.0
      %5665 = vmatpush.msra.mxu0 0.0
      %5666 = vmatpush.msra.mxu0 0.0
      %5667 = vmatpush.msra.mxu0 0.0
      %5668 = vmatpush.msra.mxu0 0.0
      %5669 = vmatpush.msra.mxu0 0.0
      %5670 = vmatpush.msra.mxu0 0.0
      %5671 = vmatpush.msra.mxu0 0.0
      %5672 = vmatpush.msra.mxu0 %v497
      %5673 = vmatpush.msra.mxu0 %v496
      %5674 = vmatpush.msra.mxu0 %v495
      %5675 = vmatmul.f32.gmra.mxu0 %v5636
      %v5676 = vpop.f32.mrf.mxu0
      %v5677 = vadd.f32 0.0, %v5676
      %5678 = vmatmul.f32.gmra.mxu0 %v5639
      %v5679 = vpop.f32.mrf.mxu0
      %v5680 = vadd.f32 0.0, %v5679
      %5681 = vmatmul.f32.gmra.mxu0 %v5642
      %v5682 = vpop.f32.mrf.mxu0
      %v5683 = vadd.f32 0.0, %v5682
      %5684 = vmatmul.f32.gmra.mxu0 %v5645
      %v5685 = vpop.f32.mrf.mxu0
      %v5686 = vadd.f32 0.0, %v5685
      %5687 = vmatmul.f32.gmra.mxu0 %v5648
      %v5688 = vpop.f32.mrf.mxu0
      %v5689 = vadd.f32 0.0, %v5688
      %5690 = vmatmul.f32.gmra.mxu0 %v5651
      %v5691 = vpop.f32.mrf.mxu0
      %v5692 = vadd.f32 0.0, %v5691
      %5693 = vmatmul.f32.gmra.mxu0 %v5654
      %v5694 = vpop.f32.mrf.mxu0
      %v5695 = vadd.f32 0.0, %v5694
      %5696 = vmatmul.f32.gmra.mxu0 %v5657
      %v5697 = vpop.f32.mrf.mxu0
      %v5698 = vadd.f32 0.0, %v5697
      %5699 = vdwg.mxu0
      %5700 = vxpose.xlu0.b32.start [1/16] %v2570, 128
      %5701 = vxpose.xlu0.b32.cont [2/16] %v2571, 128
      %5702 = vxpose.xlu0.b32.cont [3/16] %v2572, 128
      %5703 = vxpose.xlu0.b32.cont [4/16] 0.0, 128
      %5704 = vxpose.xlu0.b32.cont [5/16] 0.0, 128
      %5705 = vxpose.xlu0.b32.cont [6/16] 0.0, 128
      %5706 = vxpose.xlu0.b32.cont [7/16] 0.0, 128
      %5707 = vxpose.xlu0.b32.cont [8/16] 0.0, 128
      %5708 = vxpose.xlu0.b32.cont [9/16] 0.0, 128
      %5709 = vxpose.xlu0.b32.cont [10/16] 0.0, 128
      %5710 = vxpose.xlu0.b32.cont [11/16] 0.0, 128
      %5711 = vxpose.xlu0.b32.cont [12/16] 0.0, 128
      %5712 = vxpose.xlu0.b32.cont [13/16] 0.0, 128
      %5713 = vxpose.xlu0.b32.cont [14/16] 0.0, 128
      %5714 = vxpose.xlu0.b32.cont [15/16] 0.0, 128
      %5715 = vxpose.xlu0.b32.end [16/16] 0.0, 128
      %v5716 = vpop.trf.xlu0
      %v5717 = vpop.trf.xlu0
      %v5718 = vpop.trf.xlu0
      %v5719 = vpop.trf.xlu0
      %v5720 = vpop.trf.xlu0
      %v5721 = vpop.trf.xlu0
      %v5722 = vpop.trf.xlu0
      %v5723 = vpop.trf.xlu0
      %v5724 = vpop.trf.xlu0
      %v5725 = vpop.trf.xlu0
      %v5726 = vpop.trf.xlu0
      %v5727 = vpop.trf.xlu0
      %v5728 = vpop.trf.xlu0
      %v5729 = vpop.trf.xlu0
      %v5730 = vpop.trf.xlu0
      %v5731 = vpop.trf.xlu0
      %v5733 = vsel %vm3015, %v5716, 0
      %v5736 = vsel %vm3015, %v5717, 0
      %v5739 = vsel %vm3015, %v5718, 0
      %v5742 = vsel %vm3015, %v5719, 0
      %v5745 = vsel %vm3015, %v5720, 0
      %v5748 = vsel %vm3015, %v5721, 0
      %v5751 = vsel %vm3015, %v5722, 0
      %v5754 = vsel %vm3015, %v5723, 0
      %5756 = vmatpush.msra.mxu0 0.0
      %5757 = vmatpush.msra.mxu0 0.0
      %5758 = vmatpush.msra.mxu0 0.0
      %5759 = vmatpush.msra.mxu0 0.0
      %5760 = vmatpush.msra.mxu0 0.0
      %5761 = vmatpush.msra.mxu0 0.0
      %5762 = vmatpush.msra.mxu0 0.0
      %5763 = vmatpush.msra.mxu0 0.0
      %5764 = vmatpush.msra.mxu0 0.0
      %5765 = vmatpush.msra.mxu0 0.0
      %5766 = vmatpush.msra.mxu0 0.0
      %5767 = vmatpush.msra.mxu0 0.0
      %5768 = vmatpush.msra.mxu0 0.0
      %5769 = vmatpush.msra.mxu0 %v500
      %5770 = vmatpush.msra.mxu0 %v499
      %5771 = vmatpush.msra.mxu0 %v498
      %5772 = vmatmul.f32.gmra.mxu0 %v5733
      %v5773 = vpop.f32.mrf.mxu0
      %v5774 = vadd.f32 0.0, %v5773
      %5775 = vmatmul.f32.gmra.mxu0 %v5736
      %v5776 = vpop.f32.mrf.mxu0
      %v5777 = vadd.f32 0.0, %v5776
      %5778 = vmatmul.f32.gmra.mxu0 %v5739
      %v5779 = vpop.f32.mrf.mxu0
      %v5780 = vadd.f32 0.0, %v5779
      %5781 = vmatmul.f32.gmra.mxu0 %v5742
      %v5782 = vpop.f32.mrf.mxu0
      %v5783 = vadd.f32 0.0, %v5782
      %5784 = vmatmul.f32.gmra.mxu0 %v5745
      %v5785 = vpop.f32.mrf.mxu0
      %v5786 = vadd.f32 0.0, %v5785
      %5787 = vmatmul.f32.gmra.mxu0 %v5748
      %v5788 = vpop.f32.mrf.mxu0
      %v5789 = vadd.f32 0.0, %v5788
      %5790 = vmatmul.f32.gmra.mxu0 %v5751
      %v5791 = vpop.f32.mrf.mxu0
      %v5792 = vadd.f32 0.0, %v5791
      %5793 = vmatmul.f32.gmra.mxu0 %v5754
      %v5794 = vpop.f32.mrf.mxu0
      %v5795 = vadd.f32 0.0, %v5794
      %5796 = vdwg.mxu0
      %5797 = vxpose.xlu0.b32.start [1/16] %v2573, 128
      %5798 = vxpose.xlu0.b32.cont [2/16] %v2574, 128
      %5799 = vxpose.xlu0.b32.cont [3/16] %v2575, 128
      %5800 = vxpose.xlu0.b32.cont [4/16] 0.0, 128
      %5801 = vxpose.xlu0.b32.cont [5/16] 0.0, 128
      %5802 = vxpose.xlu0.b32.cont [6/16] 0.0, 128
      %5803 = vxpose.xlu0.b32.cont [7/16] 0.0, 128
      %5804 = vxpose.xlu0.b32.cont [8/16] 0.0, 128
      %5805 = vxpose.xlu0.b32.cont [9/16] 0.0, 128
      %5806 = vxpose.xlu0.b32.cont [10/16] 0.0, 128
      %5807 = vxpose.xlu0.b32.cont [11/16] 0.0, 128
      %5808 = vxpose.xlu0.b32.cont [12/16] 0.0, 128
      %5809 = vxpose.xlu0.b32.cont [13/16] 0.0, 128
      %5810 = vxpose.xlu0.b32.cont [14/16] 0.0, 128
      %5811 = vxpose.xlu0.b32.cont [15/16] 0.0, 128
      %5812 = vxpose.xlu0.b32.end [16/16] 0.0, 128
      %v5813 = vpop.trf.xlu0
      %v5814 = vpop.trf.xlu0
      %v5815 = vpop.trf.xlu0
      %v5816 = vpop.trf.xlu0
      %v5817 = vpop.trf.xlu0
      %v5818 = vpop.trf.xlu0
      %v5819 = vpop.trf.xlu0
      %v5820 = vpop.trf.xlu0
      %v5821 = vpop.trf.xlu0
      %v5822 = vpop.trf.xlu0
      %v5823 = vpop.trf.xlu0
      %v5824 = vpop.trf.xlu0
      %v5825 = vpop.trf.xlu0
      %v5826 = vpop.trf.xlu0
      %v5827 = vpop.trf.xlu0
      %v5828 = vpop.trf.xlu0
      %v5830 = vsel %vm3015, %v5813, 0
      %v5833 = vsel %vm3015, %v5814, 0
      %v5836 = vsel %vm3015, %v5815, 0
      %v5839 = vsel %vm3015, %v5816, 0
      %v5842 = vsel %vm3015, %v5817, 0
      %v5845 = vsel %vm3015, %v5818, 0
      %v5848 = vsel %vm3015, %v5819, 0
      %v5851 = vsel %vm3015, %v5820, 0
      %5853 = vmatpush.msra.mxu0 0.0
      %5854 = vmatpush.msra.mxu0 0.0
      %5855 = vmatpush.msra.mxu0 0.0
      %5856 = vmatpush.msra.mxu0 0.0
      %5857 = vmatpush.msra.mxu0 0.0
      %5858 = vmatpush.msra.mxu0 0.0
      %5859 = vmatpush.msra.mxu0 0.0
      %5860 = vmatpush.msra.mxu0 0.0
      %5861 = vmatpush.msra.mxu0 0.0
      %5862 = vmatpush.msra.mxu0 0.0
      %5863 = vmatpush.msra.mxu0 0.0
      %5864 = vmatpush.msra.mxu0 0.0
      %5865 = vmatpush.msra.mxu0 0.0
      %5866 = vmatpush.msra.mxu0 %v503
      %5867 = vmatpush.msra.mxu0 %v502
      %5868 = vmatpush.msra.mxu0 %v501
      %5869 = vmatmul.f32.gmra.mxu0 %v5830
      %v5870 = vpop.f32.mrf.mxu0
      %v5871 = vadd.f32 0.0, %v5870
      %5872 = vmatmul.f32.gmra.mxu0 %v5833
      %v5873 = vpop.f32.mrf.mxu0
      %v5874 = vadd.f32 0.0, %v5873
      %5875 = vmatmul.f32.gmra.mxu0 %v5836
      %v5876 = vpop.f32.mrf.mxu0
      %v5877 = vadd.f32 0.0, %v5876
      %5878 = vmatmul.f32.gmra.mxu0 %v5839
      %v5879 = vpop.f32.mrf.mxu0
      %v5880 = vadd.f32 0.0, %v5879
      %5881 = vmatmul.f32.gmra.mxu0 %v5842
      %v5882 = vpop.f32.mrf.mxu0
      %v5883 = vadd.f32 0.0, %v5882
      %5884 = vmatmul.f32.gmra.mxu0 %v5845
      %v5885 = vpop.f32.mrf.mxu0
      %v5886 = vadd.f32 0.0, %v5885
      %5887 = vmatmul.f32.gmra.mxu0 %v5848
      %v5888 = vpop.f32.mrf.mxu0
      %v5889 = vadd.f32 0.0, %v5888
      %5890 = vmatmul.f32.gmra.mxu0 %v5851
      %v5891 = vpop.f32.mrf.mxu0
      %v5892 = vadd.f32 0.0, %v5891
      %5893 = vdwg.mxu0
      %5894 = vxpose.xlu0.b32.start [1/16] %v2576, 128
      %5895 = vxpose.xlu0.b32.cont [2/16] %v2577, 128
      %5896 = vxpose.xlu0.b32.cont [3/16] %v2578, 128
      %5897 = vxpose.xlu0.b32.cont [4/16] 0.0, 128
      %5898 = vxpose.xlu0.b32.cont [5/16] 0.0, 128
      %5899 = vxpose.xlu0.b32.cont [6/16] 0.0, 128
      %5900 = vxpose.xlu0.b32.cont [7/16] 0.0, 128
      %5901 = vxpose.xlu0.b32.cont [8/16] 0.0, 128
      %5902 = vxpose.xlu0.b32.cont [9/16] 0.0, 128
      %5903 = vxpose.xlu0.b32.cont [10/16] 0.0, 128
      %5904 = vxpose.xlu0.b32.cont [11/16] 0.0, 128
      %5905 = vxpose.xlu0.b32.cont [12/16] 0.0, 128
      %5906 = vxpose.xlu0.b32.cont [13/16] 0.0, 128
      %5907 = vxpose.xlu0.b32.cont [14/16] 0.0, 128
      %5908 = vxpose.xlu0.b32.cont [15/16] 0.0, 128
      %5909 = vxpose.xlu0.b32.end [16/16] 0.0, 128
      %v5910 = vpop.trf.xlu0
      %v5911 = vpop.trf.xlu0
      %v5912 = vpop.trf.xlu0
      %v5913 = vpop.trf.xlu0
      %v5914 = vpop.trf.xlu0
      %v5915 = vpop.trf.xlu0
      %v5916 = vpop.trf.xlu0
      %v5917 = vpop.trf.xlu0
      %v5918 = vpop.trf.xlu0
      %v5919 = vpop.trf.xlu0
      %v5920 = vpop.trf.xlu0
      %v5921 = vpop.trf.xlu0
      %v5922 = vpop.trf.xlu0
      %v5923 = vpop.trf.xlu0
      %v5924 = vpop.trf.xlu0
      %v5925 = vpop.trf.xlu0
      %v5927 = vsel %vm3015, %v5910, 0
      %v5930 = vsel %vm3015, %v5911, 0
      %v5933 = vsel %vm3015, %v5912, 0
      %v5936 = vsel %vm3015, %v5913, 0
      %v5939 = vsel %vm3015, %v5914, 0
      %v5942 = vsel %vm3015, %v5915, 0
      %v5945 = vsel %vm3015, %v5916, 0
      %v5948 = vsel %vm3015, %v5917, 0
      %5950 = vmatpush.msra.mxu0 0.0
      %5951 = vmatpush.msra.mxu0 0.0
      %5952 = vmatpush.msra.mxu0 0.0
      %5953 = vmatpush.msra.mxu0 0.0
      %5954 = vmatpush.msra.mxu0 0.0
      %5955 = vmatpush.msra.mxu0 0.0
      %5956 = vmatpush.msra.mxu0 0.0
      %5957 = vmatpush.msra.mxu0 0.0
      %5958 = vmatpush.msra.mxu0 0.0
      %5959 = vmatpush.msra.mxu0 0.0
      %5960 = vmatpush.msra.mxu0 0.0
      %5961 = vmatpush.msra.mxu0 0.0
      %5962 = vmatpush.msra.mxu0 0.0
      %5963 = vmatpush.msra.mxu0 %v506
      %5964 = vmatpush.msra.mxu0 %v505
      %5965 = vmatpush.msra.mxu0 %v504
      %5966 = vmatmul.f32.gmra.mxu0 %v5927
      %v5967 = vpop.f32.mrf.mxu0
      %v5968 = vadd.f32 0.0, %v5967
      %5969 = vmatmul.f32.gmra.mxu0 %v5930
      %v5970 = vpop.f32.mrf.mxu0
      %v5971 = vadd.f32 0.0, %v5970
      %5972 = vmatmul.f32.gmra.mxu0 %v5933
      %v5973 = vpop.f32.mrf.mxu0
      %v5974 = vadd.f32 0.0, %v5973
      %5975 = vmatmul.f32.gmra.mxu0 %v5936
      %v5976 = vpop.f32.mrf.mxu0
      %v5977 = vadd.f32 0.0, %v5976
      %5978 = vmatmul.f32.gmra.mxu0 %v5939
      %v5979 = vpop.f32.mrf.mxu0
      %v5980 = vadd.f32 0.0, %v5979
      %5981 = vmatmul.f32.gmra.mxu0 %v5942
      %v5982 = vpop.f32.mrf.mxu0
      %v5983 = vadd.f32 0.0, %v5982
      %5984 = vmatmul.f32.gmra.mxu0 %v5945
      %v5985 = vpop.f32.mrf.mxu0
      %v5986 = vadd.f32 0.0, %v5985
      %5987 = vmatmul.f32.gmra.mxu0 %v5948
      %v5988 = vpop.f32.mrf.mxu0
      %v5989 = vadd.f32 0.0, %v5988
      %5990 = vdwg.mxu0
      %5991 = vxpose.xlu0.b32.start [1/16] %v2579, 128
      %5992 = vxpose.xlu0.b32.cont [2/16] %v2580, 128
      %5993 = vxpose.xlu0.b32.cont [3/16] %v2581, 128
      %5994 = vxpose.xlu0.b32.cont [4/16] 0.0, 128
      %5995 = vxpose.xlu0.b32.cont [5/16] 0.0, 128
      %5996 = vxpose.xlu0.b32.cont [6/16] 0.0, 128
      %5997 = vxpose.xlu0.b32.cont [7/16] 0.0, 128
      %5998 = vxpose.xlu0.b32.cont [8/16] 0.0, 128
      %5999 = vxpose.xlu0.b32.cont [9/16] 0.0, 128
      %6000 = vxpose.xlu0.b32.cont [10/16] 0.0, 128
      %6001 = vxpose.xlu0.b32.cont [11/16] 0.0, 128
      %6002 = vxpose.xlu0.b32.cont [12/16] 0.0, 128
      %6003 = vxpose.xlu0.b32.cont [13/16] 0.0, 128
      %6004 = vxpose.xlu0.b32.cont [14/16] 0.0, 128
      %6005 = vxpose.xlu0.b32.cont [15/16] 0.0, 128
      %6006 = vxpose.xlu0.b32.end [16/16] 0.0, 128
      %v6007 = vpop.trf.xlu0
      %v6008 = vpop.trf.xlu0
      %v6009 = vpop.trf.xlu0
      %v6010 = vpop.trf.xlu0
      %v6011 = vpop.trf.xlu0
      %v6012 = vpop.trf.xlu0
      %v6013 = vpop.trf.xlu0
      %v6014 = vpop.trf.xlu0
      %v6015 = vpop.trf.xlu0
      %v6016 = vpop.trf.xlu0
      %v6017 = vpop.trf.xlu0
      %v6018 = vpop.trf.xlu0
      %v6019 = vpop.trf.xlu0
      %v6020 = vpop.trf.xlu0
      %v6021 = vpop.trf.xlu0
      %v6022 = vpop.trf.xlu0
      %v6024 = vsel %vm3015, %v6007, 0
      %v6027 = vsel %vm3015, %v6008, 0
      %v6030 = vsel %vm3015, %v6009, 0
      %v6033 = vsel %vm3015, %v6010, 0
      %v6036 = vsel %vm3015, %v6011, 0
      %v6039 = vsel %vm3015, %v6012, 0
      %v6042 = vsel %vm3015, %v6013, 0
      %v6045 = vsel %vm3015, %v6014, 0
      %6047 = vmatpush.msra.mxu0 0.0
      %6048 = vmatpush.msra.mxu0 0.0
      %6049 = vmatpush.msra.mxu0 0.0
      %6050 = vmatpush.msra.mxu0 0.0
      %6051 = vmatpush.msra.mxu0 0.0
      %6052 = vmatpush.msra.mxu0 0.0
      %6053 = vmatpush.msra.mxu0 0.0
      %6054 = vmatpush.msra.mxu0 0.0
      %6055 = vmatpush.msra.mxu0 0.0
      %6056 = vmatpush.msra.mxu0 0.0
      %6057 = vmatpush.msra.mxu0 0.0
      %6058 = vmatpush.msra.mxu0 0.0
      %6059 = vmatpush.msra.mxu0 0.0
      %6060 = vmatpush.msra.mxu0 %v509
      %6061 = vmatpush.msra.mxu0 %v508
      %6062 = vmatpush.msra.mxu0 %v507
      %6063 = vmatmul.f32.gmra.mxu0 %v6024
      %v6064 = vpop.f32.mrf.mxu0
      %v6065 = vadd.f32 0.0, %v6064
      %6066 = vmatmul.f32.gmra.mxu0 %v6027
      %v6067 = vpop.f32.mrf.mxu0
      %v6068 = vadd.f32 0.0, %v6067
      %6069 = vmatmul.f32.gmra.mxu0 %v6030
      %v6070 = vpop.f32.mrf.mxu0
      %v6071 = vadd.f32 0.0, %v6070
      %6072 = vmatmul.f32.gmra.mxu0 %v6033
      %v6073 = vpop.f32.mrf.mxu0
      %v6074 = vadd.f32 0.0, %v6073
      %6075 = vmatmul.f32.gmra.mxu0 %v6036
      %v6076 = vpop.f32.mrf.mxu0
      %v6077 = vadd.f32 0.0, %v6076
      %6078 = vmatmul.f32.gmra.mxu0 %v6039
      %v6079 = vpop.f32.mrf.mxu0
      %v6080 = vadd.f32 0.0, %v6079
      %6081 = vmatmul.f32.gmra.mxu0 %v6042
      %v6082 = vpop.f32.mrf.mxu0
      %v6083 = vadd.f32 0.0, %v6082
      %6084 = vmatmul.f32.gmra.mxu0 %v6045
      %v6085 = vpop.f32.mrf.mxu0
      %v6086 = vadd.f32 0.0, %v6085
      %6087 = vdwg.mxu0
      %6088 = vxpose.xlu0.b32.start [1/16] %v2935, 128
      %6089 = vxpose.xlu0.b32.cont [2/16] %v2936, 128
      %6090 = vxpose.xlu0.b32.cont [3/16] %v2937, 128
      %6091 = vxpose.xlu0.b32.cont [4/16] 0.0, 128
      %6092 = vxpose.xlu0.b32.cont [5/16] 0.0, 128
      %6093 = vxpose.xlu0.b32.cont [6/16] 0.0, 128
      %6094 = vxpose.xlu0.b32.cont [7/16] 0.0, 128
      %6095 = vxpose.xlu0.b32.cont [8/16] 0.0, 128
      %6096 = vxpose.xlu0.b32.cont [9/16] 0.0, 128
      %6097 = vxpose.xlu0.b32.cont [10/16] 0.0, 128
      %6098 = vxpose.xlu0.b32.cont [11/16] 0.0, 128
      %6099 = vxpose.xlu0.b32.cont [12/16] 0.0, 128
      %6100 = vxpose.xlu0.b32.cont [13/16] 0.0, 128
      %6101 = vxpose.xlu0.b32.cont [14/16] 0.0, 128
      %6102 = vxpose.xlu0.b32.cont [15/16] 0.0, 128
      %6103 = vxpose.xlu0.b32.end [16/16] 0.0, 128
      %v6104 = vpop.trf.xlu0
      %v6105 = vpop.trf.xlu0
      %v6106 = vpop.trf.xlu0
      %v6107 = vpop.trf.xlu0
      %v6108 = vpop.trf.xlu0
      %v6109 = vpop.trf.xlu0
      %v6110 = vpop.trf.xlu0
      %v6111 = vpop.trf.xlu0
      %v6112 = vpop.trf.xlu0
      %v6113 = vpop.trf.xlu0
      %v6114 = vpop.trf.xlu0
      %v6115 = vpop.trf.xlu0
      %v6116 = vpop.trf.xlu0
      %v6117 = vpop.trf.xlu0
      %v6118 = vpop.trf.xlu0
      %v6119 = vpop.trf.xlu0
      %v6121 = vsel %vm3015, %v6104, 0
      %v6124 = vsel %vm3015, %v6105, 0
      %v6127 = vsel %vm3015, %v6106, 0
      %v6130 = vsel %vm3015, %v6107, 0
      %v6133 = vsel %vm3015, %v6108, 0
      %v6136 = vsel %vm3015, %v6109, 0
      %v6139 = vsel %vm3015, %v6110, 0
      %v6142 = vsel %vm3015, %v6111, 0
      %6144 = vmatpush.msra.mxu0 0.0
      %6145 = vmatpush.msra.mxu0 0.0
      %6146 = vmatpush.msra.mxu0 0.0
      %6147 = vmatpush.msra.mxu0 0.0
      %6148 = vmatpush.msra.mxu0 0.0
      %6149 = vmatpush.msra.mxu0 0.0
      %6150 = vmatpush.msra.mxu0 0.0
      %6151 = vmatpush.msra.mxu0 0.0
      %6152 = vmatpush.msra.mxu0 0.0
      %6153 = vmatpush.msra.mxu0 0.0
      %6154 = vmatpush.msra.mxu0 0.0
      %6155 = vmatpush.msra.mxu0 0.0
      %6156 = vmatpush.msra.mxu0 0.0
      %6157 = vmatpush.msra.mxu0 %v254
      %6158 = vmatpush.msra.mxu0 %v253
      %6159 = vmatpush.msra.mxu0 %v252
      %6160 = vmatmul.f32.gmra.mxu0 %v6121
      %v6161 = vpop.f32.mrf.mxu0
      %v6162 = vadd.f32 0.0, %v6161
      %6163 = vmatmul.f32.gmra.mxu0 %v6124
      %v6164 = vpop.f32.mrf.mxu0
      %v6165 = vadd.f32 0.0, %v6164
      %6166 = vmatmul.f32.gmra.mxu0 %v6127
      %v6167 = vpop.f32.mrf.mxu0
      %v6168 = vadd.f32 0.0, %v6167
      %6169 = vmatmul.f32.gmra.mxu0 %v6130
      %v6170 = vpop.f32.mrf.mxu0
      %v6171 = vadd.f32 0.0, %v6170
      %6172 = vmatmul.f32.gmra.mxu0 %v6133
      %v6173 = vpop.f32.mrf.mxu0
      %v6174 = vadd.f32 0.0, %v6173
      %6175 = vmatmul.f32.gmra.mxu0 %v6136
      %v6176 = vpop.f32.mrf.mxu0
      %v6177 = vadd.f32 0.0, %v6176
      %6178 = vmatmul.f32.gmra.mxu0 %v6139
      %v6179 = vpop.f32.mrf.mxu0
      %v6180 = vadd.f32 0.0, %v6179
      %6181 = vmatmul.f32.gmra.mxu0 %v6142
      %v6182 = vpop.f32.mrf.mxu0
      %v6183 = vadd.f32 0.0, %v6182
      %6184 = vdwg.mxu0
      %6185 = vxpose.xlu0.b32.start [1/16] %v2938, 128
      %6186 = vxpose.xlu0.b32.cont [2/16] %v2939, 128
      %6187 = vxpose.xlu0.b32.cont [3/16] %v2940, 128
      %6188 = vxpose.xlu0.b32.cont [4/16] 0.0, 128
      %6189 = vxpose.xlu0.b32.cont [5/16] 0.0, 128
      %6190 = vxpose.xlu0.b32.cont [6/16] 0.0, 128
      %6191 = vxpose.xlu0.b32.cont [7/16] 0.0, 128
      %6192 = vxpose.xlu0.b32.cont [8/16] 0.0, 128
      %6193 = vxpose.xlu0.b32.cont [9/16] 0.0, 128
      %6194 = vxpose.xlu0.b32.cont [10/16] 0.0, 128
      %6195 = vxpose.xlu0.b32.cont [11/16] 0.0, 128
      %6196 = vxpose.xlu0.b32.cont [12/16] 0.0, 128
      %6197 = vxpose.xlu0.b32.cont [13/16] 0.0, 128
      %6198 = vxpose.xlu0.b32.cont [14/16] 0.0, 128
      %6199 = vxpose.xlu0.b32.cont [15/16] 0.0, 128
      %6200 = vxpose.xlu0.b32.end [16/16] 0.0, 128
      %v6201 = vpop.trf.xlu0
      %v6202 = vpop.trf.xlu0
      %v6203 = vpop.trf.xlu0
      %v6204 = vpop.trf.xlu0
      %v6205 = vpop.trf.xlu0
      %v6206 = vpop.trf.xlu0
      %v6207 = vpop.trf.xlu0
      %v6208 = vpop.trf.xlu0
      %v6209 = vpop.trf.xlu0
      %v6210 = vpop.trf.xlu0
      %v6211 = vpop.trf.xlu0
      %v6212 = vpop.trf.xlu0
      %v6213 = vpop.trf.xlu0
      %v6214 = vpop.trf.xlu0
      %v6215 = vpop.trf.xlu0
      %v6216 = vpop.trf.xlu0
      %v6218 = vsel %vm3015, %v6201, 0
      %v6221 = vsel %vm3015, %v6202, 0
      %v6224 = vsel %vm3015, %v6203, 0
      %v6227 = vsel %vm3015, %v6204, 0
      %v6230 = vsel %vm3015, %v6205, 0
      %v6233 = vsel %vm3015, %v6206, 0
      %v6236 = vsel %vm3015, %v6207, 0
      %v6239 = vsel %vm3015, %v6208, 0
      %6241 = vmatpush.msra.mxu0 0.0
      %6242 = vmatpush.msra.mxu0 0.0
      %6243 = vmatpush.msra.mxu0 0.0
      %6244 = vmatpush.msra.mxu0 0.0
      %6245 = vmatpush.msra.mxu0 0.0
      %6246 = vmatpush.msra.mxu0 0.0
      %6247 = vmatpush.msra.mxu0 0.0
      %6248 = vmatpush.msra.mxu0 0.0
      %6249 = vmatpush.msra.mxu0 0.0
      %6250 = vmatpush.msra.mxu0 0.0
      %6251 = vmatpush.msra.mxu0 0.0
      %6252 = vmatpush.msra.mxu0 0.0
      %6253 = vmatpush.msra.mxu0 0.0
      %6254 = vmatpush.msra.mxu0 %v257
      %6255 = vmatpush.msra.mxu0 %v256
      %6256 = vmatpush.msra.mxu0 %v255
      %6257 = vmatmul.f32.gmra.mxu0 %v6218
      %v6258 = vpop.f32.mrf.mxu0
      %v6259 = vadd.f32 0.0, %v6258
      %6260 = vmatmul.f32.gmra.mxu0 %v6221
      %v6261 = vpop.f32.mrf.mxu0
      %v6262 = vadd.f32 0.0, %v6261
      %6263 = vmatmul.f32.gmra.mxu0 %v6224
      %v6264 = vpop.f32.mrf.mxu0
      %v6265 = vadd.f32 0.0, %v6264
      %6266 = vmatmul.f32.gmra.mxu0 %v6227
      %v6267 = vpop.f32.mrf.mxu0
      %v6268 = vadd.f32 0.0, %v6267
      %6269 = vmatmul.f32.gmra.mxu0 %v6230
      %v6270 = vpop.f32.mrf.mxu0
      %v6271 = vadd.f32 0.0, %v6270
      %6272 = vmatmul.f32.gmra.mxu0 %v6233
      %v6273 = vpop.f32.mrf.mxu0
      %v6274 = vadd.f32 0.0, %v6273
      %6275 = vmatmul.f32.gmra.mxu0 %v6236
      %v6276 = vpop.f32.mrf.mxu0
      %v6277 = vadd.f32 0.0, %v6276
      %6278 = vmatmul.f32.gmra.mxu0 %v6239
      %v6279 = vpop.f32.mrf.mxu0
      %v6280 = vadd.f32 0.0, %v6279
      %6281 = vdwg.mxu0
      %6282 = vxpose.xlu0.b32.start [1/16] %v2941, 128
      %6283 = vxpose.xlu0.b32.cont [2/16] %v2942, 128
      %6284 = vxpose.xlu0.b32.cont [3/16] %v2943, 128
      %6285 = vxpose.xlu0.b32.cont [4/16] 0.0, 128
      %6286 = vxpose.xlu0.b32.cont [5/16] 0.0, 128
      %6287 = vxpose.xlu0.b32.cont [6/16] 0.0, 128
      %6288 = vxpose.xlu0.b32.cont [7/16] 0.0, 128
      %6289 = vxpose.xlu0.b32.cont [8/16] 0.0, 128
      %6290 = vxpose.xlu0.b32.cont [9/16] 0.0, 128
      %6291 = vxpose.xlu0.b32.cont [10/16] 0.0, 128
      %6292 = vxpose.xlu0.b32.cont [11/16] 0.0, 128
      %6293 = vxpose.xlu0.b32.cont [12/16] 0.0, 128
      %6294 = vxpose.xlu0.b32.cont [13/16] 0.0, 128
      %6295 = vxpose.xlu0.b32.cont [14/16] 0.0, 128
      %6296 = vxpose.xlu0.b32.cont [15/16] 0.0, 128
      %6297 = vxpose.xlu0.b32.end [16/16] 0.0, 128
      %v6298 = vpop.trf.xlu0
      %v6299 = vpop.trf.xlu0
      %v6300 = vpop.trf.xlu0
      %v6301 = vpop.trf.xlu0
      %v6302 = vpop.trf.xlu0
      %v6303 = vpop.trf.xlu0
      %v6304 = vpop.trf.xlu0
      %v6305 = vpop.trf.xlu0
      %v6306 = vpop.trf.xlu0
      %v6307 = vpop.trf.xlu0
      %v6308 = vpop.trf.xlu0
      %v6309 = vpop.trf.xlu0
      %v6310 = vpop.trf.xlu0
      %v6311 = vpop.trf.xlu0
      %v6312 = vpop.trf.xlu0
      %v6313 = vpop.trf.xlu0
      %v6315 = vsel %vm3015, %v6298, 0
      %v6318 = vsel %vm3015, %v6299, 0
      %v6321 = vsel %vm3015, %v6300, 0
      %v6324 = vsel %vm3015, %v6301, 0
      %v6327 = vsel %vm3015, %v6302, 0
      %v6330 = vsel %vm3015, %v6303, 0
      %v6333 = vsel %vm3015, %v6304, 0
      %v6336 = vsel %vm3015, %v6305, 0
      %6338 = vmatpush.msra.mxu0 0.0
      %6339 = vmatpush.msra.mxu0 0.0
      %6340 = vmatpush.msra.mxu0 0.0
      %6341 = vmatpush.msra.mxu0 0.0
      %6342 = vmatpush.msra.mxu0 0.0
      %6343 = vmatpush.msra.mxu0 0.0
      %6344 = vmatpush.msra.mxu0 0.0
      %6345 = vmatpush.msra.mxu0 0.0
      %6346 = vmatpush.msra.mxu0 0.0
      %6347 = vmatpush.msra.mxu0 0.0
      %6348 = vmatpush.msra.mxu0 0.0
      %6349 = vmatpush.msra.mxu0 0.0
      %6350 = vmatpush.msra.mxu0 0.0
      %6351 = vmatpush.msra.mxu0 %v260
      %6352 = vmatpush.msra.mxu0 %v259
      %6353 = vmatpush.msra.mxu0 %v258
      %6354 = vmatmul.f32.gmra.mxu0 %v6315
      %v6355 = vpop.f32.mrf.mxu0
      %v6356 = vadd.f32 0.0, %v6355
      %6357 = vmatmul.f32.gmra.mxu0 %v6318
      %v6358 = vpop.f32.mrf.mxu0
      %v6359 = vadd.f32 0.0, %v6358
      %6360 = vmatmul.f32.gmra.mxu0 %v6321
      %v6361 = vpop.f32.mrf.mxu0
      %v6362 = vadd.f32 0.0, %v6361
      %6363 = vmatmul.f32.gmra.mxu0 %v6324
      %v6364 = vpop.f32.mrf.mxu0
      %v6365 = vadd.f32 0.0, %v6364
      %6366 = vmatmul.f32.gmra.mxu0 %v6327
      %v6367 = vpop.f32.mrf.mxu0
      %v6368 = vadd.f32 0.0, %v6367
      %6369 = vmatmul.f32.gmra.mxu0 %v6330
      %v6370 = vpop.f32.mrf.mxu0
      %v6371 = vadd.f32 0.0, %v6370
      %6372 = vmatmul.f32.gmra.mxu0 %v6333
      %v6373 = vpop.f32.mrf.mxu0
      %v6374 = vadd.f32 0.0, %v6373
      %6375 = vmatmul.f32.gmra.mxu0 %v6336
      %v6376 = vpop.f32.mrf.mxu0
      %v6377 = vadd.f32 0.0, %v6376
      %6378 = vdwg.mxu0
      %6379 = vxpose.xlu0.b32.start [1/16] %v2944, 128
      %6380 = vxpose.xlu0.b32.cont [2/16] %v2945, 128
      %6381 = vxpose.xlu0.b32.cont [3/16] %v2946, 128
      %6382 = vxpose.xlu0.b32.cont [4/16] 0.0, 128
      %6383 = vxpose.xlu0.b32.cont [5/16] 0.0, 128
      %6384 = vxpose.xlu0.b32.cont [6/16] 0.0, 128
      %6385 = vxpose.xlu0.b32.cont [7/16] 0.0, 128
      %6386 = vxpose.xlu0.b32.cont [8/16] 0.0, 128
      %6387 = vxpose.xlu0.b32.cont [9/16] 0.0, 128
      %6388 = vxpose.xlu0.b32.cont [10/16] 0.0, 128
      %6389 = vxpose.xlu0.b32.cont [11/16] 0.0, 128
      %6390 = vxpose.xlu0.b32.cont [12/16] 0.0, 128
      %6391 = vxpose.xlu0.b32.cont [13/16] 0.0, 128
      %6392 = vxpose.xlu0.b32.cont [14/16] 0.0, 128
      %6393 = vxpose.xlu0.b32.cont [15/16] 0.0, 128
      %6394 = vxpose.xlu0.b32.end [16/16] 0.0, 128
      %v6395 = vpop.trf.xlu0
      %v6396 = vpop.trf.xlu0
      %v6397 = vpop.trf.xlu0
      %v6398 = vpop.trf.xlu0
      %v6399 = vpop.trf.xlu0
      %v6400 = vpop.trf.xlu0
      %v6401 = vpop.trf.xlu0
      %v6402 = vpop.trf.xlu0
      %v6403 = vpop.trf.xlu0
      %v6404 = vpop.trf.xlu0
      %v6405 = vpop.trf.xlu0
      %v6406 = vpop.trf.xlu0
      %v6407 = vpop.trf.xlu0
      %v6408 = vpop.trf.xlu0
      %v6409 = vpop.trf.xlu0
      %v6410 = vpop.trf.xlu0
      %v6412 = vsel %vm3015, %v6395, 0
      %v6415 = vsel %vm3015, %v6396, 0
      %v6418 = vsel %vm3015, %v6397, 0
      %v6421 = vsel %vm3015, %v6398, 0
      %v6424 = vsel %vm3015, %v6399, 0
      %v6427 = vsel %vm3015, %v6400, 0
      %v6430 = vsel %vm3015, %v6401, 0
      %v6433 = vsel %vm3015, %v6402, 0
      %6435 = vmatpush.msra.mxu0 0.0
      %6436 = vmatpush.msra.mxu0 0.0
      %6437 = vmatpush.msra.mxu0 0.0
      %6438 = vmatpush.msra.mxu0 0.0
      %6439 = vmatpush.msra.mxu0 0.0
      %6440 = vmatpush.msra.mxu0 0.0
      %6441 = vmatpush.msra.mxu0 0.0
      %6442 = vmatpush.msra.mxu0 0.0
      %6443 = vmatpush.msra.mxu0 0.0
      %6444 = vmatpush.msra.mxu0 0.0
      %6445 = vmatpush.msra.mxu0 0.0
      %6446 = vmatpush.msra.mxu0 0.0
      %6447 = vmatpush.msra.mxu0 0.0
      %6448 = vmatpush.msra.mxu0 %v263
      %6449 = vmatpush.msra.mxu0 %v262
      %6450 = vmatpush.msra.mxu0 %v261
      %6451 = vmatmul.f32.gmra.mxu0 %v6412
      %v6452 = vpop.f32.mrf.mxu0
      %v6453 = vadd.f32 0.0, %v6452
      %6454 = vmatmul.f32.gmra.mxu0 %v6415
      %v6455 = vpop.f32.mrf.mxu0
      %v6456 = vadd.f32 0.0, %v6455
      %6457 = vmatmul.f32.gmra.mxu0 %v6418
      %v6458 = vpop.f32.mrf.mxu0
      %v6459 = vadd.f32 0.0, %v6458
      %6460 = vmatmul.f32.gmra.mxu0 %v6421
      %v6461 = vpop.f32.mrf.mxu0
      %v6462 = vadd.f32 0.0, %v6461
      %6463 = vmatmul.f32.gmra.mxu0 %v6424
      %v6464 = vpop.f32.mrf.mxu0
      %v6465 = vadd.f32 0.0, %v6464
      %6466 = vmatmul.f32.gmra.mxu0 %v6427
      %v6467 = vpop.f32.mrf.mxu0
      %v6468 = vadd.f32 0.0, %v6467
      %6469 = vmatmul.f32.gmra.mxu0 %v6430
      %v6470 = vpop.f32.mrf.mxu0
      %v6471 = vadd.f32 0.0, %v6470
      %6472 = vmatmul.f32.gmra.mxu0 %v6433
      %v6473 = vpop.f32.mrf.mxu0
      %v6474 = vadd.f32 0.0, %v6473
      %6475 = vdwg.mxu0
      %6476 = vxpose.xlu0.b32.start [1/16] %v2947, 128
      %6477 = vxpose.xlu0.b32.cont [2/16] %v2948, 128
      %6478 = vxpose.xlu0.b32.cont [3/16] %v2949, 128
      %6479 = vxpose.xlu0.b32.cont [4/16] 0.0, 128
      %6480 = vxpose.xlu0.b32.cont [5/16] 0.0, 128
      %6481 = vxpose.xlu0.b32.cont [6/16] 0.0, 128
      %6482 = vxpose.xlu0.b32.cont [7/16] 0.0, 128
      %6483 = vxpose.xlu0.b32.cont [8/16] 0.0, 128
      %6484 = vxpose.xlu0.b32.cont [9/16] 0.0, 128
      %6485 = vxpose.xlu0.b32.cont [10/16] 0.0, 128
      %6486 = vxpose.xlu0.b32.cont [11/16] 0.0, 128
      %6487 = vxpose.xlu0.b32.cont [12/16] 0.0, 128
      %6488 = vxpose.xlu0.b32.cont [13/16] 0.0, 128
      %6489 = vxpose.xlu0.b32.cont [14/16] 0.0, 128
      %6490 = vxpose.xlu0.b32.cont [15/16] 0.0, 128
      %6491 = vxpose.xlu0.b32.end [16/16] 0.0, 128
      %v6492 = vpop.trf.xlu0
      %v6493 = vpop.trf.xlu0
      %v6494 = vpop.trf.xlu0
      %v6495 = vpop.trf.xlu0
      %v6496 = vpop.trf.xlu0
      %v6497 = vpop.trf.xlu0
      %v6498 = vpop.trf.xlu0
      %v6499 = vpop.trf.xlu0
      %v6500 = vpop.trf.xlu0
      %v6501 = vpop.trf.xlu0
      %v6502 = vpop.trf.xlu0
      %v6503 = vpop.trf.xlu0
      %v6504 = vpop.trf.xlu0
      %v6505 = vpop.trf.xlu0
      %v6506 = vpop.trf.xlu0
      %v6507 = vpop.trf.xlu0
      %v6509 = vsel %vm3015, %v6492, 0
      %v6512 = vsel %vm3015, %v6493, 0
      %v6515 = vsel %vm3015, %v6494, 0
      %v6518 = vsel %vm3015, %v6495, 0
      %v6521 = vsel %vm3015, %v6496, 0
      %v6524 = vsel %vm3015, %v6497, 0
      %v6527 = vsel %vm3015, %v6498, 0
      %v6530 = vsel %vm3015, %v6499, 0
      %6532 = vmatpush.msra.mxu0 0.0
      %6533 = vmatpush.msra.mxu0 0.0
      %6534 = vmatpush.msra.mxu0 0.0
      %6535 = vmatpush.msra.mxu0 0.0
      %6536 = vmatpush.msra.mxu0 0.0
      %6537 = vmatpush.msra.mxu0 0.0
      %6538 = vmatpush.msra.mxu0 0.0
      %6539 = vmatpush.msra.mxu0 0.0
      %6540 = vmatpush.msra.mxu0 0.0
      %6541 = vmatpush.msra.mxu0 0.0
      %6542 = vmatpush.msra.mxu0 0.0
      %6543 = vmatpush.msra.mxu0 0.0
      %6544 = vmatpush.msra.mxu0 0.0
      %6545 = vmatpush.msra.mxu0 %v266
      %6546 = vmatpush.msra.mxu0 %v265
      %6547 = vmatpush.msra.mxu0 %v264
      %6548 = vmatmul.f32.gmra.mxu0 %v6509
      %v6549 = vpop.f32.mrf.mxu0
      %v6550 = vadd.f32 0.0, %v6549
      %6551 = vmatmul.f32.gmra.mxu0 %v6512
      %v6552 = vpop.f32.mrf.mxu0
      %v6553 = vadd.f32 0.0, %v6552
      %6554 = vmatmul.f32.gmra.mxu0 %v6515
      %v6555 = vpop.f32.mrf.mxu0
      %v6556 = vadd.f32 0.0, %v6555
      %6557 = vmatmul.f32.gmra.mxu0 %v6518
      %v6558 = vpop.f32.mrf.mxu0
      %v6559 = vadd.f32 0.0, %v6558
      %6560 = vmatmul.f32.gmra.mxu0 %v6521
      %v6561 = vpop.f32.mrf.mxu0
      %v6562 = vadd.f32 0.0, %v6561
      %6563 = vmatmul.f32.gmra.mxu0 %v6524
      %v6564 = vpop.f32.mrf.mxu0
      %v6565 = vadd.f32 0.0, %v6564
      %6566 = vmatmul.f32.gmra.mxu0 %v6527
      %v6567 = vpop.f32.mrf.mxu0
      %v6568 = vadd.f32 0.0, %v6567
      %6569 = vmatmul.f32.gmra.mxu0 %v6530
      %v6570 = vpop.f32.mrf.mxu0
      %v6571 = vadd.f32 0.0, %v6570
      %6572 = vdwg.mxu0
      %6573 = vxpose.xlu0.b32.start [1/16] %v2950, 128
      %6574 = vxpose.xlu0.b32.cont [2/16] %v2951, 128
      %6575 = vxpose.xlu0.b32.cont [3/16] %v2952, 128
      %6576 = vxpose.xlu0.b32.cont [4/16] 0.0, 128
      %6577 = vxpose.xlu0.b32.cont [5/16] 0.0, 128
      %6578 = vxpose.xlu0.b32.cont [6/16] 0.0, 128
      %6579 = vxpose.xlu0.b32.cont [7/16] 0.0, 128
      %6580 = vxpose.xlu0.b32.cont [8/16] 0.0, 128
      %6581 = vxpose.xlu0.b32.cont [9/16] 0.0, 128
      %6582 = vxpose.xlu0.b32.cont [10/16] 0.0, 128
      %6583 = vxpose.xlu0.b32.cont [11/16] 0.0, 128
      %6584 = vxpose.xlu0.b32.cont [12/16] 0.0, 128
      %6585 = vxpose.xlu0.b32.cont [13/16] 0.0, 128
      %6586 = vxpose.xlu0.b32.cont [14/16] 0.0, 128
      %6587 = vxpose.xlu0.b32.cont [15/16] 0.0, 128
      %6588 = vxpose.xlu0.b32.end [16/16] 0.0, 128
      %v6589 = vpop.trf.xlu0
      %v6590 = vpop.trf.xlu0
      %v6591 = vpop.trf.xlu0
      %v6592 = vpop.trf.xlu0
      %v6593 = vpop.trf.xlu0
      %v6594 = vpop.trf.xlu0
      %v6595 = vpop.trf.xlu0
      %v6596 = vpop.trf.xlu0
      %v6597 = vpop.trf.xlu0
      %v6598 = vpop.trf.xlu0
      %v6599 = vpop.trf.xlu0
      %v6600 = vpop.trf.xlu0
      %v6601 = vpop.trf.xlu0
      %v6602 = vpop.trf.xlu0
      %v6603 = vpop.trf.xlu0
      %v6604 = vpop.trf.xlu0
      %v6606 = vsel %vm3015, %v6589, 0
      %v6609 = vsel %vm3015, %v6590, 0
      %v6612 = vsel %vm3015, %v6591, 0
      %v6615 = vsel %vm3015, %v6592, 0
      %v6618 = vsel %vm3015, %v6593, 0
      %v6621 = vsel %vm3015, %v6594, 0
      %v6624 = vsel %vm3015, %v6595, 0
      %v6627 = vsel %vm3015, %v6596, 0
      %6629 = vmatpush.msra.mxu0 0.0
      %6630 = vmatpush.msra.mxu0 0.0
      %6631 = vmatpush.msra.mxu0 0.0
      %6632 = vmatpush.msra.mxu0 0.0
      %6633 = vmatpush.msra.mxu0 0.0
      %6634 = vmatpush.msra.mxu0 0.0
      %6635 = vmatpush.msra.mxu0 0.0
      %6636 = vmatpush.msra.mxu0 0.0
      %6637 = vmatpush.msra.mxu0 0.0
      %6638 = vmatpush.msra.mxu0 0.0
      %6639 = vmatpush.msra.mxu0 0.0
      %6640 = vmatpush.msra.mxu0 0.0
      %6641 = vmatpush.msra.mxu0 0.0
      %6642 = vmatpush.msra.mxu0 %v269
      %6643 = vmatpush.msra.mxu0 %v268
      %6644 = vmatpush.msra.mxu0 %v267
      %6645 = vmatmul.f32.gmra.mxu0 %v6606
      %v6646 = vpop.f32.mrf.mxu0
      %v6647 = vadd.f32 0.0, %v6646
      %6648 = vmatmul.f32.gmra.mxu0 %v6609
      %v6649 = vpop.f32.mrf.mxu0
      %v6650 = vadd.f32 0.0, %v6649
      %6651 = vmatmul.f32.gmra.mxu0 %v6612
      %v6652 = vpop.f32.mrf.mxu0
      %v6653 = vadd.f32 0.0, %v6652
      %6654 = vmatmul.f32.gmra.mxu0 %v6615
      %v6655 = vpop.f32.mrf.mxu0
      %v6656 = vadd.f32 0.0, %v6655
      %6657 = vmatmul.f32.gmra.mxu0 %v6618
      %v6658 = vpop.f32.mrf.mxu0
      %v6659 = vadd.f32 0.0, %v6658
      %6660 = vmatmul.f32.gmra.mxu0 %v6621
      %v6661 = vpop.f32.mrf.mxu0
      %v6662 = vadd.f32 0.0, %v6661
      %6663 = vmatmul.f32.gmra.mxu0 %v6624
      %v6664 = vpop.f32.mrf.mxu0
      %v6665 = vadd.f32 0.0, %v6664
      %6666 = vmatmul.f32.gmra.mxu0 %v6627
      %v6667 = vpop.f32.mrf.mxu0
      %v6668 = vadd.f32 0.0, %v6667
      %6669 = vdwg.mxu0
      %6670 = vxpose.xlu0.b32.start [1/16] %v2953, 128
      %6671 = vxpose.xlu0.b32.cont [2/16] %v2954, 128
      %6672 = vxpose.xlu0.b32.cont [3/16] %v2955, 128
      %6673 = vxpose.xlu0.b32.cont [4/16] 0.0, 128
      %6674 = vxpose.xlu0.b32.cont [5/16] 0.0, 128
      %6675 = vxpose.xlu0.b32.cont [6/16] 0.0, 128
      %6676 = vxpose.xlu0.b32.cont [7/16] 0.0, 128
      %6677 = vxpose.xlu0.b32.cont [8/16] 0.0, 128
      %6678 = vxpose.xlu0.b32.cont [9/16] 0.0, 128
      %6679 = vxpose.xlu0.b32.cont [10/16] 0.0, 128
      %6680 = vxpose.xlu0.b32.cont [11/16] 0.0, 128
      %6681 = vxpose.xlu0.b32.cont [12/16] 0.0, 128
      %6682 = vxpose.xlu0.b32.cont [13/16] 0.0, 128
      %6683 = vxpose.xlu0.b32.cont [14/16] 0.0, 128
      %6684 = vxpose.xlu0.b32.cont [15/16] 0.0, 128
      %6685 = vxpose.xlu0.b32.end [16/16] 0.0, 128
      %v6686 = vpop.trf.xlu0
      %v6687 = vpop.trf.xlu0
      %v6688 = vpop.trf.xlu0
      %v6689 = vpop.trf.xlu0
      %v6690 = vpop.trf.xlu0
      %v6691 = vpop.trf.xlu0
      %v6692 = vpop.trf.xlu0
      %v6693 = vpop.trf.xlu0
      %v6694 = vpop.trf.xlu0
      %v6695 = vpop.trf.xlu0
      %v6696 = vpop.trf.xlu0
      %v6697 = vpop.trf.xlu0
      %v6698 = vpop.trf.xlu0
      %v6699 = vpop.trf.xlu0
      %v6700 = vpop.trf.xlu0
      %v6701 = vpop.trf.xlu0
      %v6703 = vsel %vm3015, %v6686, 0
      %v6706 = vsel %vm3015, %v6687, 0
      %v6709 = vsel %vm3015, %v6688, 0
      %v6712 = vsel %vm3015, %v6689, 0
      %v6715 = vsel %vm3015, %v6690, 0
      %v6718 = vsel %vm3015, %v6691, 0
      %v6721 = vsel %vm3015, %v6692, 0
      %v6724 = vsel %vm3015, %v6693, 0
      %6726 = vmatpush.msra.mxu0 0.0
      %6727 = vmatpush.msra.mxu0 0.0
      %6728 = vmatpush.msra.mxu0 0.0
      %6729 = vmatpush.msra.mxu0 0.0
      %6730 = vmatpush.msra.mxu0 0.0
      %6731 = vmatpush.msra.mxu0 0.0
      %6732 = vmatpush.msra.mxu0 0.0
      %6733 = vmatpush.msra.mxu0 0.0
      %6734 = vmatpush.msra.mxu0 0.0
      %6735 = vmatpush.msra.mxu0 0.0
      %6736 = vmatpush.msra.mxu0 0.0
      %6737 = vmatpush.msra.mxu0 0.0
      %6738 = vmatpush.msra.mxu0 0.0
      %6739 = vmatpush.msra.mxu0 %v272
      %6740 = vmatpush.msra.mxu0 %v271
      %6741 = vmatpush.msra.mxu0 %v270
      %6742 = vmatmul.f32.gmra.mxu0 %v6703
      %v6743 = vpop.f32.mrf.mxu0
      %v6744 = vadd.f32 0.0, %v6743
      %6745 = vmatmul.f32.gmra.mxu0 %v6706
      %v6746 = vpop.f32.mrf.mxu0
      %v6747 = vadd.f32 0.0, %v6746
      %6748 = vmatmul.f32.gmra.mxu0 %v6709
      %v6749 = vpop.f32.mrf.mxu0
      %v6750 = vadd.f32 0.0, %v6749
      %6751 = vmatmul.f32.gmra.mxu0 %v6712
      %v6752 = vpop.f32.mrf.mxu0
      %v6753 = vadd.f32 0.0, %v6752
      %6754 = vmatmul.f32.gmra.mxu0 %v6715
      %v6755 = vpop.f32.mrf.mxu0
      %v6756 = vadd.f32 0.0, %v6755
      %6757 = vmatmul.f32.gmra.mxu0 %v6718
      %v6758 = vpop.f32.mrf.mxu0
      %v6759 = vadd.f32 0.0, %v6758
      %6760 = vmatmul.f32.gmra.mxu0 %v6721
      %v6761 = vpop.f32.mrf.mxu0
      %v6762 = vadd.f32 0.0, %v6761
      %6763 = vmatmul.f32.gmra.mxu0 %v6724
      %v6764 = vpop.f32.mrf.mxu0
      %v6765 = vadd.f32 0.0, %v6764
      %6766 = vdwg.mxu0
      %6767 = vxpose.xlu0.b32.start [1/16] %v2956, 128
      %6768 = vxpose.xlu0.b32.cont [2/16] %v2957, 128
      %6769 = vxpose.xlu0.b32.cont [3/16] %v2958, 128
      %6770 = vxpose.xlu0.b32.cont [4/16] 0.0, 128
      %6771 = vxpose.xlu0.b32.cont [5/16] 0.0, 128
      %6772 = vxpose.xlu0.b32.cont [6/16] 0.0, 128
      %6773 = vxpose.xlu0.b32.cont [7/16] 0.0, 128
      %6774 = vxpose.xlu0.b32.cont [8/16] 0.0, 128
      %6775 = vxpose.xlu0.b32.cont [9/16] 0.0, 128
      %6776 = vxpose.xlu0.b32.cont [10/16] 0.0, 128
      %6777 = vxpose.xlu0.b32.cont [11/16] 0.0, 128
      %6778 = vxpose.xlu0.b32.cont [12/16] 0.0, 128
      %6779 = vxpose.xlu0.b32.cont [13/16] 0.0, 128
      %6780 = vxpose.xlu0.b32.cont [14/16] 0.0, 128
      %6781 = vxpose.xlu0.b32.cont [15/16] 0.0, 128
      %6782 = vxpose.xlu0.b32.end [16/16] 0.0, 128
      %v6783 = vpop.trf.xlu0
      %v6784 = vpop.trf.xlu0
      %v6785 = vpop.trf.xlu0
      %v6786 = vpop.trf.xlu0
      %v6787 = vpop.trf.xlu0
      %v6788 = vpop.trf.xlu0
      %v6789 = vpop.trf.xlu0
      %v6790 = vpop.trf.xlu0
      %v6791 = vpop.trf.xlu0
      %v6792 = vpop.trf.xlu0
      %v6793 = vpop.trf.xlu0
      %v6794 = vpop.trf.xlu0
      %v6795 = vpop.trf.xlu0
      %v6796 = vpop.trf.xlu0
      %v6797 = vpop.trf.xlu0
      %v6798 = vpop.trf.xlu0
      %v6800 = vsel %vm3015, %v6783, 0
      %v6803 = vsel %vm3015, %v6784, 0
      %v6806 = vsel %vm3015, %v6785, 0
      %v6809 = vsel %vm3015, %v6786, 0
      %v6812 = vsel %vm3015, %v6787, 0
      %v6815 = vsel %vm3015, %v6788, 0
      %v6818 = vsel %vm3015, %v6789, 0
      %v6821 = vsel %vm3015, %v6790, 0
      %6823 = vmatpush.msra.mxu0 0.0
      %6824 = vmatpush.msra.mxu0 0.0
      %6825 = vmatpush.msra.mxu0 0.0
      %6826 = vmatpush.msra.mxu0 0.0
      %6827 = vmatpush.msra.mxu0 0.0
      %6828 = vmatpush.msra.mxu0 0.0
      %6829 = vmatpush.msra.mxu0 0.0
      %6830 = vmatpush.msra.mxu0 0.0
      %6831 = vmatpush.msra.mxu0 0.0
      %6832 = vmatpush.msra.mxu0 0.0
      %6833 = vmatpush.msra.mxu0 0.0
      %6834 = vmatpush.msra.mxu0 0.0
      %6835 = vmatpush.msra.mxu0 0.0
      %6836 = vmatpush.msra.mxu0 %v275
      %6837 = vmatpush.msra.mxu0 %v274
      %6838 = vmatpush.msra.mxu0 %v273
      %6839 = vmatmul.f32.gmra.mxu0 %v6800
      %v6840 = vpop.f32.mrf.mxu0
      %v6841 = vadd.f32 0.0, %v6840
      %6842 = vmatmul.f32.gmra.mxu0 %v6803
      %v6843 = vpop.f32.mrf.mxu0
      %v6844 = vadd.f32 0.0, %v6843
      %6845 = vmatmul.f32.gmra.mxu0 %v6806
      %v6846 = vpop.f32.mrf.mxu0
      %v6847 = vadd.f32 0.0, %v6846
      %6848 = vmatmul.f32.gmra.mxu0 %v6809
      %v6849 = vpop.f32.mrf.mxu0
      %v6850 = vadd.f32 0.0, %v6849
      %6851 = vmatmul.f32.gmra.mxu0 %v6812
      %v6852 = vpop.f32.mrf.mxu0
      %v6853 = vadd.f32 0.0, %v6852
      %6854 = vmatmul.f32.gmra.mxu0 %v6815
      %v6855 = vpop.f32.mrf.mxu0
      %v6856 = vadd.f32 0.0, %v6855
      %6857 = vmatmul.f32.gmra.mxu0 %v6818
      %v6858 = vpop.f32.mrf.mxu0
      %v6859 = vadd.f32 0.0, %v6858
      %6860 = vmatmul.f32.gmra.mxu0 %v6821
      %v6861 = vpop.f32.mrf.mxu0
      %v6862 = vadd.f32 0.0, %v6861
      %6863 = vdwg.mxu0
      %6864 = vxpose.xlu0.b32.start [1/16] %v2959, 128
      %6865 = vxpose.xlu0.b32.cont [2/16] %v2960, 128
      %6866 = vxpose.xlu0.b32.cont [3/16] %v2961, 128
      %6867 = vxpose.xlu0.b32.cont [4/16] 0.0, 128
      %6868 = vxpose.xlu0.b32.cont [5/16] 0.0, 128
      %6869 = vxpose.xlu0.b32.cont [6/16] 0.0, 128
      %6870 = vxpose.xlu0.b32.cont [7/16] 0.0, 128
      %6871 = vxpose.xlu0.b32.cont [8/16] 0.0, 128
      %6872 = vxpose.xlu0.b32.cont [9/16] 0.0, 128
      %6873 = vxpose.xlu0.b32.cont [10/16] 0.0, 128
      %6874 = vxpose.xlu0.b32.cont [11/16] 0.0, 128
      %6875 = vxpose.xlu0.b32.cont [12/16] 0.0, 128
      %6876 = vxpose.xlu0.b32.cont [13/16] 0.0, 128
      %6877 = vxpose.xlu0.b32.cont [14/16] 0.0, 128
      %6878 = vxpose.xlu0.b32.cont [15/16] 0.0, 128
      %6879 = vxpose.xlu0.b32.end [16/16] 0.0, 128
      %v6880 = vpop.trf.xlu0
      %v6881 = vpop.trf.xlu0
      %v6882 = vpop.trf.xlu0
      %v6883 = vpop.trf.xlu0
      %v6884 = vpop.trf.xlu0
      %v6885 = vpop.trf.xlu0
      %v6886 = vpop.trf.xlu0
      %v6887 = vpop.trf.xlu0
      %v6888 = vpop.trf.xlu0
      %v6889 = vpop.trf.xlu0
      %v6890 = vpop.trf.xlu0
      %v6891 = vpop.trf.xlu0
      %v6892 = vpop.trf.xlu0
      %v6893 = vpop.trf.xlu0
      %v6894 = vpop.trf.xlu0
      %v6895 = vpop.trf.xlu0
      %v6897 = vsel %vm3015, %v6880, 0
      %v6900 = vsel %vm3015, %v6881, 0
      %v6903 = vsel %vm3015, %v6882, 0
      %v6906 = vsel %vm3015, %v6883, 0
      %v6909 = vsel %vm3015, %v6884, 0
      %v6912 = vsel %vm3015, %v6885, 0
      %v6915 = vsel %vm3015, %v6886, 0
      %v6918 = vsel %vm3015, %v6887, 0
      %6920 = vmatpush.msra.mxu0 0.0
      %6921 = vmatpush.msra.mxu0 0.0
      %6922 = vmatpush.msra.mxu0 0.0
      %6923 = vmatpush.msra.mxu0 0.0
      %6924 = vmatpush.msra.mxu0 0.0
      %6925 = vmatpush.msra.mxu0 0.0
      %6926 = vmatpush.msra.mxu0 0.0
      %6927 = vmatpush.msra.mxu0 0.0
      %6928 = vmatpush.msra.mxu0 0.0
      %6929 = vmatpush.msra.mxu0 0.0
      %6930 = vmatpush.msra.mxu0 0.0
      %6931 = vmatpush.msra.mxu0 0.0
      %6932 = vmatpush.msra.mxu0 0.0
      %6933 = vmatpush.msra.mxu0 %v278
      %6934 = vmatpush.msra.mxu0 %v277
      %6935 = vmatpush.msra.mxu0 %v276
      %6936 = vmatmul.f32.gmra.mxu0 %v6897
      %v6937 = vpop.f32.mrf.mxu0
      %v6938 = vadd.f32 0.0, %v6937
      %6939 = vmatmul.f32.gmra.mxu0 %v6900
      %v6940 = vpop.f32.mrf.mxu0
      %v6941 = vadd.f32 0.0, %v6940
      %6942 = vmatmul.f32.gmra.mxu0 %v6903
      %v6943 = vpop.f32.mrf.mxu0
      %v6944 = vadd.f32 0.0, %v6943
      %6945 = vmatmul.f32.gmra.mxu0 %v6906
      %v6946 = vpop.f32.mrf.mxu0
      %v6947 = vadd.f32 0.0, %v6946
      %6948 = vmatmul.f32.gmra.mxu0 %v6909
      %v6949 = vpop.f32.mrf.mxu0
      %v6950 = vadd.f32 0.0, %v6949
      %6951 = vmatmul.f32.gmra.mxu0 %v6912
      %v6952 = vpop.f32.mrf.mxu0
      %v6953 = vadd.f32 0.0, %v6952
      %6954 = vmatmul.f32.gmra.mxu0 %v6915
      %v6955 = vpop.f32.mrf.mxu0
      %v6956 = vadd.f32 0.0, %v6955
      %6957 = vmatmul.f32.gmra.mxu0 %v6918
      %v6958 = vpop.f32.mrf.mxu0
      %v6959 = vadd.f32 0.0, %v6958
      %6960 = vdwg.mxu0
      %6961 = vxpose.xlu0.b32.start [1/16] %v2962, 128
      %6962 = vxpose.xlu0.b32.cont [2/16] %v2963, 128
      %6963 = vxpose.xlu0.b32.cont [3/16] %v2964, 128
      %6964 = vxpose.xlu0.b32.cont [4/16] 0.0, 128
      %6965 = vxpose.xlu0.b32.cont [5/16] 0.0, 128
      %6966 = vxpose.xlu0.b32.cont [6/16] 0.0, 128
      %6967 = vxpose.xlu0.b32.cont [7/16] 0.0, 128
      %6968 = vxpose.xlu0.b32.cont [8/16] 0.0, 128
      %6969 = vxpose.xlu0.b32.cont [9/16] 0.0, 128
      %6970 = vxpose.xlu0.b32.cont [10/16] 0.0, 128
      %6971 = vxpose.xlu0.b32.cont [11/16] 0.0, 128
      %6972 = vxpose.xlu0.b32.cont [12/16] 0.0, 128
      %6973 = vxpose.xlu0.b32.cont [13/16] 0.0, 128
      %6974 = vxpose.xlu0.b32.cont [14/16] 0.0, 128
      %6975 = vxpose.xlu0.b32.cont [15/16] 0.0, 128
      %6976 = vxpose.xlu0.b32.end [16/16] 0.0, 128
      %v6977 = vpop.trf.xlu0
      %v6978 = vpop.trf.xlu0
      %v6979 = vpop.trf.xlu0
      %v6980 = vpop.trf.xlu0
      %v6981 = vpop.trf.xlu0
      %v6982 = vpop.trf.xlu0
      %v6983 = vpop.trf.xlu0
      %v6984 = vpop.trf.xlu0
      %v6985 = vpop.trf.xlu0
      %v6986 = vpop.trf.xlu0
      %v6987 = vpop.trf.xlu0
      %v6988 = vpop.trf.xlu0
      %v6989 = vpop.trf.xlu0
      %v6990 = vpop.trf.xlu0
      %v6991 = vpop.trf.xlu0
      %v6992 = vpop.trf.xlu0
      %v6994 = vsel %vm3015, %v6977, 0
      %v6997 = vsel %vm3015, %v6978, 0
      %v7000 = vsel %vm3015, %v6979, 0
      %v7003 = vsel %vm3015, %v6980, 0
      %v7006 = vsel %vm3015, %v6981, 0
      %v7009 = vsel %vm3015, %v6982, 0
      %v7012 = vsel %vm3015, %v6983, 0
      %v7015 = vsel %vm3015, %v6984, 0
      %7017 = vmatpush.msra.mxu0 0.0
      %7018 = vmatpush.msra.mxu0 0.0
      %7019 = vmatpush.msra.mxu0 0.0
      %7020 = vmatpush.msra.mxu0 0.0
      %7021 = vmatpush.msra.mxu0 0.0
      %7022 = vmatpush.msra.mxu0 0.0
      %7023 = vmatpush.msra.mxu0 0.0
      %7024 = vmatpush.msra.mxu0 0.0
      %7025 = vmatpush.msra.mxu0 0.0
      %7026 = vmatpush.msra.mxu0 0.0
      %7027 = vmatpush.msra.mxu0 0.0
      %7028 = vmatpush.msra.mxu0 0.0
      %7029 = vmatpush.msra.mxu0 0.0
      %7030 = vmatpush.msra.mxu0 %v281
      %7031 = vmatpush.msra.mxu0 %v280
      %7032 = vmatpush.msra.mxu0 %v279
      %7033 = vmatmul.f32.gmra.mxu0 %v6994
      %v7034 = vpop.f32.mrf.mxu0
      %v7035 = vadd.f32 0.0, %v7034
      %7036 = vmatmul.f32.gmra.mxu0 %v6997
      %v7037 = vpop.f32.mrf.mxu0
      %v7038 = vadd.f32 0.0, %v7037
      %7039 = vmatmul.f32.gmra.mxu0 %v7000
      %v7040 = vpop.f32.mrf.mxu0
      %v7041 = vadd.f32 0.0, %v7040
      %7042 = vmatmul.f32.gmra.mxu0 %v7003
      %v7043 = vpop.f32.mrf.mxu0
      %v7044 = vadd.f32 0.0, %v7043
      %7045 = vmatmul.f32.gmra.mxu0 %v7006
      %v7046 = vpop.f32.mrf.mxu0
      %v7047 = vadd.f32 0.0, %v7046
      %7048 = vmatmul.f32.gmra.mxu0 %v7009
      %v7049 = vpop.f32.mrf.mxu0
      %v7050 = vadd.f32 0.0, %v7049
      %7051 = vmatmul.f32.gmra.mxu0 %v7012
      %v7052 = vpop.f32.mrf.mxu0
      %v7053 = vadd.f32 0.0, %v7052
      %7054 = vmatmul.f32.gmra.mxu0 %v7015
      %v7055 = vpop.f32.mrf.mxu0
      %v7056 = vadd.f32 0.0, %v7055
      %7057 = vdwg.mxu0
      %7058 = vxpose.xlu0.b32.start [1/16] %v2965, 128
      %7059 = vxpose.xlu0.b32.cont [2/16] %v2966, 128
      %7060 = vxpose.xlu0.b32.cont [3/16] %v2967, 128
      %7061 = vxpose.xlu0.b32.cont [4/16] 0.0, 128
      %7062 = vxpose.xlu0.b32.cont [5/16] 0.0, 128
      %7063 = vxpose.xlu0.b32.cont [6/16] 0.0, 128
      %7064 = vxpose.xlu0.b32.cont [7/16] 0.0, 128
      %7065 = vxpose.xlu0.b32.cont [8/16] 0.0, 128
      %7066 = vxpose.xlu0.b32.cont [9/16] 0.0, 128
      %7067 = vxpose.xlu0.b32.cont [10/16] 0.0, 128
      %7068 = vxpose.xlu0.b32.cont [11/16] 0.0, 128
      %7069 = vxpose.xlu0.b32.cont [12/16] 0.0, 128
      %7070 = vxpose.xlu0.b32.cont [13/16] 0.0, 128
      %7071 = vxpose.xlu0.b32.cont [14/16] 0.0, 128
      %7072 = vxpose.xlu0.b32.cont [15/16] 0.0, 128
      %7073 = vxpose.xlu0.b32.end [16/16] 0.0, 128
      %v7074 = vpop.trf.xlu0
      %v7075 = vpop.trf.xlu0
      %v7076 = vpop.trf.xlu0
      %v7077 = vpop.trf.xlu0
      %v7078 = vpop.trf.xlu0
      %v7079 = vpop.trf.xlu0
      %v7080 = vpop.trf.xlu0
      %v7081 = vpop.trf.xlu0
      %v7082 = vpop.trf.xlu0
      %v7083 = vpop.trf.xlu0
      %v7084 = vpop.trf.xlu0
      %v7085 = vpop.trf.xlu0
      %v7086 = vpop.trf.xlu0
      %v7087 = vpop.trf.xlu0
      %v7088 = vpop.trf.xlu0
      %v7089 = vpop.trf.xlu0
      %v7091 = vsel %vm3015, %v7074, 0
      %v7094 = vsel %vm3015, %v7075, 0
      %v7097 = vsel %vm3015, %v7076, 0
      %v7100 = vsel %vm3015, %v7077, 0
      %v7103 = vsel %vm3015, %v7078, 0
      %v7106 = vsel %vm3015, %v7079, 0
      %v7109 = vsel %vm3015, %v7080, 0
      %v7112 = vsel %vm3015, %v7081, 0
      %7114 = vmatpush.msra.mxu0 0.0
      %7115 = vmatpush.msra.mxu0 0.0
      %7116 = vmatpush.msra.mxu0 0.0
      %7117 = vmatpush.msra.mxu0 0.0
      %7118 = vmatpush.msra.mxu0 0.0
      %7119 = vmatpush.msra.mxu0 0.0
      %7120 = vmatpush.msra.mxu0 0.0
      %7121 = vmatpush.msra.mxu0 0.0
      %7122 = vmatpush.msra.mxu0 0.0
      %7123 = vmatpush.msra.mxu0 0.0
      %7124 = vmatpush.msra.mxu0 0.0
      %7125 = vmatpush.msra.mxu0 0.0
      %7126 = vmatpush.msra.mxu0 0.0
      %7127 = vmatpush.msra.mxu0 %v284
      %7128 = vmatpush.msra.mxu0 %v283
      %7129 = vmatpush.msra.mxu0 %v282
      %7130 = vmatmul.f32.gmra.mxu0 %v7091
      %v7131 = vpop.f32.mrf.mxu0
      %v7132 = vadd.f32 0.0, %v7131
      %7133 = vmatmul.f32.gmra.mxu0 %v7094
      %v7134 = vpop.f32.mrf.mxu0
      %v7135 = vadd.f32 0.0, %v7134
      %7136 = vmatmul.f32.gmra.mxu0 %v7097
      %v7137 = vpop.f32.mrf.mxu0
      %v7138 = vadd.f32 0.0, %v7137
      %7139 = vmatmul.f32.gmra.mxu0 %v7100
      %v7140 = vpop.f32.mrf.mxu0
      %v7141 = vadd.f32 0.0, %v7140
      %7142 = vmatmul.f32.gmra.mxu0 %v7103
      %v7143 = vpop.f32.mrf.mxu0
      %v7144 = vadd.f32 0.0, %v7143
      %7145 = vmatmul.f32.gmra.mxu0 %v7106
      %v7146 = vpop.f32.mrf.mxu0
      %v7147 = vadd.f32 0.0, %v7146
      %7148 = vmatmul.f32.gmra.mxu0 %v7109
      %v7149 = vpop.f32.mrf.mxu0
      %v7150 = vadd.f32 0.0, %v7149
      %7151 = vmatmul.f32.gmra.mxu0 %v7112
      %v7152 = vpop.f32.mrf.mxu0
      %v7153 = vadd.f32 0.0, %v7152
      %7154 = vdwg.mxu0
      %7155 = vxpose.xlu0.b32.start [1/16] %v2968, 128
      %7156 = vxpose.xlu0.b32.cont [2/16] %v2969, 128
      %7157 = vxpose.xlu0.b32.cont [3/16] %v2970, 128
      %7158 = vxpose.xlu0.b32.cont [4/16] 0.0, 128
      %7159 = vxpose.xlu0.b32.cont [5/16] 0.0, 128
      %7160 = vxpose.xlu0.b32.cont [6/16] 0.0, 128
      %7161 = vxpose.xlu0.b32.cont [7/16] 0.0, 128
      %7162 = vxpose.xlu0.b32.cont [8/16] 0.0, 128
      %7163 = vxpose.xlu0.b32.cont [9/16] 0.0, 128
      %7164 = vxpose.xlu0.b32.cont [10/16] 0.0, 128
      %7165 = vxpose.xlu0.b32.cont [11/16] 0.0, 128
      %7166 = vxpose.xlu0.b32.cont [12/16] 0.0, 128
      %7167 = vxpose.xlu0.b32.cont [13/16] 0.0, 128
      %7168 = vxpose.xlu0.b32.cont [14/16] 0.0, 128
      %7169 = vxpose.xlu0.b32.cont [15/16] 0.0, 128
      %7170 = vxpose.xlu0.b32.end [16/16] 0.0, 128
      %v7171 = vpop.trf.xlu0
      %v7172 = vpop.trf.xlu0
      %v7173 = vpop.trf.xlu0
      %v7174 = vpop.trf.xlu0
      %v7175 = vpop.trf.xlu0
      %v7176 = vpop.trf.xlu0
      %v7177 = vpop.trf.xlu0
      %v7178 = vpop.trf.xlu0
      %v7179 = vpop.trf.xlu0
      %v7180 = vpop.trf.xlu0
      %v7181 = vpop.trf.xlu0
      %v7182 = vpop.trf.xlu0
      %v7183 = vpop.trf.xlu0
      %v7184 = vpop.trf.xlu0
      %v7185 = vpop.trf.xlu0
      %v7186 = vpop.trf.xlu0
      %v7188 = vsel %vm3015, %v7171, 0
      %v7191 = vsel %vm3015, %v7172, 0
      %v7194 = vsel %vm3015, %v7173, 0
      %v7197 = vsel %vm3015, %v7174, 0
      %v7200 = vsel %vm3015, %v7175, 0
      %v7203 = vsel %vm3015, %v7176, 0
      %v7206 = vsel %vm3015, %v7177, 0
      %v7209 = vsel %vm3015, %v7178, 0
      %7211 = vmatpush.msra.mxu0 0.0
      %7212 = vmatpush.msra.mxu0 0.0
      %7213 = vmatpush.msra.mxu0 0.0
      %7214 = vmatpush.msra.mxu0 0.0
      %7215 = vmatpush.msra.mxu0 0.0
      %7216 = vmatpush.msra.mxu0 0.0
      %7217 = vmatpush.msra.mxu0 0.0
      %7218 = vmatpush.msra.mxu0 0.0
      %7219 = vmatpush.msra.mxu0 0.0
      %7220 = vmatpush.msra.mxu0 0.0
      %7221 = vmatpush.msra.mxu0 0.0
      %7222 = vmatpush.msra.mxu0 0.0
      %7223 = vmatpush.msra.mxu0 0.0
      %7224 = vmatpush.msra.mxu0 %v287
      %7225 = vmatpush.msra.mxu0 %v286
      %7226 = vmatpush.msra.mxu0 %v285
      %7227 = vmatmul.f32.gmra.mxu0 %v7188
      %v7228 = vpop.f32.mrf.mxu0
      %v7229 = vadd.f32 0.0, %v7228
      %7230 = vmatmul.f32.gmra.mxu0 %v7191
      %v7231 = vpop.f32.mrf.mxu0
      %v7232 = vadd.f32 0.0, %v7231
      %7233 = vmatmul.f32.gmra.mxu0 %v7194
      %v7234 = vpop.f32.mrf.mxu0
      %v7235 = vadd.f32 0.0, %v7234
      %7236 = vmatmul.f32.gmra.mxu0 %v7197
      %v7237 = vpop.f32.mrf.mxu0
      %v7238 = vadd.f32 0.0, %v7237
      %7239 = vmatmul.f32.gmra.mxu0 %v7200
      %v7240 = vpop.f32.mrf.mxu0
      %v7241 = vadd.f32 0.0, %v7240
      %7242 = vmatmul.f32.gmra.mxu0 %v7203
      %v7243 = vpop.f32.mrf.mxu0
      %v7244 = vadd.f32 0.0, %v7243
      %7245 = vmatmul.f32.gmra.mxu0 %v7206
      %v7246 = vpop.f32.mrf.mxu0
      %v7247 = vadd.f32 0.0, %v7246
      %7248 = vmatmul.f32.gmra.mxu0 %v7209
      %v7249 = vpop.f32.mrf.mxu0
      %v7250 = vadd.f32 0.0, %v7249
      %7251 = vdwg.mxu0
      %7252 = vxpose.xlu0.b32.start [1/16] %v2971, 128
      %7253 = vxpose.xlu0.b32.cont [2/16] %v2972, 128
      %7254 = vxpose.xlu0.b32.cont [3/16] %v2973, 128
      %7255 = vxpose.xlu0.b32.cont [4/16] 0.0, 128
      %7256 = vxpose.xlu0.b32.cont [5/16] 0.0, 128
      %7257 = vxpose.xlu0.b32.cont [6/16] 0.0, 128
      %7258 = vxpose.xlu0.b32.cont [7/16] 0.0, 128
      %7259 = vxpose.xlu0.b32.cont [8/16] 0.0, 128
      %7260 = vxpose.xlu0.b32.cont [9/16] 0.0, 128
      %7261 = vxpose.xlu0.b32.cont [10/16] 0.0, 128
      %7262 = vxpose.xlu0.b32.cont [11/16] 0.0, 128
      %7263 = vxpose.xlu0.b32.cont [12/16] 0.0, 128
      %7264 = vxpose.xlu0.b32.cont [13/16] 0.0, 128
      %7265 = vxpose.xlu0.b32.cont [14/16] 0.0, 128
      %7266 = vxpose.xlu0.b32.cont [15/16] 0.0, 128
      %7267 = vxpose.xlu0.b32.end [16/16] 0.0, 128
      %v7268 = vpop.trf.xlu0
      %v7269 = vpop.trf.xlu0
      %v7270 = vpop.trf.xlu0
      %v7271 = vpop.trf.xlu0
      %v7272 = vpop.trf.xlu0
      %v7273 = vpop.trf.xlu0
      %v7274 = vpop.trf.xlu0
      %v7275 = vpop.trf.xlu0
      %v7276 = vpop.trf.xlu0
      %v7277 = vpop.trf.xlu0
      %v7278 = vpop.trf.xlu0
      %v7279 = vpop.trf.xlu0
      %v7280 = vpop.trf.xlu0
      %v7281 = vpop.trf.xlu0
      %v7282 = vpop.trf.xlu0
      %v7283 = vpop.trf.xlu0
      %v7285 = vsel %vm3015, %v7268, 0
      %v7288 = vsel %vm3015, %v7269, 0
      %v7291 = vsel %vm3015, %v7270, 0
      %v7294 = vsel %vm3015, %v7271, 0
      %v7297 = vsel %vm3015, %v7272, 0
      %v7300 = vsel %vm3015, %v7273, 0
      %v7303 = vsel %vm3015, %v7274, 0
      %v7306 = vsel %vm3015, %v7275, 0
      %7308 = vmatpush.msra.mxu0 0.0
      %7309 = vmatpush.msra.mxu0 0.0
      %7310 = vmatpush.msra.mxu0 0.0
      %7311 = vmatpush.msra.mxu0 0.0
      %7312 = vmatpush.msra.mxu0 0.0
      %7313 = vmatpush.msra.mxu0 0.0
      %7314 = vmatpush.msra.mxu0 0.0
      %7315 = vmatpush.msra.mxu0 0.0
      %7316 = vmatpush.msra.mxu0 0.0
      %7317 = vmatpush.msra.mxu0 0.0
      %7318 = vmatpush.msra.mxu0 0.0
      %7319 = vmatpush.msra.mxu0 0.0
      %7320 = vmatpush.msra.mxu0 0.0
      %7321 = vmatpush.msra.mxu0 %v290
      %7322 = vmatpush.msra.mxu0 %v289
      %7323 = vmatpush.msra.mxu0 %v288
      %7324 = vmatmul.f32.gmra.mxu0 %v7285
      %v7325 = vpop.f32.mrf.mxu0
      %v7326 = vadd.f32 0.0, %v7325
      %7327 = vmatmul.f32.gmra.mxu0 %v7288
      %v7328 = vpop.f32.mrf.mxu0
      %v7329 = vadd.f32 0.0, %v7328
      %7330 = vmatmul.f32.gmra.mxu0 %v7291
      %v7331 = vpop.f32.mrf.mxu0
      %v7332 = vadd.f32 0.0, %v7331
      %7333 = vmatmul.f32.gmra.mxu0 %v7294
      %v7334 = vpop.f32.mrf.mxu0
      %v7335 = vadd.f32 0.0, %v7334
      %7336 = vmatmul.f32.gmra.mxu0 %v7297
      %v7337 = vpop.f32.mrf.mxu0
      %v7338 = vadd.f32 0.0, %v7337
      %7339 = vmatmul.f32.gmra.mxu0 %v7300
      %v7340 = vpop.f32.mrf.mxu0
      %v7341 = vadd.f32 0.0, %v7340
      %7342 = vmatmul.f32.gmra.mxu0 %v7303
      %v7343 = vpop.f32.mrf.mxu0
      %v7344 = vadd.f32 0.0, %v7343
      %7345 = vmatmul.f32.gmra.mxu0 %v7306
      %v7346 = vpop.f32.mrf.mxu0
      %v7347 = vadd.f32 0.0, %v7346
      %7348 = vdwg.mxu0
      %7349 = vxpose.xlu0.b32.start [1/16] %v2974, 128
      %7350 = vxpose.xlu0.b32.cont [2/16] %v2975, 128
      %7351 = vxpose.xlu0.b32.cont [3/16] %v2976, 128
      %7352 = vxpose.xlu0.b32.cont [4/16] 0.0, 128
      %7353 = vxpose.xlu0.b32.cont [5/16] 0.0, 128
      %7354 = vxpose.xlu0.b32.cont [6/16] 0.0, 128
      %7355 = vxpose.xlu0.b32.cont [7/16] 0.0, 128
      %7356 = vxpose.xlu0.b32.cont [8/16] 0.0, 128
      %7357 = vxpose.xlu0.b32.cont [9/16] 0.0, 128
      %7358 = vxpose.xlu0.b32.cont [10/16] 0.0, 128
      %7359 = vxpose.xlu0.b32.cont [11/16] 0.0, 128
      %7360 = vxpose.xlu0.b32.cont [12/16] 0.0, 128
      %7361 = vxpose.xlu0.b32.cont [13/16] 0.0, 128
      %7362 = vxpose.xlu0.b32.cont [14/16] 0.0, 128
      %7363 = vxpose.xlu0.b32.cont [15/16] 0.0, 128
      %7364 = vxpose.xlu0.b32.end [16/16] 0.0, 128
      %v7365 = vpop.trf.xlu0
      %v7366 = vpop.trf.xlu0
      %v7367 = vpop.trf.xlu0
      %v7368 = vpop.trf.xlu0
      %v7369 = vpop.trf.xlu0
      %v7370 = vpop.trf.xlu0
      %v7371 = vpop.trf.xlu0
      %v7372 = vpop.trf.xlu0
      %v7373 = vpop.trf.xlu0
      %v7374 = vpop.trf.xlu0
      %v7375 = vpop.trf.xlu0
      %v7376 = vpop.trf.xlu0
      %v7377 = vpop.trf.xlu0
      %v7378 = vpop.trf.xlu0
      %v7379 = vpop.trf.xlu0
      %v7380 = vpop.trf.xlu0
      %v7382 = vsel %vm3015, %v7365, 0
      %v7385 = vsel %vm3015, %v7366, 0
      %v7388 = vsel %vm3015, %v7367, 0
      %v7391 = vsel %vm3015, %v7368, 0
      %v7394 = vsel %vm3015, %v7369, 0
      %v7397 = vsel %vm3015, %v7370, 0
      %v7400 = vsel %vm3015, %v7371, 0
      %v7403 = vsel %vm3015, %v7372, 0
      %7405 = vmatpush.msra.mxu0 0.0
      %7406 = vmatpush.msra.mxu0 0.0
      %7407 = vmatpush.msra.mxu0 0.0
      %7408 = vmatpush.msra.mxu0 0.0
      %7409 = vmatpush.msra.mxu0 0.0
      %7410 = vmatpush.msra.mxu0 0.0
      %7411 = vmatpush.msra.mxu0 0.0
      %7412 = vmatpush.msra.mxu0 0.0
      %7413 = vmatpush.msra.mxu0 0.0
      %7414 = vmatpush.msra.mxu0 0.0
      %7415 = vmatpush.msra.mxu0 0.0
      %7416 = vmatpush.msra.mxu0 0.0
      %7417 = vmatpush.msra.mxu0 0.0
      %7418 = vmatpush.msra.mxu0 %v293
      %7419 = vmatpush.msra.mxu0 %v292
      %7420 = vmatpush.msra.mxu0 %v291
      %7421 = vmatmul.f32.gmra.mxu0 %v7382
      %v7422 = vpop.f32.mrf.mxu0
      %v7423 = vadd.f32 0.0, %v7422
      %7424 = vmatmul.f32.gmra.mxu0 %v7385
      %v7425 = vpop.f32.mrf.mxu0
      %v7426 = vadd.f32 0.0, %v7425
      %7427 = vmatmul.f32.gmra.mxu0 %v7388
      %v7428 = vpop.f32.mrf.mxu0
      %v7429 = vadd.f32 0.0, %v7428
      %7430 = vmatmul.f32.gmra.mxu0 %v7391
      %v7431 = vpop.f32.mrf.mxu0
      %v7432 = vadd.f32 0.0, %v7431
      %7433 = vmatmul.f32.gmra.mxu0 %v7394
      %v7434 = vpop.f32.mrf.mxu0
      %v7435 = vadd.f32 0.0, %v7434
      %7436 = vmatmul.f32.gmra.mxu0 %v7397
      %v7437 = vpop.f32.mrf.mxu0
      %v7438 = vadd.f32 0.0, %v7437
      %7439 = vmatmul.f32.gmra.mxu0 %v7400
      %v7440 = vpop.f32.mrf.mxu0
      %v7441 = vadd.f32 0.0, %v7440
      %7442 = vmatmul.f32.gmra.mxu0 %v7403
      %v7443 = vpop.f32.mrf.mxu0
      %v7444 = vadd.f32 0.0, %v7443
      %7445 = vdwg.mxu0
      %7446 = vxpose.xlu0.b32.start [1/16] %v2977, 128
      %7447 = vxpose.xlu0.b32.cont [2/16] %v2978, 128
      %7448 = vxpose.xlu0.b32.cont [3/16] %v2979, 128
      %7449 = vxpose.xlu0.b32.cont [4/16] 0.0, 128
      %7450 = vxpose.xlu0.b32.cont [5/16] 0.0, 128
      %7451 = vxpose.xlu0.b32.cont [6/16] 0.0, 128
      %7452 = vxpose.xlu0.b32.cont [7/16] 0.0, 128
      %7453 = vxpose.xlu0.b32.cont [8/16] 0.0, 128
      %7454 = vxpose.xlu0.b32.cont [9/16] 0.0, 128
      %7455 = vxpose.xlu0.b32.cont [10/16] 0.0, 128
      %7456 = vxpose.xlu0.b32.cont [11/16] 0.0, 128
      %7457 = vxpose.xlu0.b32.cont [12/16] 0.0, 128
      %7458 = vxpose.xlu0.b32.cont [13/16] 0.0, 128
      %7459 = vxpose.xlu0.b32.cont [14/16] 0.0, 128
      %7460 = vxpose.xlu0.b32.cont [15/16] 0.0, 128
      %7461 = vxpose.xlu0.b32.end [16/16] 0.0, 128
      %v7462 = vpop.trf.xlu0
      %v7463 = vpop.trf.xlu0
      %v7464 = vpop.trf.xlu0
      %v7465 = vpop.trf.xlu0
      %v7466 = vpop.trf.xlu0
      %v7467 = vpop.trf.xlu0
      %v7468 = vpop.trf.xlu0
      %v7469 = vpop.trf.xlu0
      %v7470 = vpop.trf.xlu0
      %v7471 = vpop.trf.xlu0
      %v7472 = vpop.trf.xlu0
      %v7473 = vpop.trf.xlu0
      %v7474 = vpop.trf.xlu0
      %v7475 = vpop.trf.xlu0
      %v7476 = vpop.trf.xlu0
      %v7477 = vpop.trf.xlu0
      %v7479 = vsel %vm3015, %v7462, 0
      %v7482 = vsel %vm3015, %v7463, 0
      %v7485 = vsel %vm3015, %v7464, 0
      %v7488 = vsel %vm3015, %v7465, 0
      %v7491 = vsel %vm3015, %v7466, 0
      %v7494 = vsel %vm3015, %v7467, 0
      %v7497 = vsel %vm3015, %v7468, 0
      %v7500 = vsel %vm3015, %v7469, 0
      %7502 = vmatpush.msra.mxu0 0.0
      %7503 = vmatpush.msra.mxu0 0.0
      %7504 = vmatpush.msra.mxu0 0.0
      %7505 = vmatpush.msra.mxu0 0.0
      %7506 = vmatpush.msra.mxu0 0.0
      %7507 = vmatpush.msra.mxu0 0.0
      %7508 = vmatpush.msra.mxu0 0.0
      %7509 = vmatpush.msra.mxu0 0.0
      %7510 = vmatpush.msra.mxu0 0.0
      %7511 = vmatpush.msra.mxu0 0.0
      %7512 = vmatpush.msra.mxu0 0.0
      %7513 = vmatpush.msra.mxu0 0.0
      %7514 = vmatpush.msra.mxu0 0.0
      %7515 = vmatpush.msra.mxu0 %v296
      %7516 = vmatpush.msra.mxu0 %v295
      %7517 = vmatpush.msra.mxu0 %v294
      %7518 = vmatmul.f32.gmra.mxu0 %v7479
      %v7519 = vpop.f32.mrf.mxu0
      %v7520 = vadd.f32 0.0, %v7519
      %7521 = vmatmul.f32.gmra.mxu0 %v7482
      %v7522 = vpop.f32.mrf.mxu0
      %v7523 = vadd.f32 0.0, %v7522
      %7524 = vmatmul.f32.gmra.mxu0 %v7485
      %v7525 = vpop.f32.mrf.mxu0
      %v7526 = vadd.f32 0.0, %v7525
      %7527 = vmatmul.f32.gmra.mxu0 %v7488
      %v7528 = vpop.f32.mrf.mxu0
      %v7529 = vadd.f32 0.0, %v7528
      %7530 = vmatmul.f32.gmra.mxu0 %v7491
      %v7531 = vpop.f32.mrf.mxu0
      %v7532 = vadd.f32 0.0, %v7531
      %7533 = vmatmul.f32.gmra.mxu0 %v7494
      %v7534 = vpop.f32.mrf.mxu0
      %v7535 = vadd.f32 0.0, %v7534
      %7536 = vmatmul.f32.gmra.mxu0 %v7497
      %v7537 = vpop.f32.mrf.mxu0
      %v7538 = vadd.f32 0.0, %v7537
      %7539 = vmatmul.f32.gmra.mxu0 %v7500
      %v7540 = vpop.f32.mrf.mxu0
      %v7541 = vadd.f32 0.0, %v7540
      %7542 = vdwg.mxu0
      %7543 = vxpose.xlu0.b32.start [1/16] %v2980, 128
      %7544 = vxpose.xlu0.b32.cont [2/16] %v2981, 128
      %7545 = vxpose.xlu0.b32.cont [3/16] %v2982, 128
      %7546 = vxpose.xlu0.b32.cont [4/16] 0.0, 128
      %7547 = vxpose.xlu0.b32.cont [5/16] 0.0, 128
      %7548 = vxpose.xlu0.b32.cont [6/16] 0.0, 128
      %7549 = vxpose.xlu0.b32.cont [7/16] 0.0, 128
      %7550 = vxpose.xlu0.b32.cont [8/16] 0.0, 128
      %7551 = vxpose.xlu0.b32.cont [9/16] 0.0, 128
      %7552 = vxpose.xlu0.b32.cont [10/16] 0.0, 128
      %7553 = vxpose.xlu0.b32.cont [11/16] 0.0, 128
      %7554 = vxpose.xlu0.b32.cont [12/16] 0.0, 128
      %7555 = vxpose.xlu0.b32.cont [13/16] 0.0, 128
      %7556 = vxpose.xlu0.b32.cont [14/16] 0.0, 128
      %7557 = vxpose.xlu0.b32.cont [15/16] 0.0, 128
      %7558 = vxpose.xlu0.b32.end [16/16] 0.0, 128
      %v7559 = vpop.trf.xlu0
      %v7560 = vpop.trf.xlu0
      %v7561 = vpop.trf.xlu0
      %v7562 = vpop.trf.xlu0
      %v7563 = vpop.trf.xlu0
      %v7564 = vpop.trf.xlu0
      %v7565 = vpop.trf.xlu0
      %v7566 = vpop.trf.xlu0
      %v7567 = vpop.trf.xlu0
      %v7568 = vpop.trf.xlu0
      %v7569 = vpop.trf.xlu0
      %v7570 = vpop.trf.xlu0
      %v7571 = vpop.trf.xlu0
      %v7572 = vpop.trf.xlu0
      %v7573 = vpop.trf.xlu0
      %v7574 = vpop.trf.xlu0
      %v7576 = vsel %vm3015, %v7559, 0
      %v7579 = vsel %vm3015, %v7560, 0
      %v7582 = vsel %vm3015, %v7561, 0
      %v7585 = vsel %vm3015, %v7562, 0
      %v7588 = vsel %vm3015, %v7563, 0
      %v7591 = vsel %vm3015, %v7564, 0
      %v7594 = vsel %vm3015, %v7565, 0
      %v7597 = vsel %vm3015, %v7566, 0
      %7599 = vmatpush.msra.mxu0 0.0
      %7600 = vmatpush.msra.mxu0 0.0
      %7601 = vmatpush.msra.mxu0 0.0
      %7602 = vmatpush.msra.mxu0 0.0
      %7603 = vmatpush.msra.mxu0 0.0
      %7604 = vmatpush.msra.mxu0 0.0
      %7605 = vmatpush.msra.mxu0 0.0
      %7606 = vmatpush.msra.mxu0 0.0
      %7607 = vmatpush.msra.mxu0 0.0
      %7608 = vmatpush.msra.mxu0 0.0
      %7609 = vmatpush.msra.mxu0 0.0
      %7610 = vmatpush.msra.mxu0 0.0
      %7611 = vmatpush.msra.mxu0 0.0
      %7612 = vmatpush.msra.mxu0 %v299
      %7613 = vmatpush.msra.mxu0 %v298
      %7614 = vmatpush.msra.mxu0 %v297
      %7615 = vmatmul.f32.gmra.mxu0 %v7576
      %v7616 = vpop.f32.mrf.mxu0
      %v7617 = vadd.f32 0.0, %v7616
      %7618 = vmatmul.f32.gmra.mxu0 %v7579
      %v7619 = vpop.f32.mrf.mxu0
      %v7620 = vadd.f32 0.0, %v7619
      %7621 = vmatmul.f32.gmra.mxu0 %v7582
      %v7622 = vpop.f32.mrf.mxu0
      %v7623 = vadd.f32 0.0, %v7622
      %7624 = vmatmul.f32.gmra.mxu0 %v7585
      %v7625 = vpop.f32.mrf.mxu0
      %v7626 = vadd.f32 0.0, %v7625
      %7627 = vmatmul.f32.gmra.mxu0 %v7588
      %v7628 = vpop.f32.mrf.mxu0
      %v7629 = vadd.f32 0.0, %v7628
      %7630 = vmatmul.f32.gmra.mxu0 %v7591
      %v7631 = vpop.f32.mrf.mxu0
      %v7632 = vadd.f32 0.0, %v7631
      %7633 = vmatmul.f32.gmra.mxu0 %v7594
      %v7634 = vpop.f32.mrf.mxu0
      %v7635 = vadd.f32 0.0, %v7634
      %7636 = vmatmul.f32.gmra.mxu0 %v7597
      %v7637 = vpop.f32.mrf.mxu0
      %v7638 = vadd.f32 0.0, %v7637
      %7639 = vdwg.mxu0
      %v7640 = vmul.f32 %v6162, %v222
      %v7641 = vmul.f32 %v6165, %v223
      %v7642 = vmul.f32 %v6168, %v224
      %v7643 = vmul.f32 %v6171, %v225
      %v7644 = vmul.f32 %v6174, %v226
      %v7645 = vmul.f32 %v6177, %v227
      %v7646 = vmul.f32 %v6180, %v228
      %v7647 = vmul.f32 %v6183, %v229
      %v7648 = vmul.f32 %v6259, %v222
      %v7649 = vmul.f32 %v6262, %v223
      %v7650 = vmul.f32 %v6265, %v224
      %v7651 = vmul.f32 %v6268, %v225
      %v7652 = vmul.f32 %v6271, %v226
      %v7653 = vmul.f32 %v6274, %v227
      %v7654 = vmul.f32 %v6277, %v228
      %v7655 = vmul.f32 %v6280, %v229
      %v7656 = vmul.f32 %v6356, %v222
      %v7657 = vmul.f32 %v6359, %v223
      %v7658 = vmul.f32 %v6362, %v224
      %v7659 = vmul.f32 %v6365, %v225
      %v7660 = vmul.f32 %v6368, %v226
      %v7661 = vmul.f32 %v6371, %v227
      %v7662 = vmul.f32 %v6374, %v228
      %v7663 = vmul.f32 %v6377, %v229
      %v7664 = vmul.f32 %v6453, %v222
      %v7665 = vmul.f32 %v6456, %v223
      %v7666 = vmul.f32 %v6459, %v224
      %v7667 = vmul.f32 %v6462, %v225
      %v7668 = vmul.f32 %v6465, %v226
      %v7669 = vmul.f32 %v6468, %v227
      %v7670 = vmul.f32 %v6471, %v228
      %v7671 = vmul.f32 %v6474, %v229
      %v7672 = vmul.f32 %v6550, %v222
      %v7673 = vmul.f32 %v6553, %v223
      %v7674 = vmul.f32 %v6556, %v224
      %v7675 = vmul.f32 %v6559, %v225
      %v7676 = vmul.f32 %v6562, %v226
      %v7677 = vmul.f32 %v6565, %v227
      %v7678 = vmul.f32 %v6568, %v228
      %v7679 = vmul.f32 %v6571, %v229
      %v7680 = vmul.f32 %v6647, %v222
      %v7681 = vmul.f32 %v6650, %v223
      %v7682 = vmul.f32 %v6653, %v224
      %v7683 = vmul.f32 %v6656, %v225
      %v7684 = vmul.f32 %v6659, %v226
      %v7685 = vmul.f32 %v6662, %v227
      %v7686 = vmul.f32 %v6665, %v228
      %v7687 = vmul.f32 %v6668, %v229
      %v7688 = vmul.f32 %v6744, %v222
      %v7689 = vmul.f32 %v6747, %v223
      %v7690 = vmul.f32 %v6750, %v224
      %v7691 = vmul.f32 %v6753, %v225
      %v7692 = vmul.f32 %v6756, %v226
      %v7693 = vmul.f32 %v6759, %v227
      %v7694 = vmul.f32 %v6762, %v228
      %v7695 = vmul.f32 %v6765, %v229
      %v7696 = vmul.f32 %v6841, %v222
      %v7697 = vmul.f32 %v6844, %v223
      %v7698 = vmul.f32 %v6847, %v224
      %v7699 = vmul.f32 %v6850, %v225
      %v7700 = vmul.f32 %v6853, %v226
      %v7701 = vmul.f32 %v6856, %v227
      %v7702 = vmul.f32 %v6859, %v228
      %v7703 = vmul.f32 %v6862, %v229
      %v7704 = vmul.f32 %v6938, %v222
      %v7705 = vmul.f32 %v6941, %v223
      %v7706 = vmul.f32 %v6944, %v224
      %v7707 = vmul.f32 %v6947, %v225
      %v7708 = vmul.f32 %v6950, %v226
      %v7709 = vmul.f32 %v6953, %v227
      %v7710 = vmul.f32 %v6956, %v228
      %v7711 = vmul.f32 %v6959, %v229
      %v7712 = vmul.f32 %v7035, %v222
      %v7713 = vmul.f32 %v7038, %v223
      %v7714 = vmul.f32 %v7041, %v224
      %v7715 = vmul.f32 %v7044, %v225
      %v7716 = vmul.f32 %v7047, %v226
      %v7717 = vmul.f32 %v7050, %v227
      %v7718 = vmul.f32 %v7053, %v228
      %v7719 = vmul.f32 %v7056, %v229
      %v7720 = vmul.f32 %v7132, %v222
      %v7721 = vmul.f32 %v7135, %v223
      %v7722 = vmul.f32 %v7138, %v224
      %v7723 = vmul.f32 %v7141, %v225
      %v7724 = vmul.f32 %v7144, %v226
      %v7725 = vmul.f32 %v7147, %v227
      %v7726 = vmul.f32 %v7150, %v228
      %v7727 = vmul.f32 %v7153, %v229
      %v7728 = vmul.f32 %v7229, %v222
      %v7729 = vmul.f32 %v7232, %v223
      %v7730 = vmul.f32 %v7235, %v224
      %v7731 = vmul.f32 %v7238, %v225
      %v7732 = vmul.f32 %v7241, %v226
      %v7733 = vmul.f32 %v7244, %v227
      %v7734 = vmul.f32 %v7247, %v228
      %v7735 = vmul.f32 %v7250, %v229
      %v7736 = vmul.f32 %v7326, %v222
      %v7737 = vmul.f32 %v7329, %v223
      %v7738 = vmul.f32 %v7332, %v224
      %v7739 = vmul.f32 %v7335, %v225
      %v7740 = vmul.f32 %v7338, %v226
      %v7741 = vmul.f32 %v7341, %v227
      %v7742 = vmul.f32 %v7344, %v228
      %v7743 = vmul.f32 %v7347, %v229
      %v7744 = vmul.f32 %v7423, %v222
      %v7745 = vmul.f32 %v7426, %v223
      %v7746 = vmul.f32 %v7429, %v224
      %v7747 = vmul.f32 %v7432, %v225
      %v7748 = vmul.f32 %v7435, %v226
      %v7749 = vmul.f32 %v7438, %v227
      %v7750 = vmul.f32 %v7441, %v228
      %v7751 = vmul.f32 %v7444, %v229
      %v7752 = vmul.f32 %v7520, %v222
      %v7753 = vmul.f32 %v7523, %v223
      %v7754 = vmul.f32 %v7526, %v224
      %v7755 = vmul.f32 %v7529, %v225
      %v7756 = vmul.f32 %v7532, %v226
      %v7757 = vmul.f32 %v7535, %v227
      %v7758 = vmul.f32 %v7538, %v228
      %v7759 = vmul.f32 %v7541, %v229
      %v7760 = vmul.f32 %v7617, %v222
      %v7761 = vmul.f32 %v7620, %v223
      %v7762 = vmul.f32 %v7623, %v224
      %v7763 = vmul.f32 %v7626, %v225
      %v7764 = vmul.f32 %v7629, %v226
      %v7765 = vmul.f32 %v7632, %v227
      %v7766 = vmul.f32 %v7635, %v228
      %v7767 = vmul.f32 %v7638, %v229
      %v7768 = vsel %vm511, %v2133, 0.0
      %v7769 = vsel %vm511, %v2134, 0.0
      %v7770 = vadd.f32 %v7768, %v7769
      %v7771 = vsel %vm511, %v2135, 0.0
      %v7772 = vadd.f32 %v7770, %v7771
      %v7773 = vrot.slane %v7772, 4
      %v7774 = vadd.f32 %v7772, %v7773
      %v7775 = vrot.slane %v7774, 2
      %v7776 = vadd.f32 %v7774, %v7775
      %v7777 = vrot.slane %v7776, 1
      %v7778 = vadd.f32 %v7776, %v7777
      %v7779 = vsel %vm511, %v2136, 0.0
      %v7780 = vsel %vm511, %v2137, 0.0
      %v7781 = vadd.f32 %v7779, %v7780
      %v7782 = vsel %vm511, %v2138, 0.0
      %v7783 = vadd.f32 %v7781, %v7782
      %v7784 = vrot.slane %v7783, 4
      %v7785 = vadd.f32 %v7783, %v7784
      %v7786 = vrot.slane %v7785, 2
      %v7787 = vadd.f32 %v7785, %v7786
      %v7788 = vrot.slane %v7787, 1
      %v7789 = vadd.f32 %v7787, %v7788
      %v7790 = vsel %vm511, %v2139, 0.0
      %v7791 = vsel %vm511, %v2140, 0.0
      %v7792 = vadd.f32 %v7790, %v7791
      %v7793 = vsel %vm511, %v2141, 0.0
      %v7794 = vadd.f32 %v7792, %v7793
      %v7795 = vrot.slane %v7794, 4
      %v7796 = vadd.f32 %v7794, %v7795
      %v7797 = vrot.slane %v7796, 2
      %v7798 = vadd.f32 %v7796, %v7797
      %v7799 = vrot.slane %v7798, 1
      %v7800 = vadd.f32 %v7798, %v7799
      %v7801 = vsel %vm511, %v2142, 0.0
      %v7802 = vsel %vm511, %v2143, 0.0
      %v7803 = vadd.f32 %v7801, %v7802
      %v7804 = vsel %vm511, %v2144, 0.0
      %v7805 = vadd.f32 %v7803, %v7804
      %v7806 = vrot.slane %v7805, 4
      %v7807 = vadd.f32 %v7805, %v7806
      %v7808 = vrot.slane %v7807, 2
      %v7809 = vadd.f32 %v7807, %v7808
      %v7810 = vrot.slane %v7809, 1
      %v7811 = vadd.f32 %v7809, %v7810
      %v7812 = vsel %vm511, %v2145, 0.0
      %v7813 = vsel %vm511, %v2146, 0.0
      %v7814 = vadd.f32 %v7812, %v7813
      %v7815 = vsel %vm511, %v2147, 0.0
      %v7816 = vadd.f32 %v7814, %v7815
      %v7817 = vrot.slane %v7816, 4
      %v7818 = vadd.f32 %v7816, %v7817
      %v7819 = vrot.slane %v7818, 2
      %v7820 = vadd.f32 %v7818, %v7819
      %v7821 = vrot.slane %v7820, 1
      %v7822 = vadd.f32 %v7820, %v7821
      %v7823 = vsel %vm511, %v2148, 0.0
      %v7824 = vsel %vm511, %v2149, 0.0
      %v7825 = vadd.f32 %v7823, %v7824
      %v7826 = vsel %vm511, %v2150, 0.0
      %v7827 = vadd.f32 %v7825, %v7826
      %v7828 = vrot.slane %v7827, 4
      %v7829 = vadd.f32 %v7827, %v7828
      %v7830 = vrot.slane %v7829, 2
      %v7831 = vadd.f32 %v7829, %v7830
      %v7832 = vrot.slane %v7831, 1
      %v7833 = vadd.f32 %v7831, %v7832
      %v7834 = vsel %vm511, %v2151, 0.0
      %v7835 = vsel %vm511, %v2152, 0.0
      %v7836 = vadd.f32 %v7834, %v7835
      %v7837 = vsel %vm511, %v2153, 0.0
      %v7838 = vadd.f32 %v7836, %v7837
      %v7839 = vrot.slane %v7838, 4
      %v7840 = vadd.f32 %v7838, %v7839
      %v7841 = vrot.slane %v7840, 2
      %v7842 = vadd.f32 %v7840, %v7841
      %v7843 = vrot.slane %v7842, 1
      %v7844 = vadd.f32 %v7842, %v7843
      %v7845 = vsel %vm511, %v2154, 0.0
      %v7846 = vsel %vm511, %v2155, 0.0
      %v7847 = vadd.f32 %v7845, %v7846
      %v7848 = vsel %vm511, %v2156, 0.0
      %v7849 = vadd.f32 %v7847, %v7848
      %v7850 = vrot.slane %v7849, 4
      %v7851 = vadd.f32 %v7849, %v7850
      %v7852 = vrot.slane %v7851, 2
      %v7853 = vadd.f32 %v7851, %v7852
      %v7854 = vrot.slane %v7853, 1
      %v7855 = vadd.f32 %v7853, %v7854
      %v7856 = vsel %vm511, %v2157, 0.0
      %v7857 = vsel %vm511, %v2158, 0.0
      %v7858 = vadd.f32 %v7856, %v7857
      %v7859 = vsel %vm511, %v2159, 0.0
      %v7860 = vadd.f32 %v7858, %v7859
      %v7861 = vrot.slane %v7860, 4
      %v7862 = vadd.f32 %v7860, %v7861
      %v7863 = vrot.slane %v7862, 2
      %v7864 = vadd.f32 %v7862, %v7863
      %v7865 = vrot.slane %v7864, 1
      %v7866 = vadd.f32 %v7864, %v7865
      %v7867 = vsel %vm511, %v2160, 0.0
      %v7868 = vsel %vm511, %v2161, 0.0
      %v7869 = vadd.f32 %v7867, %v7868
      %v7870 = vsel %vm511, %v2162, 0.0
      %v7871 = vadd.f32 %v7869, %v7870
      %v7872 = vrot.slane %v7871, 4
      %v7873 = vadd.f32 %v7871, %v7872
      %v7874 = vrot.slane %v7873, 2
      %v7875 = vadd.f32 %v7873, %v7874
      %v7876 = vrot.slane %v7875, 1
      %v7877 = vadd.f32 %v7875, %v7876
      %v7878 = vsel %vm511, %v2163, 0.0
      %v7879 = vsel %vm511, %v2164, 0.0
      %v7880 = vadd.f32 %v7878, %v7879
      %v7881 = vsel %vm511, %v2165, 0.0
      %v7882 = vadd.f32 %v7880, %v7881
      %v7883 = vrot.slane %v7882, 4
      %v7884 = vadd.f32 %v7882, %v7883
      %v7885 = vrot.slane %v7884, 2
      %v7886 = vadd.f32 %v7884, %v7885
      %v7887 = vrot.slane %v7886, 1
      %v7888 = vadd.f32 %v7886, %v7887
      %v7889 = vsel %vm511, %v2166, 0.0
      %v7890 = vsel %vm511, %v2167, 0.0
      %v7891 = vadd.f32 %v7889, %v7890
      %v7892 = vsel %vm511, %v2168, 0.0
      %v7893 = vadd.f32 %v7891, %v7892
      %v7894 = vrot.slane %v7893, 4
      %v7895 = vadd.f32 %v7893, %v7894
      %v7896 = vrot.slane %v7895, 2
      %v7897 = vadd.f32 %v7895, %v7896
      %v7898 = vrot.slane %v7897, 1
      %v7899 = vadd.f32 %v7897, %v7898
      %v7900 = vsel %vm511, %v2169, 0.0
      %v7901 = vsel %vm511, %v2170, 0.0
      %v7902 = vadd.f32 %v7900, %v7901
      %v7903 = vsel %vm511, %v2171, 0.0
      %v7904 = vadd.f32 %v7902, %v7903
      %v7905 = vrot.slane %v7904, 4
      %v7906 = vadd.f32 %v7904, %v7905
      %v7907 = vrot.slane %v7906, 2
      %v7908 = vadd.f32 %v7906, %v7907
      %v7909 = vrot.slane %v7908, 1
      %v7910 = vadd.f32 %v7908, %v7909
      %v7911 = vsel %vm511, %v2172, 0.0
      %v7912 = vsel %vm511, %v2173, 0.0
      %v7913 = vadd.f32 %v7911, %v7912
      %v7914 = vsel %vm511, %v2174, 0.0
      %v7915 = vadd.f32 %v7913, %v7914
      %v7916 = vrot.slane %v7915, 4
      %v7917 = vadd.f32 %v7915, %v7916
      %v7918 = vrot.slane %v7917, 2
      %v7919 = vadd.f32 %v7917, %v7918
      %v7920 = vrot.slane %v7919, 1
      %v7921 = vadd.f32 %v7919, %v7920
      %v7922 = vsel %vm511, %v2175, 0.0
      %v7923 = vsel %vm511, %v2176, 0.0
      %v7924 = vadd.f32 %v7922, %v7923
      %v7925 = vsel %vm511, %v2177, 0.0
      %v7926 = vadd.f32 %v7924, %v7925
      %v7927 = vrot.slane %v7926, 4
      %v7928 = vadd.f32 %v7926, %v7927
      %v7929 = vrot.slane %v7928, 2
      %v7930 = vadd.f32 %v7928, %v7929
      %v7931 = vrot.slane %v7930, 1
      %v7932 = vadd.f32 %v7930, %v7931
      %v7933 = vsel %vm511, %v2178, 0.0
      %v7934 = vsel %vm511, %v2179, 0.0
      %v7935 = vadd.f32 %v7933, %v7934
      %v7936 = vsel %vm511, %v2180, 0.0
      %v7937 = vadd.f32 %v7935, %v7936
      %v7938 = vrot.slane %v7937, 4
      %v7939 = vadd.f32 %v7937, %v7938
      %v7940 = vrot.slane %v7939, 2
      %v7941 = vadd.f32 %v7939, %v7940
      %v7942 = vrot.slane %v7941, 1
      %v7943 = vadd.f32 %v7941, %v7942
      %v7944 = vsel %vm511, %v2534, 0.0
      %v7945 = vsel %vm511, %v2535, 0.0
      %v7946 = vadd.f32 %v7944, %v7945
      %v7947 = vsel %vm511, %v2536, 0.0
      %v7948 = vadd.f32 %v7946, %v7947
      %v7949 = vrot.slane %v7948, 4
      %v7950 = vadd.f32 %v7948, %v7949
      %v7951 = vrot.slane %v7950, 2
      %v7952 = vadd.f32 %v7950, %v7951
      %v7953 = vrot.slane %v7952, 1
      %v7954 = vadd.f32 %v7952, %v7953
      %v7955 = vsel %vm511, %v2537, 0.0
      %v7956 = vsel %vm511, %v2538, 0.0
      %v7957 = vadd.f32 %v7955, %v7956
      %v7958 = vsel %vm511, %v2539, 0.0
      %v7959 = vadd.f32 %v7957, %v7958
      %v7960 = vrot.slane %v7959, 4
      %v7961 = vadd.f32 %v7959, %v7960
      %v7962 = vrot.slane %v7961, 2
      %v7963 = vadd.f32 %v7961, %v7962
      %v7964 = vrot.slane %v7963, 1
      %v7965 = vadd.f32 %v7963, %v7964
      %v7966 = vsel %vm511, %v2540, 0.0
      %v7967 = vsel %vm511, %v2541, 0.0
      %v7968 = vadd.f32 %v7966, %v7967
      %v7969 = vsel %vm511, %v2542, 0.0
      %v7970 = vadd.f32 %v7968, %v7969
      %v7971 = vrot.slane %v7970, 4
      %v7972 = vadd.f32 %v7970, %v7971
      %v7973 = vrot.slane %v7972, 2
      %v7974 = vadd.f32 %v7972, %v7973
      %v7975 = vrot.slane %v7974, 1
      %v7976 = vadd.f32 %v7974, %v7975
      %v7977 = vsel %vm511, %v2543, 0.0
      %v7978 = vsel %vm511, %v2544, 0.0
      %v7979 = vadd.f32 %v7977, %v7978
      %v7980 = vsel %vm511, %v2545, 0.0
      %v7981 = vadd.f32 %v7979, %v7980
      %v7982 = vrot.slane %v7981, 4
      %v7983 = vadd.f32 %v7981, %v7982
      %v7984 = vrot.slane %v7983, 2
      %v7985 = vadd.f32 %v7983, %v7984
      %v7986 = vrot.slane %v7985, 1
      %v7987 = vadd.f32 %v7985, %v7986
      %v7988 = vsel %vm511, %v2546, 0.0
      %v7989 = vsel %vm511, %v2547, 0.0
      %v7990 = vadd.f32 %v7988, %v7989
      %v7991 = vsel %vm511, %v2548, 0.0
      %v7992 = vadd.f32 %v7990, %v7991
      %v7993 = vrot.slane %v7992, 4
      %v7994 = vadd.f32 %v7992, %v7993
      %v7995 = vrot.slane %v7994, 2
      %v7996 = vadd.f32 %v7994, %v7995
      %v7997 = vrot.slane %v7996, 1
      %v7998 = vadd.f32 %v7996, %v7997
      %v7999 = vsel %vm511, %v2549, 0.0
      %v8000 = vsel %vm511, %v2550, 0.0
      %v8001 = vadd.f32 %v7999, %v8000
      %v8002 = vsel %vm511, %v2551, 0.0
      %v8003 = vadd.f32 %v8001, %v8002
      %v8004 = vrot.slane %v8003, 4
      %v8005 = vadd.f32 %v8003, %v8004
      %v8006 = vrot.slane %v8005, 2
      %v8007 = vadd.f32 %v8005, %v8006
      %v8008 = vrot.slane %v8007, 1
      %v8009 = vadd.f32 %v8007, %v8008
      %v8010 = vsel %vm511, %v2552, 0.0
      %v8011 = vsel %vm511, %v2553, 0.0
      %v8012 = vadd.f32 %v8010, %v8011
      %v8013 = vsel %vm511, %v2554, 0.0
      %v8014 = vadd.f32 %v8012, %v8013
      %v8015 = vrot.slane %v8014, 4
      %v8016 = vadd.f32 %v8014, %v8015
      %v8017 = vrot.slane %v8016, 2
      %v8018 = vadd.f32 %v8016, %v8017
      %v8019 = vrot.slane %v8018, 1
      %v8020 = vadd.f32 %v8018, %v8019
      %v8021 = vsel %vm511, %v2555, 0.0
      %v8022 = vsel %vm511, %v2556, 0.0
      %v8023 = vadd.f32 %v8021, %v8022
      %v8024 = vsel %vm511, %v2557, 0.0
      %v8025 = vadd.f32 %v8023, %v8024
      %v8026 = vrot.slane %v8025, 4
      %v8027 = vadd.f32 %v8025, %v8026
      %v8028 = vrot.slane %v8027, 2
      %v8029 = vadd.f32 %v8027, %v8028
      %v8030 = vrot.slane %v8029, 1
      %v8031 = vadd.f32 %v8029, %v8030
      %v8032 = vsel %vm511, %v2558, 0.0
      %v8033 = vsel %vm511, %v2559, 0.0
      %v8034 = vadd.f32 %v8032, %v8033
      %v8035 = vsel %vm511, %v2560, 0.0
      %v8036 = vadd.f32 %v8034, %v8035
      %v8037 = vrot.slane %v8036, 4
      %v8038 = vadd.f32 %v8036, %v8037
      %v8039 = vrot.slane %v8038, 2
      %v8040 = vadd.f32 %v8038, %v8039
      %v8041 = vrot.slane %v8040, 1
      %v8042 = vadd.f32 %v8040, %v8041
      %v8043 = vsel %vm511, %v2561, 0.0
      %v8044 = vsel %vm511, %v2562, 0.0
      %v8045 = vadd.f32 %v8043, %v8044
      %v8046 = vsel %vm511, %v2563, 0.0
      %v8047 = vadd.f32 %v8045, %v8046
      %v8048 = vrot.slane %v8047, 4
      %v8049 = vadd.f32 %v8047, %v8048
      %v8050 = vrot.slane %v8049, 2
      %v8051 = vadd.f32 %v8049, %v8050
      %v8052 = vrot.slane %v8051, 1
      %v8053 = vadd.f32 %v8051, %v8052
      %v8054 = vsel %vm511, %v2564, 0.0
      %v8055 = vsel %vm511, %v2565, 0.0
      %v8056 = vadd.f32 %v8054, %v8055
      %v8057 = vsel %vm511, %v2566, 0.0
      %v8058 = vadd.f32 %v8056, %v8057
      %v8059 = vrot.slane %v8058, 4
      %v8060 = vadd.f32 %v8058, %v8059
      %v8061 = vrot.slane %v8060, 2
      %v8062 = vadd.f32 %v8060, %v8061
      %v8063 = vrot.slane %v8062, 1
      %v8064 = vadd.f32 %v8062, %v8063
      %v8065 = vsel %vm511, %v2567, 0.0
      %v8066 = vsel %vm511, %v2568, 0.0
      %v8067 = vadd.f32 %v8065, %v8066
      %v8068 = vsel %vm511, %v2569, 0.0
      %v8069 = vadd.f32 %v8067, %v8068
      %v8070 = vrot.slane %v8069, 4
      %v8071 = vadd.f32 %v8069, %v8070
      %v8072 = vrot.slane %v8071, 2
      %v8073 = vadd.f32 %v8071, %v8072
      %v8074 = vrot.slane %v8073, 1
      %v8075 = vadd.f32 %v8073, %v8074
      %v8076 = vsel %vm511, %v2570, 0.0
      %v8077 = vsel %vm511, %v2571, 0.0
      %v8078 = vadd.f32 %v8076, %v8077
      %v8079 = vsel %vm511, %v2572, 0.0
      %v8080 = vadd.f32 %v8078, %v8079
      %v8081 = vrot.slane %v8080, 4
      %v8082 = vadd.f32 %v8080, %v8081
      %v8083 = vrot.slane %v8082, 2
      %v8084 = vadd.f32 %v8082, %v8083
      %v8085 = vrot.slane %v8084, 1
      %v8086 = vadd.f32 %v8084, %v8085
      %v8087 = vsel %vm511, %v2573, 0.0
      %v8088 = vsel %vm511, %v2574, 0.0
      %v8089 = vadd.f32 %v8087, %v8088
      %v8090 = vsel %vm511, %v2575, 0.0
      %v8091 = vadd.f32 %v8089, %v8090
      %v8092 = vrot.slane %v8091, 4
      %v8093 = vadd.f32 %v8091, %v8092
      %v8094 = vrot.slane %v8093, 2
      %v8095 = vadd.f32 %v8093, %v8094
      %v8096 = vrot.slane %v8095, 1
      %v8097 = vadd.f32 %v8095, %v8096
      %v8098 = vsel %vm511, %v2576, 0.0
      %v8099 = vsel %vm511, %v2577, 0.0
      %v8100 = vadd.f32 %v8098, %v8099
      %v8101 = vsel %vm511, %v2578, 0.0
      %v8102 = vadd.f32 %v8100, %v8101
      %v8103 = vrot.slane %v8102, 4
      %v8104 = vadd.f32 %v8102, %v8103
      %v8105 = vrot.slane %v8104, 2
      %v8106 = vadd.f32 %v8104, %v8105
      %v8107 = vrot.slane %v8106, 1
      %v8108 = vadd.f32 %v8106, %v8107
      %v8109 = vsel %vm511, %v2579, 0.0
      %v8110 = vsel %vm511, %v2580, 0.0
      %v8111 = vadd.f32 %v8109, %v8110
      %v8112 = vsel %vm511, %v2581, 0.0
      %v8113 = vadd.f32 %v8111, %v8112
      %v8114 = vrot.slane %v8113, 4
      %v8115 = vadd.f32 %v8113, %v8114
      %v8116 = vrot.slane %v8115, 2
      %v8117 = vadd.f32 %v8115, %v8116
      %v8118 = vrot.slane %v8117, 1
      %v8119 = vadd.f32 %v8117, %v8118
      %v8120 = vsel %vm511, %v2935, 0.0
      %v8121 = vsel %vm511, %v2936, 0.0
      %v8122 = vadd.f32 %v8120, %v8121
      %v8123 = vsel %vm511, %v2937, 0.0
      %v8124 = vadd.f32 %v8122, %v8123
      %v8125 = vrot.slane %v8124, 4
      %v8126 = vadd.f32 %v8124, %v8125
      %v8127 = vrot.slane %v8126, 2
      %v8128 = vadd.f32 %v8126, %v8127
      %v8129 = vrot.slane %v8128, 1
      %v8130 = vadd.f32 %v8128, %v8129
      %v8131 = vsel %vm511, %v2938, 0.0
      %v8132 = vsel %vm511, %v2939, 0.0
      %v8133 = vadd.f32 %v8131, %v8132
      %v8134 = vsel %vm511, %v2940, 0.0
      %v8135 = vadd.f32 %v8133, %v8134
      %v8136 = vrot.slane %v8135, 4
      %v8137 = vadd.f32 %v8135, %v8136
      %v8138 = vrot.slane %v8137, 2
      %v8139 = vadd.f32 %v8137, %v8138
      %v8140 = vrot.slane %v8139, 1
      %v8141 = vadd.f32 %v8139, %v8140
      %v8142 = vsel %vm511, %v2941, 0.0
      %v8143 = vsel %vm511, %v2942, 0.0
      %v8144 = vadd.f32 %v8142, %v8143
      %v8145 = vsel %vm511, %v2943, 0.0
      %v8146 = vadd.f32 %v8144, %v8145
      %v8147 = vrot.slane %v8146, 4
      %v8148 = vadd.f32 %v8146, %v8147
      %v8149 = vrot.slane %v8148, 2
      %v8150 = vadd.f32 %v8148, %v8149
      %v8151 = vrot.slane %v8150, 1
      %v8152 = vadd.f32 %v8150, %v8151
      %v8153 = vsel %vm511, %v2944, 0.0
      %v8154 = vsel %vm511, %v2945, 0.0
      %v8155 = vadd.f32 %v8153, %v8154
      %v8156 = vsel %vm511, %v2946, 0.0
      %v8157 = vadd.f32 %v8155, %v8156
      %v8158 = vrot.slane %v8157, 4
      %v8159 = vadd.f32 %v8157, %v8158
      %v8160 = vrot.slane %v8159, 2
      %v8161 = vadd.f32 %v8159, %v8160
      %v8162 = vrot.slane %v8161, 1
      %v8163 = vadd.f32 %v8161, %v8162
      %v8164 = vsel %vm511, %v2947, 0.0
      %v8165 = vsel %vm511, %v2948, 0.0
      %v8166 = vadd.f32 %v8164, %v8165
      %v8167 = vsel %vm511, %v2949, 0.0
      %v8168 = vadd.f32 %v8166, %v8167
      %v8169 = vrot.slane %v8168, 4
      %v8170 = vadd.f32 %v8168, %v8169
      %v8171 = vrot.slane %v8170, 2
      %v8172 = vadd.f32 %v8170, %v8171
      %v8173 = vrot.slane %v8172, 1
      %v8174 = vadd.f32 %v8172, %v8173
      %v8175 = vsel %vm511, %v2950, 0.0
      %v8176 = vsel %vm511, %v2951, 0.0
      %v8177 = vadd.f32 %v8175, %v8176
      %v8178 = vsel %vm511, %v2952, 0.0
      %v8179 = vadd.f32 %v8177, %v8178
      %v8180 = vrot.slane %v8179, 4
      %v8181 = vadd.f32 %v8179, %v8180
      %v8182 = vrot.slane %v8181, 2
      %v8183 = vadd.f32 %v8181, %v8182
      %v8184 = vrot.slane %v8183, 1
      %v8185 = vadd.f32 %v8183, %v8184
      %v8186 = vsel %vm511, %v2953, 0.0
      %v8187 = vsel %vm511, %v2954, 0.0
      %v8188 = vadd.f32 %v8186, %v8187
      %v8189 = vsel %vm511, %v2955, 0.0
      %v8190 = vadd.f32 %v8188, %v8189
      %v8191 = vrot.slane %v8190, 4
      %v8192 = vadd.f32 %v8190, %v8191
      %v8193 = vrot.slane %v8192, 2
      %v8194 = vadd.f32 %v8192, %v8193
      %v8195 = vrot.slane %v8194, 1
      %v8196 = vadd.f32 %v8194, %v8195
      %v8197 = vsel %vm511, %v2956, 0.0
      %v8198 = vsel %vm511, %v2957, 0.0
      %v8199 = vadd.f32 %v8197, %v8198
      %v8200 = vsel %vm511, %v2958, 0.0
      %v8201 = vadd.f32 %v8199, %v8200
      %v8202 = vrot.slane %v8201, 4
      %v8203 = vadd.f32 %v8201, %v8202
      %v8204 = vrot.slane %v8203, 2
      %v8205 = vadd.f32 %v8203, %v8204
      %v8206 = vrot.slane %v8205, 1
      %v8207 = vadd.f32 %v8205, %v8206
      %v8208 = vsel %vm511, %v2959, 0.0
      %v8209 = vsel %vm511, %v2960, 0.0
      %v8210 = vadd.f32 %v8208, %v8209
      %v8211 = vsel %vm511, %v2961, 0.0
      %v8212 = vadd.f32 %v8210, %v8211
      %v8213 = vrot.slane %v8212, 4
      %v8214 = vadd.f32 %v8212, %v8213
      %v8215 = vrot.slane %v8214, 2
      %v8216 = vadd.f32 %v8214, %v8215
      %v8217 = vrot.slane %v8216, 1
      %v8218 = vadd.f32 %v8216, %v8217
      %v8219 = vsel %vm511, %v2962, 0.0
      %v8220 = vsel %vm511, %v2963, 0.0
      %v8221 = vadd.f32 %v8219, %v8220
      %v8222 = vsel %vm511, %v2964, 0.0
      %v8223 = vadd.f32 %v8221, %v8222
      %v8224 = vrot.slane %v8223, 4
      %v8225 = vadd.f32 %v8223, %v8224
      %v8226 = vrot.slane %v8225, 2
      %v8227 = vadd.f32 %v8225, %v8226
      %v8228 = vrot.slane %v8227, 1
      %v8229 = vadd.f32 %v8227, %v8228
      %v8230 = vsel %vm511, %v2965, 0.0
      %v8231 = vsel %vm511, %v2966, 0.0
      %v8232 = vadd.f32 %v8230, %v8231
      %v8233 = vsel %vm511, %v2967, 0.0
      %v8234 = vadd.f32 %v8232, %v8233
      %v8235 = vrot.slane %v8234, 4
      %v8236 = vadd.f32 %v8234, %v8235
      %v8237 = vrot.slane %v8236, 2
      %v8238 = vadd.f32 %v8236, %v8237
      %v8239 = vrot.slane %v8238, 1
      %v8240 = vadd.f32 %v8238, %v8239
      %v8241 = vsel %vm511, %v2968, 0.0
      %v8242 = vsel %vm511, %v2969, 0.0
      %v8243 = vadd.f32 %v8241, %v8242
      %v8244 = vsel %vm511, %v2970, 0.0
      %v8245 = vadd.f32 %v8243, %v8244
      %v8246 = vrot.slane %v8245, 4
      %v8247 = vadd.f32 %v8245, %v8246
      %v8248 = vrot.slane %v8247, 2
      %v8249 = vadd.f32 %v8247, %v8248
      %v8250 = vrot.slane %v8249, 1
      %v8251 = vadd.f32 %v8249, %v8250
      %v8252 = vsel %vm511, %v2971, 0.0
      %v8253 = vsel %vm511, %v2972, 0.0
      %v8254 = vadd.f32 %v8252, %v8253
      %v8255 = vsel %vm511, %v2973, 0.0
      %v8256 = vadd.f32 %v8254, %v8255
      %v8257 = vrot.slane %v8256, 4
      %v8258 = vadd.f32 %v8256, %v8257
      %v8259 = vrot.slane %v8258, 2
      %v8260 = vadd.f32 %v8258, %v8259
      %v8261 = vrot.slane %v8260, 1
      %v8262 = vadd.f32 %v8260, %v8261
      %v8263 = vsel %vm511, %v2974, 0.0
      %v8264 = vsel %vm511, %v2975, 0.0
      %v8265 = vadd.f32 %v8263, %v8264
      %v8266 = vsel %vm511, %v2976, 0.0
      %v8267 = vadd.f32 %v8265, %v8266
      %v8268 = vrot.slane %v8267, 4
      %v8269 = vadd.f32 %v8267, %v8268
      %v8270 = vrot.slane %v8269, 2
      %v8271 = vadd.f32 %v8269, %v8270
      %v8272 = vrot.slane %v8271, 1
      %v8273 = vadd.f32 %v8271, %v8272
      %v8274 = vsel %vm511, %v2977, 0.0
      %v8275 = vsel %vm511, %v2978, 0.0
      %v8276 = vadd.f32 %v8274, %v8275
      %v8277 = vsel %vm511, %v2979, 0.0
      %v8278 = vadd.f32 %v8276, %v8277
      %v8279 = vrot.slane %v8278, 4
      %v8280 = vadd.f32 %v8278, %v8279
      %v8281 = vrot.slane %v8280, 2
      %v8282 = vadd.f32 %v8280, %v8281
      %v8283 = vrot.slane %v8282, 1
      %v8284 = vadd.f32 %v8282, %v8283
      %v8285 = vsel %vm511, %v2980, 0.0
      %v8286 = vsel %vm511, %v2981, 0.0
      %v8287 = vadd.f32 %v8285, %v8286
      %v8288 = vsel %vm511, %v2982, 0.0
      %v8289 = vadd.f32 %v8287, %v8288
      %v8290 = vrot.slane %v8289, 4
      %v8291 = vadd.f32 %v8289, %v8290
      %v8292 = vrot.slane %v8291, 2
      %v8293 = vadd.f32 %v8291, %v8292
      %v8294 = vrot.slane %v8293, 1
      %v8295 = vadd.f32 %v8293, %v8294
      %s8297 = vtos %v251
      %v8298 = vstv %s8297
      %v8300 = vmul.f32 %v8298, %v7640
      %v8301 = vmul.f32 %v8298, %v7641
      %v8302 = vmul.f32 %v8298, %v7642
      %v8303 = vmul.f32 %v8298, %v7643
      %v8304 = vmul.f32 %v8298, %v7644
      %v8305 = vmul.f32 %v8298, %v7645
      %v8306 = vmul.f32 %v8298, %v7646
      %v8307 = vmul.f32 %v8298, %v7647
      %v8308 = vmul.f32 %v8298, %v7648
      %v8309 = vmul.f32 %v8298, %v7649
      %v8310 = vmul.f32 %v8298, %v7650
      %v8311 = vmul.f32 %v8298, %v7651
      %v8312 = vmul.f32 %v8298, %v7652
      %v8313 = vmul.f32 %v8298, %v7653
      %v8314 = vmul.f32 %v8298, %v7654
      %v8315 = vmul.f32 %v8298, %v7655
      %v8316 = vmul.f32 %v8298, %v7656
      %v8317 = vmul.f32 %v8298, %v7657
      %v8318 = vmul.f32 %v8298, %v7658
      %v8319 = vmul.f32 %v8298, %v7659
      %v8320 = vmul.f32 %v8298, %v7660
      %v8321 = vmul.f32 %v8298, %v7661
      %v8322 = vmul.f32 %v8298, %v7662
      %v8323 = vmul.f32 %v8298, %v7663
      %v8324 = vmul.f32 %v8298, %v7664
      %v8325 = vmul.f32 %v8298, %v7665
      %v8326 = vmul.f32 %v8298, %v7666
      %v8327 = vmul.f32 %v8298, %v7667
      %v8328 = vmul.f32 %v8298, %v7668
      %v8329 = vmul.f32 %v8298, %v7669
      %v8330 = vmul.f32 %v8298, %v7670
      %v8331 = vmul.f32 %v8298, %v7671
      %v8332 = vmul.f32 %v8298, %v7672
      %v8333 = vmul.f32 %v8298, %v7673
      %v8334 = vmul.f32 %v8298, %v7674
      %v8335 = vmul.f32 %v8298, %v7675
      %v8336 = vmul.f32 %v8298, %v7676
      %v8337 = vmul.f32 %v8298, %v7677
      %v8338 = vmul.f32 %v8298, %v7678
      %v8339 = vmul.f32 %v8298, %v7679
      %v8340 = vmul.f32 %v8298, %v7680
      %v8341 = vmul.f32 %v8298, %v7681
      %v8342 = vmul.f32 %v8298, %v7682
      %v8343 = vmul.f32 %v8298, %v7683
      %v8344 = vmul.f32 %v8298, %v7684
      %v8345 = vmul.f32 %v8298, %v7685
      %v8346 = vmul.f32 %v8298, %v7686
      %v8347 = vmul.f32 %v8298, %v7687
      %v8348 = vmul.f32 %v8298, %v7688
      %v8349 = vmul.f32 %v8298, %v7689
      %v8350 = vmul.f32 %v8298, %v7690
      %v8351 = vmul.f32 %v8298, %v7691
      %v8352 = vmul.f32 %v8298, %v7692
      %v8353 = vmul.f32 %v8298, %v7693
      %v8354 = vmul.f32 %v8298, %v7694
      %v8355 = vmul.f32 %v8298, %v7695
      %v8356 = vmul.f32 %v8298, %v7696
      %v8357 = vmul.f32 %v8298, %v7697
      %v8358 = vmul.f32 %v8298, %v7698
      %v8359 = vmul.f32 %v8298, %v7699
      %v8360 = vmul.f32 %v8298, %v7700
      %v8361 = vmul.f32 %v8298, %v7701
      %v8362 = vmul.f32 %v8298, %v7702
      %v8363 = vmul.f32 %v8298, %v7703
      %v8364 = vmul.f32 %v8298, %v7704
      %v8365 = vmul.f32 %v8298, %v7705
      %v8366 = vmul.f32 %v8298, %v7706
      %v8367 = vmul.f32 %v8298, %v7707
      %v8368 = vmul.f32 %v8298, %v7708
      %v8369 = vmul.f32 %v8298, %v7709
      %v8370 = vmul.f32 %v8298, %v7710
      %v8371 = vmul.f32 %v8298, %v7711
      %v8372 = vmul.f32 %v8298, %v7712
      %v8373 = vmul.f32 %v8298, %v7713
      %v8374 = vmul.f32 %v8298, %v7714
      %v8375 = vmul.f32 %v8298, %v7715
      %v8376 = vmul.f32 %v8298, %v7716
      %v8377 = vmul.f32 %v8298, %v7717
      %v8378 = vmul.f32 %v8298, %v7718
      %v8379 = vmul.f32 %v8298, %v7719
      %v8380 = vmul.f32 %v8298, %v7720
      %v8381 = vmul.f32 %v8298, %v7721
      %v8382 = vmul.f32 %v8298, %v7722
      %v8383 = vmul.f32 %v8298, %v7723
      %v8384 = vmul.f32 %v8298, %v7724
      %v8385 = vmul.f32 %v8298, %v7725
      %v8386 = vmul.f32 %v8298, %v7726
      %v8387 = vmul.f32 %v8298, %v7727
      %v8388 = vmul.f32 %v8298, %v7728
      %v8389 = vmul.f32 %v8298, %v7729
      %v8390 = vmul.f32 %v8298, %v7730
      %v8391 = vmul.f32 %v8298, %v7731
      %v8392 = vmul.f32 %v8298, %v7732
      %v8393 = vmul.f32 %v8298, %v7733
      %v8394 = vmul.f32 %v8298, %v7734
      %v8395 = vmul.f32 %v8298, %v7735
      %v8396 = vmul.f32 %v8298, %v7736
      %v8397 = vmul.f32 %v8298, %v7737
      %v8398 = vmul.f32 %v8298, %v7738
      %v8399 = vmul.f32 %v8298, %v7739
      %v8400 = vmul.f32 %v8298, %v7740
      %v8401 = vmul.f32 %v8298, %v7741
      %v8402 = vmul.f32 %v8298, %v7742
      %v8403 = vmul.f32 %v8298, %v7743
      %v8404 = vmul.f32 %v8298, %v7744
      %v8405 = vmul.f32 %v8298, %v7745
      %v8406 = vmul.f32 %v8298, %v7746
      %v8407 = vmul.f32 %v8298, %v7747
      %v8408 = vmul.f32 %v8298, %v7748
      %v8409 = vmul.f32 %v8298, %v7749
      %v8410 = vmul.f32 %v8298, %v7750
      %v8411 = vmul.f32 %v8298, %v7751
      %v8412 = vmul.f32 %v8298, %v7752
      %v8413 = vmul.f32 %v8298, %v7753
      %v8414 = vmul.f32 %v8298, %v7754
      %v8415 = vmul.f32 %v8298, %v7755
      %v8416 = vmul.f32 %v8298, %v7756
      %v8417 = vmul.f32 %v8298, %v7757
      %v8418 = vmul.f32 %v8298, %v7758
      %v8419 = vmul.f32 %v8298, %v7759
      %v8420 = vmul.f32 %v8298, %v7760
      %v8421 = vmul.f32 %v8298, %v7761
      %v8422 = vmul.f32 %v8298, %v7762
      %v8423 = vmul.f32 %v8298, %v7763
      %v8424 = vmul.f32 %v8298, %v7764
      %v8425 = vmul.f32 %v8298, %v7765
      %v8426 = vmul.f32 %v8298, %v7766
      %v8427 = vmul.f32 %v8298, %v7767
      %v8428 = vadd.f32 %v214, %v8300
      %v8429 = vadd.f32 %v215, %v8301
      %v8430 = vadd.f32 %v216, %v8302
      %v8431 = vadd.f32 %v217, %v8303
      %v8432 = vadd.f32 %v218, %v8304
      %v8433 = vadd.f32 %v219, %v8305
      %v8434 = vadd.f32 %v220, %v8306
      %v8435 = vadd.f32 %v221, %v8307
      %v8436 = vadd.f32 %v214, %v8308
      %v8437 = vadd.f32 %v215, %v8309
      %v8438 = vadd.f32 %v216, %v8310
      %v8439 = vadd.f32 %v217, %v8311
      %v8440 = vadd.f32 %v218, %v8312
      %v8441 = vadd.f32 %v219, %v8313
      %v8442 = vadd.f32 %v220, %v8314
      %v8443 = vadd.f32 %v221, %v8315
      %v8444 = vadd.f32 %v214, %v8316
      %v8445 = vadd.f32 %v215, %v8317
      %v8446 = vadd.f32 %v216, %v8318
      %v8447 = vadd.f32 %v217, %v8319
      %v8448 = vadd.f32 %v218, %v8320
      %v8449 = vadd.f32 %v219, %v8321
      %v8450 = vadd.f32 %v220, %v8322
      %v8451 = vadd.f32 %v221, %v8323
      %v8452 = vadd.f32 %v214, %v8324
      %v8453 = vadd.f32 %v215, %v8325
      %v8454 = vadd.f32 %v216, %v8326
      %v8455 = vadd.f32 %v217, %v8327
      %v8456 = vadd.f32 %v218, %v8328
      %v8457 = vadd.f32 %v219, %v8329
      %v8458 = vadd.f32 %v220, %v8330
      %v8459 = vadd.f32 %v221, %v8331
      %v8460 = vadd.f32 %v214, %v8332
      %v8461 = vadd.f32 %v215, %v8333
      %v8462 = vadd.f32 %v216, %v8334
      %v8463 = vadd.f32 %v217, %v8335
      %v8464 = vadd.f32 %v218, %v8336
      %v8465 = vadd.f32 %v219, %v8337
      %v8466 = vadd.f32 %v220, %v8338
      %v8467 = vadd.f32 %v221, %v8339
      %v8468 = vadd.f32 %v214, %v8340
      %v8469 = vadd.f32 %v215, %v8341
      %v8470 = vadd.f32 %v216, %v8342
      %v8471 = vadd.f32 %v217, %v8343
      %v8472 = vadd.f32 %v218, %v8344
      %v8473 = vadd.f32 %v219, %v8345
      %v8474 = vadd.f32 %v220, %v8346
      %v8475 = vadd.f32 %v221, %v8347
      %v8476 = vadd.f32 %v214, %v8348
      %v8477 = vadd.f32 %v215, %v8349
      %v8478 = vadd.f32 %v216, %v8350
      %v8479 = vadd.f32 %v217, %v8351
      %v8480 = vadd.f32 %v218, %v8352
      %v8481 = vadd.f32 %v219, %v8353
      %v8482 = vadd.f32 %v220, %v8354
      %v8483 = vadd.f32 %v221, %v8355
      %v8484 = vadd.f32 %v214, %v8356
      %v8485 = vadd.f32 %v215, %v8357
      %v8486 = vadd.f32 %v216, %v8358
      %v8487 = vadd.f32 %v217, %v8359
      %v8488 = vadd.f32 %v218, %v8360
      %v8489 = vadd.f32 %v219, %v8361
      %v8490 = vadd.f32 %v220, %v8362
      %v8491 = vadd.f32 %v221, %v8363
      %v8492 = vadd.f32 %v214, %v8364
      %v8493 = vadd.f32 %v215, %v8365
      %v8494 = vadd.f32 %v216, %v8366
      %v8495 = vadd.f32 %v217, %v8367
      %v8496 = vadd.f32 %v218, %v8368
      %v8497 = vadd.f32 %v219, %v8369
      %v8498 = vadd.f32 %v220, %v8370
      %v8499 = vadd.f32 %v221, %v8371
      %v8500 = vadd.f32 %v214, %v8372
      %v8501 = vadd.f32 %v215, %v8373
      %v8502 = vadd.f32 %v216, %v8374
      %v8503 = vadd.f32 %v217, %v8375
      %v8504 = vadd.f32 %v218, %v8376
      %v8505 = vadd.f32 %v219, %v8377
      %v8506 = vadd.f32 %v220, %v8378
      %v8507 = vadd.f32 %v221, %v8379
      %v8508 = vadd.f32 %v214, %v8380
      %v8509 = vadd.f32 %v215, %v8381
      %v8510 = vadd.f32 %v216, %v8382
      %v8511 = vadd.f32 %v217, %v8383
      %v8512 = vadd.f32 %v218, %v8384
      %v8513 = vadd.f32 %v219, %v8385
      %v8514 = vadd.f32 %v220, %v8386
      %v8515 = vadd.f32 %v221, %v8387
      %v8516 = vadd.f32 %v214, %v8388
      %v8517 = vadd.f32 %v215, %v8389
      %v8518 = vadd.f32 %v216, %v8390
      %v8519 = vadd.f32 %v217, %v8391
      %v8520 = vadd.f32 %v218, %v8392
      %v8521 = vadd.f32 %v219, %v8393
      %v8522 = vadd.f32 %v220, %v8394
      %v8523 = vadd.f32 %v221, %v8395
      %v8524 = vadd.f32 %v214, %v8396
      %v8525 = vadd.f32 %v215, %v8397
      %v8526 = vadd.f32 %v216, %v8398
      %v8527 = vadd.f32 %v217, %v8399
      %v8528 = vadd.f32 %v218, %v8400
      %v8529 = vadd.f32 %v219, %v8401
      %v8530 = vadd.f32 %v220, %v8402
      %v8531 = vadd.f32 %v221, %v8403
      %v8532 = vadd.f32 %v214, %v8404
      %v8533 = vadd.f32 %v215, %v8405
      %v8534 = vadd.f32 %v216, %v8406
      %v8535 = vadd.f32 %v217, %v8407
      %v8536 = vadd.f32 %v218, %v8408
      %v8537 = vadd.f32 %v219, %v8409
      %v8538 = vadd.f32 %v220, %v8410
      %v8539 = vadd.f32 %v221, %v8411
      %v8540 = vadd.f32 %v214, %v8412
      %v8541 = vadd.f32 %v215, %v8413
      %v8542 = vadd.f32 %v216, %v8414
      %v8543 = vadd.f32 %v217, %v8415
      %v8544 = vadd.f32 %v218, %v8416
      %v8545 = vadd.f32 %v219, %v8417
      %v8546 = vadd.f32 %v220, %v8418
      %v8547 = vadd.f32 %v221, %v8419
      %v8548 = vadd.f32 %v214, %v8420
      %v8549 = vadd.f32 %v215, %v8421
      %v8550 = vadd.f32 %v216, %v8422
      %v8551 = vadd.f32 %v217, %v8423
      %v8552 = vadd.f32 %v218, %v8424
      %v8553 = vadd.f32 %v219, %v8425
      %v8554 = vadd.f32 %v220, %v8426
      %v8555 = vadd.f32 %v221, %v8427
      %v8556 = vmul.f32 %v8298, %v4610
      %v8557 = vmul.f32 %v8298, %v4613
      %v8558 = vmul.f32 %v8298, %v4616
      %v8559 = vmul.f32 %v8298, %v4619
      %v8560 = vmul.f32 %v8298, %v4622
      %v8561 = vmul.f32 %v8298, %v4625
      %v8562 = vmul.f32 %v8298, %v4628
      %v8563 = vmul.f32 %v8298, %v4631
      %v8564 = vmul.f32 %v8298, %v4707
      %v8565 = vmul.f32 %v8298, %v4710
      %v8566 = vmul.f32 %v8298, %v4713
      %v8567 = vmul.f32 %v8298, %v4716
      %v8568 = vmul.f32 %v8298, %v4719
      %v8569 = vmul.f32 %v8298, %v4722
      %v8570 = vmul.f32 %v8298, %v4725
      %v8571 = vmul.f32 %v8298, %v4728
      %v8572 = vmul.f32 %v8298, %v4804
      %v8573 = vmul.f32 %v8298, %v4807
      %v8574 = vmul.f32 %v8298, %v4810
      %v8575 = vmul.f32 %v8298, %v4813
      %v8576 = vmul.f32 %v8298, %v4816
      %v8577 = vmul.f32 %v8298, %v4819
      %v8578 = vmul.f32 %v8298, %v4822
      %v8579 = vmul.f32 %v8298, %v4825
      %v8580 = vmul.f32 %v8298, %v4901
      %v8581 = vmul.f32 %v8298, %v4904
      %v8582 = vmul.f32 %v8298, %v4907
      %v8583 = vmul.f32 %v8298, %v4910
      %v8584 = vmul.f32 %v8298, %v4913
      %v8585 = vmul.f32 %v8298, %v4916
      %v8586 = vmul.f32 %v8298, %v4919
      %v8587 = vmul.f32 %v8298, %v4922
      %v8588 = vmul.f32 %v8298, %v4998
      %v8589 = vmul.f32 %v8298, %v5001
      %v8590 = vmul.f32 %v8298, %v5004
      %v8591 = vmul.f32 %v8298, %v5007
      %v8592 = vmul.f32 %v8298, %v5010
      %v8593 = vmul.f32 %v8298, %v5013
      %v8594 = vmul.f32 %v8298, %v5016
      %v8595 = vmul.f32 %v8298, %v5019
      %v8596 = vmul.f32 %v8298, %v5095
      %v8597 = vmul.f32 %v8298, %v5098
      %v8598 = vmul.f32 %v8298, %v5101
      %v8599 = vmul.f32 %v8298, %v5104
      %v8600 = vmul.f32 %v8298, %v5107
      %v8601 = vmul.f32 %v8298, %v5110
      %v8602 = vmul.f32 %v8298, %v5113
      %v8603 = vmul.f32 %v8298, %v5116
      %v8604 = vmul.f32 %v8298, %v5192
      %v8605 = vmul.f32 %v8298, %v5195
      %v8606 = vmul.f32 %v8298, %v5198
      %v8607 = vmul.f32 %v8298, %v5201
      %v8608 = vmul.f32 %v8298, %v5204
      %v8609 = vmul.f32 %v8298, %v5207
      %v8610 = vmul.f32 %v8298, %v5210
      %v8611 = vmul.f32 %v8298, %v5213
      %v8612 = vmul.f32 %v8298, %v5289
      %v8613 = vmul.f32 %v8298, %v5292
      %v8614 = vmul.f32 %v8298, %v5295
      %v8615 = vmul.f32 %v8298, %v5298
      %v8616 = vmul.f32 %v8298, %v5301
      %v8617 = vmul.f32 %v8298, %v5304
      %v8618 = vmul.f32 %v8298, %v5307
      %v8619 = vmul.f32 %v8298, %v5310
      %v8620 = vmul.f32 %v8298, %v5386
      %v8621 = vmul.f32 %v8298, %v5389
      %v8622 = vmul.f32 %v8298, %v5392
      %v8623 = vmul.f32 %v8298, %v5395
      %v8624 = vmul.f32 %v8298, %v5398
      %v8625 = vmul.f32 %v8298, %v5401
      %v8626 = vmul.f32 %v8298, %v5404
      %v8627 = vmul.f32 %v8298, %v5407
      %v8628 = vmul.f32 %v8298, %v5483
      %v8629 = vmul.f32 %v8298, %v5486
      %v8630 = vmul.f32 %v8298, %v5489
      %v8631 = vmul.f32 %v8298, %v5492
      %v8632 = vmul.f32 %v8298, %v5495
      %v8633 = vmul.f32 %v8298, %v5498
      %v8634 = vmul.f32 %v8298, %v5501
      %v8635 = vmul.f32 %v8298, %v5504
      %v8636 = vmul.f32 %v8298, %v5580
      %v8637 = vmul.f32 %v8298, %v5583
      %v8638 = vmul.f32 %v8298, %v5586
      %v8639 = vmul.f32 %v8298, %v5589
      %v8640 = vmul.f32 %v8298, %v5592
      %v8641 = vmul.f32 %v8298, %v5595
      %v8642 = vmul.f32 %v8298, %v5598
      %v8643 = vmul.f32 %v8298, %v5601
      %v8644 = vmul.f32 %v8298, %v5677
      %v8645 = vmul.f32 %v8298, %v5680
      %v8646 = vmul.f32 %v8298, %v5683
      %v8647 = vmul.f32 %v8298, %v5686
      %v8648 = vmul.f32 %v8298, %v5689
      %v8649 = vmul.f32 %v8298, %v5692
      %v8650 = vmul.f32 %v8298, %v5695
      %v8651 = vmul.f32 %v8298, %v5698
      %v8652 = vmul.f32 %v8298, %v5774
      %v8653 = vmul.f32 %v8298, %v5777
      %v8654 = vmul.f32 %v8298, %v5780
      %v8655 = vmul.f32 %v8298, %v5783
      %v8656 = vmul.f32 %v8298, %v5786
      %v8657 = vmul.f32 %v8298, %v5789
      %v8658 = vmul.f32 %v8298, %v5792
      %v8659 = vmul.f32 %v8298, %v5795
      %v8660 = vmul.f32 %v8298, %v5871
      %v8661 = vmul.f32 %v8298, %v5874
      %v8662 = vmul.f32 %v8298, %v5877
      %v8663 = vmul.f32 %v8298, %v5880
      %v8664 = vmul.f32 %v8298, %v5883
      %v8665 = vmul.f32 %v8298, %v5886
      %v8666 = vmul.f32 %v8298, %v5889
      %v8667 = vmul.f32 %v8298, %v5892
      %v8668 = vmul.f32 %v8298, %v5968
      %v8669 = vmul.f32 %v8298, %v5971
      %v8670 = vmul.f32 %v8298, %v5974
      %v8671 = vmul.f32 %v8298, %v5977
      %v8672 = vmul.f32 %v8298, %v5980
      %v8673 = vmul.f32 %v8298, %v5983
      %v8674 = vmul.f32 %v8298, %v5986
      %v8675 = vmul.f32 %v8298, %v5989
      %v8676 = vmul.f32 %v8298, %v6065
      %v8677 = vmul.f32 %v8298, %v6068
      %v8678 = vmul.f32 %v8298, %v6071
      %v8679 = vmul.f32 %v8298, %v6074
      %v8680 = vmul.f32 %v8298, %v6077
      %v8681 = vmul.f32 %v8298, %v6080
      %v8682 = vmul.f32 %v8298, %v6083
      %v8683 = vmul.f32 %v8298, %v6086
      %v8684 = vadd.f32 %v230, %v8556
      %v8685 = vadd.f32 %v231, %v8557
      %v8686 = vadd.f32 %v232, %v8558
      %v8687 = vadd.f32 %v233, %v8559
      %v8688 = vadd.f32 %v234, %v8560
      %v8689 = vadd.f32 %v235, %v8561
      %v8690 = vadd.f32 %v236, %v8562
      %v8691 = vadd.f32 %v237, %v8563
      %v8692 = vadd.f32 %v230, %v8564
      %v8693 = vadd.f32 %v231, %v8565
      %v8694 = vadd.f32 %v232, %v8566
      %v8695 = vadd.f32 %v233, %v8567
      %v8696 = vadd.f32 %v234, %v8568
      %v8697 = vadd.f32 %v235, %v8569
      %v8698 = vadd.f32 %v236, %v8570
      %v8699 = vadd.f32 %v237, %v8571
      %v8700 = vadd.f32 %v230, %v8572
      %v8701 = vadd.f32 %v231, %v8573
      %v8702 = vadd.f32 %v232, %v8574
      %v8703 = vadd.f32 %v233, %v8575
      %v8704 = vadd.f32 %v234, %v8576
      %v8705 = vadd.f32 %v235, %v8577
      %v8706 = vadd.f32 %v236, %v8578
      %v8707 = vadd.f32 %v237, %v8579
      %v8708 = vadd.f32 %v230, %v8580
      %v8709 = vadd.f32 %v231, %v8581
      %v8710 = vadd.f32 %v232, %v8582
      %v8711 = vadd.f32 %v233, %v8583
      %v8712 = vadd.f32 %v234, %v8584
      %v8713 = vadd.f32 %v235, %v8585
      %v8714 = vadd.f32 %v236, %v8586
      %v8715 = vadd.f32 %v237, %v8587
      %v8716 = vadd.f32 %v230, %v8588
      %v8717 = vadd.f32 %v231, %v8589
      %v8718 = vadd.f32 %v232, %v8590
      %v8719 = vadd.f32 %v233, %v8591
      %v8720 = vadd.f32 %v234, %v8592
      %v8721 = vadd.f32 %v235, %v8593
      %v8722 = vadd.f32 %v236, %v8594
      %v8723 = vadd.f32 %v237, %v8595
      %v8724 = vadd.f32 %v230, %v8596
      %v8725 = vadd.f32 %v231, %v8597
      %v8726 = vadd.f32 %v232, %v8598
      %v8727 = vadd.f32 %v233, %v8599
      %v8728 = vadd.f32 %v234, %v8600
      %v8729 = vadd.f32 %v235, %v8601
      %v8730 = vadd.f32 %v236, %v8602
      %v8731 = vadd.f32 %v237, %v8603
      %v8732 = vadd.f32 %v230, %v8604
      %v8733 = vadd.f32 %v231, %v8605
      %v8734 = vadd.f32 %v232, %v8606
      %v8735 = vadd.f32 %v233, %v8607
      %v8736 = vadd.f32 %v234, %v8608
      %v8737 = vadd.f32 %v235, %v8609
      %v8738 = vadd.f32 %v236, %v8610
      %v8739 = vadd.f32 %v237, %v8611
      %v8740 = vadd.f32 %v230, %v8612
      %v8741 = vadd.f32 %v231, %v8613
      %v8742 = vadd.f32 %v232, %v8614
      %v8743 = vadd.f32 %v233, %v8615
      %v8744 = vadd.f32 %v234, %v8616
      %v8745 = vadd.f32 %v235, %v8617
      %v8746 = vadd.f32 %v236, %v8618
      %v8747 = vadd.f32 %v237, %v8619
      %v8748 = vadd.f32 %v230, %v8620
      %v8749 = vadd.f32 %v231, %v8621
      %v8750 = vadd.f32 %v232, %v8622
      %v8751 = vadd.f32 %v233, %v8623
      %v8752 = vadd.f32 %v234, %v8624
      %v8753 = vadd.f32 %v235, %v8625
      %v8754 = vadd.f32 %v236, %v8626
      %v8755 = vadd.f32 %v237, %v8627
      %v8756 = vadd.f32 %v230, %v8628
      %v8757 = vadd.f32 %v231, %v8629
      %v8758 = vadd.f32 %v232, %v8630
      %v8759 = vadd.f32 %v233, %v8631
      %v8760 = vadd.f32 %v234, %v8632
      %v8761 = vadd.f32 %v235, %v8633
      %v8762 = vadd.f32 %v236, %v8634
      %v8763 = vadd.f32 %v237, %v8635
      %v8764 = vadd.f32 %v230, %v8636
      %v8765 = vadd.f32 %v231, %v8637
      %v8766 = vadd.f32 %v232, %v8638
      %v8767 = vadd.f32 %v233, %v8639
      %v8768 = vadd.f32 %v234, %v8640
      %v8769 = vadd.f32 %v235, %v8641
      %v8770 = vadd.f32 %v236, %v8642
      %v8771 = vadd.f32 %v237, %v8643
      %v8772 = vadd.f32 %v230, %v8644
      %v8773 = vadd.f32 %v231, %v8645
      %v8774 = vadd.f32 %v232, %v8646
      %v8775 = vadd.f32 %v233, %v8647
      %v8776 = vadd.f32 %v234, %v8648
      %v8777 = vadd.f32 %v235, %v8649
      %v8778 = vadd.f32 %v236, %v8650
      %v8779 = vadd.f32 %v237, %v8651
      %v8780 = vadd.f32 %v230, %v8652
      %v8781 = vadd.f32 %v231, %v8653
      %v8782 = vadd.f32 %v232, %v8654
      %v8783 = vadd.f32 %v233, %v8655
      %v8784 = vadd.f32 %v234, %v8656
      %v8785 = vadd.f32 %v235, %v8657
      %v8786 = vadd.f32 %v236, %v8658
      %v8787 = vadd.f32 %v237, %v8659
      %v8788 = vadd.f32 %v230, %v8660
      %v8789 = vadd.f32 %v231, %v8661
      %v8790 = vadd.f32 %v232, %v8662
      %v8791 = vadd.f32 %v233, %v8663
      %v8792 = vadd.f32 %v234, %v8664
      %v8793 = vadd.f32 %v235, %v8665
      %v8794 = vadd.f32 %v236, %v8666
      %v8795 = vadd.f32 %v237, %v8667
      %v8796 = vadd.f32 %v230, %v8668
      %v8797 = vadd.f32 %v231, %v8669
      %v8798 = vadd.f32 %v232, %v8670
      %v8799 = vadd.f32 %v233, %v8671
      %v8800 = vadd.f32 %v234, %v8672
      %v8801 = vadd.f32 %v235, %v8673
      %v8802 = vadd.f32 %v236, %v8674
      %v8803 = vadd.f32 %v237, %v8675
      %v8804 = vadd.f32 %v230, %v8676
      %v8805 = vadd.f32 %v231, %v8677
      %v8806 = vadd.f32 %v232, %v8678
      %v8807 = vadd.f32 %v233, %v8679
      %v8808 = vadd.f32 %v234, %v8680
      %v8809 = vadd.f32 %v235, %v8681
      %v8810 = vadd.f32 %v236, %v8682
      %v8811 = vadd.f32 %v237, %v8683
      %v8812 = vmul.f32 %v8298, %v3058
      %v8813 = vmul.f32 %v8298, %v3061
      %v8814 = vmul.f32 %v8298, %v3064
      %v8815 = vmul.f32 %v8298, %v3067
      %v8816 = vmul.f32 %v8298, %v3070
      %v8817 = vmul.f32 %v8298, %v3073
      %v8818 = vmul.f32 %v8298, %v3076
      %v8819 = vmul.f32 %v8298, %v3079
      %v8820 = vmul.f32 %v8298, %v3155
      %v8821 = vmul.f32 %v8298, %v3158
      %v8822 = vmul.f32 %v8298, %v3161
      %v8823 = vmul.f32 %v8298, %v3164
      %v8824 = vmul.f32 %v8298, %v3167
      %v8825 = vmul.f32 %v8298, %v3170
      %v8826 = vmul.f32 %v8298, %v3173
      %v8827 = vmul.f32 %v8298, %v3176
      %v8828 = vmul.f32 %v8298, %v3252
      %v8829 = vmul.f32 %v8298, %v3255
      %v8830 = vmul.f32 %v8298, %v3258
      %v8831 = vmul.f32 %v8298, %v3261
      %v8832 = vmul.f32 %v8298, %v3264
      %v8833 = vmul.f32 %v8298, %v3267
      %v8834 = vmul.f32 %v8298, %v3270
      %v8835 = vmul.f32 %v8298, %v3273
      %v8836 = vmul.f32 %v8298, %v3349
      %v8837 = vmul.f32 %v8298, %v3352
      %v8838 = vmul.f32 %v8298, %v3355
      %v8839 = vmul.f32 %v8298, %v3358
      %v8840 = vmul.f32 %v8298, %v3361
      %v8841 = vmul.f32 %v8298, %v3364
      %v8842 = vmul.f32 %v8298, %v3367
      %v8843 = vmul.f32 %v8298, %v3370
      %v8844 = vmul.f32 %v8298, %v3446
      %v8845 = vmul.f32 %v8298, %v3449
      %v8846 = vmul.f32 %v8298, %v3452
      %v8847 = vmul.f32 %v8298, %v3455
      %v8848 = vmul.f32 %v8298, %v3458
      %v8849 = vmul.f32 %v8298, %v3461
      %v8850 = vmul.f32 %v8298, %v3464
      %v8851 = vmul.f32 %v8298, %v3467
      %v8852 = vmul.f32 %v8298, %v3543
      %v8853 = vmul.f32 %v8298, %v3546
      %v8854 = vmul.f32 %v8298, %v3549
      %v8855 = vmul.f32 %v8298, %v3552
      %v8856 = vmul.f32 %v8298, %v3555
      %v8857 = vmul.f32 %v8298, %v3558
      %v8858 = vmul.f32 %v8298, %v3561
      %v8859 = vmul.f32 %v8298, %v3564
      %v8860 = vmul.f32 %v8298, %v3640
      %v8861 = vmul.f32 %v8298, %v3643
      %v8862 = vmul.f32 %v8298, %v3646
      %v8863 = vmul.f32 %v8298, %v3649
      %v8864 = vmul.f32 %v8298, %v3652
      %v8865 = vmul.f32 %v8298, %v3655
      %v8866 = vmul.f32 %v8298, %v3658
      %v8867 = vmul.f32 %v8298, %v3661
      %v8868 = vmul.f32 %v8298, %v3737
      %v8869 = vmul.f32 %v8298, %v3740
      %v8870 = vmul.f32 %v8298, %v3743
      %v8871 = vmul.f32 %v8298, %v3746
      %v8872 = vmul.f32 %v8298, %v3749
      %v8873 = vmul.f32 %v8298, %v3752
      %v8874 = vmul.f32 %v8298, %v3755
      %v8875 = vmul.f32 %v8298, %v3758
      %v8876 = vmul.f32 %v8298, %v3834
      %v8877 = vmul.f32 %v8298, %v3837
      %v8878 = vmul.f32 %v8298, %v3840
      %v8879 = vmul.f32 %v8298, %v3843
      %v8880 = vmul.f32 %v8298, %v3846
      %v8881 = vmul.f32 %v8298, %v3849
      %v8882 = vmul.f32 %v8298, %v3852
      %v8883 = vmul.f32 %v8298, %v3855
      %v8884 = vmul.f32 %v8298, %v3931
      %v8885 = vmul.f32 %v8298, %v3934
      %v8886 = vmul.f32 %v8298, %v3937
      %v8887 = vmul.f32 %v8298, %v3940
      %v8888 = vmul.f32 %v8298, %v3943
      %v8889 = vmul.f32 %v8298, %v3946
      %v8890 = vmul.f32 %v8298, %v3949
      %v8891 = vmul.f32 %v8298, %v3952
      %v8892 = vmul.f32 %v8298, %v4028
      %v8893 = vmul.f32 %v8298, %v4031
      %v8894 = vmul.f32 %v8298, %v4034
      %v8895 = vmul.f32 %v8298, %v4037
      %v8896 = vmul.f32 %v8298, %v4040
      %v8897 = vmul.f32 %v8298, %v4043
      %v8898 = vmul.f32 %v8298, %v4046
      %v8899 = vmul.f32 %v8298, %v4049
      %v8900 = vmul.f32 %v8298, %v4125
      %v8901 = vmul.f32 %v8298, %v4128
      %v8902 = vmul.f32 %v8298, %v4131
      %v8903 = vmul.f32 %v8298, %v4134
      %v8904 = vmul.f32 %v8298, %v4137
      %v8905 = vmul.f32 %v8298, %v4140
      %v8906 = vmul.f32 %v8298, %v4143
      %v8907 = vmul.f32 %v8298, %v4146
      %v8908 = vmul.f32 %v8298, %v4222
      %v8909 = vmul.f32 %v8298, %v4225
      %v8910 = vmul.f32 %v8298, %v4228
      %v8911 = vmul.f32 %v8298, %v4231
      %v8912 = vmul.f32 %v8298, %v4234
      %v8913 = vmul.f32 %v8298, %v4237
      %v8914 = vmul.f32 %v8298, %v4240
      %v8915 = vmul.f32 %v8298, %v4243
      %v8916 = vmul.f32 %v8298, %v4319
      %v8917 = vmul.f32 %v8298, %v4322
      %v8918 = vmul.f32 %v8298, %v4325
      %v8919 = vmul.f32 %v8298, %v4328
      %v8920 = vmul.f32 %v8298, %v4331
      %v8921 = vmul.f32 %v8298, %v4334
      %v8922 = vmul.f32 %v8298, %v4337
      %v8923 = vmul.f32 %v8298, %v4340
      %v8924 = vmul.f32 %v8298, %v4416
      %v8925 = vmul.f32 %v8298, %v4419
      %v8926 = vmul.f32 %v8298, %v4422
      %v8927 = vmul.f32 %v8298, %v4425
      %v8928 = vmul.f32 %v8298, %v4428
      %v8929 = vmul.f32 %v8298, %v4431
      %v8930 = vmul.f32 %v8298, %v4434
      %v8931 = vmul.f32 %v8298, %v4437
      %v8932 = vmul.f32 %v8298, %v4513
      %v8933 = vmul.f32 %v8298, %v4516
      %v8934 = vmul.f32 %v8298, %v4519
      %v8935 = vmul.f32 %v8298, %v4522
      %v8936 = vmul.f32 %v8298, %v4525
      %v8937 = vmul.f32 %v8298, %v4528
      %v8938 = vmul.f32 %v8298, %v4531
      %v8939 = vmul.f32 %v8298, %v4534
      %v8940 = vadd.f32 %v238, %v8812
      %v8941 = vadd.f32 %v239, %v8813
      %v8942 = vadd.f32 %v240, %v8814
      %v8943 = vadd.f32 %v241, %v8815
      %v8944 = vadd.f32 %v242, %v8816
      %v8945 = vadd.f32 %v243, %v8817
      %v8946 = vadd.f32 %v244, %v8818
      %v8947 = vadd.f32 %v245, %v8819
      %v8948 = vadd.f32 %v238, %v8820
      %v8949 = vadd.f32 %v239, %v8821
      %v8950 = vadd.f32 %v240, %v8822
      %v8951 = vadd.f32 %v241, %v8823
      %v8952 = vadd.f32 %v242, %v8824
      %v8953 = vadd.f32 %v243, %v8825
      %v8954 = vadd.f32 %v244, %v8826
      %v8955 = vadd.f32 %v245, %v8827
      %v8956 = vadd.f32 %v238, %v8828
      %v8957 = vadd.f32 %v239, %v8829
      %v8958 = vadd.f32 %v240, %v8830
      %v8959 = vadd.f32 %v241, %v8831
      %v8960 = vadd.f32 %v242, %v8832
      %v8961 = vadd.f32 %v243, %v8833
      %v8962 = vadd.f32 %v244, %v8834
      %v8963 = vadd.f32 %v245, %v8835
      %v8964 = vadd.f32 %v238, %v8836
      %v8965 = vadd.f32 %v239, %v8837
      %v8966 = vadd.f32 %v240, %v8838
      %v8967 = vadd.f32 %v241, %v8839
      %v8968 = vadd.f32 %v242, %v8840
      %v8969 = vadd.f32 %v243, %v8841
      %v8970 = vadd.f32 %v244, %v8842
      %v8971 = vadd.f32 %v245, %v8843
      %v8972 = vadd.f32 %v238, %v8844
      %v8973 = vadd.f32 %v239, %v8845
      %v8974 = vadd.f32 %v240, %v8846
      %v8975 = vadd.f32 %v241, %v8847
      %v8976 = vadd.f32 %v242, %v8848
      %v8977 = vadd.f32 %v243, %v8849
      %v8978 = vadd.f32 %v244, %v8850
      %v8979 = vadd.f32 %v245, %v8851
      %v8980 = vadd.f32 %v238, %v8852
      %v8981 = vadd.f32 %v239, %v8853
      %v8982 = vadd.f32 %v240, %v8854
      %v8983 = vadd.f32 %v241, %v8855
      %v8984 = vadd.f32 %v242, %v8856
      %v8985 = vadd.f32 %v243, %v8857
      %v8986 = vadd.f32 %v244, %v8858
      %v8987 = vadd.f32 %v245, %v8859
      %v8988 = vadd.f32 %v238, %v8860
      %v8989 = vadd.f32 %v239, %v8861
      %v8990 = vadd.f32 %v240, %v8862
      %v8991 = vadd.f32 %v241, %v8863
      %v8992 = vadd.f32 %v242, %v8864
      %v8993 = vadd.f32 %v243, %v8865
      %v8994 = vadd.f32 %v244, %v8866
      %v8995 = vadd.f32 %v245, %v8867
      %v8996 = vadd.f32 %v238, %v8868
      %v8997 = vadd.f32 %v239, %v8869
      %v8998 = vadd.f32 %v240, %v8870
      %v8999 = vadd.f32 %v241, %v8871
      %v9000 = vadd.f32 %v242, %v8872
      %v9001 = vadd.f32 %v243, %v8873
      %v9002 = vadd.f32 %v244, %v8874
      %v9003 = vadd.f32 %v245, %v8875
      %v9004 = vadd.f32 %v238, %v8876
      %v9005 = vadd.f32 %v239, %v8877
      %v9006 = vadd.f32 %v240, %v8878
      %v9007 = vadd.f32 %v241, %v8879
      %v9008 = vadd.f32 %v242, %v8880
      %v9009 = vadd.f32 %v243, %v8881
      %v9010 = vadd.f32 %v244, %v8882
      %v9011 = vadd.f32 %v245, %v8883
      %v9012 = vadd.f32 %v238, %v8884
      %v9013 = vadd.f32 %v239, %v8885
      %v9014 = vadd.f32 %v240, %v8886
      %v9015 = vadd.f32 %v241, %v8887
      %v9016 = vadd.f32 %v242, %v8888
      %v9017 = vadd.f32 %v243, %v8889
      %v9018 = vadd.f32 %v244, %v8890
      %v9019 = vadd.f32 %v245, %v8891
      %v9020 = vadd.f32 %v238, %v8892
      %v9021 = vadd.f32 %v239, %v8893
      %v9022 = vadd.f32 %v240, %v8894
      %v9023 = vadd.f32 %v241, %v8895
      %v9024 = vadd.f32 %v242, %v8896
      %v9025 = vadd.f32 %v243, %v8897
      %v9026 = vadd.f32 %v244, %v8898
      %v9027 = vadd.f32 %v245, %v8899
      %v9028 = vadd.f32 %v238, %v8900
      %v9029 = vadd.f32 %v239, %v8901
      %v9030 = vadd.f32 %v240, %v8902
      %v9031 = vadd.f32 %v241, %v8903
      %v9032 = vadd.f32 %v242, %v8904
      %v9033 = vadd.f32 %v243, %v8905
      %v9034 = vadd.f32 %v244, %v8906
      %v9035 = vadd.f32 %v245, %v8907
      %v9036 = vadd.f32 %v238, %v8908
      %v9037 = vadd.f32 %v239, %v8909
      %v9038 = vadd.f32 %v240, %v8910
      %v9039 = vadd.f32 %v241, %v8911
      %v9040 = vadd.f32 %v242, %v8912
      %v9041 = vadd.f32 %v243, %v8913
      %v9042 = vadd.f32 %v244, %v8914
      %v9043 = vadd.f32 %v245, %v8915
      %v9044 = vadd.f32 %v238, %v8916
      %v9045 = vadd.f32 %v239, %v8917
      %v9046 = vadd.f32 %v240, %v8918
      %v9047 = vadd.f32 %v241, %v8919
      %v9048 = vadd.f32 %v242, %v8920
      %v9049 = vadd.f32 %v243, %v8921
      %v9050 = vadd.f32 %v244, %v8922
      %v9051 = vadd.f32 %v245, %v8923
      %v9052 = vadd.f32 %v238, %v8924
      %v9053 = vadd.f32 %v239, %v8925
      %v9054 = vadd.f32 %v240, %v8926
      %v9055 = vadd.f32 %v241, %v8927
      %v9056 = vadd.f32 %v242, %v8928
      %v9057 = vadd.f32 %v243, %v8929
      %v9058 = vadd.f32 %v244, %v8930
      %v9059 = vadd.f32 %v245, %v8931
      %v9060 = vadd.f32 %v238, %v8932
      %v9061 = vadd.f32 %v239, %v8933
      %v9062 = vadd.f32 %v240, %v8934
      %v9063 = vadd.f32 %v241, %v8935
      %v9064 = vadd.f32 %v242, %v8936
      %v9065 = vadd.f32 %v243, %v8937
      %v9066 = vadd.f32 %v244, %v8938
      %v9067 = vadd.f32 %v245, %v8939
      %9068 = vset.pattern.permute.xlu0 0
      %9069 = vperm.xlu0 %9068, %v251
      %v9070 = vpop.permute.xlu0 %9069
      %v9072 = vmul.f32 %v9070, %v8130
      %v9073 = vmul.f32 %v9070, %v8141
      %v9074 = vmul.f32 %v9070, %v8152
      %v9075 = vmul.f32 %v9070, %v8163
      %v9076 = vmul.f32 %v9070, %v8174
      %v9077 = vmul.f32 %v9070, %v8185
      %v9078 = vmul.f32 %v9070, %v8196
      %v9079 = vmul.f32 %v9070, %v8207
      %v9080 = vmul.f32 %v9070, %v8218
      %v9081 = vmul.f32 %v9070, %v8229
      %v9082 = vmul.f32 %v9070, %v8240
      %v9083 = vmul.f32 %v9070, %v8251
      %v9084 = vmul.f32 %v9070, %v8262
      %v9085 = vmul.f32 %v9070, %v8273
      %v9086 = vmul.f32 %v9070, %v8284
      %v9087 = vmul.f32 %v9070, %v8295
      %v9088 = vadd.f32 %v246, %v9072
      %v9089 = vadd.f32 %v246, %v9073
      %v9090 = vadd.f32 %v246, %v9074
      %v9091 = vadd.f32 %v246, %v9075
      %v9092 = vadd.f32 %v246, %v9076
      %v9093 = vadd.f32 %v246, %v9077
      %v9094 = vadd.f32 %v246, %v9078
      %v9095 = vadd.f32 %v246, %v9079
      %v9096 = vadd.f32 %v246, %v9080
      %v9097 = vadd.f32 %v246, %v9081
      %v9098 = vadd.f32 %v246, %v9082
      %v9099 = vadd.f32 %v246, %v9083
      %v9100 = vadd.f32 %v246, %v9084
      %v9101 = vadd.f32 %v246, %v9085
      %v9102 = vadd.f32 %v246, %v9086
      %v9103 = vadd.f32 %v246, %v9087
      %v9104 = vmul.f32 %v9070, %v7954
      %v9105 = vmul.f32 %v9070, %v7965
      %v9106 = vmul.f32 %v9070, %v7976
      %v9107 = vmul.f32 %v9070, %v7987
      %v9108 = vmul.f32 %v9070, %v7998
      %v9109 = vmul.f32 %v9070, %v8009
      %v9110 = vmul.f32 %v9070, %v8020
      %v9111 = vmul.f32 %v9070, %v8031
      %v9112 = vmul.f32 %v9070, %v8042
      %v9113 = vmul.f32 %v9070, %v8053
      %v9114 = vmul.f32 %v9070, %v8064
      %v9115 = vmul.f32 %v9070, %v8075
      %v9116 = vmul.f32 %v9070, %v8086
      %v9117 = vmul.f32 %v9070, %v8097
      %v9118 = vmul.f32 %v9070, %v8108
      %v9119 = vmul.f32 %v9070, %v8119
      %v9120 = vadd.f32 %v247, %v9104
      %v9121 = vadd.f32 %v247, %v9105
      %v9122 = vadd.f32 %v247, %v9106
      %v9123 = vadd.f32 %v247, %v9107
      %v9124 = vadd.f32 %v247, %v9108
      %v9125 = vadd.f32 %v247, %v9109
      %v9126 = vadd.f32 %v247, %v9110
      %v9127 = vadd.f32 %v247, %v9111
      %v9128 = vadd.f32 %v247, %v9112
      %v9129 = vadd.f32 %v247, %v9113
      %v9130 = vadd.f32 %v247, %v9114
      %v9131 = vadd.f32 %v247, %v9115
      %v9132 = vadd.f32 %v247, %v9116
      %v9133 = vadd.f32 %v247, %v9117
      %v9134 = vadd.f32 %v247, %v9118
      %v9135 = vadd.f32 %v247, %v9119
      %v9136 = vmul.f32 %v9070, %v7778
      %v9137 = vmul.f32 %v9070, %v7789
      %v9138 = vmul.f32 %v9070, %v7800
      %v9139 = vmul.f32 %v9070, %v7811
      %v9140 = vmul.f32 %v9070, %v7822
      %v9141 = vmul.f32 %v9070, %v7833
      %v9142 = vmul.f32 %v9070, %v7844
      %v9143 = vmul.f32 %v9070, %v7855
      %v9144 = vmul.f32 %v9070, %v7866
      %v9145 = vmul.f32 %v9070, %v7877
      %v9146 = vmul.f32 %v9070, %v7888
      %v9147 = vmul.f32 %v9070, %v7899
      %v9148 = vmul.f32 %v9070, %v7910
      %v9149 = vmul.f32 %v9070, %v7921
      %v9150 = vmul.f32 %v9070, %v7932
      %v9151 = vmul.f32 %v9070, %v7943
      %v9152 = vadd.f32 %v248, %v9136
      %v9153 = vadd.f32 %v248, %v9137
      %v9154 = vadd.f32 %v248, %v9138
      %v9155 = vadd.f32 %v248, %v9139
      %v9156 = vadd.f32 %v248, %v9140
      %v9157 = vadd.f32 %v248, %v9141
      %v9158 = vadd.f32 %v248, %v9142
      %v9159 = vadd.f32 %v248, %v9143
      %v9160 = vadd.f32 %v248, %v9144
      %v9161 = vadd.f32 %v248, %v9145
      %v9162 = vadd.f32 %v248, %v9146
      %v9163 = vadd.f32 %v248, %v9147
      %v9164 = vadd.f32 %v248, %v9148
      %v9165 = vadd.f32 %v248, %v9149
      %v9166 = vadd.f32 %v248, %v9150
      %v9167 = vadd.f32 %v248, %v9151
      %v9168 = vld [vmem:[%s210] sm:$0xff]
      %v9169 = vld [vmem:[%s210 + $0x8] sm:$0xff]
      %v9170 = vld [vmem:[%s210 + $0x10] sm:$0xff]
      %v9171 = vld [vmem:[%s210 + $0x18] sm:$0xff]
      %v9172 = vld [vmem:[%s210 + $0x20] sm:$0xff]
      %v9173 = vld [vmem:[%s210 + $0x28] sm:$0xff]
      %v9174 = vld [vmem:[%s210 + $0x30] sm:$0xff]
      %v9175 = vld [vmem:[%s210 + $0x38] sm:$0xff]
      %v9176 = vld [vmem:[%s210 + $0x40] sm:$0xff]
      %v9177 = vld [vmem:[%s210 + $0x48] sm:$0xff]
      %v9178 = vld [vmem:[%s210 + $0x50] sm:$0xff]
      %v9179 = vld [vmem:[%s210 + $0x58] sm:$0xff]
      %v9180 = vld [vmem:[%s210 + $0x60] sm:$0xff]
      %v9181 = vld [vmem:[%s210 + $0x68] sm:$0xff]
      %v9182 = vld [vmem:[%s210 + $0x70] sm:$0xff]
      %v9183 = vld [vmem:[%s210 + $0x78] sm:$0xff]
      %v9184 = vperm.slane %v9088, 0
      %v9185 = vperm.slane %v9089, 0
      %v9186 = vperm.slane %v9090, 0
      %v9187 = vperm.slane %v9091, 0
      %v9188 = vperm.slane %v9092, 0
      %v9189 = vperm.slane %v9093, 0
      %v9190 = vperm.slane %v9094, 0
      %v9191 = vperm.slane %v9095, 0
      %v9192 = vperm.slane %v9096, 0
      %v9193 = vperm.slane %v9097, 0
      %v9194 = vperm.slane %v9098, 0
      %v9195 = vperm.slane %v9099, 0
      %v9196 = vperm.slane %v9100, 0
      %v9197 = vperm.slane %v9101, 0
      %v9198 = vperm.slane %v9102, 0
      %v9199 = vperm.slane %v9103, 0
      %9200 = vmatpush.xpose.msra.mxu0 0.0
      %9201 = vmatpush.xpose.msra.mxu0 0.0
      %9202 = vmatpush.xpose.msra.mxu0 0.0
      %9203 = vmatpush.xpose.msra.mxu0 0.0
      %9204 = vmatpush.xpose.msra.mxu0 0.0
      %9205 = vmatpush.xpose.msra.mxu0 0.0
      %9206 = vmatpush.xpose.msra.mxu0 0.0
      %9207 = vmatpush.xpose.msra.mxu0 0.0
      %9208 = vmatpush.xpose.msra.mxu0 %v8435
      %9209 = vmatpush.xpose.msra.mxu0 %v8434
      %9210 = vmatpush.xpose.msra.mxu0 %v8433
      %9211 = vmatpush.xpose.msra.mxu0 %v8432
      %9212 = vmatpush.xpose.msra.mxu0 %v8431
      %9213 = vmatpush.xpose.msra.mxu0 %v8430
      %9214 = vmatpush.xpose.msra.mxu0 %v8429
      %9215 = vmatpush.xpose.msra.mxu0 %v8428
      %9216 = vmatmul.f32.gmra.mxu0 %v9168
      %v9217 = vpop.f32.mrf.mxu0
      %v9218 = vadd.f32 %v9184, %v9217
      %9219 = vdwg.mxu0
      %9220 = vmatpush.xpose.msra.mxu0 0.0
      %9221 = vmatpush.xpose.msra.mxu0 0.0
      %9222 = vmatpush.xpose.msra.mxu0 0.0
      %9223 = vmatpush.xpose.msra.mxu0 0.0
      %9224 = vmatpush.xpose.msra.mxu0 0.0
      %9225 = vmatpush.xpose.msra.mxu0 0.0
      %9226 = vmatpush.xpose.msra.mxu0 0.0
      %9227 = vmatpush.xpose.msra.mxu0 0.0
      %9228 = vmatpush.xpose.msra.mxu0 %v8443
      %9229 = vmatpush.xpose.msra.mxu0 %v8442
      %9230 = vmatpush.xpose.msra.mxu0 %v8441
      %9231 = vmatpush.xpose.msra.mxu0 %v8440
      %9232 = vmatpush.xpose.msra.mxu0 %v8439
      %9233 = vmatpush.xpose.msra.mxu0 %v8438
      %9234 = vmatpush.xpose.msra.mxu0 %v8437
      %9235 = vmatpush.xpose.msra.mxu0 %v8436
      %9236 = vmatmul.f32.gmra.mxu0 %v9169
      %v9237 = vpop.f32.mrf.mxu0
      %v9238 = vadd.f32 %v9185, %v9237
      %9239 = vdwg.mxu0
      %9240 = vmatpush.xpose.msra.mxu0 0.0
      %9241 = vmatpush.xpose.msra.mxu0 0.0
      %9242 = vmatpush.xpose.msra.mxu0 0.0
      %9243 = vmatpush.xpose.msra.mxu0 0.0
      %9244 = vmatpush.xpose.msra.mxu0 0.0
      %9245 = vmatpush.xpose.msra.mxu0 0.0
      %9246 = vmatpush.xpose.msra.mxu0 0.0
      %9247 = vmatpush.xpose.msra.mxu0 0.0
      %9248 = vmatpush.xpose.msra.mxu0 %v8451
      %9249 = vmatpush.xpose.msra.mxu0 %v8450
      %9250 = vmatpush.xpose.msra.mxu0 %v8449
      %9251 = vmatpush.xpose.msra.mxu0 %v8448
      %9252 = vmatpush.xpose.msra.mxu0 %v8447
      %9253 = vmatpush.xpose.msra.mxu0 %v8446
      %9254 = vmatpush.xpose.msra.mxu0 %v8445
      %9255 = vmatpush.xpose.msra.mxu0 %v8444
      %9256 = vmatmul.f32.gmra.mxu0 %v9170
      %v9257 = vpop.f32.mrf.mxu0
      %v9258 = vadd.f32 %v9186, %v9257
      %9259 = vdwg.mxu0
      %9260 = vmatpush.xpose.msra.mxu0 0.0
      %9261 = vmatpush.xpose.msra.mxu0 0.0
      %9262 = vmatpush.xpose.msra.mxu0 0.0
      %9263 = vmatpush.xpose.msra.mxu0 0.0
      %9264 = vmatpush.xpose.msra.mxu0 0.0
      %9265 = vmatpush.xpose.msra.mxu0 0.0
      %9266 = vmatpush.xpose.msra.mxu0 0.0
      %9267 = vmatpush.xpose.msra.mxu0 0.0
      %9268 = vmatpush.xpose.msra.mxu0 %v8459
      %9269 = vmatpush.xpose.msra.mxu0 %v8458
      %9270 = vmatpush.xpose.msra.mxu0 %v8457
      %9271 = vmatpush.xpose.msra.mxu0 %v8456
      %9272 = vmatpush.xpose.msra.mxu0 %v8455
      %9273 = vmatpush.xpose.msra.mxu0 %v8454
      %9274 = vmatpush.xpose.msra.mxu0 %v8453
      %9275 = vmatpush.xpose.msra.mxu0 %v8452
      %9276 = vmatmul.f32.gmra.mxu0 %v9171
      %v9277 = vpop.f32.mrf.mxu0
      %v9278 = vadd.f32 %v9187, %v9277
      %9279 = vdwg.mxu0
      %9280 = vmatpush.xpose.msra.mxu0 0.0
      %9281 = vmatpush.xpose.msra.mxu0 0.0
      %9282 = vmatpush.xpose.msra.mxu0 0.0
      %9283 = vmatpush.xpose.msra.mxu0 0.0
      %9284 = vmatpush.xpose.msra.mxu0 0.0
      %9285 = vmatpush.xpose.msra.mxu0 0.0
      %9286 = vmatpush.xpose.msra.mxu0 0.0
      %9287 = vmatpush.xpose.msra.mxu0 0.0
      %9288 = vmatpush.xpose.msra.mxu0 %v8467
      %9289 = vmatpush.xpose.msra.mxu0 %v8466
      %9290 = vmatpush.xpose.msra.mxu0 %v8465
      %9291 = vmatpush.xpose.msra.mxu0 %v8464
      %9292 = vmatpush.xpose.msra.mxu0 %v8463
      %9293 = vmatpush.xpose.msra.mxu0 %v8462
      %9294 = vmatpush.xpose.msra.mxu0 %v8461
      %9295 = vmatpush.xpose.msra.mxu0 %v8460
      %9296 = vmatmul.f32.gmra.mxu0 %v9172
      %v9297 = vpop.f32.mrf.mxu0
      %v9298 = vadd.f32 %v9188, %v9297
      %9299 = vdwg.mxu0
      %9300 = vmatpush.xpose.msra.mxu0 0.0
      %9301 = vmatpush.xpose.msra.mxu0 0.0
      %9302 = vmatpush.xpose.msra.mxu0 0.0
      %9303 = vmatpush.xpose.msra.mxu0 0.0
      %9304 = vmatpush.xpose.msra.mxu0 0.0
      %9305 = vmatpush.xpose.msra.mxu0 0.0
      %9306 = vmatpush.xpose.msra.mxu0 0.0
      %9307 = vmatpush.xpose.msra.mxu0 0.0
      %9308 = vmatpush.xpose.msra.mxu0 %v8475
      %9309 = vmatpush.xpose.msra.mxu0 %v8474
      %9310 = vmatpush.xpose.msra.mxu0 %v8473
      %9311 = vmatpush.xpose.msra.mxu0 %v8472
      %9312 = vmatpush.xpose.msra.mxu0 %v8471
      %9313 = vmatpush.xpose.msra.mxu0 %v8470
      %9314 = vmatpush.xpose.msra.mxu0 %v8469
      %9315 = vmatpush.xpose.msra.mxu0 %v8468
      %9316 = vmatmul.f32.gmra.mxu0 %v9173
      %v9317 = vpop.f32.mrf.mxu0
      %v9318 = vadd.f32 %v9189, %v9317
      %9319 = vdwg.mxu0
      %9320 = vmatpush.xpose.msra.mxu0 0.0
      %9321 = vmatpush.xpose.msra.mxu0 0.0
      %9322 = vmatpush.xpose.msra.mxu0 0.0
      %9323 = vmatpush.xpose.msra.mxu0 0.0
      %9324 = vmatpush.xpose.msra.mxu0 0.0
      %9325 = vmatpush.xpose.msra.mxu0 0.0
      %9326 = vmatpush.xpose.msra.mxu0 0.0
      %9327 = vmatpush.xpose.msra.mxu0 0.0
      %9328 = vmatpush.xpose.msra.mxu0 %v8483
      %9329 = vmatpush.xpose.msra.mxu0 %v8482
      %9330 = vmatpush.xpose.msra.mxu0 %v8481
      %9331 = vmatpush.xpose.msra.mxu0 %v8480
      %9332 = vmatpush.xpose.msra.mxu0 %v8479
      %9333 = vmatpush.xpose.msra.mxu0 %v8478
      %9334 = vmatpush.xpose.msra.mxu0 %v8477
      %9335 = vmatpush.xpose.msra.mxu0 %v8476
      %9336 = vmatmul.f32.gmra.mxu0 %v9174
      %v9337 = vpop.f32.mrf.mxu0
      %v9338 = vadd.f32 %v9190, %v9337
      %9339 = vdwg.mxu0
      %9340 = vmatpush.xpose.msra.mxu0 0.0
      %9341 = vmatpush.xpose.msra.mxu0 0.0
      %9342 = vmatpush.xpose.msra.mxu0 0.0
      %9343 = vmatpush.xpose.msra.mxu0 0.0
      %9344 = vmatpush.xpose.msra.mxu0 0.0
      %9345 = vmatpush.xpose.msra.mxu0 0.0
      %9346 = vmatpush.xpose.msra.mxu0 0.0
      %9347 = vmatpush.xpose.msra.mxu0 0.0
      %9348 = vmatpush.xpose.msra.mxu0 %v8491
      %9349 = vmatpush.xpose.msra.mxu0 %v8490
      %9350 = vmatpush.xpose.msra.mxu0 %v8489
      %9351 = vmatpush.xpose.msra.mxu0 %v8488
      %9352 = vmatpush.xpose.msra.mxu0 %v8487
      %9353 = vmatpush.xpose.msra.mxu0 %v8486
      %9354 = vmatpush.xpose.msra.mxu0 %v8485
      %9355 = vmatpush.xpose.msra.mxu0 %v8484
      %9356 = vmatmul.f32.gmra.mxu0 %v9175
      %v9357 = vpop.f32.mrf.mxu0
      %v9358 = vadd.f32 %v9191, %v9357
      %9359 = vdwg.mxu0
      %9360 = vmatpush.xpose.msra.mxu0 0.0
      %9361 = vmatpush.xpose.msra.mxu0 0.0
      %9362 = vmatpush.xpose.msra.mxu0 0.0
      %9363 = vmatpush.xpose.msra.mxu0 0.0
      %9364 = vmatpush.xpose.msra.mxu0 0.0
      %9365 = vmatpush.xpose.msra.mxu0 0.0
      %9366 = vmatpush.xpose.msra.mxu0 0.0
      %9367 = vmatpush.xpose.msra.mxu0 0.0
      %9368 = vmatpush.xpose.msra.mxu0 %v8499
      %9369 = vmatpush.xpose.msra.mxu0 %v8498
      %9370 = vmatpush.xpose.msra.mxu0 %v8497
      %9371 = vmatpush.xpose.msra.mxu0 %v8496
      %9372 = vmatpush.xpose.msra.mxu0 %v8495
      %9373 = vmatpush.xpose.msra.mxu0 %v8494
      %9374 = vmatpush.xpose.msra.mxu0 %v8493
      %9375 = vmatpush.xpose.msra.mxu0 %v8492
      %9376 = vmatmul.f32.gmra.mxu0 %v9176
      %v9377 = vpop.f32.mrf.mxu0
      %v9378 = vadd.f32 %v9192, %v9377
      %9379 = vdwg.mxu0
      %9380 = vmatpush.xpose.msra.mxu0 0.0
      %9381 = vmatpush.xpose.msra.mxu0 0.0
      %9382 = vmatpush.xpose.msra.mxu0 0.0
      %9383 = vmatpush.xpose.msra.mxu0 0.0
      %9384 = vmatpush.xpose.msra.mxu0 0.0
      %9385 = vmatpush.xpose.msra.mxu0 0.0
      %9386 = vmatpush.xpose.msra.mxu0 0.0
      %9387 = vmatpush.xpose.msra.mxu0 0.0
      %9388 = vmatpush.xpose.msra.mxu0 %v8507
      %9389 = vmatpush.xpose.msra.mxu0 %v8506
      %9390 = vmatpush.xpose.msra.mxu0 %v8505
      %9391 = vmatpush.xpose.msra.mxu0 %v8504
      %9392 = vmatpush.xpose.msra.mxu0 %v8503
      %9393 = vmatpush.xpose.msra.mxu0 %v8502
      %9394 = vmatpush.xpose.msra.mxu0 %v8501
      %9395 = vmatpush.xpose.msra.mxu0 %v8500
      %9396 = vmatmul.f32.gmra.mxu0 %v9177
      %v9397 = vpop.f32.mrf.mxu0
      %v9398 = vadd.f32 %v9193, %v9397
      %9399 = vdwg.mxu0
      %9400 = vmatpush.xpose.msra.mxu0 0.0
      %9401 = vmatpush.xpose.msra.mxu0 0.0
      %9402 = vmatpush.xpose.msra.mxu0 0.0
      %9403 = vmatpush.xpose.msra.mxu0 0.0
      %9404 = vmatpush.xpose.msra.mxu0 0.0
      %9405 = vmatpush.xpose.msra.mxu0 0.0
      %9406 = vmatpush.xpose.msra.mxu0 0.0
      %9407 = vmatpush.xpose.msra.mxu0 0.0
      %9408 = vmatpush.xpose.msra.mxu0 %v8515
      %9409 = vmatpush.xpose.msra.mxu0 %v8514
      %9410 = vmatpush.xpose.msra.mxu0 %v8513
      %9411 = vmatpush.xpose.msra.mxu0 %v8512
      %9412 = vmatpush.xpose.msra.mxu0 %v8511
      %9413 = vmatpush.xpose.msra.mxu0 %v8510
      %9414 = vmatpush.xpose.msra.mxu0 %v8509
      %9415 = vmatpush.xpose.msra.mxu0 %v8508
      %9416 = vmatmul.f32.gmra.mxu0 %v9178
      %v9417 = vpop.f32.mrf.mxu0
      %v9418 = vadd.f32 %v9194, %v9417
      %9419 = vdwg.mxu0
      %9420 = vmatpush.xpose.msra.mxu0 0.0
      %9421 = vmatpush.xpose.msra.mxu0 0.0
      %9422 = vmatpush.xpose.msra.mxu0 0.0
      %9423 = vmatpush.xpose.msra.mxu0 0.0
      %9424 = vmatpush.xpose.msra.mxu0 0.0
      %9425 = vmatpush.xpose.msra.mxu0 0.0
      %9426 = vmatpush.xpose.msra.mxu0 0.0
      %9427 = vmatpush.xpose.msra.mxu0 0.0
      %9428 = vmatpush.xpose.msra.mxu0 %v8523
      %9429 = vmatpush.xpose.msra.mxu0 %v8522
      %9430 = vmatpush.xpose.msra.mxu0 %v8521
      %9431 = vmatpush.xpose.msra.mxu0 %v8520
      %9432 = vmatpush.xpose.msra.mxu0 %v8519
      %9433 = vmatpush.xpose.msra.mxu0 %v8518
      %9434 = vmatpush.xpose.msra.mxu0 %v8517
      %9435 = vmatpush.xpose.msra.mxu0 %v8516
      %9436 = vmatmul.f32.gmra.mxu0 %v9179
      %v9437 = vpop.f32.mrf.mxu0
      %v9438 = vadd.f32 %v9195, %v9437
      %9439 = vdwg.mxu0
      %9440 = vmatpush.xpose.msra.mxu0 0.0
      %9441 = vmatpush.xpose.msra.mxu0 0.0
      %9442 = vmatpush.xpose.msra.mxu0 0.0
      %9443 = vmatpush.xpose.msra.mxu0 0.0
      %9444 = vmatpush.xpose.msra.mxu0 0.0
      %9445 = vmatpush.xpose.msra.mxu0 0.0
      %9446 = vmatpush.xpose.msra.mxu0 0.0
      %9447 = vmatpush.xpose.msra.mxu0 0.0
      %9448 = vmatpush.xpose.msra.mxu0 %v8531
      %9449 = vmatpush.xpose.msra.mxu0 %v8530
      %9450 = vmatpush.xpose.msra.mxu0 %v8529
      %9451 = vmatpush.xpose.msra.mxu0 %v8528
      %9452 = vmatpush.xpose.msra.mxu0 %v8527
      %9453 = vmatpush.xpose.msra.mxu0 %v8526
      %9454 = vmatpush.xpose.msra.mxu0 %v8525
      %9455 = vmatpush.xpose.msra.mxu0 %v8524
      %9456 = vmatmul.f32.gmra.mxu0 %v9180
      %v9457 = vpop.f32.mrf.mxu0
      %v9458 = vadd.f32 %v9196, %v9457
      %9459 = vdwg.mxu0
      %9460 = vmatpush.xpose.msra.mxu0 0.0
      %9461 = vmatpush.xpose.msra.mxu0 0.0
      %9462 = vmatpush.xpose.msra.mxu0 0.0
      %9463 = vmatpush.xpose.msra.mxu0 0.0
      %9464 = vmatpush.xpose.msra.mxu0 0.0
      %9465 = vmatpush.xpose.msra.mxu0 0.0
      %9466 = vmatpush.xpose.msra.mxu0 0.0
      %9467 = vmatpush.xpose.msra.mxu0 0.0
      %9468 = vmatpush.xpose.msra.mxu0 %v8539
      %9469 = vmatpush.xpose.msra.mxu0 %v8538
      %9470 = vmatpush.xpose.msra.mxu0 %v8537
      %9471 = vmatpush.xpose.msra.mxu0 %v8536
      %9472 = vmatpush.xpose.msra.mxu0 %v8535
      %9473 = vmatpush.xpose.msra.mxu0 %v8534
      %9474 = vmatpush.xpose.msra.mxu0 %v8533
      %9475 = vmatpush.xpose.msra.mxu0 %v8532
      %9476 = vmatmul.f32.gmra.mxu0 %v9181
      %v9477 = vpop.f32.mrf.mxu0
      %v9478 = vadd.f32 %v9197, %v9477
      %9479 = vdwg.mxu0
      %9480 = vmatpush.xpose.msra.mxu0 0.0
      %9481 = vmatpush.xpose.msra.mxu0 0.0
      %9482 = vmatpush.xpose.msra.mxu0 0.0
      %9483 = vmatpush.xpose.msra.mxu0 0.0
      %9484 = vmatpush.xpose.msra.mxu0 0.0
      %9485 = vmatpush.xpose.msra.mxu0 0.0
      %9486 = vmatpush.xpose.msra.mxu0 0.0
      %9487 = vmatpush.xpose.msra.mxu0 0.0
      %9488 = vmatpush.xpose.msra.mxu0 %v8547
      %9489 = vmatpush.xpose.msra.mxu0 %v8546
      %9490 = vmatpush.xpose.msra.mxu0 %v8545
      %9491 = vmatpush.xpose.msra.mxu0 %v8544
      %9492 = vmatpush.xpose.msra.mxu0 %v8543
      %9493 = vmatpush.xpose.msra.mxu0 %v8542
      %9494 = vmatpush.xpose.msra.mxu0 %v8541
      %9495 = vmatpush.xpose.msra.mxu0 %v8540
      %9496 = vmatmul.f32.gmra.mxu0 %v9182
      %v9497 = vpop.f32.mrf.mxu0
      %v9498 = vadd.f32 %v9198, %v9497
      %9499 = vdwg.mxu0
      %9500 = vmatpush.xpose.msra.mxu0 0.0
      %9501 = vmatpush.xpose.msra.mxu0 0.0
      %9502 = vmatpush.xpose.msra.mxu0 0.0
      %9503 = vmatpush.xpose.msra.mxu0 0.0
      %9504 = vmatpush.xpose.msra.mxu0 0.0
      %9505 = vmatpush.xpose.msra.mxu0 0.0
      %9506 = vmatpush.xpose.msra.mxu0 0.0
      %9507 = vmatpush.xpose.msra.mxu0 0.0
      %9508 = vmatpush.xpose.msra.mxu0 %v8555
      %9509 = vmatpush.xpose.msra.mxu0 %v8554
      %9510 = vmatpush.xpose.msra.mxu0 %v8553
      %9511 = vmatpush.xpose.msra.mxu0 %v8552
      %9512 = vmatpush.xpose.msra.mxu0 %v8551
      %9513 = vmatpush.xpose.msra.mxu0 %v8550
      %9514 = vmatpush.xpose.msra.mxu0 %v8549
      %9515 = vmatpush.xpose.msra.mxu0 %v8548
      %9516 = vmatmul.f32.gmra.mxu0 %v9183
      %v9517 = vpop.f32.mrf.mxu0
      %v9518 = vadd.f32 %v9199, %v9517
      %9519 = vdwg.mxu0
      %v9520 = vmax.f32 %v9218, 0.0
      %v9521 = vmax.f32 %v9238, 0.0
      %v9522 = vmax.f32 %v9258, 0.0
      %v9523 = vmax.f32 %v9278, 0.0
      %v9524 = vmax.f32 %v9298, 0.0
      %v9525 = vmax.f32 %v9318, 0.0
      %v9526 = vmax.f32 %v9338, 0.0
      %v9527 = vmax.f32 %v9358, 0.0
      %v9528 = vmax.f32 %v9378, 0.0
      %v9529 = vmax.f32 %v9398, 0.0
      %v9530 = vmax.f32 %v9418, 0.0
      %v9531 = vmax.f32 %v9438, 0.0
      %v9532 = vmax.f32 %v9458, 0.0
      %v9533 = vmax.f32 %v9478, 0.0
      %v9534 = vmax.f32 %v9498, 0.0
      %v9535 = vmax.f32 %v9518, 0.0
      %v9536 = vperm.slane %v9120, 0
      %v9537 = vperm.slane %v9121, 0
      %v9538 = vperm.slane %v9122, 0
      %v9539 = vperm.slane %v9123, 0
      %v9540 = vperm.slane %v9124, 0
      %v9541 = vperm.slane %v9125, 0
      %v9542 = vperm.slane %v9126, 0
      %v9543 = vperm.slane %v9127, 0
      %v9544 = vperm.slane %v9128, 0
      %v9545 = vperm.slane %v9129, 0
      %v9546 = vperm.slane %v9130, 0
      %v9547 = vperm.slane %v9131, 0
      %v9548 = vperm.slane %v9132, 0
      %v9549 = vperm.slane %v9133, 0
      %v9550 = vperm.slane %v9134, 0
      %v9551 = vperm.slane %v9135, 0
      %v9553 = vsel %vm511, %v9520, 0
      %v9556 = vsel %vm511, %v8684, 0
      %v9559 = vsel %vm511, %v8685, 0
      %v9562 = vsel %vm511, %v8686, 0
      %v9565 = vsel %vm511, %v8687, 0
      %v9568 = vsel %vm511, %v8688, 0
      %v9571 = vsel %vm511, %v8689, 0
      %v9574 = vsel %vm511, %v8690, 0
      %v9577 = vsel %vm511, %v8691, 0
      %9579 = vmatpush.xpose.msra.mxu0 0.0
      %9580 = vmatpush.xpose.msra.mxu0 0.0
      %9581 = vmatpush.xpose.msra.mxu0 0.0
      %9582 = vmatpush.xpose.msra.mxu0 0.0
      %9583 = vmatpush.xpose.msra.mxu0 0.0
      %9584 = vmatpush.xpose.msra.mxu0 0.0
      %9585 = vmatpush.xpose.msra.mxu0 0.0
      %9586 = vmatpush.xpose.msra.mxu0 0.0
      %9587 = vmatpush.xpose.msra.mxu0 %v9577
      %9588 = vmatpush.xpose.msra.mxu0 %v9574
      %9589 = vmatpush.xpose.msra.mxu0 %v9571
      %9590 = vmatpush.xpose.msra.mxu0 %v9568
      %9591 = vmatpush.xpose.msra.mxu0 %v9565
      %9592 = vmatpush.xpose.msra.mxu0 %v9562
      %9593 = vmatpush.xpose.msra.mxu0 %v9559
      %9594 = vmatpush.xpose.msra.mxu0 %v9556
      %9595 = vmatmul.f32.gmra.mxu0 %v9553
      %v9596 = vpop.f32.mrf.mxu0
      %v9597 = vadd.f32 %v9536, %v9596
      %9598 = vdwg.mxu0
      %v9600 = vsel %vm511, %v9521, 0
      %v9603 = vsel %vm511, %v8692, 0
      %v9606 = vsel %vm511, %v8693, 0
      %v9609 = vsel %vm511, %v8694, 0
      %v9612 = vsel %vm511, %v8695, 0
      %v9615 = vsel %vm511, %v8696, 0
      %v9618 = vsel %vm511, %v8697, 0
      %v9621 = vsel %vm511, %v8698, 0
      %v9624 = vsel %vm511, %v8699, 0
      %9626 = vmatpush.xpose.msra.mxu0 0.0
      %9627 = vmatpush.xpose.msra.mxu0 0.0
      %9628 = vmatpush.xpose.msra.mxu0 0.0
      %9629 = vmatpush.xpose.msra.mxu0 0.0
      %9630 = vmatpush.xpose.msra.mxu0 0.0
      %9631 = vmatpush.xpose.msra.mxu0 0.0
      %9632 = vmatpush.xpose.msra.mxu0 0.0
      %9633 = vmatpush.xpose.msra.mxu0 0.0
      %9634 = vmatpush.xpose.msra.mxu0 %v9624
      %9635 = vmatpush.xpose.msra.mxu0 %v9621
      %9636 = vmatpush.xpose.msra.mxu0 %v9618
      %9637 = vmatpush.xpose.msra.mxu0 %v9615
      %9638 = vmatpush.xpose.msra.mxu0 %v9612
      %9639 = vmatpush.xpose.msra.mxu0 %v9609
      %9640 = vmatpush.xpose.msra.mxu0 %v9606
      %9641 = vmatpush.xpose.msra.mxu0 %v9603
      %9642 = vmatmul.f32.gmra.mxu0 %v9600
      %v9643 = vpop.f32.mrf.mxu0
      %v9644 = vadd.f32 %v9537, %v9643
      %9645 = vdwg.mxu0
      %v9647 = vsel %vm511, %v9522, 0
      %v9650 = vsel %vm511, %v8700, 0
      %v9653 = vsel %vm511, %v8701, 0
      %v9656 = vsel %vm511, %v8702, 0
      %v9659 = vsel %vm511, %v8703, 0
      %v9662 = vsel %vm511, %v8704, 0
      %v9665 = vsel %vm511, %v8705, 0
      %v9668 = vsel %vm511, %v8706, 0
      %v9671 = vsel %vm511, %v8707, 0
      %9673 = vmatpush.xpose.msra.mxu0 0.0
      %9674 = vmatpush.xpose.msra.mxu0 0.0
      %9675 = vmatpush.xpose.msra.mxu0 0.0
      %9676 = vmatpush.xpose.msra.mxu0 0.0
      %9677 = vmatpush.xpose.msra.mxu0 0.0
      %9678 = vmatpush.xpose.msra.mxu0 0.0
      %9679 = vmatpush.xpose.msra.mxu0 0.0
      %9680 = vmatpush.xpose.msra.mxu0 0.0
      %9681 = vmatpush.xpose.msra.mxu0 %v9671
      %9682 = vmatpush.xpose.msra.mxu0 %v9668
      %9683 = vmatpush.xpose.msra.mxu0 %v9665
      %9684 = vmatpush.xpose.msra.mxu0 %v9662
      %9685 = vmatpush.xpose.msra.mxu0 %v9659
      %9686 = vmatpush.xpose.msra.mxu0 %v9656
      %9687 = vmatpush.xpose.msra.mxu0 %v9653
      %9688 = vmatpush.xpose.msra.mxu0 %v9650
      %9689 = vmatmul.f32.gmra.mxu0 %v9647
      %v9690 = vpop.f32.mrf.mxu0
      %v9691 = vadd.f32 %v9538, %v9690
      %9692 = vdwg.mxu0
      %v9694 = vsel %vm511, %v9523, 0
      %v9697 = vsel %vm511, %v8708, 0
      %v9700 = vsel %vm511, %v8709, 0
      %v9703 = vsel %vm511, %v8710, 0
      %v9706 = vsel %vm511, %v8711, 0
      %v9709 = vsel %vm511, %v8712, 0
      %v9712 = vsel %vm511, %v8713, 0
      %v9715 = vsel %vm511, %v8714, 0
      %v9718 = vsel %vm511, %v8715, 0
      %9720 = vmatpush.xpose.msra.mxu0 0.0
      %9721 = vmatpush.xpose.msra.mxu0 0.0
      %9722 = vmatpush.xpose.msra.mxu0 0.0
      %9723 = vmatpush.xpose.msra.mxu0 0.0
      %9724 = vmatpush.xpose.msra.mxu0 0.0
      %9725 = vmatpush.xpose.msra.mxu0 0.0
      %9726 = vmatpush.xpose.msra.mxu0 0.0
      %9727 = vmatpush.xpose.msra.mxu0 0.0
      %9728 = vmatpush.xpose.msra.mxu0 %v9718
      %9729 = vmatpush.xpose.msra.mxu0 %v9715
      %9730 = vmatpush.xpose.msra.mxu0 %v9712
      %9731 = vmatpush.xpose.msra.mxu0 %v9709
      %9732 = vmatpush.xpose.msra.mxu0 %v9706
      %9733 = vmatpush.xpose.msra.mxu0 %v9703
      %9734 = vmatpush.xpose.msra.mxu0 %v9700
      %9735 = vmatpush.xpose.msra.mxu0 %v9697
      %9736 = vmatmul.f32.gmra.mxu0 %v9694
      %v9737 = vpop.f32.mrf.mxu0
      %v9738 = vadd.f32 %v9539, %v9737
      %9739 = vdwg.mxu0
      %v9741 = vsel %vm511, %v9524, 0
      %v9744 = vsel %vm511, %v8716, 0
      %v9747 = vsel %vm511, %v8717, 0
      %v9750 = vsel %vm511, %v8718, 0
      %v9753 = vsel %vm511, %v8719, 0
      %v9756 = vsel %vm511, %v8720, 0
      %v9759 = vsel %vm511, %v8721, 0
      %v9762 = vsel %vm511, %v8722, 0
      %v9765 = vsel %vm511, %v8723, 0
      %9767 = vmatpush.xpose.msra.mxu0 0.0
      %9768 = vmatpush.xpose.msra.mxu0 0.0
      %9769 = vmatpush.xpose.msra.mxu0 0.0
      %9770 = vmatpush.xpose.msra.mxu0 0.0
      %9771 = vmatpush.xpose.msra.mxu0 0.0
      %9772 = vmatpush.xpose.msra.mxu0 0.0
      %9773 = vmatpush.xpose.msra.mxu0 0.0
      %9774 = vmatpush.xpose.msra.mxu0 0.0
      %9775 = vmatpush.xpose.msra.mxu0 %v9765
      %9776 = vmatpush.xpose.msra.mxu0 %v9762
      %9777 = vmatpush.xpose.msra.mxu0 %v9759
      %9778 = vmatpush.xpose.msra.mxu0 %v9756
      %9779 = vmatpush.xpose.msra.mxu0 %v9753
      %9780 = vmatpush.xpose.msra.mxu0 %v9750
      %9781 = vmatpush.xpose.msra.mxu0 %v9747
      %9782 = vmatpush.xpose.msra.mxu0 %v9744
      %9783 = vmatmul.f32.gmra.mxu0 %v9741
      %v9784 = vpop.f32.mrf.mxu0
      %v9785 = vadd.f32 %v9540, %v9784
      %9786 = vdwg.mxu0
      %v9788 = vsel %vm511, %v9525, 0
      %v9791 = vsel %vm511, %v8724, 0
      %v9794 = vsel %vm511, %v8725, 0
      %v9797 = vsel %vm511, %v8726, 0
      %v9800 = vsel %vm511, %v8727, 0
      %v9803 = vsel %vm511, %v8728, 0
      %v9806 = vsel %vm511, %v8729, 0
      %v9809 = vsel %vm511, %v8730, 0
      %v9812 = vsel %vm511, %v8731, 0
      %9814 = vmatpush.xpose.msra.mxu0 0.0
      %9815 = vmatpush.xpose.msra.mxu0 0.0
      %9816 = vmatpush.xpose.msra.mxu0 0.0
      %9817 = vmatpush.xpose.msra.mxu0 0.0
      %9818 = vmatpush.xpose.msra.mxu0 0.0
      %9819 = vmatpush.xpose.msra.mxu0 0.0
      %9820 = vmatpush.xpose.msra.mxu0 0.0
      %9821 = vmatpush.xpose.msra.mxu0 0.0
      %9822 = vmatpush.xpose.msra.mxu0 %v9812
      %9823 = vmatpush.xpose.msra.mxu0 %v9809
      %9824 = vmatpush.xpose.msra.mxu0 %v9806
      %9825 = vmatpush.xpose.msra.mxu0 %v9803
      %9826 = vmatpush.xpose.msra.mxu0 %v9800
      %9827 = vmatpush.xpose.msra.mxu0 %v9797
      %9828 = vmatpush.xpose.msra.mxu0 %v9794
      %9829 = vmatpush.xpose.msra.mxu0 %v9791
      %9830 = vmatmul.f32.gmra.mxu0 %v9788
      %v9831 = vpop.f32.mrf.mxu0
      %v9832 = vadd.f32 %v9541, %v9831
      %9833 = vdwg.mxu0
      %v9835 = vsel %vm511, %v9526, 0
      %v9838 = vsel %vm511, %v8732, 0
      %v9841 = vsel %vm511, %v8733, 0
      %v9844 = vsel %vm511, %v8734, 0
      %v9847 = vsel %vm511, %v8735, 0
      %v9850 = vsel %vm511, %v8736, 0
      %v9853 = vsel %vm511, %v8737, 0
      %v9856 = vsel %vm511, %v8738, 0
      %v9859 = vsel %vm511, %v8739, 0
      %9861 = vmatpush.xpose.msra.mxu0 0.0
      %9862 = vmatpush.xpose.msra.mxu0 0.0
      %9863 = vmatpush.xpose.msra.mxu0 0.0
      %9864 = vmatpush.xpose.msra.mxu0 0.0
      %9865 = vmatpush.xpose.msra.mxu0 0.0
      %9866 = vmatpush.xpose.msra.mxu0 0.0
      %9867 = vmatpush.xpose.msra.mxu0 0.0
      %9868 = vmatpush.xpose.msra.mxu0 0.0
      %9869 = vmatpush.xpose.msra.mxu0 %v9859
      %9870 = vmatpush.xpose.msra.mxu0 %v9856
      %9871 = vmatpush.xpose.msra.mxu0 %v9853
      %9872 = vmatpush.xpose.msra.mxu0 %v9850
      %9873 = vmatpush.xpose.msra.mxu0 %v9847
      %9874 = vmatpush.xpose.msra.mxu0 %v9844
      %9875 = vmatpush.xpose.msra.mxu0 %v9841
      %9876 = vmatpush.xpose.msra.mxu0 %v9838
      %9877 = vmatmul.f32.gmra.mxu0 %v9835
      %v9878 = vpop.f32.mrf.mxu0
      %v9879 = vadd.f32 %v9542, %v9878
      %9880 = vdwg.mxu0
      %v9882 = vsel %vm511, %v9527, 0
      %v9885 = vsel %vm511, %v8740, 0
      %v9888 = vsel %vm511, %v8741, 0
      %v9891 = vsel %vm511, %v8742, 0
      %v9894 = vsel %vm511, %v8743, 0
      %v9897 = vsel %vm511, %v8744, 0
      %v9900 = vsel %vm511, %v8745, 0
      %v9903 = vsel %vm511, %v8746, 0
      %v9906 = vsel %vm511, %v8747, 0
      %9908 = vmatpush.xpose.msra.mxu0 0.0
      %9909 = vmatpush.xpose.msra.mxu0 0.0
      %9910 = vmatpush.xpose.msra.mxu0 0.0
      %9911 = vmatpush.xpose.msra.mxu0 0.0
      %9912 = vmatpush.xpose.msra.mxu0 0.0
      %9913 = vmatpush.xpose.msra.mxu0 0.0
      %9914 = vmatpush.xpose.msra.mxu0 0.0
      %9915 = vmatpush.xpose.msra.mxu0 0.0
      %9916 = vmatpush.xpose.msra.mxu0 %v9906
      %9917 = vmatpush.xpose.msra.mxu0 %v9903
      %9918 = vmatpush.xpose.msra.mxu0 %v9900
      %9919 = vmatpush.xpose.msra.mxu0 %v9897
      %9920 = vmatpush.xpose.msra.mxu0 %v9894
      %9921 = vmatpush.xpose.msra.mxu0 %v9891
      %9922 = vmatpush.xpose.msra.mxu0 %v9888
      %9923 = vmatpush.xpose.msra.mxu0 %v9885
      %9924 = vmatmul.f32.gmra.mxu0 %v9882
      %v9925 = vpop.f32.mrf.mxu0
      %v9926 = vadd.f32 %v9543, %v9925
      %9927 = vdwg.mxu0
      %v9929 = vsel %vm511, %v9528, 0
      %v9932 = vsel %vm511, %v8748, 0
      %v9935 = vsel %vm511, %v8749, 0
      %v9938 = vsel %vm511, %v8750, 0
      %v9941 = vsel %vm511, %v8751, 0
      %v9944 = vsel %vm511, %v8752, 0
      %v9947 = vsel %vm511, %v8753, 0
      %v9950 = vsel %vm511, %v8754, 0
      %v9953 = vsel %vm511, %v8755, 0
      %9955 = vmatpush.xpose.msra.mxu0 0.0
      %9956 = vmatpush.xpose.msra.mxu0 0.0
      %9957 = vmatpush.xpose.msra.mxu0 0.0
      %9958 = vmatpush.xpose.msra.mxu0 0.0
      %9959 = vmatpush.xpose.msra.mxu0 0.0
      %9960 = vmatpush.xpose.msra.mxu0 0.0
      %9961 = vmatpush.xpose.msra.mxu0 0.0
      %9962 = vmatpush.xpose.msra.mxu0 0.0
      %9963 = vmatpush.xpose.msra.mxu0 %v9953
      %9964 = vmatpush.xpose.msra.mxu0 %v9950
      %9965 = vmatpush.xpose.msra.mxu0 %v9947
      %9966 = vmatpush.xpose.msra.mxu0 %v9944
      %9967 = vmatpush.xpose.msra.mxu0 %v9941
      %9968 = vmatpush.xpose.msra.mxu0 %v9938
      %9969 = vmatpush.xpose.msra.mxu0 %v9935
      %9970 = vmatpush.xpose.msra.mxu0 %v9932
      %9971 = vmatmul.f32.gmra.mxu0 %v9929
      %v9972 = vpop.f32.mrf.mxu0
      %v9973 = vadd.f32 %v9544, %v9972
      %9974 = vdwg.mxu0
      %v9976 = vsel %vm511, %v9529, 0
      %v9979 = vsel %vm511, %v8756, 0
      %v9982 = vsel %vm511, %v8757, 0
      %v9985 = vsel %vm511, %v8758, 0
      %v9988 = vsel %vm511, %v8759, 0
      %v9991 = vsel %vm511, %v8760, 0
      %v9994 = vsel %vm511, %v8761, 0
      %v9997 = vsel %vm511, %v8762, 0
      %v10000 = vsel %vm511, %v8763, 0
      %10002 = vmatpush.xpose.msra.mxu0 0.0
      %10003 = vmatpush.xpose.msra.mxu0 0.0
      %10004 = vmatpush.xpose.msra.mxu0 0.0
      %10005 = vmatpush.xpose.msra.mxu0 0.0
      %10006 = vmatpush.xpose.msra.mxu0 0.0
      %10007 = vmatpush.xpose.msra.mxu0 0.0
      %10008 = vmatpush.xpose.msra.mxu0 0.0
      %10009 = vmatpush.xpose.msra.mxu0 0.0
      %10010 = vmatpush.xpose.msra.mxu0 %v10000
      %10011 = vmatpush.xpose.msra.mxu0 %v9997
      %10012 = vmatpush.xpose.msra.mxu0 %v9994
      %10013 = vmatpush.xpose.msra.mxu0 %v9991
      %10014 = vmatpush.xpose.msra.mxu0 %v9988
      %10015 = vmatpush.xpose.msra.mxu0 %v9985
      %10016 = vmatpush.xpose.msra.mxu0 %v9982
      %10017 = vmatpush.xpose.msra.mxu0 %v9979
      %10018 = vmatmul.f32.gmra.mxu0 %v9976
      %v10019 = vpop.f32.mrf.mxu0
      %v10020 = vadd.f32 %v9545, %v10019
      %10021 = vdwg.mxu0
      %v10023 = vsel %vm511, %v9530, 0
      %v10026 = vsel %vm511, %v8764, 0
      %v10029 = vsel %vm511, %v8765, 0
      %v10032 = vsel %vm511, %v8766, 0
      %v10035 = vsel %vm511, %v8767, 0
      %v10038 = vsel %vm511, %v8768, 0
      %v10041 = vsel %vm511, %v8769, 0
      %v10044 = vsel %vm511, %v8770, 0
      %v10047 = vsel %vm511, %v8771, 0
      %10049 = vmatpush.xpose.msra.mxu0 0.0
      %10050 = vmatpush.xpose.msra.mxu0 0.0
      %10051 = vmatpush.xpose.msra.mxu0 0.0
      %10052 = vmatpush.xpose.msra.mxu0 0.0
      %10053 = vmatpush.xpose.msra.mxu0 0.0
      %10054 = vmatpush.xpose.msra.mxu0 0.0
      %10055 = vmatpush.xpose.msra.mxu0 0.0
      %10056 = vmatpush.xpose.msra.mxu0 0.0
      %10057 = vmatpush.xpose.msra.mxu0 %v10047
      %10058 = vmatpush.xpose.msra.mxu0 %v10044
      %10059 = vmatpush.xpose.msra.mxu0 %v10041
      %10060 = vmatpush.xpose.msra.mxu0 %v10038
      %10061 = vmatpush.xpose.msra.mxu0 %v10035
      %10062 = vmatpush.xpose.msra.mxu0 %v10032
      %10063 = vmatpush.xpose.msra.mxu0 %v10029
      %10064 = vmatpush.xpose.msra.mxu0 %v10026
      %10065 = vmatmul.f32.gmra.mxu0 %v10023
      %v10066 = vpop.f32.mrf.mxu0
      %v10067 = vadd.f32 %v9546, %v10066
      %10068 = vdwg.mxu0
      %v10070 = vsel %vm511, %v9531, 0
      %v10073 = vsel %vm511, %v8772, 0
      %v10076 = vsel %vm511, %v8773, 0
      %v10079 = vsel %vm511, %v8774, 0
      %v10082 = vsel %vm511, %v8775, 0
      %v10085 = vsel %vm511, %v8776, 0
      %v10088 = vsel %vm511, %v8777, 0
      %v10091 = vsel %vm511, %v8778, 0
      %v10094 = vsel %vm511, %v8779, 0
      %10096 = vmatpush.xpose.msra.mxu0 0.0
      %10097 = vmatpush.xpose.msra.mxu0 0.0
      %10098 = vmatpush.xpose.msra.mxu0 0.0
      %10099 = vmatpush.xpose.msra.mxu0 0.0
      %10100 = vmatpush.xpose.msra.mxu0 0.0
      %10101 = vmatpush.xpose.msra.mxu0 0.0
      %10102 = vmatpush.xpose.msra.mxu0 0.0
      %10103 = vmatpush.xpose.msra.mxu0 0.0
      %10104 = vmatpush.xpose.msra.mxu0 %v10094
      %10105 = vmatpush.xpose.msra.mxu0 %v10091
      %10106 = vmatpush.xpose.msra.mxu0 %v10088
      %10107 = vmatpush.xpose.msra.mxu0 %v10085
      %10108 = vmatpush.xpose.msra.mxu0 %v10082
      %10109 = vmatpush.xpose.msra.mxu0 %v10079
      %10110 = vmatpush.xpose.msra.mxu0 %v10076
      %10111 = vmatpush.xpose.msra.mxu0 %v10073
      %10112 = vmatmul.f32.gmra.mxu0 %v10070
      %v10113 = vpop.f32.mrf.mxu0
      %v10114 = vadd.f32 %v9547, %v10113
      %10115 = vdwg.mxu0
      %v10117 = vsel %vm511, %v9532, 0
      %v10120 = vsel %vm511, %v8780, 0
      %v10123 = vsel %vm511, %v8781, 0
      %v10126 = vsel %vm511, %v8782, 0
      %v10129 = vsel %vm511, %v8783, 0
      %v10132 = vsel %vm511, %v8784, 0
      %v10135 = vsel %vm511, %v8785, 0
      %v10138 = vsel %vm511, %v8786, 0
      %v10141 = vsel %vm511, %v8787, 0
      %10143 = vmatpush.xpose.msra.mxu0 0.0
      %10144 = vmatpush.xpose.msra.mxu0 0.0
      %10145 = vmatpush.xpose.msra.mxu0 0.0
      %10146 = vmatpush.xpose.msra.mxu0 0.0
      %10147 = vmatpush.xpose.msra.mxu0 0.0
      %10148 = vmatpush.xpose.msra.mxu0 0.0
      %10149 = vmatpush.xpose.msra.mxu0 0.0
      %10150 = vmatpush.xpose.msra.mxu0 0.0
      %10151 = vmatpush.xpose.msra.mxu0 %v10141
      %10152 = vmatpush.xpose.msra.mxu0 %v10138
      %10153 = vmatpush.xpose.msra.mxu0 %v10135
      %10154 = vmatpush.xpose.msra.mxu0 %v10132
      %10155 = vmatpush.xpose.msra.mxu0 %v10129
      %10156 = vmatpush.xpose.msra.mxu0 %v10126
      %10157 = vmatpush.xpose.msra.mxu0 %v10123
      %10158 = vmatpush.xpose.msra.mxu0 %v10120
      %10159 = vmatmul.f32.gmra.mxu0 %v10117
      %v10160 = vpop.f32.mrf.mxu0
      %v10161 = vadd.f32 %v9548, %v10160
      %10162 = vdwg.mxu0
      %v10164 = vsel %vm511, %v9533, 0
      %v10167 = vsel %vm511, %v8788, 0
      %v10170 = vsel %vm511, %v8789, 0
      %v10173 = vsel %vm511, %v8790, 0
      %v10176 = vsel %vm511, %v8791, 0
      %v10179 = vsel %vm511, %v8792, 0
      %v10182 = vsel %vm511, %v8793, 0
      %v10185 = vsel %vm511, %v8794, 0
      %v10188 = vsel %vm511, %v8795, 0
      %10190 = vmatpush.xpose.msra.mxu0 0.0
      %10191 = vmatpush.xpose.msra.mxu0 0.0
      %10192 = vmatpush.xpose.msra.mxu0 0.0
      %10193 = vmatpush.xpose.msra.mxu0 0.0
      %10194 = vmatpush.xpose.msra.mxu0 0.0
      %10195 = vmatpush.xpose.msra.mxu0 0.0
      %10196 = vmatpush.xpose.msra.mxu0 0.0
      %10197 = vmatpush.xpose.msra.mxu0 0.0
      %10198 = vmatpush.xpose.msra.mxu0 %v10188
      %10199 = vmatpush.xpose.msra.mxu0 %v10185
      %10200 = vmatpush.xpose.msra.mxu0 %v10182
      %10201 = vmatpush.xpose.msra.mxu0 %v10179
      %10202 = vmatpush.xpose.msra.mxu0 %v10176
      %10203 = vmatpush.xpose.msra.mxu0 %v10173
      %10204 = vmatpush.xpose.msra.mxu0 %v10170
      %10205 = vmatpush.xpose.msra.mxu0 %v10167
      %10206 = vmatmul.f32.gmra.mxu0 %v10164
      %v10207 = vpop.f32.mrf.mxu0
      %v10208 = vadd.f32 %v9549, %v10207
      %10209 = vdwg.mxu0
      %v10211 = vsel %vm511, %v9534, 0
      %v10214 = vsel %vm511, %v8796, 0
      %v10217 = vsel %vm511, %v8797, 0
      %v10220 = vsel %vm511, %v8798, 0
      %v10223 = vsel %vm511, %v8799, 0
      %v10226 = vsel %vm511, %v8800, 0
      %v10229 = vsel %vm511, %v8801, 0
      %v10232 = vsel %vm511, %v8802, 0
      %v10235 = vsel %vm511, %v8803, 0
      %10237 = vmatpush.xpose.msra.mxu0 0.0
      %10238 = vmatpush.xpose.msra.mxu0 0.0
      %10239 = vmatpush.xpose.msra.mxu0 0.0
      %10240 = vmatpush.xpose.msra.mxu0 0.0
      %10241 = vmatpush.xpose.msra.mxu0 0.0
      %10242 = vmatpush.xpose.msra.mxu0 0.0
      %10243 = vmatpush.xpose.msra.mxu0 0.0
      %10244 = vmatpush.xpose.msra.mxu0 0.0
      %10245 = vmatpush.xpose.msra.mxu0 %v10235
      %10246 = vmatpush.xpose.msra.mxu0 %v10232
      %10247 = vmatpush.xpose.msra.mxu0 %v10229
      %10248 = vmatpush.xpose.msra.mxu0 %v10226
      %10249 = vmatpush.xpose.msra.mxu0 %v10223
      %10250 = vmatpush.xpose.msra.mxu0 %v10220
      %10251 = vmatpush.xpose.msra.mxu0 %v10217
      %10252 = vmatpush.xpose.msra.mxu0 %v10214
      %10253 = vmatmul.f32.gmra.mxu0 %v10211
      %v10254 = vpop.f32.mrf.mxu0
      %v10255 = vadd.f32 %v9550, %v10254
      %10256 = vdwg.mxu0
      %v10258 = vsel %vm511, %v9535, 0
      %v10261 = vsel %vm511, %v8804, 0
      %v10264 = vsel %vm511, %v8805, 0
      %v10267 = vsel %vm511, %v8806, 0
      %v10270 = vsel %vm511, %v8807, 0
      %v10273 = vsel %vm511, %v8808, 0
      %v10276 = vsel %vm511, %v8809, 0
      %v10279 = vsel %vm511, %v8810, 0
      %v10282 = vsel %vm511, %v8811, 0
      %10284 = vmatpush.xpose.msra.mxu0 0.0
      %10285 = vmatpush.xpose.msra.mxu0 0.0
      %10286 = vmatpush.xpose.msra.mxu0 0.0
      %10287 = vmatpush.xpose.msra.mxu0 0.0
      %10288 = vmatpush.xpose.msra.mxu0 0.0
      %10289 = vmatpush.xpose.msra.mxu0 0.0
      %10290 = vmatpush.xpose.msra.mxu0 0.0
      %10291 = vmatpush.xpose.msra.mxu0 0.0
      %10292 = vmatpush.xpose.msra.mxu0 %v10282
      %10293 = vmatpush.xpose.msra.mxu0 %v10279
      %10294 = vmatpush.xpose.msra.mxu0 %v10276
      %10295 = vmatpush.xpose.msra.mxu0 %v10273
      %10296 = vmatpush.xpose.msra.mxu0 %v10270
      %10297 = vmatpush.xpose.msra.mxu0 %v10267
      %10298 = vmatpush.xpose.msra.mxu0 %v10264
      %10299 = vmatpush.xpose.msra.mxu0 %v10261
      %10300 = vmatmul.f32.gmra.mxu0 %v10258
      %v10301 = vpop.f32.mrf.mxu0
      %v10302 = vadd.f32 %v9551, %v10301
      %10303 = vdwg.mxu0
      %v10304 = vmax.f32 %v9597, 0.0
      %v10305 = vmax.f32 %v9644, 0.0
      %v10306 = vmax.f32 %v9691, 0.0
      %v10307 = vmax.f32 %v9738, 0.0
      %v10308 = vmax.f32 %v9785, 0.0
      %v10309 = vmax.f32 %v9832, 0.0
      %v10310 = vmax.f32 %v9879, 0.0
      %v10311 = vmax.f32 %v9926, 0.0
      %v10312 = vmax.f32 %v9973, 0.0
      %v10313 = vmax.f32 %v10020, 0.0
      %v10314 = vmax.f32 %v10067, 0.0
      %v10315 = vmax.f32 %v10114, 0.0
      %v10316 = vmax.f32 %v10161, 0.0
      %v10317 = vmax.f32 %v10208, 0.0
      %v10318 = vmax.f32 %v10255, 0.0
      %v10319 = vmax.f32 %v10302, 0.0
      %v10320 = vperm.slane %v9152, 0
      %v10321 = vperm.slane %v9153, 0
      %v10322 = vperm.slane %v9154, 0
      %v10323 = vperm.slane %v9155, 0
      %v10324 = vperm.slane %v9156, 0
      %v10325 = vperm.slane %v9157, 0
      %v10326 = vperm.slane %v9158, 0
      %v10327 = vperm.slane %v9159, 0
      %v10328 = vperm.slane %v9160, 0
      %v10329 = vperm.slane %v9161, 0
      %v10330 = vperm.slane %v9162, 0
      %v10331 = vperm.slane %v9163, 0
      %v10332 = vperm.slane %v9164, 0
      %v10333 = vperm.slane %v9165, 0
      %v10334 = vperm.slane %v9166, 0
      %v10335 = vperm.slane %v9167, 0
      %v10337 = vsel %vm511, %v10304, 0
      %v10340 = vsel %vm511, %v8940, 0
      %v10343 = vsel %vm511, %v8941, 0
      %v10346 = vsel %vm511, %v8942, 0
      %v10349 = vsel %vm511, %v8943, 0
      %v10352 = vsel %vm511, %v8944, 0
      %v10355 = vsel %vm511, %v8945, 0
      %v10358 = vsel %vm511, %v8946, 0
      %v10361 = vsel %vm511, %v8947, 0
      %10363 = vmatpush.xpose.msra.mxu0 0.0
      %10364 = vmatpush.xpose.msra.mxu0 0.0
      %10365 = vmatpush.xpose.msra.mxu0 0.0
      %10366 = vmatpush.xpose.msra.mxu0 0.0
      %10367 = vmatpush.xpose.msra.mxu0 0.0
      %10368 = vmatpush.xpose.msra.mxu0 0.0
      %10369 = vmatpush.xpose.msra.mxu0 0.0
      %10370 = vmatpush.xpose.msra.mxu0 0.0
      %10371 = vmatpush.xpose.msra.mxu0 %v10361
      %10372 = vmatpush.xpose.msra.mxu0 %v10358
      %10373 = vmatpush.xpose.msra.mxu0 %v10355
      %10374 = vmatpush.xpose.msra.mxu0 %v10352
      %10375 = vmatpush.xpose.msra.mxu0 %v10349
      %10376 = vmatpush.xpose.msra.mxu0 %v10346
      %10377 = vmatpush.xpose.msra.mxu0 %v10343
      %10378 = vmatpush.xpose.msra.mxu0 %v10340
      %10379 = vmatmul.f32.gmra.mxu0 %v10337
      %v10380 = vpop.f32.mrf.mxu0
      %v10381 = vadd.f32 %v10320, %v10380
      %10382 = vdwg.mxu0
      %v10384 = vsel %vm511, %v10305, 0
      %v10387 = vsel %vm511, %v8948, 0
      %v10390 = vsel %vm511, %v8949, 0
      %v10393 = vsel %vm511, %v8950, 0
      %v10396 = vsel %vm511, %v8951, 0
      %v10399 = vsel %vm511, %v8952, 0
      %v10402 = vsel %vm511, %v8953, 0
      %v10405 = vsel %vm511, %v8954, 0
      %v10408 = vsel %vm511, %v8955, 0
      %10410 = vmatpush.xpose.msra.mxu0 0.0
      %10411 = vmatpush.xpose.msra.mxu0 0.0
      %10412 = vmatpush.xpose.msra.mxu0 0.0
      %10413 = vmatpush.xpose.msra.mxu0 0.0
      %10414 = vmatpush.xpose.msra.mxu0 0.0
      %10415 = vmatpush.xpose.msra.mxu0 0.0
      %10416 = vmatpush.xpose.msra.mxu0 0.0
      %10417 = vmatpush.xpose.msra.mxu0 0.0
      %10418 = vmatpush.xpose.msra.mxu0 %v10408
      %10419 = vmatpush.xpose.msra.mxu0 %v10405
      %10420 = vmatpush.xpose.msra.mxu0 %v10402
      %10421 = vmatpush.xpose.msra.mxu0 %v10399
      %10422 = vmatpush.xpose.msra.mxu0 %v10396
      %10423 = vmatpush.xpose.msra.mxu0 %v10393
      %10424 = vmatpush.xpose.msra.mxu0 %v10390
      %10425 = vmatpush.xpose.msra.mxu0 %v10387
      %10426 = vmatmul.f32.gmra.mxu0 %v10384
      %v10427 = vpop.f32.mrf.mxu0
      %v10428 = vadd.f32 %v10321, %v10427
      %10429 = vdwg.mxu0
      %v10431 = vsel %vm511, %v10306, 0
      %v10434 = vsel %vm511, %v8956, 0
      %v10437 = vsel %vm511, %v8957, 0
      %v10440 = vsel %vm511, %v8958, 0
      %v10443 = vsel %vm511, %v8959, 0
      %v10446 = vsel %vm511, %v8960, 0
      %v10449 = vsel %vm511, %v8961, 0
      %v10452 = vsel %vm511, %v8962, 0
      %v10455 = vsel %vm511, %v8963, 0
      %10457 = vmatpush.xpose.msra.mxu0 0.0
      %10458 = vmatpush.xpose.msra.mxu0 0.0
      %10459 = vmatpush.xpose.msra.mxu0 0.0
      %10460 = vmatpush.xpose.msra.mxu0 0.0
      %10461 = vmatpush.xpose.msra.mxu0 0.0
      %10462 = vmatpush.xpose.msra.mxu0 0.0
      %10463 = vmatpush.xpose.msra.mxu0 0.0
      %10464 = vmatpush.xpose.msra.mxu0 0.0
      %10465 = vmatpush.xpose.msra.mxu0 %v10455
      %10466 = vmatpush.xpose.msra.mxu0 %v10452
      %10467 = vmatpush.xpose.msra.mxu0 %v10449
      %10468 = vmatpush.xpose.msra.mxu0 %v10446
      %10469 = vmatpush.xpose.msra.mxu0 %v10443
      %10470 = vmatpush.xpose.msra.mxu0 %v10440
      %10471 = vmatpush.xpose.msra.mxu0 %v10437
      %10472 = vmatpush.xpose.msra.mxu0 %v10434
      %10473 = vmatmul.f32.gmra.mxu0 %v10431
      %v10474 = vpop.f32.mrf.mxu0
      %v10475 = vadd.f32 %v10322, %v10474
      %10476 = vdwg.mxu0
      %v10478 = vsel %vm511, %v10307, 0
      %v10481 = vsel %vm511, %v8964, 0
      %v10484 = vsel %vm511, %v8965, 0
      %v10487 = vsel %vm511, %v8966, 0
      %v10490 = vsel %vm511, %v8967, 0
      %v10493 = vsel %vm511, %v8968, 0
      %v10496 = vsel %vm511, %v8969, 0
      %v10499 = vsel %vm511, %v8970, 0
      %v10502 = vsel %vm511, %v8971, 0
      %10504 = vmatpush.xpose.msra.mxu0 0.0
      %10505 = vmatpush.xpose.msra.mxu0 0.0
      %10506 = vmatpush.xpose.msra.mxu0 0.0
      %10507 = vmatpush.xpose.msra.mxu0 0.0
      %10508 = vmatpush.xpose.msra.mxu0 0.0
      %10509 = vmatpush.xpose.msra.mxu0 0.0
      %10510 = vmatpush.xpose.msra.mxu0 0.0
      %10511 = vmatpush.xpose.msra.mxu0 0.0
      %10512 = vmatpush.xpose.msra.mxu0 %v10502
      %10513 = vmatpush.xpose.msra.mxu0 %v10499
      %10514 = vmatpush.xpose.msra.mxu0 %v10496
      %10515 = vmatpush.xpose.msra.mxu0 %v10493
      %10516 = vmatpush.xpose.msra.mxu0 %v10490
      %10517 = vmatpush.xpose.msra.mxu0 %v10487
      %10518 = vmatpush.xpose.msra.mxu0 %v10484
      %10519 = vmatpush.xpose.msra.mxu0 %v10481
      %10520 = vmatmul.f32.gmra.mxu0 %v10478
      %v10521 = vpop.f32.mrf.mxu0
      %v10522 = vadd.f32 %v10323, %v10521
      %10523 = vdwg.mxu0
      %v10525 = vsel %vm511, %v10308, 0
      %v10528 = vsel %vm511, %v8972, 0
      %v10531 = vsel %vm511, %v8973, 0
      %v10534 = vsel %vm511, %v8974, 0
      %v10537 = vsel %vm511, %v8975, 0
      %v10540 = vsel %vm511, %v8976, 0
      %v10543 = vsel %vm511, %v8977, 0
      %v10546 = vsel %vm511, %v8978, 0
      %v10549 = vsel %vm511, %v8979, 0
      %10551 = vmatpush.xpose.msra.mxu0 0.0
      %10552 = vmatpush.xpose.msra.mxu0 0.0
      %10553 = vmatpush.xpose.msra.mxu0 0.0
      %10554 = vmatpush.xpose.msra.mxu0 0.0
      %10555 = vmatpush.xpose.msra.mxu0 0.0
      %10556 = vmatpush.xpose.msra.mxu0 0.0
      %10557 = vmatpush.xpose.msra.mxu0 0.0
      %10558 = vmatpush.xpose.msra.mxu0 0.0
      %10559 = vmatpush.xpose.msra.mxu0 %v10549
      %10560 = vmatpush.xpose.msra.mxu0 %v10546
      %10561 = vmatpush.xpose.msra.mxu0 %v10543
      %10562 = vmatpush.xpose.msra.mxu0 %v10540
      %10563 = vmatpush.xpose.msra.mxu0 %v10537
      %10564 = vmatpush.xpose.msra.mxu0 %v10534
      %10565 = vmatpush.xpose.msra.mxu0 %v10531
      %10566 = vmatpush.xpose.msra.mxu0 %v10528
      %10567 = vmatmul.f32.gmra.mxu0 %v10525
      %v10568 = vpop.f32.mrf.mxu0
      %v10569 = vadd.f32 %v10324, %v10568
      %10570 = vdwg.mxu0
      %v10572 = vsel %vm511, %v10309, 0
      %v10575 = vsel %vm511, %v8980, 0
      %v10578 = vsel %vm511, %v8981, 0
      %v10581 = vsel %vm511, %v8982, 0
      %v10584 = vsel %vm511, %v8983, 0
      %v10587 = vsel %vm511, %v8984, 0
      %v10590 = vsel %vm511, %v8985, 0
      %v10593 = vsel %vm511, %v8986, 0
      %v10596 = vsel %vm511, %v8987, 0
      %10598 = vmatpush.xpose.msra.mxu0 0.0
      %10599 = vmatpush.xpose.msra.mxu0 0.0
      %10600 = vmatpush.xpose.msra.mxu0 0.0
      %10601 = vmatpush.xpose.msra.mxu0 0.0
      %10602 = vmatpush.xpose.msra.mxu0 0.0
      %10603 = vmatpush.xpose.msra.mxu0 0.0
      %10604 = vmatpush.xpose.msra.mxu0 0.0
      %10605 = vmatpush.xpose.msra.mxu0 0.0
      %10606 = vmatpush.xpose.msra.mxu0 %v10596
      %10607 = vmatpush.xpose.msra.mxu0 %v10593
      %10608 = vmatpush.xpose.msra.mxu0 %v10590
      %10609 = vmatpush.xpose.msra.mxu0 %v10587
      %10610 = vmatpush.xpose.msra.mxu0 %v10584
      %10611 = vmatpush.xpose.msra.mxu0 %v10581
      %10612 = vmatpush.xpose.msra.mxu0 %v10578
      %10613 = vmatpush.xpose.msra.mxu0 %v10575
      %10614 = vmatmul.f32.gmra.mxu0 %v10572
      %v10615 = vpop.f32.mrf.mxu0
      %v10616 = vadd.f32 %v10325, %v10615
      %10617 = vdwg.mxu0
      %v10619 = vsel %vm511, %v10310, 0
      %v10622 = vsel %vm511, %v8988, 0
      %v10625 = vsel %vm511, %v8989, 0
      %v10628 = vsel %vm511, %v8990, 0
      %v10631 = vsel %vm511, %v8991, 0
      %v10634 = vsel %vm511, %v8992, 0
      %v10637 = vsel %vm511, %v8993, 0
      %v10640 = vsel %vm511, %v8994, 0
      %v10643 = vsel %vm511, %v8995, 0
      %10645 = vmatpush.xpose.msra.mxu0 0.0
      %10646 = vmatpush.xpose.msra.mxu0 0.0
      %10647 = vmatpush.xpose.msra.mxu0 0.0
      %10648 = vmatpush.xpose.msra.mxu0 0.0
      %10649 = vmatpush.xpose.msra.mxu0 0.0
      %10650 = vmatpush.xpose.msra.mxu0 0.0
      %10651 = vmatpush.xpose.msra.mxu0 0.0
      %10652 = vmatpush.xpose.msra.mxu0 0.0
      %10653 = vmatpush.xpose.msra.mxu0 %v10643
      %10654 = vmatpush.xpose.msra.mxu0 %v10640
      %10655 = vmatpush.xpose.msra.mxu0 %v10637
      %10656 = vmatpush.xpose.msra.mxu0 %v10634
      %10657 = vmatpush.xpose.msra.mxu0 %v10631
      %10658 = vmatpush.xpose.msra.mxu0 %v10628
      %10659 = vmatpush.xpose.msra.mxu0 %v10625
      %10660 = vmatpush.xpose.msra.mxu0 %v10622
      %10661 = vmatmul.f32.gmra.mxu0 %v10619
      %v10662 = vpop.f32.mrf.mxu0
      %v10663 = vadd.f32 %v10326, %v10662
      %10664 = vdwg.mxu0
      %v10666 = vsel %vm511, %v10311, 0
      %v10669 = vsel %vm511, %v8996, 0
      %v10672 = vsel %vm511, %v8997, 0
      %v10675 = vsel %vm511, %v8998, 0
      %v10678 = vsel %vm511, %v8999, 0
      %v10681 = vsel %vm511, %v9000, 0
      %v10684 = vsel %vm511, %v9001, 0
      %v10687 = vsel %vm511, %v9002, 0
      %v10690 = vsel %vm511, %v9003, 0
      %10692 = vmatpush.xpose.msra.mxu0 0.0
      %10693 = vmatpush.xpose.msra.mxu0 0.0
      %10694 = vmatpush.xpose.msra.mxu0 0.0
      %10695 = vmatpush.xpose.msra.mxu0 0.0
      %10696 = vmatpush.xpose.msra.mxu0 0.0
      %10697 = vmatpush.xpose.msra.mxu0 0.0
      %10698 = vmatpush.xpose.msra.mxu0 0.0
      %10699 = vmatpush.xpose.msra.mxu0 0.0
      %10700 = vmatpush.xpose.msra.mxu0 %v10690
      %10701 = vmatpush.xpose.msra.mxu0 %v10687
      %10702 = vmatpush.xpose.msra.mxu0 %v10684
      %10703 = vmatpush.xpose.msra.mxu0 %v10681
      %10704 = vmatpush.xpose.msra.mxu0 %v10678
      %10705 = vmatpush.xpose.msra.mxu0 %v10675
      %10706 = vmatpush.xpose.msra.mxu0 %v10672
      %10707 = vmatpush.xpose.msra.mxu0 %v10669
      %10708 = vmatmul.f32.gmra.mxu0 %v10666
      %v10709 = vpop.f32.mrf.mxu0
      %v10710 = vadd.f32 %v10327, %v10709
      %10711 = vdwg.mxu0
      %v10713 = vsel %vm511, %v10312, 0
      %v10716 = vsel %vm511, %v9004, 0
      %v10719 = vsel %vm511, %v9005, 0
      %v10722 = vsel %vm511, %v9006, 0
      %v10725 = vsel %vm511, %v9007, 0
      %v10728 = vsel %vm511, %v9008, 0
      %v10731 = vsel %vm511, %v9009, 0
      %v10734 = vsel %vm511, %v9010, 0
      %v10737 = vsel %vm511, %v9011, 0
      %10739 = vmatpush.xpose.msra.mxu0 0.0
      %10740 = vmatpush.xpose.msra.mxu0 0.0
      %10741 = vmatpush.xpose.msra.mxu0 0.0
      %10742 = vmatpush.xpose.msra.mxu0 0.0
      %10743 = vmatpush.xpose.msra.mxu0 0.0
      %10744 = vmatpush.xpose.msra.mxu0 0.0
      %10745 = vmatpush.xpose.msra.mxu0 0.0
      %10746 = vmatpush.xpose.msra.mxu0 0.0
      %10747 = vmatpush.xpose.msra.mxu0 %v10737
      %10748 = vmatpush.xpose.msra.mxu0 %v10734
      %10749 = vmatpush.xpose.msra.mxu0 %v10731
      %10750 = vmatpush.xpose.msra.mxu0 %v10728
      %10751 = vmatpush.xpose.msra.mxu0 %v10725
      %10752 = vmatpush.xpose.msra.mxu0 %v10722
      %10753 = vmatpush.xpose.msra.mxu0 %v10719
      %10754 = vmatpush.xpose.msra.mxu0 %v10716
      %10755 = vmatmul.f32.gmra.mxu0 %v10713
      %v10756 = vpop.f32.mrf.mxu0
      %v10757 = vadd.f32 %v10328, %v10756
      %10758 = vdwg.mxu0
      %v10760 = vsel %vm511, %v10313, 0
      %v10763 = vsel %vm511, %v9012, 0
      %v10766 = vsel %vm511, %v9013, 0
      %v10769 = vsel %vm511, %v9014, 0
      %v10772 = vsel %vm511, %v9015, 0
      %v10775 = vsel %vm511, %v9016, 0
      %v10778 = vsel %vm511, %v9017, 0
      %v10781 = vsel %vm511, %v9018, 0
      %v10784 = vsel %vm511, %v9019, 0
      %10786 = vmatpush.xpose.msra.mxu0 0.0
      %10787 = vmatpush.xpose.msra.mxu0 0.0
      %10788 = vmatpush.xpose.msra.mxu0 0.0
      %10789 = vmatpush.xpose.msra.mxu0 0.0
      %10790 = vmatpush.xpose.msra.mxu0 0.0
      %10791 = vmatpush.xpose.msra.mxu0 0.0
      %10792 = vmatpush.xpose.msra.mxu0 0.0
      %10793 = vmatpush.xpose.msra.mxu0 0.0
      %10794 = vmatpush.xpose.msra.mxu0 %v10784
      %10795 = vmatpush.xpose.msra.mxu0 %v10781
      %10796 = vmatpush.xpose.msra.mxu0 %v10778
      %10797 = vmatpush.xpose.msra.mxu0 %v10775
      %10798 = vmatpush.xpose.msra.mxu0 %v10772
      %10799 = vmatpush.xpose.msra.mxu0 %v10769
      %10800 = vmatpush.xpose.msra.mxu0 %v10766
      %10801 = vmatpush.xpose.msra.mxu0 %v10763
      %10802 = vmatmul.f32.gmra.mxu0 %v10760
      %v10803 = vpop.f32.mrf.mxu0
      %v10804 = vadd.f32 %v10329, %v10803
      %10805 = vdwg.mxu0
      %v10807 = vsel %vm511, %v10314, 0
      %v10810 = vsel %vm511, %v9020, 0
      %v10813 = vsel %vm511, %v9021, 0
      %v10816 = vsel %vm511, %v9022, 0
      %v10819 = vsel %vm511, %v9023, 0
      %v10822 = vsel %vm511, %v9024, 0
      %v10825 = vsel %vm511, %v9025, 0
      %v10828 = vsel %vm511, %v9026, 0
      %v10831 = vsel %vm511, %v9027, 0
      %10833 = vmatpush.xpose.msra.mxu0 0.0
      %10834 = vmatpush.xpose.msra.mxu0 0.0
      %10835 = vmatpush.xpose.msra.mxu0 0.0
      %10836 = vmatpush.xpose.msra.mxu0 0.0
      %10837 = vmatpush.xpose.msra.mxu0 0.0
      %10838 = vmatpush.xpose.msra.mxu0 0.0
      %10839 = vmatpush.xpose.msra.mxu0 0.0
      %10840 = vmatpush.xpose.msra.mxu0 0.0
      %10841 = vmatpush.xpose.msra.mxu0 %v10831
      %10842 = vmatpush.xpose.msra.mxu0 %v10828
      %10843 = vmatpush.xpose.msra.mxu0 %v10825
      %10844 = vmatpush.xpose.msra.mxu0 %v10822
      %10845 = vmatpush.xpose.msra.mxu0 %v10819
      %10846 = vmatpush.xpose.msra.mxu0 %v10816
      %10847 = vmatpush.xpose.msra.mxu0 %v10813
      %10848 = vmatpush.xpose.msra.mxu0 %v10810
      %10849 = vmatmul.f32.gmra.mxu0 %v10807
      %v10850 = vpop.f32.mrf.mxu0
      %v10851 = vadd.f32 %v10330, %v10850
      %10852 = vdwg.mxu0
      %v10854 = vsel %vm511, %v10315, 0
      %v10857 = vsel %vm511, %v9028, 0
      %v10860 = vsel %vm511, %v9029, 0
      %v10863 = vsel %vm511, %v9030, 0
      %v10866 = vsel %vm511, %v9031, 0
      %v10869 = vsel %vm511, %v9032, 0
      %v10872 = vsel %vm511, %v9033, 0
      %v10875 = vsel %vm511, %v9034, 0
      %v10878 = vsel %vm511, %v9035, 0
      %10880 = vmatpush.xpose.msra.mxu0 0.0
      %10881 = vmatpush.xpose.msra.mxu0 0.0
      %10882 = vmatpush.xpose.msra.mxu0 0.0
      %10883 = vmatpush.xpose.msra.mxu0 0.0
      %10884 = vmatpush.xpose.msra.mxu0 0.0
      %10885 = vmatpush.xpose.msra.mxu0 0.0
      %10886 = vmatpush.xpose.msra.mxu0 0.0
      %10887 = vmatpush.xpose.msra.mxu0 0.0
      %10888 = vmatpush.xpose.msra.mxu0 %v10878
      %10889 = vmatpush.xpose.msra.mxu0 %v10875
      %10890 = vmatpush.xpose.msra.mxu0 %v10872
      %10891 = vmatpush.xpose.msra.mxu0 %v10869
      %10892 = vmatpush.xpose.msra.mxu0 %v10866
      %10893 = vmatpush.xpose.msra.mxu0 %v10863
      %10894 = vmatpush.xpose.msra.mxu0 %v10860
      %10895 = vmatpush.xpose.msra.mxu0 %v10857
      %10896 = vmatmul.f32.gmra.mxu0 %v10854
      %v10897 = vpop.f32.mrf.mxu0
      %v10898 = vadd.f32 %v10331, %v10897
      %10899 = vdwg.mxu0
      %v10901 = vsel %vm511, %v10316, 0
      %v10904 = vsel %vm511, %v9036, 0
      %v10907 = vsel %vm511, %v9037, 0
      %v10910 = vsel %vm511, %v9038, 0
      %v10913 = vsel %vm511, %v9039, 0
      %v10916 = vsel %vm511, %v9040, 0
      %v10919 = vsel %vm511, %v9041, 0
      %v10922 = vsel %vm511, %v9042, 0
      %v10925 = vsel %vm511, %v9043, 0
      %10927 = vmatpush.xpose.msra.mxu0 0.0
      %10928 = vmatpush.xpose.msra.mxu0 0.0
      %10929 = vmatpush.xpose.msra.mxu0 0.0
      %10930 = vmatpush.xpose.msra.mxu0 0.0
      %10931 = vmatpush.xpose.msra.mxu0 0.0
      %10932 = vmatpush.xpose.msra.mxu0 0.0
      %10933 = vmatpush.xpose.msra.mxu0 0.0
      %10934 = vmatpush.xpose.msra.mxu0 0.0
      %10935 = vmatpush.xpose.msra.mxu0 %v10925
      %10936 = vmatpush.xpose.msra.mxu0 %v10922
      %10937 = vmatpush.xpose.msra.mxu0 %v10919
      %10938 = vmatpush.xpose.msra.mxu0 %v10916
      %10939 = vmatpush.xpose.msra.mxu0 %v10913
      %10940 = vmatpush.xpose.msra.mxu0 %v10910
      %10941 = vmatpush.xpose.msra.mxu0 %v10907
      %10942 = vmatpush.xpose.msra.mxu0 %v10904
      %10943 = vmatmul.f32.gmra.mxu0 %v10901
      %v10944 = vpop.f32.mrf.mxu0
      %v10945 = vadd.f32 %v10332, %v10944
      %10946 = vdwg.mxu0
      %v10948 = vsel %vm511, %v10317, 0
      %v10951 = vsel %vm511, %v9044, 0
      %v10954 = vsel %vm511, %v9045, 0
      %v10957 = vsel %vm511, %v9046, 0
      %v10960 = vsel %vm511, %v9047, 0
      %v10963 = vsel %vm511, %v9048, 0
      %v10966 = vsel %vm511, %v9049, 0
      %v10969 = vsel %vm511, %v9050, 0
      %v10972 = vsel %vm511, %v9051, 0
      %10974 = vmatpush.xpose.msra.mxu0 0.0
      %10975 = vmatpush.xpose.msra.mxu0 0.0
      %10976 = vmatpush.xpose.msra.mxu0 0.0
      %10977 = vmatpush.xpose.msra.mxu0 0.0
      %10978 = vmatpush.xpose.msra.mxu0 0.0
      %10979 = vmatpush.xpose.msra.mxu0 0.0
      %10980 = vmatpush.xpose.msra.mxu0 0.0
      %10981 = vmatpush.xpose.msra.mxu0 0.0
      %10982 = vmatpush.xpose.msra.mxu0 %v10972
      %10983 = vmatpush.xpose.msra.mxu0 %v10969
      %10984 = vmatpush.xpose.msra.mxu0 %v10966
      %10985 = vmatpush.xpose.msra.mxu0 %v10963
      %10986 = vmatpush.xpose.msra.mxu0 %v10960
      %10987 = vmatpush.xpose.msra.mxu0 %v10957
      %10988 = vmatpush.xpose.msra.mxu0 %v10954
      %10989 = vmatpush.xpose.msra.mxu0 %v10951
      %10990 = vmatmul.f32.gmra.mxu0 %v10948
      %v10991 = vpop.f32.mrf.mxu0
      %v10992 = vadd.f32 %v10333, %v10991
      %10993 = vdwg.mxu0
      %v10995 = vsel %vm511, %v10318, 0
      %v10998 = vsel %vm511, %v9052, 0
      %v11001 = vsel %vm511, %v9053, 0
      %v11004 = vsel %vm511, %v9054, 0
      %v11007 = vsel %vm511, %v9055, 0
      %v11010 = vsel %vm511, %v9056, 0
      %v11013 = vsel %vm511, %v9057, 0
      %v11016 = vsel %vm511, %v9058, 0
      %v11019 = vsel %vm511, %v9059, 0
      %11021 = vmatpush.xpose.msra.mxu0 0.0
      %11022 = vmatpush.xpose.msra.mxu0 0.0
      %11023 = vmatpush.xpose.msra.mxu0 0.0
      %11024 = vmatpush.xpose.msra.mxu0 0.0
      %11025 = vmatpush.xpose.msra.mxu0 0.0
      %11026 = vmatpush.xpose.msra.mxu0 0.0
      %11027 = vmatpush.xpose.msra.mxu0 0.0
      %11028 = vmatpush.xpose.msra.mxu0 0.0
      %11029 = vmatpush.xpose.msra.mxu0 %v11019
      %11030 = vmatpush.xpose.msra.mxu0 %v11016
      %11031 = vmatpush.xpose.msra.mxu0 %v11013
      %11032 = vmatpush.xpose.msra.mxu0 %v11010
      %11033 = vmatpush.xpose.msra.mxu0 %v11007
      %11034 = vmatpush.xpose.msra.mxu0 %v11004
      %11035 = vmatpush.xpose.msra.mxu0 %v11001
      %11036 = vmatpush.xpose.msra.mxu0 %v10998
      %11037 = vmatmul.f32.gmra.mxu0 %v10995
      %v11038 = vpop.f32.mrf.mxu0
      %v11039 = vadd.f32 %v10334, %v11038
      %11040 = vdwg.mxu0
      %v11042 = vsel %vm511, %v10319, 0
      %v11045 = vsel %vm511, %v9060, 0
      %v11048 = vsel %vm511, %v9061, 0
      %v11051 = vsel %vm511, %v9062, 0
      %v11054 = vsel %vm511, %v9063, 0
      %v11057 = vsel %vm511, %v9064, 0
      %v11060 = vsel %vm511, %v9065, 0
      %v11063 = vsel %vm511, %v9066, 0
      %v11066 = vsel %vm511, %v9067, 0
      %11068 = vmatpush.xpose.msra.mxu0 0.0
      %11069 = vmatpush.xpose.msra.mxu0 0.0
      %11070 = vmatpush.xpose.msra.mxu0 0.0
      %11071 = vmatpush.xpose.msra.mxu0 0.0
      %11072 = vmatpush.xpose.msra.mxu0 0.0
      %11073 = vmatpush.xpose.msra.mxu0 0.0
      %11074 = vmatpush.xpose.msra.mxu0 0.0
      %11075 = vmatpush.xpose.msra.mxu0 0.0
      %11076 = vmatpush.xpose.msra.mxu0 %v11066
      %11077 = vmatpush.xpose.msra.mxu0 %v11063
      %11078 = vmatpush.xpose.msra.mxu0 %v11060
      %11079 = vmatpush.xpose.msra.mxu0 %v11057
      %11080 = vmatpush.xpose.msra.mxu0 %v11054
      %11081 = vmatpush.xpose.msra.mxu0 %v11051
      %11082 = vmatpush.xpose.msra.mxu0 %v11048
      %11083 = vmatpush.xpose.msra.mxu0 %v11045
      %11084 = vmatmul.f32.gmra.mxu0 %v11042
      %v11085 = vpop.f32.mrf.mxu0
      %v11086 = vadd.f32 %v10335, %v11085
      %11087 = vdwg.mxu0
      %v11088 = vmax.f32 %v10381, 0.0
      %v11089 = vmax.f32 %v10428, 0.0
      %v11090 = vmax.f32 %v10475, 0.0
      %v11091 = vmax.f32 %v10522, 0.0
      %v11092 = vmax.f32 %v10569, 0.0
      %v11093 = vmax.f32 %v10616, 0.0
      %v11094 = vmax.f32 %v10663, 0.0
      %v11095 = vmax.f32 %v10710, 0.0
      %v11096 = vmax.f32 %v10757, 0.0
      %v11097 = vmax.f32 %v10804, 0.0
      %v11098 = vmax.f32 %v10851, 0.0
      %v11099 = vmax.f32 %v10898, 0.0
      %v11100 = vmax.f32 %v10945, 0.0
      %v11101 = vmax.f32 %v10992, 0.0
      %v11102 = vmax.f32 %v11039, 0.0
      %v11103 = vmax.f32 %v11086, 0.0
      %11105 = vset.pattern.permute.xlu0 1
      %11106 = vperm.xlu0 %11105, %v250
      %v11107 = vpop.permute.xlu0 %11106
      %v11110 = vsel %vm511, %v249, 0
      %v11113 = vsel %vm511, %v11088, 0
      %v11116 = vsel %vm511, %v11089, 0
      %v11119 = vsel %vm511, %v11090, 0
      %v11122 = vsel %vm511, %v11091, 0
      %v11125 = vsel %vm511, %v11092, 0
      %v11128 = vsel %vm511, %v11093, 0
      %v11131 = vsel %vm511, %v11094, 0
      %v11134 = vsel %vm511, %v11095, 0
      %v11137 = vsel %vm511, %v11096, 0
      %v11140 = vsel %vm511, %v11097, 0
      %v11143 = vsel %vm511, %v11098, 0
      %v11146 = vsel %vm511, %v11099, 0
      %v11149 = vsel %vm511, %v11100, 0
      %v11152 = vsel %vm511, %v11101, 0
      %v11155 = vsel %vm511, %v11102, 0
      %v11158 = vsel %vm511, %v11103, 0
      %11160 = vmatpush.xpose.msra.mxu0 %v11158
      %11161 = vmatpush.xpose.msra.mxu0 %v11155
      %11162 = vmatpush.xpose.msra.mxu0 %v11152
      %11163 = vmatpush.xpose.msra.mxu0 %v11149
      %11164 = vmatpush.xpose.msra.mxu0 %v11146
      %11165 = vmatpush.xpose.msra.mxu0 %v11143
      %11166 = vmatpush.xpose.msra.mxu0 %v11140
      %11167 = vmatpush.xpose.msra.mxu0 %v11137
      %11168 = vmatpush.xpose.msra.mxu0 %v11134
      %11169 = vmatpush.xpose.msra.mxu0 %v11131
      %11170 = vmatpush.xpose.msra.mxu0 %v11128
      %11171 = vmatpush.xpose.msra.mxu0 %v11125
      %11172 = vmatpush.xpose.msra.mxu0 %v11122
      %11173 = vmatpush.xpose.msra.mxu0 %v11119
      %11174 = vmatpush.xpose.msra.mxu0 %v11116
      %11175 = vmatpush.xpose.msra.mxu0 %v11113
      %11176 = vmatmul.f32.gmra.mxu0 %v11110
      %v11177 = vpop.f32.mrf.mxu0
      %v11178 = vadd.f32 %v11107, %v11177
      %11179 = vdwg.mxu0
      %11180 = vst [vmem:[%s213] sm:$0x1] %v11178
      %p11181 = scmp.lt.s32.totalorder %s15, 1
      %s11182 = scalar_select %p11181, %s15, 1
      %s11183 = scalar_lea.vmem %s4, %s11182
      // Predicated region
      $region37: #{meta_forward_batch.1} parent=35 // pred_check
        %p11184 = pneg %p127
      $region38: #{meta_forward_batch.1} parent=35 // pred_check_branch
        %11186 = sbr.rel (%p11184) target = $region40
      $region39: #{meta_forward_batch.1} parent=35 // pred_region
        _
      $region40: #{meta_forward_batch.1} parent=35 // pred_fallthru
        _
    $region36: #{meta_forward_batch.1} parent=5 // pred_fallthru
      _
    %p11187 = scmp.le.s32.totalorder 2, %s10
    // Predicated region
    $region41: #{meta_forward_batch.1} parent=5 // pred_check
      %p11188 = pneg %p11187
    $region42: #{meta_forward_batch.1} parent=5 // pred_check_branch
      %11190 = sbr.rel (%p11188) target = $region44
    $region43: #{meta_forward_batch.1} parent=5 // pred_region
      %s11191 = ssub.s32 %s10, 2
      // Predicated region
      $region45: #{meta_forward_batch.1} parent=43 // pred_check
        %p11192 = pneg %p133
      $region46: #{meta_forward_batch.1} parent=43 // pred_check_branch
        %11194 = sbr.rel (%p11192) target = $region48
      $region47: #{meta_forward_batch.1} parent=43 // pred_region
        %p11195 = scmp.lt.s32.totalorder %s16, 1
        %s11196 = scalar_select %p11195, %s16, 1
        %s11197 = scalar_lea.vmem %s4, %s11196
      $region48: #{meta_forward_batch.1} parent=43 // pred_fallthru
        _
    $region44: #{meta_forward_batch.1} parent=5 // pred_fallthru
      _
  $region6: #{meta_forward_batch.1} parent=0 // loop_footer
    %s14 = sadd.s32 1, %s10
  $region7: #{meta_forward_batch.1} parent=0 // loop_footer_branch
    %9 = sbr.rel target = $region3
  $region8: #{meta_forward_batch.1} parent=0 // loop_exit
    _

</llo_original>
